<compile_context>
chip_gen: v6e
topology: v6e:2x2x1
jax: 0.10.0
libtpu: 0.0.40
codegen_flags: <defaults>
</compile_context>

<pallas_src>
import functools

import numpy as np
import jax
import jax.numpy as jnp
from jax import lax
from jax.experimental import pallas as pl
from jax.experimental.pallas import tpu as pltpu

NUM_Z = 100          # torch.nn.Embedding(100, 2)
D_ATTR = 2           # Irreps('0e+0e').dim
D_POS = 3            # Irreps('1e').dim
D_IN = D_ATTR + D_POS   # 5
D_MID = 6            # Irreps('1e+1o').dim
D_OUT = 3            # Irreps('1e').dim


# ---------------------- Wigner 3j blocks (real basis) ----------------------
def _w3j_011():
    return np.eye(3, dtype=np.float64)[None, :, :] / np.sqrt(3.0)


def _w3j_101():
    return np.eye(3, dtype=np.float64)[:, None, :] / np.sqrt(3.0)


def _w3j_111():
    eps = np.zeros((3, 3, 3), dtype=np.float64)
    eps[0, 1, 2] = eps[1, 2, 0] = eps[2, 0, 1] = 1.0
    eps[0, 2, 1] = eps[2, 1, 0] = eps[1, 0, 2] = -1.0
    return eps / np.sqrt(6.0)


# ------------------ FCTP weight tensors (numpy builders) -------------------
def _tp_first_W(w):
    # FCTP('0e+0e+1e', '0e+0e+1e', '1e+1o'): 5 paths into 1e, none into 1o.
    a = np.sqrt(3.0 / 5.0)  # irrep 'component' / path 'element' normalization
    c011, c101, c111 = _w3j_011(), _w3j_101(), _w3j_111()
    W = np.zeros((D_IN, D_IN, D_MID))
    W[0:1, 2:5, 0:3] += a * w[0] * c011
    W[1:2, 2:5, 0:3] += a * w[1] * c011
    W[2:5, 0:1, 0:3] += a * w[2] * c101
    W[2:5, 1:2, 0:3] += a * w[3] * c101
    W[2:5, 2:5, 0:3] += a * w[4] * c111
    return W


def _tp_mid_W(w):
    # FCTP('1e+1o', '0e+0e+1e', '1e+1o'): 3 paths into 1e, 3 into 1o.
    c101, c111 = _w3j_101(), _w3j_111()
    W = np.zeros((D_MID, D_IN, D_MID))
    W[0:3, 0:1, 0:3] += w[0] * c101
    W[0:3, 1:2, 0:3] += w[1] * c101
    W[0:3, 2:5, 0:3] += w[2] * c111
    W[3:6, 0:1, 3:6] += w[3] * c101
    W[3:6, 1:2, 3:6] += w[4] * c101
    W[3:6, 2:5, 3:6] += w[5] * c111
    return W


def _tp_gate_W(w):
    # gate: FCTP('1e+1o', '0e+0e+1e', '1e'): 3 paths into 1e.
    c101, c111 = _w3j_101(), _w3j_111()
    W = np.zeros((D_MID, D_IN, D_OUT))
    W[0:3, 0:1, :] += w[0] * c101
    W[0:3, 1:2, :] += w[1] * c101
    W[0:3, 2:5, :] += w[2] * c111
    return W


def _tp_patterns():
    """Static nonzero supports (i, j, k) of the six TP weight tensors."""
    ws = ([_tp_first_W(np.ones(5))]
          + [_tp_mid_W(np.ones(6))] * 4
          + [_tp_gate_W(np.ones(3))])
    return [np.nonzero(w) for w in ws]


# ------------------------------ parameters ---------------------------------
def init_params(key):
    ks = jax.random.split(key, 12)
    f32 = jnp.float32

    emb = jax.random.normal(ks[0], (NUM_Z, D_ATTR), f32)

    def linear(k, fan_in, fan_out):
        kw, kb = jax.random.split(k)
        lim = 1.0 / np.sqrt(fan_in)
        w = jax.random.uniform(kw, (fan_in, fan_out), f32, -lim, lim)
        b = jax.random.uniform(kb, (1, fan_out), f32, -lim, lim)
        return w, b

    w1, b1 = linear(ks[1], D_POS, 256)
    w2, b2 = linear(ks[2], 256, 512)
    w3, b3 = linear(ks[3], 512, 256)
    w4, b4 = linear(ks[4], 256, D_POS)
    wf, bf = linear(ks[5], D_OUT, 3)

    # lane-placement projection realising the pos_t half of concat([z_emb, pos_t])
    p2 = np.zeros((D_POS, D_IN), np.float32)
    p2[:, D_ATTR:] = np.eye(D_POS)

    def draw(k, n):
        return np.asarray(jax.random.normal(k, (n,)), np.float64)

    tps3d = ([_tp_first_W(draw(ks[6], 5))]
             + [_tp_mid_W(draw(ks[7 + i], 6)) for i in range(4)]
             + [_tp_gate_W(draw(ks[11], 3))])

    return dict(emb=emb, p2=jnp.asarray(p2),
                w1=w1, b1=b1, w2=w2, b2=b2, w3=w3, b3=b3, w4=w4, b4=b4,
                tps3d=[jnp.asarray(t, jnp.float32) for t in tps3d], wf=wf, bf=bf)


# -------------------------------- kernel -----------------------------------
def _make_kernel(term_lists, d_outs):
    """Kernel factory; term_lists / d_outs are static Python structure."""

    def kernel(coef_ref,                       # SMEM  [n_terms]  f32
               zp_ref, pos_ref, segt_ref,      # VMEM  [5,TN] [3,TN] [B,TN]
               w1_ref, b1_ref, w2_ref, b2_ref, w3_ref, b3_ref, w4p2_ref,
               o_ref, acc_ref):
        step = pl.program_id(1)                # node-tile reduction axis of this core

        @pl.when(step == 0)
        def _init():
            acc_ref[...] = jnp.zeros_like(acc_ref)

        dot = functools.partial(jnp.dot, preferred_element_type=jnp.float32)
        bf16 = jnp.bfloat16

        # pos MLP, feature-major ([features, nodes]): 3 -> 256 -> 512 -> 256 (ReLU).
        # bf16 MXU operands, f32 accumulation; bias add + ReLU on the f32 accumulator.
        h = jnp.maximum(dot(w1_ref[...], pos_ref[...].astype(bf16)) + b1_ref[...], 0.0)
        h = jnp.maximum(dot(w2_ref[...], h.astype(bf16)) + b2_ref[...], 0.0)
        h = jnp.maximum(dot(w3_ref[...], h.astype(bf16)) + b3_ref[...], 0.0)

        # x = concat([z_emb, pos_t], -1) (transposed): zp already holds z_emb in rows
        # 0:2 and the folded b4 bias in rows 2:5; the last MLP layer (w4 @ p2)^T
        # writes the pos_t part directly into rows 2:5.
        x = zp_ref[...] + dot(w4p2_ref[...], h.astype(bf16))          # [5, TN] f32

        # ---- tensor-product chain, lane-major, pure VPU ----
        # out_T[k, n] = sum_{i,j} W[i,j,k] * left_T[i, n] * x_T[j, n]
        x_rows = [x[j:j + 1, :] for j in range(D_IN)]
        zero_row = jnp.zeros_like(x_rows[0])

        left_rows = x_rows
        left_zero = [False] * D_IN
        for terms, d_out in zip(term_lists, d_outs):
            new_rows = [None] * d_out
            for (i, j, k, t) in terms:
                if left_zero[i]:
                    continue                    # statically-known zero input row
                term = (coef_ref[t] * left_rows[i]) * x_rows[j]
                new_rows[k] = term if new_rows[k] is None else new_rows[k] + term
            left_zero = [r is None for r in new_rows]
            left_rows = [zero_row if r is None else r for r in new_rows]

        out = jnp.concatenate(left_rows, axis=0)                       # [3, TN] f32

        # scatter_add over graphs: acc[b,k] += sum_n seg_t[b,n] * out[k,n]
        # (padded nodes carry an all-zero seg column, so they contribute nothing)
        acc_ref[...] += lax.dot_general(
            segt_ref[...], out, (((1,), (1,)), ((), ())),
            preferred_element_type=jnp.float32)

        # Emit this core's partial graph sums only on its last node tile.  The output
        # block index depends only on the OUTER (core) grid axis, so Pallas flushes
        # the block after the inner reduction loop finishes -- do not reorder the grid
        # or make the output index depend on the inner axis.
        @pl.when(step == pl.num_programs(1) - 1)
        def _store():
            o_ref[...] = acc_ref[...][None]

    return kernel


# ------------------------------- wrapper ------------------------------------
def _default_num_cores():
    """2-way 'parallel' core axis only on multi-TensorCore chips."""
    try:
        kind = jax.devices()[0].device_kind.lower()
    except Exception:
        return 1
    return 2 if any(t in kind for t in ("v7", "v4", "v5p")) else 1


def e3nn_forward(z, pos, batch, params, *, num_graphs, tile_nodes=512, num_cores=None):
    if num_cores is None:
        num_cores = _default_num_cores()
    n = pos.shape[0]
    f32, bf16 = jnp.float32, jnp.bfloat16

    # Pad the node dimension so it splits evenly over cores * tiles.
    chunk = tile_nodes * num_cores
    n_pad = ((n + chunk - 1) // chunk) * chunk
    pad = n_pad - n
    tiles_per_core = n_pad // chunk

    # ---- host/XLA-side prep; everything node-lane-major ([feature, node]) ----
    b4p2 = params["b4"] @ params["p2"]                   # [1, 5] (cols 0:2 are zero)
    z_emb = params["emb"][z]                             # [N, 2] embedding gather
    zp = jnp.pad(z_emb, ((0, pad), (0, D_IN - D_ATTR))) + b4p2     # b4 folded in
    zp_t = zp.T                                          # [5, Np]
    pos_t = jnp.pad(pos, ((0, pad), (0, 0))).T           # [3, Np]
    # padded nodes get index == num_graphs -> all-zero one-hot column.
    # NOTE: real nodes must have batch ids < num_graphs (out-of-range ids silently drop).
    batch_p = jnp.pad(batch, (0, pad), constant_values=num_graphs)
    seg_t = jax.nn.one_hot(batch_p, num_graphs, dtype=f32, axis=0)   # [B, Np], lane-dense
    # TODO(synk): for num_graphs in the hundreds, pass `batch` via scalar prefetch
    # instead of materializing the [B, Np] one-hot.

    # Sparse tensor-product coefficients: static (i,j,k) support, traced values.
    patterns = _tp_patterns()
    term_lists, coef_parts, off = [], [], 0
    for W, (ii, jj, kk) in zip(params["tps3d"], patterns):
        coef_parts.append(W[ii, jj, kk])
        term_lists.append([(int(i), int(j), int(k), off + t)
                           for t, (i, j, k) in enumerate(zip(ii, jj, kk))])
        off += len(ii)
    coefs = jnp.concatenate(coef_parts).astype(f32)      # SMEM payload
    d_outs = [int(W.shape[-1]) for W in params["tps3d"]]

    # Transposed MLP weights; bf16 MXU operands, f32 biases.  (w4 @ p2) folds the
    # lane placement of pos_t into the last MLP matmul.
    weights = (params["w1"].T.astype(bf16), params["b1"].T,
               params["w2"].T.astype(bf16), params["b2"].T,
               params["w3"].T.astype(bf16), params["b3"].T,
               (params["w4"] @ params["p2"]).T.astype(bf16))

    node_map = lambda c, i: (0, c * tiles_per_core + i)
    const_map = lambda c, i: (0, 0)

    grid_spec = pltpu.PrefetchScalarGridSpec(
        num_scalar_prefetch=0,
        grid=(num_cores, tiles_per_core),        # (parallel cores, node-tile reduction)
        in_specs=[pl.BlockSpec(memory_space=pltpu.MemorySpace.SMEM)]      # coefs
                + [pl.BlockSpec((D_IN, tile_nodes), node_map),            # zp_t
                   pl.BlockSpec((D_POS, tile_nodes), node_map),           # pos_t
                   pl.BlockSpec((num_graphs, tile_nodes), node_map)]      # seg_t
                + [pl.BlockSpec(w.shape, const_map) for w in weights],
        out_specs=pl.BlockSpec((1, num_graphs, 3), lambda c, i: (c, 0, 0)),
        scratch_shapes=[pltpu.VMEM((num_graphs, 3), jnp.float32)],
    )

    partials = pl.pallas_call(
        _make_kernel(term_lists, d_outs),
        out_shape=jax.ShapeDtypeStruct((num_cores, num_graphs, 3), jnp.float32),
        grid_spec=grid_spec,
        compiler_params=pltpu.CompilerParams(
            dimension_semantics=("parallel", "arbitrary")),
    )(coefs, zp_t, pos_t, seg_t, *weights)

    # Cross-core reduction + final Linear(3,3) are negligible; run them in XLA.
    summed = partials.sum(axis=0)                        # [B, 3]
    return summed @ params["wf"] + params["bf"]


# -------------------------- pure-JAX reference ------------------------------
def reference_forward(z, pos, batch, params, num_graphs):
    # Mirrors the kernel's precision: bf16 MLP matmul operands with f32 accumulation,
    # exact-f32 elementwise tensor products, f32 scatter + final linear.
    bf16 = jnp.bfloat16

    def mm(a, w):
        return jnp.dot(a.astype(bf16), w.astype(bf16),
                       preferred_element_type=jnp.float32)

    z_emb = params["emb"][z]
    h = jax.nn.relu(mm(pos, params["w1"]) + params["b1"])
    h = jax.nn.relu(mm(h, params["w2"]) + params["b2"])
    h = jax.nn.relu(mm(h, params["w3"]) + params["b3"])
    pos_t = mm(h, params["w4"]) + params["b4"]
    x = jnp.concatenate([z_emb, pos_t], axis=-1)
    out = x
    for W in params["tps3d"]:
        # exact f32 bilinear map (pure elementwise + sum, like the kernel's VPU path)
        out = (out[:, :, None, None] * x[:, None, :, None] * W[None]).sum(axis=(1, 2))
    seg = jax.nn.one_hot(batch, num_graphs, dtype=jnp.float32)
    summed = seg.T @ out
    return summed @ params["wf"] + params["bf"]


if __name__ == "__main__":
    N, B = 600, 4                       # exercises padding + multi-step reduction
    key = jax.random.PRNGKey(0)
    k_param, k_z, k_pos = jax.random.split(key, 3)

    params = init_params(k_param)
    z = jax.random.randint(k_z, (N,), 0, NUM_Z, dtype=jnp.int32)
    pos = jax.random.normal(k_pos, (N, D_POS), jnp.float32)
    batch = jnp.repeat(jnp.arange(B, dtype=jnp.int32), N // B)

    out = e3nn_forward(z, pos, batch, params, num_graphs=B, tile_nodes=512)
    out = jax.block_until_ready(out)

    ref = reference_forward(z, pos, batch, params, B)
    assert out.shape == (B, 3)
    assert jnp.allclose(out, ref, rtol=1e-3, atol=1e-2), (out, ref)
    print("KERNEL_OK")
</pallas_src>

<mosaic_0001>
module attributes {stable_mosaic.version = 11 : i64} {
  func.func @kernel(%arg0: i32, %arg1: i32, %arg2: memref<126xf32, #tpu.memory_space<smem>>, %arg3: memref<5x512xf32, #tpu.memory_space<vmem>>, %arg4: memref<3x512xf32, #tpu.memory_space<vmem>>, %arg5: memref<4x512xf32, #tpu.memory_space<vmem>>, %arg6: memref<256x3xbf16, #tpu.memory_space<vmem>>, %arg7: memref<256x1xf32, #tpu.memory_space<vmem>>, %arg8: memref<512x256xbf16, #tpu.memory_space<vmem>>, %arg9: memref<512x1xf32, #tpu.memory_space<vmem>>, %arg10: memref<256x512xbf16, #tpu.memory_space<vmem>>, %arg11: memref<256x1xf32, #tpu.memory_space<vmem>>, %arg12: memref<5x256xbf16, #tpu.memory_space<vmem>>, %arg13: memref<1x4x3xf32, #tpu.memory_space<vmem>>, %arg14: memref<4x3xf32, #tpu.memory_space<vmem>>) attributes {dimension_semantics = [#tpu.dimension_semantics<parallel>, #tpu.dimension_semantics<arbitrary>], iteration_bounds = array<i64: 1, 2>, scalar_prefetch = 0 : i64, scratch_operands = 1 : i64, tpu.core_type = #tpu.core_type<tc>, window_params = [{transform_indices = @transform_0, window_bounds = array<i64: 126>}, {transform_indices = @transform_1, window_bounds = array<i64: 5, 512>}, {transform_indices = @transform_2, window_bounds = array<i64: 3, 512>}, {transform_indices = @transform_3, window_bounds = array<i64: 4, 512>}, {pipeline_mode = #tpu.pipeline_mode<synchronous>, transform_indices = @transform_4, window_bounds = array<i64: 256, 3>}, {pipeline_mode = #tpu.pipeline_mode<synchronous>, transform_indices = @transform_5, window_bounds = array<i64: 256, 1>}, {pipeline_mode = #tpu.pipeline_mode<synchronous>, transform_indices = @transform_6, window_bounds = array<i64: 512, 256>}, {pipeline_mode = #tpu.pipeline_mode<synchronous>, transform_indices = @transform_7, window_bounds = array<i64: 512, 1>}, {pipeline_mode = #tpu.pipeline_mode<synchronous>, transform_indices = @transform_8, window_bounds = array<i64: 256, 512>}, {pipeline_mode = #tpu.pipeline_mode<synchronous>, transform_indices = @transform_9, window_bounds = array<i64: 256, 1>}, {pipeline_mode = #tpu.pipeline_mode<synchronous>, transform_indices = @transform_10, window_bounds = array<i64: 5, 256>}, {transform_indices = @transform_11, window_bounds = array<i64: 1, 4, 3>}]} {
    %c0_i32 = arith.constant 0 : i32
    %0 = arith.cmpi eq, %arg1, %c0_i32 : i32
    %1 = arith.extui %0 : i1 to i32
    %c0_i32_0 = arith.constant 0 : i32
    %2 = arith.cmpi ne, %1, %c0_i32_0 : i32
    scf.if %2 {
      %cst_33 = arith.constant 0.000000e+00 : f32
      %419 = vector.broadcast %cst_33 : f32 to vector<4x3xf32>
      %c0_34 = arith.constant 0 : index
      %c0_35 = arith.constant 0 : index
      %420 = vector.load %arg14[%c0_34, %c0_35] : memref<4x3xf32, #tpu.memory_space<vmem>>, vector<4x3xf32>
      tpu.vector_store %arg14[%c0_34, %c0_35], %419 {strides = array<i32>} : memref<4x3xf32, #tpu.memory_space<vmem>>, vector<4x3xf32>,
    } else {
    }
    %c0 = arith.constant 0 : index
    %c0_1 = arith.constant 0 : index
    %3 = vector.load %arg6[%c0, %c0_1] : memref<256x3xbf16, #tpu.memory_space<vmem>>, vector<256x3xbf16>
    %c0_2 = arith.constant 0 : index
    %c0_3 = arith.constant 0 : index
    %4 = vector.load %arg4[%c0_2, %c0_3] : memref<3x512xf32, #tpu.memory_space<vmem>>, vector<3x512xf32>
    %5 = arith.truncf %4 : vector<3x512xf32> to vector<3x512xbf16>
    %cst = arith.constant dense<0.000000e+00> : vector<256x512xf32>
    %6 = tpu.matmul %3, %5, %cst {dimension_numbers = #tpu.dot_dimension_numbers<[1], [0], [0], [1], [0, 0, 1, 1], [], []>} : vector<256x3xbf16>, vector<3x512xbf16>, vector<256x512xf32> -> vector<256x512xf32>
    %c0_4 = arith.constant 0 : index
    %c0_5 = arith.constant 0 : index
    %7 = vector.load %arg7[%c0_4, %c0_5] : memref<256x1xf32, #tpu.memory_space<vmem>>, vector<256x1xf32>
    %8 = vector.broadcast %7 : vector<256x1xf32> to vector<256x512xf32>
    %9 = arith.addf %6, %8 : vector<256x512xf32>
    %cst_6 = arith.constant 0.000000e+00 : f32
    %10 = vector.broadcast %cst_6 : f32 to vector<256x512xf32>
    %11 = arith.maximumf %9, %10 : vector<256x512xf32>
    %c0_7 = arith.constant 0 : index
    %c0_8 = arith.constant 0 : index
    %12 = vector.load %arg8[%c0_7, %c0_8] : memref<512x256xbf16, #tpu.memory_space<vmem>>, vector<512x256xbf16>
    %13 = arith.truncf %11 : vector<256x512xf32> to vector<256x512xbf16>
    %cst_9 = arith.constant dense<0.000000e+00> : vector<512x512xf32>
    %14 = tpu.matmul %12, %13, %cst_9 {dimension_numbers = #tpu.dot_dimension_numbers<[1], [0], [0], [1], [0, 0, 1, 1], [], []>} : vector<512x256xbf16>, vector<256x512xbf16>, vector<512x512xf32> -> vector<512x512xf32>
    %c0_10 = arith.constant 0 : index
    %c0_11 = arith.constant 0 : index
    %15 = vector.load %arg9[%c0_10, %c0_11] : memref<512x1xf32, #tpu.memory_space<vmem>>, vector<512x1xf32>
    %16 = vector.broadcast %15 : vector<512x1xf32> to vector<512x512xf32>
    %17 = arith.addf %14, %16 : vector<512x512xf32>
    %cst_12 = arith.constant 0.000000e+00 : f32
    %18 = vector.broadcast %cst_12 : f32 to vector<512x512xf32>
    %19 = arith.maximumf %17, %18 : vector<512x512xf32>
    %c0_13 = arith.constant 0 : index
    %c0_14 = arith.constant 0 : index
    %20 = vector.load %arg10[%c0_13, %c0_14] : memref<256x512xbf16, #tpu.memory_space<vmem>>, vector<256x512xbf16>
    %21 = arith.truncf %19 : vector<512x512xf32> to vector<512x512xbf16>
    %cst_15 = arith.constant dense<0.000000e+00> : vector<256x512xf32>
    %22 = tpu.matmul %20, %21, %cst_15 {dimension_numbers = #tpu.dot_dimension_numbers<[1], [0], [0], [1], [0, 0, 1, 1], [], []>} : vector<256x512xbf16>, vector<512x512xbf16>, vector<256x512xf32> -> vector<256x512xf32>
    %c0_16 = arith.constant 0 : index
    %c0_17 = arith.constant 0 : index
    %23 = vector.load %arg11[%c0_16, %c0_17] : memref<256x1xf32, #tpu.memory_space<vmem>>, vector<256x1xf32>
    %24 = vector.broadcast %23 : vector<256x1xf32> to vector<256x512xf32>
    %25 = arith.addf %22, %24 : vector<256x512xf32>
    %cst_18 = arith.constant 0.000000e+00 : f32
    %26 = vector.broadcast %cst_18 : f32 to vector<256x512xf32>
    %27 = arith.maximumf %25, %26 : vector<256x512xf32>
    %c0_19 = arith.constant 0 : index
    %c0_20 = arith.constant 0 : index
    %28 = vector.load %arg3[%c0_19, %c0_20] : memref<5x512xf32, #tpu.memory_space<vmem>>, vector<5x512xf32>
    %c0_21 = arith.constant 0 : index
    %c0_22 = arith.constant 0 : index
    %29 = vector.load %arg12[%c0_21, %c0_22] : memref<5x256xbf16, #tpu.memory_space<vmem>>, vector<5x256xbf16>
    %30 = arith.truncf %27 : vector<256x512xf32> to vector<256x512xbf16>
    %cst_23 = arith.constant dense<0.000000e+00> : vector<5x512xf32>
    %31 = tpu.matmul %29, %30, %cst_23 {dimension_numbers = #tpu.dot_dimension_numbers<[1], [0], [0], [1], [0, 0, 1, 1], [], []>} : vector<5x256xbf16>, vector<256x512xbf16>, vector<5x512xf32> -> vector<5x512xf32>
    %32 = arith.addf %28, %31 : vector<5x512xf32>
    %33 = vector.extract_strided_slice %32 {offsets = [0, 0], sizes = [1, 512], strides = [1, 1]} : vector<5x512xf32> to vector<1x512xf32>
    %34 = vector.extract_strided_slice %32 {offsets = [1, 0], sizes = [1, 512], strides = [1, 1]} : vector<5x512xf32> to vector<1x512xf32>
    %35 = vector.extract_strided_slice %32 {offsets = [2, 0], sizes = [1, 512], strides = [1, 1]} : vector<5x512xf32> to vector<1x512xf32>
    %36 = vector.extract_strided_slice %32 {offsets = [3, 0], sizes = [1, 512], strides = [1, 1]} : vector<5x512xf32> to vector<1x512xf32>
    %37 = vector.extract_strided_slice %32 {offsets = [4, 0], sizes = [1, 512], strides = [1, 1]} : vector<5x512xf32> to vector<1x512xf32>
    %c0_24 = arith.constant 0 : index
    %38 = memref.load %arg2[%c0_24] : memref<126xf32, #tpu.memory_space<smem>>
    %39 = vector.broadcast %38 : f32 to vector<1x512xf32>
    %40 = arith.mulf %39, %33 : vector<1x512xf32>
    %41 = arith.mulf %40, %35 : vector<1x512xf32>
    %c1 = arith.constant 1 : index
    %42 = memref.load %arg2[%c1] : memref<126xf32, #tpu.memory_space<smem>>
    %43 = vector.broadcast %42 : f32 to vector<1x512xf32>
    %44 = arith.mulf %43, %33 : vector<1x512xf32>
    %45 = arith.mulf %44, %36 : vector<1x512xf32>
    %c2 = arith.constant 2 : index
    %46 = memref.load %arg2[%c2] : memref<126xf32, #tpu.memory_space<smem>>
    %47 = vector.broadcast %46 : f32 to vector<1x512xf32>
    %48 = arith.mulf %47, %33 : vector<1x512xf32>
    %49 = arith.mulf %48, %37 : vector<1x512xf32>
    %c3 = arith.constant 3 : index
    %50 = memref.load %arg2[%c3] : memref<126xf32, #tpu.memory_space<smem>>
    %51 = vector.broadcast %50 : f32 to vector<1x512xf32>
    %52 = arith.mulf %51, %34 : vector<1x512xf32>
    %53 = arith.mulf %52, %35 : vector<1x512xf32>
    %54 = arith.addf %41, %53 : vector<1x512xf32>
    %c4 = arith.constant 4 : index
    %55 = memref.load %arg2[%c4] : memref<126xf32, #tpu.memory_space<smem>>
    %56 = vector.broadcast %55 : f32 to vector<1x512xf32>
    %57 = arith.mulf %56, %34 : vector<1x512xf32>
    %58 = arith.mulf %57, %36 : vector<1x512xf32>
    %59 = arith.addf %45, %58 : vector<1x512xf32>
    %c5 = arith.constant 5 : index
    %60 = memref.load %arg2[%c5] : memref<126xf32, #tpu.memory_space<smem>>
    %61 = vector.broadcast %60 : f32 to vector<1x512xf32>
    %62 = arith.mulf %61, %34 : vector<1x512xf32>
    %63 = arith.mulf %62, %37 : vector<1x512xf32>
    %64 = arith.addf %49, %63 : vector<1x512xf32>
    %c6 = arith.constant 6 : index
    %65 = memref.load %arg2[%c6] : memref<126xf32, #tpu.memory_space<smem>>
    %66 = vector.broadcast %65 : f32 to vector<1x512xf32>
    %67 = arith.mulf %66, %35 : vector<1x512xf32>
    %68 = arith.mulf %67, %33 : vector<1x512xf32>
    %69 = arith.addf %54, %68 : vector<1x512xf32>
    %c7 = arith.constant 7 : index
    %70 = memref.load %arg2[%c7] : memref<126xf32, #tpu.memory_space<smem>>
    %71 = vector.broadcast %70 : f32 to vector<1x512xf32>
    %72 = arith.mulf %71, %35 : vector<1x512xf32>
    %73 = arith.mulf %72, %34 : vector<1x512xf32>
    %74 = arith.addf %69, %73 : vector<1x512xf32>
    %c8 = arith.constant 8 : index
    %75 = memref.load %arg2[%c8] : memref<126xf32, #tpu.memory_space<smem>>
    %76 = vector.broadcast %75 : f32 to vector<1x512xf32>
    %77 = arith.mulf %76, %35 : vector<1x512xf32>
    %78 = arith.mulf %77, %36 : vector<1x512xf32>
    %79 = arith.addf %64, %78 : vector<1x512xf32>
    %c9 = arith.constant 9 : index
    %80 = memref.load %arg2[%c9] : memref<126xf32, #tpu.memory_space<smem>>
    %81 = vector.broadcast %80 : f32 to vector<1x512xf32>
    %82 = arith.mulf %81, %35 : vector<1x512xf32>
    %83 = arith.mulf %82, %37 : vector<1x512xf32>
    %84 = arith.addf %59, %83 : vector<1x512xf32>
    %c10 = arith.constant 10 : index
    %85 = memref.load %arg2[%c10] : memref<126xf32, #tpu.memory_space<smem>>
    %86 = vector.broadcast %85 : f32 to vector<1x512xf32>
    %87 = arith.mulf %86, %36 : vector<1x512xf32>
    %88 = arith.mulf %87, %33 : vector<1x512xf32>
    %89 = arith.addf %84, %88 : vector<1x512xf32>
    %c11 = arith.constant 11 : index
    %90 = memref.load %arg2[%c11] : memref<126xf32, #tpu.memory_space<smem>>
    %91 = vector.broadcast %90 : f32 to vector<1x512xf32>
    %92 = arith.mulf %91, %36 : vector<1x512xf32>
    %93 = arith.mulf %92, %34 : vector<1x512xf32>
    %94 = arith.addf %89, %93 : vector<1x512xf32>
    %c12 = arith.constant 12 : index
    %95 = memref.load %arg2[%c12] : memref<126xf32, #tpu.memory_space<smem>>
    %96 = vector.broadcast %95 : f32 to vector<1x512xf32>
    %97 = arith.mulf %96, %36 : vector<1x512xf32>
    %98 = arith.mulf %97, %35 : vector<1x512xf32>
    %99 = arith.addf %79, %98 : vector<1x512xf32>
    %c13 = arith.constant 13 : index
    %100 = memref.load %arg2[%c13] : memref<126xf32, #tpu.memory_space<smem>>
    %101 = vector.broadcast %100 : f32 to vector<1x512xf32>
    %102 = arith.mulf %101, %36 : vector<1x512xf32>
    %103 = arith.mulf %102, %37 : vector<1x512xf32>
    %104 = arith.addf %74, %103 : vector<1x512xf32>
    %c14 = arith.constant 14 : index
    %105 = memref.load %arg2[%c14] : memref<126xf32, #tpu.memory_space<smem>>
    %106 = vector.broadcast %105 : f32 to vector<1x512xf32>
    %107 = arith.mulf %106, %37 : vector<1x512xf32>
    %108 = arith.mulf %107, %33 : vector<1x512xf32>
    %109 = arith.addf %99, %108 : vector<1x512xf32>
    %c15 = arith.constant 15 : index
    %110 = memref.load %arg2[%c15] : memref<126xf32, #tpu.memory_space<smem>>
    %111 = vector.broadcast %110 : f32 to vector<1x512xf32>
    %112 = arith.mulf %111, %37 : vector<1x512xf32>
    %113 = arith.mulf %112, %34 : vector<1x512xf32>
    %114 = arith.addf %109, %113 : vector<1x512xf32>
    %c16 = arith.constant 16 : index
    %115 = memref.load %arg2[%c16] : memref<126xf32, #tpu.memory_space<smem>>
    %116 = vector.broadcast %115 : f32 to vector<1x512xf32>
    %117 = arith.mulf %116, %37 : vector<1x512xf32>
    %118 = arith.mulf %117, %35 : vector<1x512xf32>
    %119 = arith.addf %94, %118 : vector<1x512xf32>
    %c17 = arith.constant 17 : index
    %120 = memref.load %arg2[%c17] : memref<126xf32, #tpu.memory_space<smem>>
    %121 = vector.broadcast %120 : f32 to vector<1x512xf32>
    %122 = arith.mulf %121, %37 : vector<1x512xf32>
    %123 = arith.mulf %122, %36 : vector<1x512xf32>
    %124 = arith.addf %104, %123 : vector<1x512xf32>
    %c18 = arith.constant 18 : index
    %125 = memref.load %arg2[%c18] : memref<126xf32, #tpu.memory_space<smem>>
    %126 = vector.broadcast %125 : f32 to vector<1x512xf32>
    %127 = arith.mulf %126, %124 : vector<1x512xf32>
    %128 = arith.mulf %127, %33 : vector<1x512xf32>
    %c19 = arith.constant 19 : index
    %129 = memref.load %arg2[%c19] : memref<126xf32, #tpu.memory_space<smem>>
    %130 = vector.broadcast %129 : f32 to vector<1x512xf32>
    %131 = arith.mulf %130, %124 : vector<1x512xf32>
    %132 = arith.mulf %131, %34 : vector<1x512xf32>
    %133 = arith.addf %128, %132 : vector<1x512xf32>
    %c20 = arith.constant 20 : index
    %134 = memref.load %arg2[%c20] : memref<126xf32, #tpu.memory_space<smem>>
    %135 = vector.broadcast %134 : f32 to vector<1x512xf32>
    %136 = arith.mulf %135, %124 : vector<1x512xf32>
    %137 = arith.mulf %136, %36 : vector<1x512xf32>
    %c21 = arith.constant 21 : index
    %138 = memref.load %arg2[%c21] : memref<126xf32, #tpu.memory_space<smem>>
    %139 = vector.broadcast %138 : f32 to vector<1x512xf32>
    %140 = arith.mulf %139, %124 : vector<1x512xf32>
    %141 = arith.mulf %140, %37 : vector<1x512xf32>
    %c22 = arith.constant 22 : index
    %142 = memref.load %arg2[%c22] : memref<126xf32, #tpu.memory_space<smem>>
    %143 = vector.broadcast %142 : f32 to vector<1x512xf32>
    %144 = arith.mulf %143, %119 : vector<1x512xf32>
    %145 = arith.mulf %144, %33 : vector<1x512xf32>
    %146 = arith.addf %141, %145 : vector<1x512xf32>
    %c23 = arith.constant 23 : index
    %147 = memref.load %arg2[%c23] : memref<126xf32, #tpu.memory_space<smem>>
    %148 = vector.broadcast %147 : f32 to vector<1x512xf32>
    %149 = arith.mulf %148, %119 : vector<1x512xf32>
    %150 = arith.mulf %149, %34 : vector<1x512xf32>
    %151 = arith.addf %146, %150 : vector<1x512xf32>
    %c24 = arith.constant 24 : index
    %152 = memref.load %arg2[%c24] : memref<126xf32, #tpu.memory_space<smem>>
    %153 = vector.broadcast %152 : f32 to vector<1x512xf32>
    %154 = arith.mulf %153, %119 : vector<1x512xf32>
    %155 = arith.mulf %154, %35 : vector<1x512xf32>
    %156 = arith.addf %137, %155 : vector<1x512xf32>
    %c25 = arith.constant 25 : index
    %157 = memref.load %arg2[%c25] : memref<126xf32, #tpu.memory_space<smem>>
    %158 = vector.broadcast %157 : f32 to vector<1x512xf32>
    %159 = arith.mulf %158, %119 : vector<1x512xf32>
    %160 = arith.mulf %159, %37 : vector<1x512xf32>
    %161 = arith.addf %133, %160 : vector<1x512xf32>
    %c26 = arith.constant 26 : index
    %162 = memref.load %arg2[%c26] : memref<126xf32, #tpu.memory_space<smem>>
    %163 = vector.broadcast %162 : f32 to vector<1x512xf32>
    %164 = arith.mulf %163, %114 : vector<1x512xf32>
    %165 = arith.mulf %164, %33 : vector<1x512xf32>
    %166 = arith.addf %156, %165 : vector<1x512xf32>
    %c27 = arith.constant 27 : index
    %167 = memref.load %arg2[%c27] : memref<126xf32, #tpu.memory_space<smem>>
    %168 = vector.broadcast %167 : f32 to vector<1x512xf32>
    %169 = arith.mulf %168, %114 : vector<1x512xf32>
    %170 = arith.mulf %169, %34 : vector<1x512xf32>
    %171 = arith.addf %166, %170 : vector<1x512xf32>
    %c28 = arith.constant 28 : index
    %172 = memref.load %arg2[%c28] : memref<126xf32, #tpu.memory_space<smem>>
    %173 = vector.broadcast %172 : f32 to vector<1x512xf32>
    %174 = arith.mulf %173, %114 : vector<1x512xf32>
    %175 = arith.mulf %174, %35 : vector<1x512xf32>
    %176 = arith.addf %151, %175 : vector<1x512xf32>
    %c29 = arith.constant 29 : index
    %177 = memref.load %arg2[%c29] : memref<126xf32, #tpu.memory_space<smem>>
    %178 = vector.broadcast %177 : f32 to vector<1x512xf32>
    %179 = arith.mulf %178, %114 : vector<1x512xf32>
    %180 = arith.mulf %179, %36 : vector<1x512xf32>
    %181 = arith.addf %161, %180 : vector<1x512xf32>
    %c42 = arith.constant 42 : index
    %182 = memref.load %arg2[%c42] : memref<126xf32, #tpu.memory_space<smem>>
    %183 = vector.broadcast %182 : f32 to vector<1x512xf32>
    %184 = arith.mulf %183, %181 : vector<1x512xf32>
    %185 = arith.mulf %184, %33 : vector<1x512xf32>
    %c43 = arith.constant 43 : index
    %186 = memref.load %arg2[%c43] : memref<126xf32, #tpu.memory_space<smem>>
    %187 = vector.broadcast %186 : f32 to vector<1x512xf32>
    %188 = arith.mulf %187, %181 : vector<1x512xf32>
    %189 = arith.mulf %188, %34 : vector<1x512xf32>
    %190 = arith.addf %185, %189 : vector<1x512xf32>
    %c44 = arith.constant 44 : index
    %191 = memref.load %arg2[%c44] : memref<126xf32, #tpu.memory_space<smem>>
    %192 = vector.broadcast %191 : f32 to vector<1x512xf32>
    %193 = arith.mulf %192, %181 : vector<1x512xf32>
    %194 = arith.mulf %193, %36 : vector<1x512xf32>
    %c45 = arith.constant 45 : index
    %195 = memref.load %arg2[%c45] : memref<126xf32, #tpu.memory_space<smem>>
    %196 = vector.broadcast %195 : f32 to vector<1x512xf32>
    %197 = arith.mulf %196, %181 : vector<1x512xf32>
    %198 = arith.mulf %197, %37 : vector<1x512xf32>
    %c46 = arith.constant 46 : index
    %199 = memref.load %arg2[%c46] : memref<126xf32, #tpu.memory_space<smem>>
    %200 = vector.broadcast %199 : f32 to vector<1x512xf32>
    %201 = arith.mulf %200, %176 : vector<1x512xf32>
    %202 = arith.mulf %201, %33 : vector<1x512xf32>
    %203 = arith.addf %198, %202 : vector<1x512xf32>
    %c47 = arith.constant 47 : index
    %204 = memref.load %arg2[%c47] : memref<126xf32, #tpu.memory_space<smem>>
    %205 = vector.broadcast %204 : f32 to vector<1x512xf32>
    %206 = arith.mulf %205, %176 : vector<1x512xf32>
    %207 = arith.mulf %206, %34 : vector<1x512xf32>
    %208 = arith.addf %203, %207 : vector<1x512xf32>
    %c48 = arith.constant 48 : index
    %209 = memref.load %arg2[%c48] : memref<126xf32, #tpu.memory_space<smem>>
    %210 = vector.broadcast %209 : f32 to vector<1x512xf32>
    %211 = arith.mulf %210, %176 : vector<1x512xf32>
    %212 = arith.mulf %211, %35 : vector<1x512xf32>
    %213 = arith.addf %194, %212 : vector<1x512xf32>
    %c49 = arith.constant 49 : index
    %214 = memref.load %arg2[%c49] : memref<126xf32, #tpu.memory_space<smem>>
    %215 = vector.broadcast %214 : f32 to vector<1x512xf32>
    %216 = arith.mulf %215, %176 : vector<1x512xf32>
    %217 = arith.mulf %216, %37 : vector<1x512xf32>
    %218 = arith.addf %190, %217 : vector<1x512xf32>
    %c50 = arith.constant 50 : index
    %219 = memref.load %arg2[%c50] : memref<126xf32, #tpu.memory_space<smem>>
    %220 = vector.broadcast %219 : f32 to vector<1x512xf32>
    %221 = arith.mulf %220, %171 : vector<1x512xf32>
    %222 = arith.mulf %221, %33 : vector<1x512xf32>
    %223 = arith.addf %213, %222 : vector<1x512xf32>
    %c51 = arith.constant 51 : index
    %224 = memref.load %arg2[%c51] : memref<126xf32, #tpu.memory_space<smem>>
    %225 = vector.broadcast %224 : f32 to vector<1x512xf32>
    %226 = arith.mulf %225, %171 : vector<1x512xf32>
    %227 = arith.mulf %226, %34 : vector<1x512xf32>
    %228 = arith.addf %223, %227 : vector<1x512xf32>
    %c52 = arith.constant 52 : index
    %229 = memref.load %arg2[%c52] : memref<126xf32, #tpu.memory_space<smem>>
    %230 = vector.broadcast %229 : f32 to vector<1x512xf32>
    %231 = arith.mulf %230, %171 : vector<1x512xf32>
    %232 = arith.mulf %231, %35 : vector<1x512xf32>
    %233 = arith.addf %208, %232 : vector<1x512xf32>
    %c53 = arith.constant 53 : index
    %234 = memref.load %arg2[%c53] : memref<126xf32, #tpu.memory_space<smem>>
    %235 = vector.broadcast %234 : f32 to vector<1x512xf32>
    %236 = arith.mulf %235, %171 : vector<1x512xf32>
    %237 = arith.mulf %236, %36 : vector<1x512xf32>
    %238 = arith.addf %218, %237 : vector<1x512xf32>
    %c66 = arith.constant 66 : index
    %239 = memref.load %arg2[%c66] : memref<126xf32, #tpu.memory_space<smem>>
    %240 = vector.broadcast %239 : f32 to vector<1x512xf32>
    %241 = arith.mulf %240, %238 : vector<1x512xf32>
    %242 = arith.mulf %241, %33 : vector<1x512xf32>
    %c67 = arith.constant 67 : index
    %243 = memref.load %arg2[%c67] : memref<126xf32, #tpu.memory_space<smem>>
    %244 = vector.broadcast %243 : f32 to vector<1x512xf32>
    %245 = arith.mulf %244, %238 : vector<1x512xf32>
    %246 = arith.mulf %245, %34 : vector<1x512xf32>
    %247 = arith.addf %242, %246 : vector<1x512xf32>
    %c68 = arith.constant 68 : index
    %248 = memref.load %arg2[%c68] : memref<126xf32, #tpu.memory_space<smem>>
    %249 = vector.broadcast %248 : f32 to vector<1x512xf32>
    %250 = arith.mulf %249, %238 : vector<1x512xf32>
    %251 = arith.mulf %250, %36 : vector<1x512xf32>
    %c69 = arith.constant 69 : index
    %252 = memref.load %arg2[%c69] : memref<126xf32, #tpu.memory_space<smem>>
    %253 = vector.broadcast %252 : f32 to vector<1x512xf32>
    %254 = arith.mulf %253, %238 : vector<1x512xf32>
    %255 = arith.mulf %254, %37 : vector<1x512xf32>
    %c70 = arith.constant 70 : index
    %256 = memref.load %arg2[%c70] : memref<126xf32, #tpu.memory_space<smem>>
    %257 = vector.broadcast %256 : f32 to vector<1x512xf32>
    %258 = arith.mulf %257, %233 : vector<1x512xf32>
    %259 = arith.mulf %258, %33 : vector<1x512xf32>
    %260 = arith.addf %255, %259 : vector<1x512xf32>
    %c71 = arith.constant 71 : index
    %261 = memref.load %arg2[%c71] : memref<126xf32, #tpu.memory_space<smem>>
    %262 = vector.broadcast %261 : f32 to vector<1x512xf32>
    %263 = arith.mulf %262, %233 : vector<1x512xf32>
    %264 = arith.mulf %263, %34 : vector<1x512xf32>
    %265 = arith.addf %260, %264 : vector<1x512xf32>
    %c72 = arith.constant 72 : index
    %266 = memref.load %arg2[%c72] : memref<126xf32, #tpu.memory_space<smem>>
    %267 = vector.broadcast %266 : f32 to vector<1x512xf32>
    %268 = arith.mulf %267, %233 : vector<1x512xf32>
    %269 = arith.mulf %268, %35 : vector<1x512xf32>
    %270 = arith.addf %251, %269 : vector<1x512xf32>
    %c73 = arith.constant 73 : index
    %271 = memref.load %arg2[%c73] : memref<126xf32, #tpu.memory_space<smem>>
    %272 = vector.broadcast %271 : f32 to vector<1x512xf32>
    %273 = arith.mulf %272, %233 : vector<1x512xf32>
    %274 = arith.mulf %273, %37 : vector<1x512xf32>
    %275 = arith.addf %247, %274 : vector<1x512xf32>
    %c74 = arith.constant 74 : index
    %276 = memref.load %arg2[%c74] : memref<126xf32, #tpu.memory_space<smem>>
    %277 = vector.broadcast %276 : f32 to vector<1x512xf32>
    %278 = arith.mulf %277, %228 : vector<1x512xf32>
    %279 = arith.mulf %278, %33 : vector<1x512xf32>
    %280 = arith.addf %270, %279 : vector<1x512xf32>
    %c75 = arith.constant 75 : index
    %281 = memref.load %arg2[%c75] : memref<126xf32, #tpu.memory_space<smem>>
    %282 = vector.broadcast %281 : f32 to vector<1x512xf32>
    %283 = arith.mulf %282, %228 : vector<1x512xf32>
    %284 = arith.mulf %283, %34 : vector<1x512xf32>
    %285 = arith.addf %280, %284 : vector<1x512xf32>
    %c76 = arith.constant 76 : index
    %286 = memref.load %arg2[%c76] : memref<126xf32, #tpu.memory_space<smem>>
    %287 = vector.broadcast %286 : f32 to vector<1x512xf32>
    %288 = arith.mulf %287, %228 : vector<1x512xf32>
    %289 = arith.mulf %288, %35 : vector<1x512xf32>
    %290 = arith.addf %265, %289 : vector<1x512xf32>
    %c77 = arith.constant 77 : index
    %291 = memref.load %arg2[%c77] : memref<126xf32, #tpu.memory_space<smem>>
    %292 = vector.broadcast %291 : f32 to vector<1x512xf32>
    %293 = arith.mulf %292, %228 : vector<1x512xf32>
    %294 = arith.mulf %293, %36 : vector<1x512xf32>
    %295 = arith.addf %275, %294 : vector<1x512xf32>
    %c90 = arith.constant 90 : index
    %296 = memref.load %arg2[%c90] : memref<126xf32, #tpu.memory_space<smem>>
    %297 = vector.broadcast %296 : f32 to vector<1x512xf32>
    %298 = arith.mulf %297, %295 : vector<1x512xf32>
    %299 = arith.mulf %298, %33 : vector<1x512xf32>
    %c91 = arith.constant 91 : index
    %300 = memref.load %arg2[%c91] : memref<126xf32, #tpu.memory_space<smem>>
    %301 = vector.broadcast %300 : f32 to vector<1x512xf32>
    %302 = arith.mulf %301, %295 : vector<1x512xf32>
    %303 = arith.mulf %302, %34 : vector<1x512xf32>
    %304 = arith.addf %299, %303 : vector<1x512xf32>
    %c92 = arith.constant 92 : index
    %305 = memref.load %arg2[%c92] : memref<126xf32, #tpu.memory_space<smem>>
    %306 = vector.broadcast %305 : f32 to vector<1x512xf32>
    %307 = arith.mulf %306, %295 : vector<1x512xf32>
    %308 = arith.mulf %307, %36 : vector<1x512xf32>
    %c93 = arith.constant 93 : index
    %309 = memref.load %arg2[%c93] : memref<126xf32, #tpu.memory_space<smem>>
    %310 = vector.broadcast %309 : f32 to vector<1x512xf32>
    %311 = arith.mulf %310, %295 : vector<1x512xf32>
    %312 = arith.mulf %311, %37 : vector<1x512xf32>
    %c94 = arith.constant 94 : index
    %313 = memref.load %arg2[%c94] : memref<126xf32, #tpu.memory_space<smem>>
    %314 = vector.broadcast %313 : f32 to vector<1x512xf32>
    %315 = arith.mulf %314, %290 : vector<1x512xf32>
    %316 = arith.mulf %315, %33 : vector<1x512xf32>
    %317 = arith.addf %312, %316 : vector<1x512xf32>
    %c95 = arith.constant 95 : index
    %318 = memref.load %arg2[%c95] : memref<126xf32, #tpu.memory_space<smem>>
    %319 = vector.broadcast %318 : f32 to vector<1x512xf32>
    %320 = arith.mulf %319, %290 : vector<1x512xf32>
    %321 = arith.mulf %320, %34 : vector<1x512xf32>
    %322 = arith.addf %317, %321 : vector<1x512xf32>
    %c96 = arith.constant 96 : index
    %323 = memref.load %arg2[%c96] : memref<126xf32, #tpu.memory_space<smem>>
    %324 = vector.broadcast %323 : f32 to vector<1x512xf32>
    %325 = arith.mulf %324, %290 : vector<1x512xf32>
    %326 = arith.mulf %325, %35 : vector<1x512xf32>
    %327 = arith.addf %308, %326 : vector<1x512xf32>
    %c97 = arith.constant 97 : index
    %328 = memref.load %arg2[%c97] : memref<126xf32, #tpu.memory_space<smem>>
    %329 = vector.broadcast %328 : f32 to vector<1x512xf32>
    %330 = arith.mulf %329, %290 : vector<1x512xf32>
    %331 = arith.mulf %330, %37 : vector<1x512xf32>
    %332 = arith.addf %304, %331 : vector<1x512xf32>
    %c98 = arith.constant 98 : index
    %333 = memref.load %arg2[%c98] : memref<126xf32, #tpu.memory_space<smem>>
    %334 = vector.broadcast %333 : f32 to vector<1x512xf32>
    %335 = arith.mulf %334, %285 : vector<1x512xf32>
    %336 = arith.mulf %335, %33 : vector<1x512xf32>
    %337 = arith.addf %327, %336 : vector<1x512xf32>
    %c99 = arith.constant 99 : index
    %338 = memref.load %arg2[%c99] : memref<126xf32, #tpu.memory_space<smem>>
    %339 = vector.broadcast %338 : f32 to vector<1x512xf32>
    %340 = arith.mulf %339, %285 : vector<1x512xf32>
    %341 = arith.mulf %340, %34 : vector<1x512xf32>
    %342 = arith.addf %337, %341 : vector<1x512xf32>
    %c100 = arith.constant 100 : index
    %343 = memref.load %arg2[%c100] : memref<126xf32, #tpu.memory_space<smem>>
    %344 = vector.broadcast %343 : f32 to vector<1x512xf32>
    %345 = arith.mulf %344, %285 : vector<1x512xf32>
    %346 = arith.mulf %345, %35 : vector<1x512xf32>
    %347 = arith.addf %322, %346 : vector<1x512xf32>
    %c101 = arith.constant 101 : index
    %348 = memref.load %arg2[%c101] : memref<126xf32, #tpu.memory_space<smem>>
    %349 = vector.broadcast %348 : f32 to vector<1x512xf32>
    %350 = arith.mulf %349, %285 : vector<1x512xf32>
    %351 = arith.mulf %350, %36 : vector<1x512xf32>
    %352 = arith.addf %332, %351 : vector<1x512xf32>
    %c114 = arith.constant 114 : index
    %353 = memref.load %arg2[%c114] : memref<126xf32, #tpu.memory_space<smem>>
    %354 = vector.broadcast %353 : f32 to vector<1x512xf32>
    %355 = arith.mulf %354, %352 : vector<1x512xf32>
    %356 = arith.mulf %355, %33 : vector<1x512xf32>
    %c115 = arith.constant 115 : index
    %357 = memref.load %arg2[%c115] : memref<126xf32, #tpu.memory_space<smem>>
    %358 = vector.broadcast %357 : f32 to vector<1x512xf32>
    %359 = arith.mulf %358, %352 : vector<1x512xf32>
    %360 = arith.mulf %359, %34 : vector<1x512xf32>
    %361 = arith.addf %356, %360 : vector<1x512xf32>
    %c116 = arith.constant 116 : index
    %362 = memref.load %arg2[%c116] : memref<126xf32, #tpu.memory_space<smem>>
    %363 = vector.broadcast %362 : f32 to vector<1x512xf32>
    %364 = arith.mulf %363, %352 : vector<1x512xf32>
    %365 = arith.mulf %364, %36 : vector<1x512xf32>
    %c117 = arith.constant 117 : index
    %366 = memref.load %arg2[%c117] : memref<126xf32, #tpu.memory_space<smem>>
    %367 = vector.broadcast %366 : f32 to vector<1x512xf32>
    %368 = arith.mulf %367, %352 : vector<1x512xf32>
    %369 = arith.mulf %368, %37 : vector<1x512xf32>
    %c118 = arith.constant 118 : index
    %370 = memref.load %arg2[%c118] : memref<126xf32, #tpu.memory_space<smem>>
    %371 = vector.broadcast %370 : f32 to vector<1x512xf32>
    %372 = arith.mulf %371, %347 : vector<1x512xf32>
    %373 = arith.mulf %372, %33 : vector<1x512xf32>
    %374 = arith.addf %369, %373 : vector<1x512xf32>
    %c119 = arith.constant 119 : index
    %375 = memref.load %arg2[%c119] : memref<126xf32, #tpu.memory_space<smem>>
    %376 = vector.broadcast %375 : f32 to vector<1x512xf32>
    %377 = arith.mulf %376, %347 : vector<1x512xf32>
    %378 = arith.mulf %377, %34 : vector<1x512xf32>
    %379 = arith.addf %374, %378 : vector<1x512xf32>
    %c120 = arith.constant 120 : index
    %380 = memref.load %arg2[%c120] : memref<126xf32, #tpu.memory_space<smem>>
    %381 = vector.broadcast %380 : f32 to vector<1x512xf32>
    %382 = arith.mulf %381, %347 : vector<1x512xf32>
    %383 = arith.mulf %382, %35 : vector<1x512xf32>
    %384 = arith.addf %365, %383 : vector<1x512xf32>
    %c121 = arith.constant 121 : index
    %385 = memref.load %arg2[%c121] : memref<126xf32, #tpu.memory_space<smem>>
    %386 = vector.broadcast %385 : f32 to vector<1x512xf32>
    %387 = arith.mulf %386, %347 : vector<1x512xf32>
    %388 = arith.mulf %387, %37 : vector<1x512xf32>
    %389 = arith.addf %361, %388 : vector<1x512xf32>
    %c122 = arith.constant 122 : index
    %390 = memref.load %arg2[%c122] : memref<126xf32, #tpu.memory_space<smem>>
    %391 = vector.broadcast %390 : f32 to vector<1x512xf32>
    %392 = arith.mulf %391, %342 : vector<1x512xf32>
    %393 = arith.mulf %392, %33 : vector<1x512xf32>
    %394 = arith.addf %384, %393 : vector<1x512xf32>
    %c123 = arith.constant 123 : index
    %395 = memref.load %arg2[%c123] : memref<126xf32, #tpu.memory_space<smem>>
    %396 = vector.broadcast %395 : f32 to vector<1x512xf32>
    %397 = arith.mulf %396, %342 : vector<1x512xf32>
    %398 = arith.mulf %397, %34 : vector<1x512xf32>
    %399 = arith.addf %394, %398 : vector<1x512xf32>
    %c124 = arith.constant 124 : index
    %400 = memref.load %arg2[%c124] : memref<126xf32, #tpu.memory_space<smem>>
    %401 = vector.broadcast %400 : f32 to vector<1x512xf32>
    %402 = arith.mulf %401, %342 : vector<1x512xf32>
    %403 = arith.mulf %402, %35 : vector<1x512xf32>
    %404 = arith.addf %379, %403 : vector<1x512xf32>
    %c125 = arith.constant 125 : index
    %405 = memref.load %arg2[%c125] : memref<126xf32, #tpu.memory_space<smem>>
    %406 = vector.broadcast %405 : f32 to vector<1x512xf32>
    %407 = arith.mulf %406, %342 : vector<1x512xf32>
    %408 = arith.mulf %407, %36 : vector<1x512xf32>
    %409 = arith.addf %389, %408 : vector<1x512xf32>
    %410 = tpu.concatenate %409, %404, %399 in 0 : vector<1x512xf32>, vector<1x512xf32>, vector<1x512xf32> -> vector<3x512xf32>
    %c0_25 = arith.constant 0 : index
    %c0_26 = arith.constant 0 : index
    %411 = vector.load %arg14[%c0_25, %c0_26] : memref<4x3xf32, #tpu.memory_space<vmem>>, vector<4x3xf32>
    %c0_27 = arith.constant 0 : index
    %c0_28 = arith.constant 0 : index
    %412 = vector.load %arg5[%c0_27, %c0_28] : memref<4x512xf32, #tpu.memory_space<vmem>>, vector<4x512xf32>
    %cst_29 = arith.constant dense<0.000000e+00> : vector<4x3xf32>
    %413 = tpu.matmul %412, %410, %cst_29 {dimension_numbers = #tpu.dot_dimension_numbers<[1], [1], [0], [0], [0, 0, 1, 0], [], []>} : vector<4x512xf32>, vector<3x512xf32>, vector<4x3xf32> -> vector<4x3xf32>
    %414 = arith.addf %411, %413 : vector<4x3xf32>
    %c0_30 = arith.constant 0 : index
    %c0_31 = arith.constant 0 : index
    %415 = vector.load %arg14[%c0_30, %c0_31] : memref<4x3xf32, #tpu.memory_space<vmem>>, vector<4x3xf32>
    tpu.vector_store %arg14[%c0_30, %c0_31], %414 {strides = array<i32>} : memref<4x3xf32, #tpu.memory_space<vmem>>, vector<4x3xf32>,
    %c1_i32 = arith.constant 1 : i32
    %416 = arith.cmpi eq, %arg1, %c1_i32 : i32
    %417 = arith.extui %416 : i1 to i32
    %c0_i32_32 = arith.constant 0 : i32
    %418 = arith.cmpi ne, %417, %c0_i32_32 : i32
    scf.if %418 {
      %c0_33 = arith.constant 0 : index
      %c0_34 = arith.constant 0 : index
      %419 = vector.load %arg14[%c0_33, %c0_34] : memref<4x3xf32, #tpu.memory_space<vmem>>, vector<4x3xf32>
      %420 = vector.shape_cast %419 : vector<4x3xf32> to vector<1x4x3xf32>
      %c0_35 = arith.constant 0 : index
      %c0_36 = arith.constant 0 : index
      %c0_37 = arith.constant 0 : index
      %421 = vector.load %arg13[%c0_35, %c0_36, %c0_37] : memref<1x4x3xf32, #tpu.memory_space<vmem>>, vector<1x4x3xf32>
      tpu.vector_store %arg13[%c0_35, %c0_36, %c0_37], %420 {strides = array<i32>} : memref<1x4x3xf32, #tpu.memory_space<vmem>>, vector<1x4x3xf32>,
    } else {
    }
    return
  }
  func.func @transform_0(%arg0: i32, %arg1: i32) -> i32 {
    %c0_i32 = arith.constant 0 : i32
    %c0_i32_0 = arith.constant 0 : i32
    return %c0_i32 : i32
  }
  func.func @transform_1(%arg0: i32, %arg1: i32) -> (i32, i32) {
    %c2_i32 = arith.constant 2 : i32
    %0 = arith.muli %arg0, %c2_i32 : i32
    %1 = arith.addi %0, %arg1 : i32
    %c0_i32 = arith.constant 0 : i32
    %c0_i32_0 = arith.constant 0 : i32
    return %c0_i32, %1 : i32, i32
  }
  func.func @transform_2(%arg0: i32, %arg1: i32) -> (i32, i32) {
    %c2_i32 = arith.constant 2 : i32
    %0 = arith.muli %arg0, %c2_i32 : i32
    %1 = arith.addi %0, %arg1 : i32
    %c0_i32 = arith.constant 0 : i32
    %c0_i32_0 = arith.constant 0 : i32
    return %c0_i32, %1 : i32, i32
  }
  func.func @transform_3(%arg0: i32, %arg1: i32) -> (i32, i32) {
    %c2_i32 = arith.constant 2 : i32
    %0 = arith.muli %arg0, %c2_i32 : i32
    %1 = arith.addi %0, %arg1 : i32
    %c0_i32 = arith.constant 0 : i32
    %c0_i32_0 = arith.constant 0 : i32
    return %c0_i32, %1 : i32, i32
  }
  func.func @transform_4(%arg0: i32, %arg1: i32) -> (i32, i32) {
    %c0_i32 = arith.constant 0 : i32
    %c0_i32_0 = arith.constant 0 : i32
    %c0_i32_1 = arith.constant 0 : i32
    return %c0_i32, %c0_i32_0 : i32, i32
  }
  func.func @transform_5(%arg0: i32, %arg1: i32) -> (i32, i32) {
    %c0_i32 = arith.constant 0 : i32
    %c0_i32_0 = arith.constant 0 : i32
    %c0_i32_1 = arith.constant 0 : i32
    return %c0_i32, %c0_i32_0 : i32, i32
  }
  func.func @transform_6(%arg0: i32, %arg1: i32) -> (i32, i32) {
    %c0_i32 = arith.constant 0 : i32
    %c0_i32_0 = arith.constant 0 : i32
    %c0_i32_1 = arith.constant 0 : i32
    return %c0_i32, %c0_i32_0 : i32, i32
  }
  func.func @transform_7(%arg0: i32, %arg1: i32) -> (i32, i32) {
    %c0_i32 = arith.constant 0 : i32
    %c0_i32_0 = arith.constant 0 : i32
    %c0_i32_1 = arith.constant 0 : i32
    return %c0_i32, %c0_i32_0 : i32, i32
  }
  func.func @transform_8(%arg0: i32, %arg1: i32) -> (i32, i32) {
    %c0_i32 = arith.constant 0 : i32
    %c0_i32_0 = arith.constant 0 : i32
    %c0_i32_1 = arith.constant 0 : i32
    return %c0_i32, %c0_i32_0 : i32, i32
  }
  func.func @transform_9(%arg0: i32, %arg1: i32) -> (i32, i32) {
    %c0_i32 = arith.constant 0 : i32
    %c0_i32_0 = arith.constant 0 : i32
    %c0_i32_1 = arith.constant 0 : i32
    return %c0_i32, %c0_i32_0 : i32, i32
  }
  func.func @transform_10(%arg0: i32, %arg1: i32) -> (i32, i32) {
    %c0_i32 = arith.constant 0 : i32
    %c0_i32_0 = arith.constant 0 : i32
    %c0_i32_1 = arith.constant 0 : i32
    return %c0_i32, %c0_i32_0 : i32, i32
  }
  func.func @transform_11(%arg0: i32, %arg1: i32) -> (i32, i32, i32) {
    %c0_i32 = arith.constant 0 : i32
    %c0_i32_0 = arith.constant 0 : i32
    %c0_i32_1 = arith.constant 0 : i32
    return %arg0, %c0_i32, %c0_i32_0 : i32, i32, i32
  }
}

</mosaic_0001>

<llo_original>
// kernel: tpu_custom_call.1
$region0: #{tpu_custom_call.1}
  #allocation0 [shape = 'u32[]', space=smem, size = 0x4, offset = 0x4, fixed_abs, tag = 'smem constant byte address 0x4 - core index']
  #allocation1 [shape = 'u32[144,128]{1,0:T(1,128)}', space=vmem, size = 0x12000, scoped, tag = 'internal scratch']
  #allocation2 [shape = 'f32[4,3]{1,0:T(4,128)}', space=vmem, size = 0x800, scoped, tag = 'scratch operand']
  %s0 = inlined_call_operand.hbm [shape: f32[126], index: 0, kind: input, shape index: {}]
  %s1 = inlined_call_operand.vmem [shape: f32[5,1024], index: 1, kind: input, shape index: {}]
  %s2 = inlined_call_operand.vmem [shape: f32[3,1024], index: 2, kind: input, shape index: {}]
  %s3 = inlined_call_operand.vmem [shape: f32[4,1024], index: 3, kind: input, shape index: {}]
  %s4 = inlined_call_operand.vmem [shape: bf16[256,3], index: 4, kind: input, shape index: {}]
  %s5 = inlined_call_operand.vmem [shape: f32[256,1], index: 5, kind: input, shape index: {}]
  %s6 = inlined_call_operand.vmem [shape: bf16[512,256], index: 6, kind: input, shape index: {}]
  %s7 = inlined_call_operand.vmem [shape: f32[512,1], index: 7, kind: input, shape index: {}]
  %s8 = inlined_call_operand.vmem [shape: bf16[256,512], index: 8, kind: input, shape index: {}]
  %s9 = inlined_call_operand.vmem [shape: f32[256,1], index: 9, kind: input, shape index: {}]
  %s10 = inlined_call_operand.vmem [shape: bf16[5,256], index: 10, kind: input, shape index: {}]
  %s11 = inlined_call_operand.vmem [shape: f32[1,4,3], index: 11, kind: output, shape index: {}]
  %s12 = sld [smem:[#allocation0]]
  $region89: #{tpu_custom_call.1} parent=0
    _
  %s14 = ssub.s32 1, %s12
  %s15 = scalar_select 0, %s14, %s12
  $region1: #{tpu_custom_call.1} parent=0
    #allocation3 [shape = 'u8[512]{0}', space=smem, size = 0x200, scoped, tag = 'input window, operand 0, single buffered']
    #allocation4 [shape = 's32[2]{0}', space=sflag, size = 0x8, scoped, tag = 'scoped memory for tpu_custom_call.1']
    %16 = vsyncpa [#allocation4], 0
    loop: start=0, step=1, limit=4
    $region2: #{tpu_custom_call.1} parent=1 // loop_pre_header
      _
    $region3: #{tpu_custom_call.1} parent=1 // loop_header
      %s18 = sphi 0, %s22
      %p19 = scmp.ge.s32.totalorder %s18, 4
      %s25 = sphi 0, %s37
      %s26 = sphi 0, %s33
      %s27 = sphi 0, %s25
      %s28 = sphi 0, %s26
      %s29 = sphi 0, %s27
      %s30 = sphi 0, %s28
      %s38 = sphi 0, %s38
      %s40 = sphi 0, %s38
      %s41 = sphi 0, %s40
      %s55 = sphi 0, %s41
      %s65 = sphi 0, %s67
      %s68 = sphi 0, %s65
      %s69 = sphi 0, %s68
      %s85 = sphi 0, %s69
      %s95 = sphi 0, %s97
      %s98 = sphi 0, %s95
      %s99 = sphi 0, %s98
      %s115 = sphi 0, %s99
      %s125 = sphi 0, %s127
      %s128 = sphi 0, %s125
      %s129 = sphi 0, %s128
      %s145 = sphi 0, %s129
      %s149 = sphi 0, %s149
      %s151 = sphi 0, %s149
      %s152 = sphi 0, %s151
      %s166 = sphi 0, %s152
      %s170 = sphi 0, %s170
      %s172 = sphi 0, %s170
      %s173 = sphi 0, %s172
      %s187 = sphi 0, %s173
      %s191 = sphi 0, %s191
      %s193 = sphi 0, %s191
      %s194 = sphi 0, %s193
      %s208 = sphi 0, %s194
      %s212 = sphi 0, %s212
      %s214 = sphi 0, %s212
      %s215 = sphi 0, %s214
      %s229 = sphi 0, %s215
      %s233 = sphi 0, %s233
      %s235 = sphi 0, %s233
      %s236 = sphi 0, %s235
      %s250 = sphi 0, %s236
      %s254 = sphi 0, %s254
      %s256 = sphi 0, %s254
      %s257 = sphi 0, %s256
      %s271 = sphi 0, %s257
      %s275 = sphi 0, %s275
      %s277 = sphi 0, %s275
      %s278 = sphi 0, %s277
      %s292 = sphi 0, %s278
      %s298 = sphi 0, %s300
      %s301 = sphi 0, %s298
      %s302 = sphi 0, %s301
      %s318 = sphi 0, %s302
    $region4: #{tpu_custom_call.1} parent=1 // loop_header_branch
      %21 = sbr.rel (%p19) target = $region8
    $region5: #{tpu_custom_call.1} parent=1 // loop_body
      %s23 = ssub.s32 %s18, 1
      %s24 = ssub.s32 %s18, 2
      %s31 = sadd.s32 1, %s26
      %p32 = scmp.ge.s32.totalorder %s31, 2
      %s33 = scalar_select %p32, 0, %s31
      %s34 = sadd.s32 1, %s25
      %s35 = scalar_select %p32, %s34, %s25
      %p36 = scmp.ge.s32.totalorder %s35, 1
      %s37 = scalar_select %p36, 0, %s35
      %s39 = sadd.s32 %s38, 1
      %p42 = scmp.eq.s32.totalorder %s18, 1
      %p43 = scmp.ne.s32.totalorder %s38, %s40
      %p44 = scmp.eq.s32.totalorder %s18, 0
      %p45 = por %p43, %p44
      %p46 = scmp.ne.s32.totalorder %s38, %s40
      %p47 = scmp.eq.s32.totalorder %s23, 1
      %p48 = por %p46, %p47
      %p49 = scmp.ne.s32.totalorder %s40, %s41
      %p50 = scmp.eq.s32.totalorder %s23, 0
      %p51 = por %p49, %p50
      %p52 = scmp.ne.s32.totalorder %s40, %s41
      %p53 = scmp.eq.s32.totalorder %s24, 1
      %p54 = por %p52, %p53
      %p56 = scmp.ne.s32.totalorder %s41, %s55
      %p57 = scmp.eq.s32.totalorder %s24, 0
      %p58 = por %p56, %p57
      %s59 = smul.u32 %s25, 2
      %s60 = sadd.s32 %s59, %s26
      %s61 = smul.u32 %s37, 2
      %s62 = sadd.s32 %s61, %s33
      %s63 = ssub.s32 %s60, %s62
      %p64 = scmp.eq.s32.totalorder %s63, 0
      %s66 = sadd.s32 %s65, 1
      %s67 = scalar_select %p64, %s65, %s66
      %p70 = pneg %p64
      %p71 = scmp.eq.s32.totalorder %s18, 1
      %p72 = por %p70, %p71
      %p73 = scmp.ne.s32.totalorder %s65, %s68
      %p74 = scmp.eq.s32.totalorder %s18, 0
      %p75 = por %p73, %p74
      %p76 = scmp.ne.s32.totalorder %s65, %s68
      %p77 = scmp.eq.s32.totalorder %s23, 1
      %p78 = por %p76, %p77
      %p79 = scmp.ne.s32.totalorder %s68, %s69
      %p80 = scmp.eq.s32.totalorder %s23, 0
      %p81 = por %p79, %p80
      %p82 = scmp.ne.s32.totalorder %s68, %s69
      %p83 = scmp.eq.s32.totalorder %s24, 1
      %p84 = por %p82, %p83
      %p86 = scmp.ne.s32.totalorder %s69, %s85
      %p87 = scmp.eq.s32.totalorder %s24, 0
      %p88 = por %p86, %p87
      %s89 = smul.u32 %s25, 2
      %s90 = sadd.s32 %s89, %s26
      %s91 = smul.u32 %s37, 2
      %s92 = sadd.s32 %s91, %s33
      %s93 = ssub.s32 %s90, %s92
      %p94 = scmp.eq.s32.totalorder %s93, 0
      %s96 = sadd.s32 %s95, 1
      %s97 = scalar_select %p94, %s95, %s96
      %p100 = pneg %p94
      %p101 = scmp.eq.s32.totalorder %s18, 1
      %p102 = por %p100, %p101
      %p103 = scmp.ne.s32.totalorder %s95, %s98
      %p104 = scmp.eq.s32.totalorder %s18, 0
      %p105 = por %p103, %p104
      %p106 = scmp.ne.s32.totalorder %s95, %s98
      %p107 = scmp.eq.s32.totalorder %s23, 1
      %p108 = por %p106, %p107
      %p109 = scmp.ne.s32.totalorder %s98, %s99
      %p110 = scmp.eq.s32.totalorder %s23, 0
      %p111 = por %p109, %p110
      %p112 = scmp.ne.s32.totalorder %s98, %s99
      %p113 = scmp.eq.s32.totalorder %s24, 1
      %p114 = por %p112, %p113
      %p116 = scmp.ne.s32.totalorder %s99, %s115
      %p117 = scmp.eq.s32.totalorder %s24, 0
      %p118 = por %p116, %p117
      %s119 = smul.u32 %s25, 2
      %s120 = sadd.s32 %s119, %s26
      %s121 = smul.u32 %s37, 2
      %s122 = sadd.s32 %s121, %s33
      %s123 = ssub.s32 %s120, %s122
      %p124 = scmp.eq.s32.totalorder %s123, 0
      %s126 = sadd.s32 %s125, 1
      %s127 = scalar_select %p124, %s125, %s126
      %p130 = pneg %p124
      %p131 = scmp.eq.s32.totalorder %s18, 1
      %p132 = por %p130, %p131
      %p133 = scmp.ne.s32.totalorder %s125, %s128
      %p134 = scmp.eq.s32.totalorder %s18, 0
      %p135 = por %p133, %p134
      %p136 = scmp.ne.s32.totalorder %s125, %s128
      %p137 = scmp.eq.s32.totalorder %s23, 1
      %p138 = por %p136, %p137
      %p139 = scmp.ne.s32.totalorder %s128, %s129
      %p140 = scmp.eq.s32.totalorder %s23, 0
      %p141 = por %p139, %p140
      %p142 = scmp.ne.s32.totalorder %s128, %s129
      %p143 = scmp.eq.s32.totalorder %s24, 1
      %p144 = por %p142, %p143
      %p146 = scmp.ne.s32.totalorder %s129, %s145
      %p147 = scmp.eq.s32.totalorder %s24, 0
      %p148 = por %p146, %p147
      %s150 = sadd.s32 %s149, 1
      %p153 = scmp.eq.s32.totalorder %s18, 1
      %p154 = scmp.ne.s32.totalorder %s149, %s151
      %p155 = scmp.eq.s32.totalorder %s18, 0
      %p156 = por %p154, %p155
      %p157 = scmp.ne.s32.totalorder %s149, %s151
      %p158 = scmp.eq.s32.totalorder %s23, 1
      %p159 = por %p157, %p158
      %p160 = scmp.ne.s32.totalorder %s151, %s152
      %p161 = scmp.eq.s32.totalorder %s23, 0
      %p162 = por %p160, %p161
      %p163 = scmp.ne.s32.totalorder %s151, %s152
      %p164 = scmp.eq.s32.totalorder %s24, 1
      %p165 = por %p163, %p164
      %p167 = scmp.ne.s32.totalorder %s152, %s166
      %p168 = scmp.eq.s32.totalorder %s24, 0
      %p169 = por %p167, %p168
      %s171 = sadd.s32 %s170, 1
      %p174 = scmp.eq.s32.totalorder %s18, 1
      %p175 = scmp.ne.s32.totalorder %s170, %s172
      %p176 = scmp.eq.s32.totalorder %s18, 0
      %p177 = por %p175, %p176
      %p178 = scmp.ne.s32.totalorder %s170, %s172
      %p179 = scmp.eq.s32.totalorder %s23, 1
      %p180 = por %p178, %p179
      %p181 = scmp.ne.s32.totalorder %s172, %s173
      %p182 = scmp.eq.s32.totalorder %s23, 0
      %p183 = por %p181, %p182
      %p184 = scmp.ne.s32.totalorder %s172, %s173
      %p185 = scmp.eq.s32.totalorder %s24, 1
      %p186 = por %p184, %p185
      %p188 = scmp.ne.s32.totalorder %s173, %s187
      %p189 = scmp.eq.s32.totalorder %s24, 0
      %p190 = por %p188, %p189
      %s192 = sadd.s32 %s191, 1
      %p195 = scmp.eq.s32.totalorder %s18, 1
      %p196 = scmp.ne.s32.totalorder %s191, %s193
      %p197 = scmp.eq.s32.totalorder %s18, 0
      %p198 = por %p196, %p197
      %p199 = scmp.ne.s32.totalorder %s191, %s193
      %p200 = scmp.eq.s32.totalorder %s23, 1
      %p201 = por %p199, %p200
      %p202 = scmp.ne.s32.totalorder %s193, %s194
      %p203 = scmp.eq.s32.totalorder %s23, 0
      %p204 = por %p202, %p203
      %p205 = scmp.ne.s32.totalorder %s193, %s194
      %p206 = scmp.eq.s32.totalorder %s24, 1
      %p207 = por %p205, %p206
      %p209 = scmp.ne.s32.totalorder %s194, %s208
      %p210 = scmp.eq.s32.totalorder %s24, 0
      %p211 = por %p209, %p210
      %s213 = sadd.s32 %s212, 1
      %p216 = scmp.eq.s32.totalorder %s18, 1
      %p217 = scmp.ne.s32.totalorder %s212, %s214
      %p218 = scmp.eq.s32.totalorder %s18, 0
      %p219 = por %p217, %p218
      %p220 = scmp.ne.s32.totalorder %s212, %s214
      %p221 = scmp.eq.s32.totalorder %s23, 1
      %p222 = por %p220, %p221
      %p223 = scmp.ne.s32.totalorder %s214, %s215
      %p224 = scmp.eq.s32.totalorder %s23, 0
      %p225 = por %p223, %p224
      %p226 = scmp.ne.s32.totalorder %s214, %s215
      %p227 = scmp.eq.s32.totalorder %s24, 1
      %p228 = por %p226, %p227
      %p230 = scmp.ne.s32.totalorder %s215, %s229
      %p231 = scmp.eq.s32.totalorder %s24, 0
      %p232 = por %p230, %p231
      %s234 = sadd.s32 %s233, 1
      %p237 = scmp.eq.s32.totalorder %s18, 1
      %p238 = scmp.ne.s32.totalorder %s233, %s235
      %p239 = scmp.eq.s32.totalorder %s18, 0
      %p240 = por %p238, %p239
      %p241 = scmp.ne.s32.totalorder %s233, %s235
      %p242 = scmp.eq.s32.totalorder %s23, 1
      %p243 = por %p241, %p242
      %p244 = scmp.ne.s32.totalorder %s235, %s236
      %p245 = scmp.eq.s32.totalorder %s23, 0
      %p246 = por %p244, %p245
      %p247 = scmp.ne.s32.totalorder %s235, %s236
      %p248 = scmp.eq.s32.totalorder %s24, 1
      %p249 = por %p247, %p248
      %p251 = scmp.ne.s32.totalorder %s236, %s250
      %p252 = scmp.eq.s32.totalorder %s24, 0
      %p253 = por %p251, %p252
      %s255 = sadd.s32 %s254, 1
      %p258 = scmp.eq.s32.totalorder %s18, 1
      %p259 = scmp.ne.s32.totalorder %s254, %s256
      %p260 = scmp.eq.s32.totalorder %s18, 0
      %p261 = por %p259, %p260
      %p262 = scmp.ne.s32.totalorder %s254, %s256
      %p263 = scmp.eq.s32.totalorder %s23, 1
      %p264 = por %p262, %p263
      %p265 = scmp.ne.s32.totalorder %s256, %s257
      %p266 = scmp.eq.s32.totalorder %s23, 0
      %p267 = por %p265, %p266
      %p268 = scmp.ne.s32.totalorder %s256, %s257
      %p269 = scmp.eq.s32.totalorder %s24, 1
      %p270 = por %p268, %p269
      %p272 = scmp.ne.s32.totalorder %s257, %s271
      %p273 = scmp.eq.s32.totalorder %s24, 0
      %p274 = por %p272, %p273
      %s276 = sadd.s32 %s275, 1
      %p279 = scmp.eq.s32.totalorder %s18, 1
      %p280 = scmp.ne.s32.totalorder %s275, %s277
      %p281 = scmp.eq.s32.totalorder %s18, 0
      %p282 = por %p280, %p281
      %p283 = scmp.ne.s32.totalorder %s275, %s277
      %p284 = scmp.eq.s32.totalorder %s23, 1
      %p285 = por %p283, %p284
      %p286 = scmp.ne.s32.totalorder %s277, %s278
      %p287 = scmp.eq.s32.totalorder %s23, 0
      %p288 = por %p286, %p287
      %p289 = scmp.ne.s32.totalorder %s277, %s278
      %p290 = scmp.eq.s32.totalorder %s24, 1
      %p291 = por %p289, %p290
      %p293 = scmp.ne.s32.totalorder %s278, %s292
      %p294 = scmp.eq.s32.totalorder %s24, 0
      %p295 = por %p293, %p294
      %s296 = ssub.s32 %s25, %s37
      %p297 = scmp.eq.s32.totalorder %s296, 0
      %s299 = sadd.s32 %s298, 1
      %s300 = scalar_select %p297, %s298, %s299
      %p303 = pneg %p297
      %p304 = scmp.eq.s32.totalorder %s18, 1
      %p305 = por %p303, %p304
      %p306 = scmp.ne.s32.totalorder %s298, %s301
      %p307 = scmp.eq.s32.totalorder %s18, 0
      %p308 = por %p306, %p307
      %p309 = scmp.ne.s32.totalorder %s298, %s301
      %p310 = scmp.eq.s32.totalorder %s23, 1
      %p311 = por %p309, %p310
      %p312 = scmp.ne.s32.totalorder %s301, %s302
      %p313 = scmp.eq.s32.totalorder %s23, 0
      %p314 = por %p312, %p313
      %p315 = scmp.ne.s32.totalorder %s301, %s302
      %p316 = scmp.eq.s32.totalorder %s24, 1
      %p317 = por %p315, %p316
      %p319 = scmp.ne.s32.totalorder %s302, %s318
      %p320 = scmp.eq.s32.totalorder %s24, 0
      %p321 = por %p319, %p320
      %p322 = scmp.le.s32.totalorder 1, %s18
      %p323 = scmp.lt.s32.totalorder %s18, 3
      %p324 = pnand %p322, %p323
      %p325 = pneg %p324
      // Predicated region
      $region9: #{tpu_custom_call.1} parent=5 // pred_check
        _
      $region10: #{tpu_custom_call.1} parent=5 // pred_check_branch
        %327 = sbr.rel (%p324) target = $region12
      $region11: #{tpu_custom_call.1} parent=5 // pred_region
        %s328 = ssub.s32 %s18, 1
        // Predicated region
        $region13: #{tpu_custom_call.1} parent=11 // pred_check
          %p329 = pneg %p51
        $region14: #{tpu_custom_call.1} parent=11 // pred_check_branch
          %331 = sbr.rel (%p329) target = $region16
        $region15: #{tpu_custom_call.1} parent=11 // pred_region
          %s333 = ssub.s32 16, 16
          %334 = vsyncadd [#allocation4], %s333
          %337 = dma.hbm_to_smem %s0, 16, [#allocation3], [#allocation4]
        $region16: #{tpu_custom_call.1} parent=11 // pred_fallthru
          _
        // Predicated region
        $region17: #{tpu_custom_call.1} parent=11 // pred_check
          %p338 = pneg %p162
        $region18: #{tpu_custom_call.1} parent=11 // pred_check_branch
          %340 = sbr.rel (%p338) target = $region20
        $region19: #{tpu_custom_call.1} parent=11 // pred_region
          _
        $region20: #{tpu_custom_call.1} parent=11 // pred_fallthru
          _
        // Predicated region
        $region21: #{tpu_custom_call.1} parent=11 // pred_check
          %p341 = pneg %p183
        $region22: #{tpu_custom_call.1} parent=11 // pred_check_branch
          %343 = sbr.rel (%p341) target = $region24
        $region23: #{tpu_custom_call.1} parent=11 // pred_region
          _
        $region24: #{tpu_custom_call.1} parent=11 // pred_fallthru
          _
        // Predicated region
        $region25: #{tpu_custom_call.1} parent=11 // pred_check
          %p344 = pneg %p204
        $region26: #{tpu_custom_call.1} parent=11 // pred_check_branch
          %346 = sbr.rel (%p344) target = $region28
        $region27: #{tpu_custom_call.1} parent=11 // pred_region
          _
        $region28: #{tpu_custom_call.1} parent=11 // pred_fallthru
          _
        // Predicated region
        $region29: #{tpu_custom_call.1} parent=11 // pred_check
          %p347 = pneg %p225
        $region30: #{tpu_custom_call.1} parent=11 // pred_check_branch
          %349 = sbr.rel (%p347) target = $region32
        $region31: #{tpu_custom_call.1} parent=11 // pred_region
          _
        $region32: #{tpu_custom_call.1} parent=11 // pred_fallthru
          _
        // Predicated region
        $region33: #{tpu_custom_call.1} parent=11 // pred_check
          %p350 = pneg %p246
        $region34: #{tpu_custom_call.1} parent=11 // pred_check_branch
          %352 = sbr.rel (%p350) target = $region36
        $region35: #{tpu_custom_call.1} parent=11 // pred_region
          _
        $region36: #{tpu_custom_call.1} parent=11 // pred_fallthru
          _
        // Predicated region
        $region37: #{tpu_custom_call.1} parent=11 // pred_check
          %p353 = pneg %p267
        $region38: #{tpu_custom_call.1} parent=11 // pred_check_branch
          %355 = sbr.rel (%p353) target = $region40
        $region39: #{tpu_custom_call.1} parent=11 // pred_region
          _
        $region40: #{tpu_custom_call.1} parent=11 // pred_fallthru
          _
        // Predicated region
        $region41: #{tpu_custom_call.1} parent=11 // pred_check
          %p356 = pneg %p288
        $region42: #{tpu_custom_call.1} parent=11 // pred_check_branch
          %358 = sbr.rel (%p356) target = $region44
        $region43: #{tpu_custom_call.1} parent=11 // pred_region
          _
        $region44: #{tpu_custom_call.1} parent=11 // pred_fallthru
          _
      $region12: #{tpu_custom_call.1} parent=5 // pred_fallthru
        _
      %p359 = scmp.lt.s32.totalorder %s18, 2
      // Predicated region
      $region45: #{tpu_custom_call.1} parent=5 // pred_check
        %p360 = pneg %p359
      $region46: #{tpu_custom_call.1} parent=5 // pred_check_branch
        %362 = sbr.rel (%p360) target = $region48
      $region47: #{tpu_custom_call.1} parent=5 // pred_region
        // Predicated region
        $region49: #{tpu_custom_call.1} parent=47 // pred_check
          %p363 = pneg %p75
        $region50: #{tpu_custom_call.1} parent=47 // pred_check_branch
          %365 = sbr.rel (%p363) target = $region52
        $region51: #{tpu_custom_call.1} parent=47 // pred_region
          %s366 = smul.u32 %s25, 2
          %s367 = sadd.s32 %s366, %s26
          %s368 = smul.u32 4, %s367
          %p369 = scmp.lt.s32.totalorder %s368, 7
          %s370 = scalar_select %p369, %s368, 7
          %s371 = smul.addr %s370, 8
          %s372 = scalar_lea.vmem %s1, %s371
          %s373 = smul.u32 %s25, 2
          %s374 = sadd.s32 %s373, %s26
          %s375 = smul.u32 4, %s374
        $region52: #{tpu_custom_call.1} parent=47 // pred_fallthru
          _
        // Predicated region
        $region53: #{tpu_custom_call.1} parent=47 // pred_check
          %p376 = pneg %p105
        $region54: #{tpu_custom_call.1} parent=47 // pred_check_branch
          %378 = sbr.rel (%p376) target = $region56
        $region55: #{tpu_custom_call.1} parent=47 // pred_region
          %s379 = smul.u32 %s25, 2
          %s380 = sadd.s32 %s379, %s26
          %s381 = smul.u32 4, %s380
          %p382 = scmp.lt.s32.totalorder %s381, 7
          %s383 = scalar_select %p382, %s381, 7
          %s384 = smul.addr %s383, 4
          %s385 = scalar_lea.vmem %s2, %s384
          %s386 = smul.u32 %s25, 2
          %s387 = sadd.s32 %s386, %s26
          %s388 = smul.u32 4, %s387
        $region56: #{tpu_custom_call.1} parent=47 // pred_fallthru
          _
        // Predicated region
        $region57: #{tpu_custom_call.1} parent=47 // pred_check
          %p389 = pneg %p135
        $region58: #{tpu_custom_call.1} parent=47 // pred_check_branch
          %391 = sbr.rel (%p389) target = $region60
        $region59: #{tpu_custom_call.1} parent=47 // pred_region
          %s392 = smul.u32 %s25, 2
          %s393 = sadd.s32 %s392, %s26
          %s394 = smul.u32 4, %s393
          %p395 = scmp.lt.s32.totalorder %s394, 7
          %s396 = scalar_select %p395, %s394, 7
          %s397 = smul.addr %s396, 4
          %s398 = scalar_lea.vmem %s3, %s397
          %s399 = smul.u32 %s25, 2
          %s400 = sadd.s32 %s399, %s26
          %s401 = smul.u32 4, %s400
        $region60: #{tpu_custom_call.1} parent=47 // pred_fallthru
          _
      $region48: #{tpu_custom_call.1} parent=5 // pred_fallthru
        _
      %p402 = scmp.le.s32.totalorder 1, %s18
      %p403 = scmp.lt.s32.totalorder %s18, 3
      %p404 = pnand %p402, %p403
      %p405 = pneg %p404
      // Predicated region
      $region61: #{tpu_custom_call.1} parent=5 // pred_check
        _
      $region62: #{tpu_custom_call.1} parent=5 // pred_check_branch
        %407 = sbr.rel (%p404) target = $region64
      $region63: #{tpu_custom_call.1} parent=5 // pred_region
        %s408 = ssub.s32 %s18, 1
        // Predicated region
        $region65: #{tpu_custom_call.1} parent=63 // pred_check
          %p409 = pneg %p51
        $region66: #{tpu_custom_call.1} parent=63 // pred_check_branch
          %411 = sbr.rel (%p409) target = $region68
        $region67: #{tpu_custom_call.1} parent=63 // pred_region
          %412 = dma.done [#allocation4], 16
        $region68: #{tpu_custom_call.1} parent=63 // pred_fallthru
          _
        %413 = sfence
        %p414 = pneg %p51
        %p415 = pneg %p48
        %s416 = smul.u32 %s27, 2
        %s417 = sadd.s32 %s416, %s28
        %s418 = smul.u32 4, %s417
        %p419 = scmp.lt.s32.totalorder %s418, 7
        %s420 = scalar_select %p419, %s418, 7
        %s421 = smul.addr %s420, 8
        %s422 = scalar_lea.vmem %s1, %s421
        %p423 = pneg %p81
        %p424 = pneg %p78
        %s425 = smul.u32 %s27, 2
        %s426 = sadd.s32 %s425, %s28
        %s427 = smul.u32 4, %s426
        %p428 = scmp.lt.s32.totalorder %s427, 7
        %s429 = scalar_select %p428, %s427, 7
        %s430 = smul.addr %s429, 4
        %s431 = scalar_lea.vmem %s2, %s430
        %p432 = pneg %p111
        %p433 = pneg %p108
        %s434 = smul.u32 %s27, 2
        %s435 = sadd.s32 %s434, %s28
        %s436 = smul.u32 4, %s435
        %p437 = scmp.lt.s32.totalorder %s436, 7
        %s438 = scalar_select %p437, %s436, 7
        %s439 = smul.addr %s438, 4
        %s440 = scalar_lea.vmem %s3, %s439
        %p441 = pneg %p141
        %p442 = pneg %p138
        %p443 = pneg %p162
        %p444 = pneg %p159
        %p445 = pneg %p183
        %p446 = pneg %p180
        %p447 = pneg %p204
        %p448 = pneg %p201
        %p449 = pneg %p225
        %p450 = pneg %p222
        %p451 = pneg %p246
        %p452 = pneg %p243
        %p453 = pneg %p267
        %p454 = pneg %p264
        %p455 = pneg %p288
        %p456 = pneg %p285
        %p457 = pneg %p314
        %p458 = pneg %p311
        %p459 = scmp.lt.s32.totalorder %s27, 0
        %s460 = scalar_select %p459, %s27, 0
        %s461 = smul.addr %s460, 4
        %s462 = scalar_lea.vmem %s11, %s461
        %s463 = smul.u32 %s27, 2
        %s464 = sadd.s32 %s463, %s28
        %s465 = smul.u32 4, %s464
        %p466 = scmp.lt.s32.totalorder %s465, 7
        %s467 = scalar_select %p466, %s465, 7
        %s468 = smul.addr %s467, 8
        %s469 = scalar_lea.vmem %s1, %s468
        %s470 = smul.u32 %s27, 2
        %s471 = sadd.s32 %s470, %s28
        %s472 = smul.u32 4, %s471
        %s473 = smul.u32 %s27, 2
        %s474 = sadd.s32 %s473, %s28
        %s475 = smul.u32 4, %s474
        %p476 = scmp.lt.s32.totalorder %s475, 7
        %s477 = scalar_select %p476, %s475, 7
        %s478 = smul.addr %s477, 4
        %s479 = scalar_lea.vmem %s2, %s478
        %s480 = smul.u32 %s27, 2
        %s481 = sadd.s32 %s480, %s28
        %s482 = smul.u32 4, %s481
        %s483 = smul.u32 %s27, 2
        %s484 = sadd.s32 %s483, %s28
        %s485 = smul.u32 4, %s484
        %p486 = scmp.lt.s32.totalorder %s485, 7
        %s487 = scalar_select %p486, %s485, 7
        %s488 = smul.addr %s487, 4
        %s489 = scalar_lea.vmem %s3, %s488
        %s490 = smul.u32 %s27, 2
        %s491 = sadd.s32 %s490, %s28
        %s492 = smul.u32 4, %s491
        %p493 = scmp.lt.s32.totalorder %s27, 0
        %s494 = scalar_select %p493, %s27, 0
        %s495 = smul.addr %s494, 4
        %s496 = scalar_lea.vmem %s11, %s495
        %p498 = scmp.eq.s32.totalorder %s28, 0
        // Predicated region
        $region69: #{tpu_custom_call.1} parent=63 // pred_check
          %p499 = pneg %p498
        $region70: #{tpu_custom_call.1} parent=63 // pred_check_branch
          %501 = sbr.rel (%p499) target = $region72
        $region71: #{tpu_custom_call.1} parent=63 // pred_region
          %vm502 = vcmask 19456
          %503 = vst.msk [vmem:[#allocation2] sm:$0xf] %vm502, 0.0
        $region72: #{tpu_custom_call.1} parent=63 // pred_fallthru
          _
        %v504 = vld [vmem:[%s4] sm:$0xf]
        %v505 = vld [vmem:[%s4 + $0x4] sm:$0xf]
        %v506 = vld [vmem:[%s4 + $0x8] sm:$0xf]
        %v507 = vld [vmem:[%s4 + $0xc] sm:$0xf]
        %v508 = vld [vmem:[%s4 + $0x10] sm:$0xf]
        %v509 = vld [vmem:[%s4 + $0x14] sm:$0xf]
        %v510 = vld [vmem:[%s4 + $0x18] sm:$0xf]
        %v511 = vld [vmem:[%s4 + $0x1c] sm:$0xf]
        %v512 = vld [vmem:[%s4 + $0x20] sm:$0xf]
        %v513 = vld [vmem:[%s4 + $0x24] sm:$0xf]
        %v514 = vld [vmem:[%s4 + $0x28] sm:$0xf]
        %v515 = vld [vmem:[%s4 + $0x2c] sm:$0xf]
        %v516 = vld [vmem:[%s4 + $0x30] sm:$0xf]
        %v517 = vld [vmem:[%s4 + $0x34] sm:$0xf]
        %v518 = vld [vmem:[%s4 + $0x38] sm:$0xf]
        %v519 = vld [vmem:[%s4 + $0x3c] sm:$0xf]
        %v520 = vld [vmem:[%s4 + $0x40] sm:$0xf]
        %v521 = vld [vmem:[%s4 + $0x44] sm:$0xf]
        %v522 = vld [vmem:[%s4 + $0x48] sm:$0xf]
        %v523 = vld [vmem:[%s4 + $0x4c] sm:$0xf]
        %v524 = vld [vmem:[%s4 + $0x50] sm:$0xf]
        %v525 = vld [vmem:[%s4 + $0x54] sm:$0xf]
        %v526 = vld [vmem:[%s4 + $0x58] sm:$0xf]
        %v527 = vld [vmem:[%s4 + $0x5c] sm:$0xf]
        %v528 = vld [vmem:[%s4 + $0x60] sm:$0xf]
        %v529 = vld [vmem:[%s4 + $0x64] sm:$0xf]
        %v530 = vld [vmem:[%s4 + $0x68] sm:$0xf]
        %v531 = vld [vmem:[%s4 + $0x6c] sm:$0xf]
        %v532 = vld [vmem:[%s4 + $0x70] sm:$0xf]
        %v533 = vld [vmem:[%s4 + $0x74] sm:$0xf]
        %v534 = vld [vmem:[%s4 + $0x78] sm:$0xf]
        %v535 = vld [vmem:[%s4 + $0x7c] sm:$0xf]
        %v536 = vld [vmem:[%s479] sm:$0x77]
        %v537 = vld [vmem:[%s479 + $0x8] sm:$0x77]
        %v540 = vcombine.high %v536, %v536
        %v541 = vcombine.high %v537, %v537
        %v544 = vpack.c.bf16 %v536, %v536
        %v545 = vpack.c.bf16 %v540, %v540
        %v546 = vpack.c.bf16 %v537, %v537
        %v547 = vpack.c.bf16 %v541, %v541
        %v548 = vld [vmem:[%s5] sm:$0xff]
        %v549 = vld [vmem:[%s5 + $0x8] sm:$0xff]
        %v550 = vld [vmem:[%s5 + $0x10] sm:$0xff]
        %v551 = vld [vmem:[%s5 + $0x18] sm:$0xff]
        %v552 = vld [vmem:[%s5 + $0x20] sm:$0xff]
        %v553 = vld [vmem:[%s5 + $0x28] sm:$0xff]
        %v554 = vld [vmem:[%s5 + $0x30] sm:$0xff]
        %v555 = vld [vmem:[%s5 + $0x38] sm:$0xff]
        %v556 = vld [vmem:[%s5 + $0x40] sm:$0xff]
        %v557 = vld [vmem:[%s5 + $0x48] sm:$0xff]
        %v558 = vld [vmem:[%s5 + $0x50] sm:$0xff]
        %v559 = vld [vmem:[%s5 + $0x58] sm:$0xff]
        %v560 = vld [vmem:[%s5 + $0x60] sm:$0xff]
        %v561 = vld [vmem:[%s5 + $0x68] sm:$0xff]
        %v562 = vld [vmem:[%s5 + $0x70] sm:$0xff]
        %v563 = vld [vmem:[%s5 + $0x78] sm:$0xff]
        %v564 = vld [vmem:[%s5 + $0x80] sm:$0xff]
        %v565 = vld [vmem:[%s5 + $0x88] sm:$0xff]
        %v566 = vld [vmem:[%s5 + $0x90] sm:$0xff]
        %v567 = vld [vmem:[%s5 + $0x98] sm:$0xff]
        %v568 = vld [vmem:[%s5 + $0xa0] sm:$0xff]
        %v569 = vld [vmem:[%s5 + $0xa8] sm:$0xff]
        %v570 = vld [vmem:[%s5 + $0xb0] sm:$0xff]
        %v571 = vld [vmem:[%s5 + $0xb8] sm:$0xff]
        %v572 = vld [vmem:[%s5 + $0xc0] sm:$0xff]
        %v573 = vld [vmem:[%s5 + $0xc8] sm:$0xff]
        %v574 = vld [vmem:[%s5 + $0xd0] sm:$0xff]
        %v575 = vld [vmem:[%s5 + $0xd8] sm:$0xff]
        %v576 = vld [vmem:[%s5 + $0xe0] sm:$0xff]
        %v577 = vld [vmem:[%s5 + $0xe8] sm:$0xff]
        %v578 = vld [vmem:[%s5 + $0xf0] sm:$0xff]
        %v579 = vld [vmem:[%s5 + $0xf8] sm:$0xff]
        %581 = vset.pattern.permute.xlu0 0
        %582 = vperm.xlu0 %581, %v548
        %v583 = vpop.permute.xlu0 %582
        %586 = vset.pattern.permute.xlu0 0
        %587 = vperm.xlu0 %586, %v549
        %v588 = vpop.permute.xlu0 %587
        %591 = vset.pattern.permute.xlu0 0
        %592 = vperm.xlu0 %591, %v550
        %v593 = vpop.permute.xlu0 %592
        %596 = vset.pattern.permute.xlu0 0
        %597 = vperm.xlu0 %596, %v551
        %v598 = vpop.permute.xlu0 %597
        %601 = vset.pattern.permute.xlu0 0
        %602 = vperm.xlu0 %601, %v552
        %v603 = vpop.permute.xlu0 %602
        %606 = vset.pattern.permute.xlu0 0
        %607 = vperm.xlu0 %606, %v553
        %v608 = vpop.permute.xlu0 %607
        %611 = vset.pattern.permute.xlu0 0
        %612 = vperm.xlu0 %611, %v554
        %v613 = vpop.permute.xlu0 %612
        %616 = vset.pattern.permute.xlu0 0
        %617 = vperm.xlu0 %616, %v555
        %v618 = vpop.permute.xlu0 %617
        %621 = vset.pattern.permute.xlu0 0
        %622 = vperm.xlu0 %621, %v556
        %v623 = vpop.permute.xlu0 %622
        %626 = vset.pattern.permute.xlu0 0
        %627 = vperm.xlu0 %626, %v557
        %v628 = vpop.permute.xlu0 %627
        %631 = vset.pattern.permute.xlu0 0
        %632 = vperm.xlu0 %631, %v558
        %v633 = vpop.permute.xlu0 %632
        %636 = vset.pattern.permute.xlu0 0
        %637 = vperm.xlu0 %636, %v559
        %v638 = vpop.permute.xlu0 %637
        %641 = vset.pattern.permute.xlu0 0
        %642 = vperm.xlu0 %641, %v560
        %v643 = vpop.permute.xlu0 %642
        %646 = vset.pattern.permute.xlu0 0
        %647 = vperm.xlu0 %646, %v561
        %v648 = vpop.permute.xlu0 %647
        %651 = vset.pattern.permute.xlu0 0
        %652 = vperm.xlu0 %651, %v562
        %v653 = vpop.permute.xlu0 %652
        %656 = vset.pattern.permute.xlu0 0
        %657 = vperm.xlu0 %656, %v563
        %v658 = vpop.permute.xlu0 %657
        %661 = vset.pattern.permute.xlu0 0
        %662 = vperm.xlu0 %661, %v564
        %v663 = vpop.permute.xlu0 %662
        %666 = vset.pattern.permute.xlu0 0
        %667 = vperm.xlu0 %666, %v565
        %v668 = vpop.permute.xlu0 %667
        %671 = vset.pattern.permute.xlu0 0
        %672 = vperm.xlu0 %671, %v566
        %v673 = vpop.permute.xlu0 %672
        %676 = vset.pattern.permute.xlu0 0
        %677 = vperm.xlu0 %676, %v567
        %v678 = vpop.permute.xlu0 %677
        %681 = vset.pattern.permute.xlu0 0
        %682 = vperm.xlu0 %681, %v568
        %v683 = vpop.permute.xlu0 %682
        %686 = vset.pattern.permute.xlu0 0
        %687 = vperm.xlu0 %686, %v569
        %v688 = vpop.permute.xlu0 %687
        %691 = vset.pattern.permute.xlu0 0
        %692 = vperm.xlu0 %691, %v570
        %v693 = vpop.permute.xlu0 %692
        %696 = vset.pattern.permute.xlu0 0
        %697 = vperm.xlu0 %696, %v571
        %v698 = vpop.permute.xlu0 %697
        %701 = vset.pattern.permute.xlu0 0
        %702 = vperm.xlu0 %701, %v572
        %v703 = vpop.permute.xlu0 %702
        %706 = vset.pattern.permute.xlu0 0
        %707 = vperm.xlu0 %706, %v573
        %v708 = vpop.permute.xlu0 %707
        %711 = vset.pattern.permute.xlu0 0
        %712 = vperm.xlu0 %711, %v574
        %v713 = vpop.permute.xlu0 %712
        %716 = vset.pattern.permute.xlu0 0
        %717 = vperm.xlu0 %716, %v575
        %v718 = vpop.permute.xlu0 %717
        %721 = vset.pattern.permute.xlu0 0
        %722 = vperm.xlu0 %721, %v576
        %v723 = vpop.permute.xlu0 %722
        %726 = vset.pattern.permute.xlu0 0
        %727 = vperm.xlu0 %726, %v577
        %v728 = vpop.permute.xlu0 %727
        %731 = vset.pattern.permute.xlu0 0
        %732 = vperm.xlu0 %731, %v578
        %v733 = vpop.permute.xlu0 %732
        %736 = vset.pattern.permute.xlu0 0
        %737 = vperm.xlu0 %736, %v579
        %v738 = vpop.permute.xlu0 %737
        %v772 = vunpack.c.l.b16 %v504
        %v773 = vunpack.c.l.b16 %v505
        %v774 = vunpack.c.l.b16 %v506
        %v775 = vunpack.c.l.b16 %v507
        %v776 = vunpack.c.l.b16 %v508
        %v777 = vunpack.c.l.b16 %v509
        %v778 = vunpack.c.l.b16 %v510
        %v779 = vunpack.c.l.b16 %v511
        %v780 = vunpack.c.l.b16 %v512
        %v781 = vunpack.c.l.b16 %v513
        %v782 = vunpack.c.l.b16 %v514
        %v783 = vunpack.c.l.b16 %v515
        %v784 = vunpack.c.l.b16 %v516
        %v785 = vunpack.c.l.b16 %v517
        %v786 = vunpack.c.l.b16 %v518
        %v787 = vunpack.c.l.b16 %v519
        %v788 = vunpack.c.l.b16 %v520
        %v789 = vunpack.c.l.b16 %v521
        %v790 = vunpack.c.l.b16 %v522
        %v791 = vunpack.c.l.b16 %v523
        %v792 = vunpack.c.l.b16 %v524
        %v793 = vunpack.c.l.b16 %v525
        %v794 = vunpack.c.l.b16 %v526
        %v795 = vunpack.c.l.b16 %v527
        %v796 = vunpack.c.l.b16 %v528
        %v797 = vunpack.c.l.b16 %v529
        %v798 = vunpack.c.l.b16 %v530
        %v799 = vunpack.c.l.b16 %v531
        %v800 = vunpack.c.l.b16 %v532
        %v801 = vunpack.c.l.b16 %v533
        %v802 = vunpack.c.l.b16 %v534
        %v803 = vunpack.c.l.b16 %v535
        %v804 = vpack.c.b16 %v773, %v772
        %v805 = vpack.c.b16 %v775, %v774
        %v806 = vpack.c.b16 %v777, %v776
        %v807 = vpack.c.b16 %v779, %v778
        %v808 = vpack.c.b16 %v781, %v780
        %v809 = vpack.c.b16 %v783, %v782
        %v810 = vpack.c.b16 %v785, %v784
        %v811 = vpack.c.b16 %v787, %v786
        %v812 = vpack.c.b16 %v789, %v788
        %v813 = vpack.c.b16 %v791, %v790
        %v814 = vpack.c.b16 %v793, %v792
        %v815 = vpack.c.b16 %v795, %v794
        %v816 = vpack.c.b16 %v797, %v796
        %v817 = vpack.c.b16 %v799, %v798
        %v818 = vpack.c.b16 %v801, %v800
        %v819 = vpack.c.b16 %v803, %v802
        %vm820 = vcmask 23552
        %v822 = vsel %vm820, %v804, 0
        %v825 = vsel %vm820, %v805, 0
        %v828 = vsel %vm820, %v806, 0
        %v831 = vsel %vm820, %v807, 0
        %v834 = vsel %vm820, %v808, 0
        %v837 = vsel %vm820, %v809, 0
        %v840 = vsel %vm820, %v810, 0
        %v843 = vsel %vm820, %v811, 0
        %v846 = vsel %vm820, %v812, 0
        %v849 = vsel %vm820, %v813, 0
        %v852 = vsel %vm820, %v814, 0
        %v855 = vsel %vm820, %v815, 0
        %v858 = vsel %vm820, %v816, 0
        %v861 = vsel %vm820, %v817, 0
        %v864 = vsel %vm820, %v818, 0
        %v867 = vsel %vm820, %v819, 0
        %vm869 = vcmask 1040384
        %vm870 = vcmask 1041408
        %v871 = vsel %vm869, 4294967295, 65535
        %v872 = vsel %vm870, %v871, 0
        %v874 = vand.u32 %v544, %v872
        %v877 = vand.u32 %v545, %v872
        %v880 = vand.u32 %v546, %v872
        %v883 = vand.u32 %v547, %v872
        %885 = vmatprep.subr.bf16.mxu0 0
        %886 = vmatpush1.bf16.msra.mxu0 0
        %887 = vmatprep.subr.bf16.mxu0 0
        %888 = vmatpush1.bf16.msra.mxu0 0
        %889 = vmatprep.subr.bf16.mxu0 0
        %890 = vmatpush1.bf16.msra.mxu0 0
        %891 = vmatprep.subr.bf16.mxu0 0
        %892 = vmatpush1.bf16.msra.mxu0 0
        %893 = vmatprep.subr.bf16.mxu0 0
        %894 = vmatpush1.bf16.msra.mxu0 0
        %895 = vmatprep.subr.bf16.mxu0 0
        %896 = vmatpush1.bf16.msra.mxu0 0
        %897 = vmatprep.subr.bf16.mxu0 0
        %898 = vmatpush1.bf16.msra.mxu0 0
        %899 = vmatprep.subr.bf16.mxu0 %v877
        %900 = vmatpush1.bf16.msra.mxu0 %v874
        %901 = vmatprep.subr.bf16.mxu0 0
        %902 = vmatpush2.bf16.msra.mxu0 0
        %903 = vmatprep.subr.bf16.mxu0 0
        %904 = vmatpush2.bf16.msra.mxu0 0
        %905 = vmatprep.subr.bf16.mxu0 0
        %906 = vmatpush2.bf16.msra.mxu0 0
        %907 = vmatprep.subr.bf16.mxu0 0
        %908 = vmatpush2.bf16.msra.mxu0 0
        %909 = vmatprep.subr.bf16.mxu0 0
        %910 = vmatpush2.bf16.msra.mxu0 0
        %911 = vmatprep.subr.bf16.mxu0 0
        %912 = vmatpush2.bf16.msra.mxu0 0
        %913 = vmatprep.subr.bf16.mxu0 0
        %914 = vmatpush2.bf16.msra.mxu0 0
        %915 = vmatprep.subr.bf16.mxu0 0
        %916 = vmatpush2.bf16.msra.mxu0 0
        %917 = vmatprep.mubr.bf16.mxu0 0
        %918 = vmatmul.mubr.bf16.gmra.mxu0 %v822
        %v919 = vpop.f32.mrf.mxu0
        %v920 = vadd.f32 %v583, %v919
        %v921 = vpop.f32.mrf.mxu0
        %v922 = vadd.f32 %v583, %v921
        %v923 = vpop.f32.mrf.mxu0
        %v924 = vadd.f32 %v588, %v923
        %v925 = vpop.f32.mrf.mxu0
        %v926 = vadd.f32 %v588, %v925
        %927 = vmatprep.mubr.bf16.mxu0 0
        %928 = vmatmul.mubr.bf16.gmra.mxu0 %v825
        %v929 = vpop.f32.mrf.mxu0
        %v930 = vadd.f32 %v593, %v929
        %v931 = vpop.f32.mrf.mxu0
        %v932 = vadd.f32 %v593, %v931
        %v933 = vpop.f32.mrf.mxu0
        %v934 = vadd.f32 %v598, %v933
        %v935 = vpop.f32.mrf.mxu0
        %v936 = vadd.f32 %v598, %v935
        %937 = vmatprep.mubr.bf16.mxu0 0
        %938 = vmatmul.mubr.bf16.gmra.mxu0 %v828
        %v939 = vpop.f32.mrf.mxu0
        %v940 = vadd.f32 %v603, %v939
        %v941 = vpop.f32.mrf.mxu0
        %v942 = vadd.f32 %v603, %v941
        %v943 = vpop.f32.mrf.mxu0
        %v944 = vadd.f32 %v608, %v943
        %v945 = vpop.f32.mrf.mxu0
        %v946 = vadd.f32 %v608, %v945
        %947 = vmatprep.mubr.bf16.mxu0 0
        %948 = vmatmul.mubr.bf16.gmra.mxu0 %v831
        %v949 = vpop.f32.mrf.mxu0
        %v950 = vadd.f32 %v613, %v949
        %v951 = vpop.f32.mrf.mxu0
        %v952 = vadd.f32 %v613, %v951
        %v953 = vpop.f32.mrf.mxu0
        %v954 = vadd.f32 %v618, %v953
        %v955 = vpop.f32.mrf.mxu0
        %v956 = vadd.f32 %v618, %v955
        %957 = vmatprep.mubr.bf16.mxu0 0
        %958 = vmatmul.mubr.bf16.gmra.mxu0 %v834
        %v959 = vpop.f32.mrf.mxu0
        %v960 = vadd.f32 %v623, %v959
        %v961 = vpop.f32.mrf.mxu0
        %v962 = vadd.f32 %v623, %v961
        %v963 = vpop.f32.mrf.mxu0
        %v964 = vadd.f32 %v628, %v963
        %v965 = vpop.f32.mrf.mxu0
        %v966 = vadd.f32 %v628, %v965
        %967 = vmatprep.mubr.bf16.mxu0 0
        %968 = vmatmul.mubr.bf16.gmra.mxu0 %v837
        %v969 = vpop.f32.mrf.mxu0
        %v970 = vadd.f32 %v633, %v969
        %v971 = vpop.f32.mrf.mxu0
        %v972 = vadd.f32 %v633, %v971
        %v973 = vpop.f32.mrf.mxu0
        %v974 = vadd.f32 %v638, %v973
        %v975 = vpop.f32.mrf.mxu0
        %v976 = vadd.f32 %v638, %v975
        %977 = vmatprep.mubr.bf16.mxu0 0
        %978 = vmatmul.mubr.bf16.gmra.mxu0 %v840
        %v979 = vpop.f32.mrf.mxu0
        %v980 = vadd.f32 %v643, %v979
        %v981 = vpop.f32.mrf.mxu0
        %v982 = vadd.f32 %v643, %v981
        %v983 = vpop.f32.mrf.mxu0
        %v984 = vadd.f32 %v648, %v983
        %v985 = vpop.f32.mrf.mxu0
        %v986 = vadd.f32 %v648, %v985
        %987 = vmatprep.mubr.bf16.mxu0 0
        %988 = vmatmul.mubr.bf16.gmra.mxu0 %v843
        %v989 = vpop.f32.mrf.mxu0
        %v990 = vadd.f32 %v653, %v989
        %v991 = vpop.f32.mrf.mxu0
        %v992 = vadd.f32 %v653, %v991
        %v993 = vpop.f32.mrf.mxu0
        %v994 = vadd.f32 %v658, %v993
        %v995 = vpop.f32.mrf.mxu0
        %v996 = vadd.f32 %v658, %v995
        %997 = vmatprep.mubr.bf16.mxu0 0
        %998 = vmatmul.mubr.bf16.gmra.mxu0 %v846
        %v999 = vpop.f32.mrf.mxu0
        %v1000 = vadd.f32 %v663, %v999
        %v1001 = vpop.f32.mrf.mxu0
        %v1002 = vadd.f32 %v663, %v1001
        %v1003 = vpop.f32.mrf.mxu0
        %v1004 = vadd.f32 %v668, %v1003
        %v1005 = vpop.f32.mrf.mxu0
        %v1006 = vadd.f32 %v668, %v1005
        %1007 = vmatprep.mubr.bf16.mxu0 0
        %1008 = vmatmul.mubr.bf16.gmra.mxu0 %v849
        %v1009 = vpop.f32.mrf.mxu0
        %v1010 = vadd.f32 %v673, %v1009
        %v1011 = vpop.f32.mrf.mxu0
        %v1012 = vadd.f32 %v673, %v1011
        %v1013 = vpop.f32.mrf.mxu0
        %v1014 = vadd.f32 %v678, %v1013
        %v1015 = vpop.f32.mrf.mxu0
        %v1016 = vadd.f32 %v678, %v1015
        %1017 = vmatprep.mubr.bf16.mxu0 0
        %1018 = vmatmul.mubr.bf16.gmra.mxu0 %v852
        %v1019 = vpop.f32.mrf.mxu0
        %v1020 = vadd.f32 %v683, %v1019
        %v1021 = vpop.f32.mrf.mxu0
        %v1022 = vadd.f32 %v683, %v1021
        %v1023 = vpop.f32.mrf.mxu0
        %v1024 = vadd.f32 %v688, %v1023
        %v1025 = vpop.f32.mrf.mxu0
        %v1026 = vadd.f32 %v688, %v1025
        %1027 = vmatprep.mubr.bf16.mxu0 0
        %1028 = vmatmul.mubr.bf16.gmra.mxu0 %v855
        %v1029 = vpop.f32.mrf.mxu0
        %v1030 = vadd.f32 %v693, %v1029
        %v1031 = vpop.f32.mrf.mxu0
        %v1032 = vadd.f32 %v693, %v1031
        %v1033 = vpop.f32.mrf.mxu0
        %v1034 = vadd.f32 %v698, %v1033
        %v1035 = vpop.f32.mrf.mxu0
        %v1036 = vadd.f32 %v698, %v1035
        %1037 = vmatprep.mubr.bf16.mxu0 0
        %1038 = vmatmul.mubr.bf16.gmra.mxu0 %v858
        %v1039 = vpop.f32.mrf.mxu0
        %v1040 = vadd.f32 %v703, %v1039
        %v1041 = vpop.f32.mrf.mxu0
        %v1042 = vadd.f32 %v703, %v1041
        %v1043 = vpop.f32.mrf.mxu0
        %v1044 = vadd.f32 %v708, %v1043
        %v1045 = vpop.f32.mrf.mxu0
        %v1046 = vadd.f32 %v708, %v1045
        %1047 = vmatprep.mubr.bf16.mxu0 0
        %1048 = vmatmul.mubr.bf16.gmra.mxu0 %v861
        %v1049 = vpop.f32.mrf.mxu0
        %v1050 = vadd.f32 %v713, %v1049
        %v1051 = vpop.f32.mrf.mxu0
        %v1052 = vadd.f32 %v713, %v1051
        %v1053 = vpop.f32.mrf.mxu0
        %v1054 = vadd.f32 %v718, %v1053
        %v1055 = vpop.f32.mrf.mxu0
        %v1056 = vadd.f32 %v718, %v1055
        %1057 = vmatprep.mubr.bf16.mxu0 0
        %1058 = vmatmul.mubr.bf16.gmra.mxu0 %v864
        %v1059 = vpop.f32.mrf.mxu0
        %v1060 = vadd.f32 %v723, %v1059
        %v1061 = vpop.f32.mrf.mxu0
        %v1062 = vadd.f32 %v723, %v1061
        %v1063 = vpop.f32.mrf.mxu0
        %v1064 = vadd.f32 %v728, %v1063
        %v1065 = vpop.f32.mrf.mxu0
        %v1066 = vadd.f32 %v728, %v1065
        %1067 = vmatprep.mubr.bf16.mxu0 0
        %1068 = vmatmul.mubr.bf16.gmra.mxu0 %v867
        %v1069 = vpop.f32.mrf.mxu0
        %v1070 = vadd.f32 %v733, %v1069
        %v1071 = vpop.f32.mrf.mxu0
        %v1072 = vadd.f32 %v733, %v1071
        %v1073 = vpop.f32.mrf.mxu0
        %v1074 = vadd.f32 %v738, %v1073
        %v1075 = vpop.f32.mrf.mxu0
        %v1076 = vadd.f32 %v738, %v1075
        %1077 = vdwg.mxu0
        %1078 = vmatprep.subr.bf16.mxu0 0
        %1079 = vmatpush1.bf16.msra.mxu0 0
        %1080 = vmatprep.subr.bf16.mxu0 0
        %1081 = vmatpush1.bf16.msra.mxu0 0
        %1082 = vmatprep.subr.bf16.mxu0 0
        %1083 = vmatpush1.bf16.msra.mxu0 0
        %1084 = vmatprep.subr.bf16.mxu0 0
        %1085 = vmatpush1.bf16.msra.mxu0 0
        %1086 = vmatprep.subr.bf16.mxu0 0
        %1087 = vmatpush1.bf16.msra.mxu0 0
        %1088 = vmatprep.subr.bf16.mxu0 0
        %1089 = vmatpush1.bf16.msra.mxu0 0
        %1090 = vmatprep.subr.bf16.mxu0 0
        %1091 = vmatpush1.bf16.msra.mxu0 0
        %1092 = vmatprep.subr.bf16.mxu0 %v883
        %1093 = vmatpush1.bf16.msra.mxu0 %v880
        %1094 = vmatprep.subr.bf16.mxu0 0
        %1095 = vmatpush2.bf16.msra.mxu0 0
        %1096 = vmatprep.subr.bf16.mxu0 0
        %1097 = vmatpush2.bf16.msra.mxu0 0
        %1098 = vmatprep.subr.bf16.mxu0 0
        %1099 = vmatpush2.bf16.msra.mxu0 0
        %1100 = vmatprep.subr.bf16.mxu0 0
        %1101 = vmatpush2.bf16.msra.mxu0 0
        %1102 = vmatprep.subr.bf16.mxu0 0
        %1103 = vmatpush2.bf16.msra.mxu0 0
        %1104 = vmatprep.subr.bf16.mxu0 0
        %1105 = vmatpush2.bf16.msra.mxu0 0
        %1106 = vmatprep.subr.bf16.mxu0 0
        %1107 = vmatpush2.bf16.msra.mxu0 0
        %1108 = vmatprep.subr.bf16.mxu0 0
        %1109 = vmatpush2.bf16.msra.mxu0 0
        %1110 = vmatprep.mubr.bf16.mxu0 0
        %1111 = vmatmul.mubr.bf16.gmra.mxu0 %v822
        %v1112 = vpop.f32.mrf.mxu0
        %v1113 = vadd.f32 %v583, %v1112
        %v1114 = vpop.f32.mrf.mxu0
        %v1115 = vadd.f32 %v583, %v1114
        %v1116 = vpop.f32.mrf.mxu0
        %v1117 = vadd.f32 %v588, %v1116
        %v1118 = vpop.f32.mrf.mxu0
        %v1119 = vadd.f32 %v588, %v1118
        %1120 = vmatprep.mubr.bf16.mxu0 0
        %1121 = vmatmul.mubr.bf16.gmra.mxu0 %v825
        %v1122 = vpop.f32.mrf.mxu0
        %v1123 = vadd.f32 %v593, %v1122
        %v1124 = vpop.f32.mrf.mxu0
        %v1125 = vadd.f32 %v593, %v1124
        %v1126 = vpop.f32.mrf.mxu0
        %v1127 = vadd.f32 %v598, %v1126
        %v1128 = vpop.f32.mrf.mxu0
        %v1129 = vadd.f32 %v598, %v1128
        %1130 = vmatprep.mubr.bf16.mxu0 0
        %1131 = vmatmul.mubr.bf16.gmra.mxu0 %v828
        %v1132 = vpop.f32.mrf.mxu0
        %v1133 = vadd.f32 %v603, %v1132
        %v1134 = vpop.f32.mrf.mxu0
        %v1135 = vadd.f32 %v603, %v1134
        %v1136 = vpop.f32.mrf.mxu0
        %v1137 = vadd.f32 %v608, %v1136
        %v1138 = vpop.f32.mrf.mxu0
        %v1139 = vadd.f32 %v608, %v1138
        %1140 = vmatprep.mubr.bf16.mxu0 0
        %1141 = vmatmul.mubr.bf16.gmra.mxu0 %v831
        %v1142 = vpop.f32.mrf.mxu0
        %v1143 = vadd.f32 %v613, %v1142
        %v1144 = vpop.f32.mrf.mxu0
        %v1145 = vadd.f32 %v613, %v1144
        %v1146 = vpop.f32.mrf.mxu0
        %v1147 = vadd.f32 %v618, %v1146
        %v1148 = vpop.f32.mrf.mxu0
        %v1149 = vadd.f32 %v618, %v1148
        %1150 = vmatprep.mubr.bf16.mxu0 0
        %1151 = vmatmul.mubr.bf16.gmra.mxu0 %v834
        %v1152 = vpop.f32.mrf.mxu0
        %v1153 = vadd.f32 %v623, %v1152
        %v1154 = vpop.f32.mrf.mxu0
        %v1155 = vadd.f32 %v623, %v1154
        %v1156 = vpop.f32.mrf.mxu0
        %v1157 = vadd.f32 %v628, %v1156
        %v1158 = vpop.f32.mrf.mxu0
        %v1159 = vadd.f32 %v628, %v1158
        %1160 = vmatprep.mubr.bf16.mxu0 0
        %1161 = vmatmul.mubr.bf16.gmra.mxu0 %v837
        %v1162 = vpop.f32.mrf.mxu0
        %v1163 = vadd.f32 %v633, %v1162
        %v1164 = vpop.f32.mrf.mxu0
        %v1165 = vadd.f32 %v633, %v1164
        %v1166 = vpop.f32.mrf.mxu0
        %v1167 = vadd.f32 %v638, %v1166
        %v1168 = vpop.f32.mrf.mxu0
        %v1169 = vadd.f32 %v638, %v1168
        %1170 = vmatprep.mubr.bf16.mxu0 0
        %1171 = vmatmul.mubr.bf16.gmra.mxu0 %v840
        %v1172 = vpop.f32.mrf.mxu0
        %v1173 = vadd.f32 %v643, %v1172
        %v1174 = vpop.f32.mrf.mxu0
        %v1175 = vadd.f32 %v643, %v1174
        %v1176 = vpop.f32.mrf.mxu0
        %v1177 = vadd.f32 %v648, %v1176
        %v1178 = vpop.f32.mrf.mxu0
        %v1179 = vadd.f32 %v648, %v1178
        %1180 = vmatprep.mubr.bf16.mxu0 0
        %1181 = vmatmul.mubr.bf16.gmra.mxu0 %v843
        %v1182 = vpop.f32.mrf.mxu0
        %v1183 = vadd.f32 %v653, %v1182
        %v1184 = vpop.f32.mrf.mxu0
        %v1185 = vadd.f32 %v653, %v1184
        %v1186 = vpop.f32.mrf.mxu0
        %v1187 = vadd.f32 %v658, %v1186
        %v1188 = vpop.f32.mrf.mxu0
        %v1189 = vadd.f32 %v658, %v1188
        %1190 = vmatprep.mubr.bf16.mxu0 0
        %1191 = vmatmul.mubr.bf16.gmra.mxu0 %v846
        %v1192 = vpop.f32.mrf.mxu0
        %v1193 = vadd.f32 %v663, %v1192
        %v1194 = vpop.f32.mrf.mxu0
        %v1195 = vadd.f32 %v663, %v1194
        %v1196 = vpop.f32.mrf.mxu0
        %v1197 = vadd.f32 %v668, %v1196
        %v1198 = vpop.f32.mrf.mxu0
        %v1199 = vadd.f32 %v668, %v1198
        %1200 = vmatprep.mubr.bf16.mxu0 0
        %1201 = vmatmul.mubr.bf16.gmra.mxu0 %v849
        %v1202 = vpop.f32.mrf.mxu0
        %v1203 = vadd.f32 %v673, %v1202
        %v1204 = vpop.f32.mrf.mxu0
        %v1205 = vadd.f32 %v673, %v1204
        %v1206 = vpop.f32.mrf.mxu0
        %v1207 = vadd.f32 %v678, %v1206
        %v1208 = vpop.f32.mrf.mxu0
        %v1209 = vadd.f32 %v678, %v1208
        %1210 = vmatprep.mubr.bf16.mxu0 0
        %1211 = vmatmul.mubr.bf16.gmra.mxu0 %v852
        %v1212 = vpop.f32.mrf.mxu0
        %v1213 = vadd.f32 %v683, %v1212
        %v1214 = vpop.f32.mrf.mxu0
        %v1215 = vadd.f32 %v683, %v1214
        %v1216 = vpop.f32.mrf.mxu0
        %v1217 = vadd.f32 %v688, %v1216
        %v1218 = vpop.f32.mrf.mxu0
        %v1219 = vadd.f32 %v688, %v1218
        %1220 = vmatprep.mubr.bf16.mxu0 0
        %1221 = vmatmul.mubr.bf16.gmra.mxu0 %v855
        %v1222 = vpop.f32.mrf.mxu0
        %v1223 = vadd.f32 %v693, %v1222
        %v1224 = vpop.f32.mrf.mxu0
        %v1225 = vadd.f32 %v693, %v1224
        %v1226 = vpop.f32.mrf.mxu0
        %v1227 = vadd.f32 %v698, %v1226
        %v1228 = vpop.f32.mrf.mxu0
        %v1229 = vadd.f32 %v698, %v1228
        %1230 = vmatprep.mubr.bf16.mxu0 0
        %1231 = vmatmul.mubr.bf16.gmra.mxu0 %v858
        %v1232 = vpop.f32.mrf.mxu0
        %v1233 = vadd.f32 %v703, %v1232
        %v1234 = vpop.f32.mrf.mxu0
        %v1235 = vadd.f32 %v703, %v1234
        %v1236 = vpop.f32.mrf.mxu0
        %v1237 = vadd.f32 %v708, %v1236
        %v1238 = vpop.f32.mrf.mxu0
        %v1239 = vadd.f32 %v708, %v1238
        %1240 = vmatprep.mubr.bf16.mxu0 0
        %1241 = vmatmul.mubr.bf16.gmra.mxu0 %v861
        %v1242 = vpop.f32.mrf.mxu0
        %v1243 = vadd.f32 %v713, %v1242
        %v1244 = vpop.f32.mrf.mxu0
        %v1245 = vadd.f32 %v713, %v1244
        %v1246 = vpop.f32.mrf.mxu0
        %v1247 = vadd.f32 %v718, %v1246
        %v1248 = vpop.f32.mrf.mxu0
        %v1249 = vadd.f32 %v718, %v1248
        %1250 = vmatprep.mubr.bf16.mxu0 0
        %1251 = vmatmul.mubr.bf16.gmra.mxu0 %v864
        %v1252 = vpop.f32.mrf.mxu0
        %v1253 = vadd.f32 %v723, %v1252
        %v1254 = vpop.f32.mrf.mxu0
        %v1255 = vadd.f32 %v723, %v1254
        %v1256 = vpop.f32.mrf.mxu0
        %v1257 = vadd.f32 %v728, %v1256
        %v1258 = vpop.f32.mrf.mxu0
        %v1259 = vadd.f32 %v728, %v1258
        %1260 = vmatprep.mubr.bf16.mxu0 0
        %1261 = vmatmul.mubr.bf16.gmra.mxu0 %v867
        %v1262 = vpop.f32.mrf.mxu0
        %v1263 = vadd.f32 %v733, %v1262
        %v1264 = vpop.f32.mrf.mxu0
        %v1265 = vadd.f32 %v733, %v1264
        %v1266 = vpop.f32.mrf.mxu0
        %v1267 = vadd.f32 %v738, %v1266
        %v1268 = vpop.f32.mrf.mxu0
        %v1269 = vadd.f32 %v738, %v1268
        %1270 = vdwg.mxu0
        %v1271 = vmax.f32 %v920, 0.0
        %v1272 = vmax.f32 %v922, 0.0
        %v1273 = vmax.f32 %v1113, 0.0
        %v1274 = vmax.f32 %v1115, 0.0
        %v1275 = vmax.f32 %v924, 0.0
        %v1276 = vmax.f32 %v926, 0.0
        %v1277 = vmax.f32 %v1117, 0.0
        %v1278 = vmax.f32 %v1119, 0.0
        %v1279 = vmax.f32 %v930, 0.0
        %v1280 = vmax.f32 %v932, 0.0
        %v1281 = vmax.f32 %v1123, 0.0
        %v1282 = vmax.f32 %v1125, 0.0
        %v1283 = vmax.f32 %v934, 0.0
        %v1284 = vmax.f32 %v936, 0.0
        %v1285 = vmax.f32 %v1127, 0.0
        %v1286 = vmax.f32 %v1129, 0.0
        %v1287 = vmax.f32 %v940, 0.0
        %v1288 = vmax.f32 %v942, 0.0
        %v1289 = vmax.f32 %v1133, 0.0
        %v1290 = vmax.f32 %v1135, 0.0
        %v1291 = vmax.f32 %v944, 0.0
        %v1292 = vmax.f32 %v946, 0.0
        %v1293 = vmax.f32 %v1137, 0.0
        %v1294 = vmax.f32 %v1139, 0.0
        %v1295 = vmax.f32 %v950, 0.0
        %v1296 = vmax.f32 %v952, 0.0
        %v1297 = vmax.f32 %v1143, 0.0
        %v1298 = vmax.f32 %v1145, 0.0
        %v1299 = vmax.f32 %v954, 0.0
        %v1300 = vmax.f32 %v956, 0.0
        %v1301 = vmax.f32 %v1147, 0.0
        %v1302 = vmax.f32 %v1149, 0.0
        %v1303 = vmax.f32 %v960, 0.0
        %v1304 = vmax.f32 %v962, 0.0
        %v1305 = vmax.f32 %v1153, 0.0
        %v1306 = vmax.f32 %v1155, 0.0
        %v1307 = vmax.f32 %v964, 0.0
        %v1308 = vmax.f32 %v966, 0.0
        %v1309 = vmax.f32 %v1157, 0.0
        %v1310 = vmax.f32 %v1159, 0.0
        %v1311 = vmax.f32 %v970, 0.0
        %v1312 = vmax.f32 %v972, 0.0
        %v1313 = vmax.f32 %v1163, 0.0
        %v1314 = vmax.f32 %v1165, 0.0
        %v1315 = vmax.f32 %v974, 0.0
        %v1316 = vmax.f32 %v976, 0.0
        %v1317 = vmax.f32 %v1167, 0.0
        %v1318 = vmax.f32 %v1169, 0.0
        %v1319 = vmax.f32 %v980, 0.0
        %v1320 = vmax.f32 %v982, 0.0
        %v1321 = vmax.f32 %v1173, 0.0
        %v1322 = vmax.f32 %v1175, 0.0
        %v1323 = vmax.f32 %v984, 0.0
        %v1324 = vmax.f32 %v986, 0.0
        %v1325 = vmax.f32 %v1177, 0.0
        %v1326 = vmax.f32 %v1179, 0.0
        %v1327 = vmax.f32 %v990, 0.0
        %v1328 = vmax.f32 %v992, 0.0
        %v1329 = vmax.f32 %v1183, 0.0
        %v1330 = vmax.f32 %v1185, 0.0
        %v1331 = vmax.f32 %v994, 0.0
        %v1332 = vmax.f32 %v996, 0.0
        %v1333 = vmax.f32 %v1187, 0.0
        %v1334 = vmax.f32 %v1189, 0.0
        %v1335 = vmax.f32 %v1000, 0.0
        %v1336 = vmax.f32 %v1002, 0.0
        %v1337 = vmax.f32 %v1193, 0.0
        %v1338 = vmax.f32 %v1195, 0.0
        %v1339 = vmax.f32 %v1004, 0.0
        %v1340 = vmax.f32 %v1006, 0.0
        %v1341 = vmax.f32 %v1197, 0.0
        %v1342 = vmax.f32 %v1199, 0.0
        %v1343 = vmax.f32 %v1010, 0.0
        %v1344 = vmax.f32 %v1012, 0.0
        %v1345 = vmax.f32 %v1203, 0.0
        %v1346 = vmax.f32 %v1205, 0.0
        %v1347 = vmax.f32 %v1014, 0.0
        %v1348 = vmax.f32 %v1016, 0.0
        %v1349 = vmax.f32 %v1207, 0.0
        %v1350 = vmax.f32 %v1209, 0.0
        %v1351 = vmax.f32 %v1020, 0.0
        %v1352 = vmax.f32 %v1022, 0.0
        %v1353 = vmax.f32 %v1213, 0.0
        %v1354 = vmax.f32 %v1215, 0.0
        %v1355 = vmax.f32 %v1024, 0.0
        %v1356 = vmax.f32 %v1026, 0.0
        %v1357 = vmax.f32 %v1217, 0.0
        %v1358 = vmax.f32 %v1219, 0.0
        %v1359 = vmax.f32 %v1030, 0.0
        %v1360 = vmax.f32 %v1032, 0.0
        %v1361 = vmax.f32 %v1223, 0.0
        %v1362 = vmax.f32 %v1225, 0.0
        %v1363 = vmax.f32 %v1034, 0.0
        %v1364 = vmax.f32 %v1036, 0.0
        %v1365 = vmax.f32 %v1227, 0.0
        %v1366 = vmax.f32 %v1229, 0.0
        %v1367 = vmax.f32 %v1040, 0.0
        %v1368 = vmax.f32 %v1042, 0.0
        %v1369 = vmax.f32 %v1233, 0.0
        %v1370 = vmax.f32 %v1235, 0.0
        %v1371 = vmax.f32 %v1044, 0.0
        %v1372 = vmax.f32 %v1046, 0.0
        %v1373 = vmax.f32 %v1237, 0.0
        %v1374 = vmax.f32 %v1239, 0.0
        %v1375 = vmax.f32 %v1050, 0.0
        %v1376 = vmax.f32 %v1052, 0.0
        %v1377 = vmax.f32 %v1243, 0.0
        %v1378 = vmax.f32 %v1245, 0.0
        %v1379 = vmax.f32 %v1054, 0.0
        %v1380 = vmax.f32 %v1056, 0.0
        %v1381 = vmax.f32 %v1247, 0.0
        %v1382 = vmax.f32 %v1249, 0.0
        %v1383 = vmax.f32 %v1060, 0.0
        %v1384 = vmax.f32 %v1062, 0.0
        %v1385 = vmax.f32 %v1253, 0.0
        %v1386 = vmax.f32 %v1255, 0.0
        %v1387 = vmax.f32 %v1064, 0.0
        %v1388 = vmax.f32 %v1066, 0.0
        %v1389 = vmax.f32 %v1257, 0.0
        %v1390 = vmax.f32 %v1259, 0.0
        %v1391 = vmax.f32 %v1070, 0.0
        %v1392 = vmax.f32 %v1072, 0.0
        %v1393 = vmax.f32 %v1263, 0.0
        %v1394 = vmax.f32 %v1265, 0.0
        %v1395 = vmax.f32 %v1074, 0.0
        %v1396 = vmax.f32 %v1076, 0.0
        %v1397 = vmax.f32 %v1267, 0.0
        %v1398 = vmax.f32 %v1269, 0.0
        %v1399 = vld [vmem:[%s6] sm:$0xff]
        %v1400 = vld [vmem:[%s6 + $0x8] sm:$0xff]
        %v1401 = vld [vmem:[%s6 + $0x10] sm:$0xff]
        %v1402 = vld [vmem:[%s6 + $0x18] sm:$0xff]
        %v1403 = vld [vmem:[%s6 + $0x20] sm:$0xff]
        %v1404 = vld [vmem:[%s6 + $0x28] sm:$0xff]
        %v1405 = vld [vmem:[%s6 + $0x30] sm:$0xff]
        %v1406 = vld [vmem:[%s6 + $0x38] sm:$0xff]
        %v1407 = vld [vmem:[%s6 + $0x40] sm:$0xff]
        %v1408 = vld [vmem:[%s6 + $0x48] sm:$0xff]
        %v1409 = vld [vmem:[%s6 + $0x50] sm:$0xff]
        %v1410 = vld [vmem:[%s6 + $0x58] sm:$0xff]
        %v1411 = vld [vmem:[%s6 + $0x60] sm:$0xff]
        %v1412 = vld [vmem:[%s6 + $0x68] sm:$0xff]
        %v1413 = vld [vmem:[%s6 + $0x70] sm:$0xff]
        %v1414 = vld [vmem:[%s6 + $0x78] sm:$0xff]
        %v1415 = vld [vmem:[%s6 + $0x80] sm:$0xff]
        %v1416 = vld [vmem:[%s6 + $0x88] sm:$0xff]
        %v1417 = vld [vmem:[%s6 + $0x90] sm:$0xff]
        %v1418 = vld [vmem:[%s6 + $0x98] sm:$0xff]
        %v1419 = vld [vmem:[%s6 + $0xa0] sm:$0xff]
        %v1420 = vld [vmem:[%s6 + $0xa8] sm:$0xff]
        %v1421 = vld [vmem:[%s6 + $0xb0] sm:$0xff]
        %v1422 = vld [vmem:[%s6 + $0xb8] sm:$0xff]
        %v1423 = vld [vmem:[%s6 + $0xc0] sm:$0xff]
        %v1424 = vld [vmem:[%s6 + $0xc8] sm:$0xff]
        %v1425 = vld [vmem:[%s6 + $0xd0] sm:$0xff]
        %v1426 = vld [vmem:[%s6 + $0xd8] sm:$0xff]
        %v1427 = vld [vmem:[%s6 + $0xe0] sm:$0xff]
        %v1428 = vld [vmem:[%s6 + $0xe8] sm:$0xff]
        %v1429 = vld [vmem:[%s6 + $0xf0] sm:$0xff]
        %v1430 = vld [vmem:[%s6 + $0xf8] sm:$0xff]
        %v1431 = vld [vmem:[%s6 + $0x100] sm:$0xff]
        %v1432 = vld [vmem:[%s6 + $0x108] sm:$0xff]
        %v1433 = vld [vmem:[%s6 + $0x110] sm:$0xff]
        %v1434 = vld [vmem:[%s6 + $0x118] sm:$0xff]
        %v1435 = vld [vmem:[%s6 + $0x120] sm:$0xff]
        %v1436 = vld [vmem:[%s6 + $0x128] sm:$0xff]
        %v1437 = vld [vmem:[%s6 + $0x130] sm:$0xff]
        %v1438 = vld [vmem:[%s6 + $0x138] sm:$0xff]
        %v1439 = vld [vmem:[%s6 + $0x140] sm:$0xff]
        %v1440 = vld [vmem:[%s6 + $0x148] sm:$0xff]
        %v1441 = vld [vmem:[%s6 + $0x150] sm:$0xff]
        %v1442 = vld [vmem:[%s6 + $0x158] sm:$0xff]
        %v1443 = vld [vmem:[%s6 + $0x160] sm:$0xff]
        %v1444 = vld [vmem:[%s6 + $0x168] sm:$0xff]
        %v1445 = vld [vmem:[%s6 + $0x170] sm:$0xff]
        %v1446 = vld [vmem:[%s6 + $0x178] sm:$0xff]
        %v1447 = vld [vmem:[%s6 + $0x180] sm:$0xff]
        %v1448 = vld [vmem:[%s6 + $0x188] sm:$0xff]
        %v1449 = vld [vmem:[%s6 + $0x190] sm:$0xff]
        %v1450 = vld [vmem:[%s6 + $0x198] sm:$0xff]
        %v1451 = vld [vmem:[%s6 + $0x1a0] sm:$0xff]
        %v1452 = vld [vmem:[%s6 + $0x1a8] sm:$0xff]
        %v1453 = vld [vmem:[%s6 + $0x1b0] sm:$0xff]
        %v1454 = vld [vmem:[%s6 + $0x1b8] sm:$0xff]
        %v1455 = vld [vmem:[%s6 + $0x1c0] sm:$0xff]
        %v1456 = vld [vmem:[%s6 + $0x1c8] sm:$0xff]
        %v1457 = vld [vmem:[%s6 + $0x1d0] sm:$0xff]
        %v1458 = vld [vmem:[%s6 + $0x1d8] sm:$0xff]
        %v1459 = vld [vmem:[%s6 + $0x1e0] sm:$0xff]
        %v1460 = vld [vmem:[%s6 + $0x1e8] sm:$0xff]
        %v1461 = vld [vmem:[%s6 + $0x1f0] sm:$0xff]
        %v1462 = vld [vmem:[%s6 + $0x1f8] sm:$0xff]
        %v1463 = vpack.c.bf16 %v1275, %v1271
        %v1464 = vpack.c.bf16 %v1276, %v1272
        %v1465 = vpack.c.bf16 %v1277, %v1273
        %v1466 = vpack.c.bf16 %v1278, %v1274
        %v1467 = vpack.c.bf16 %v1283, %v1279
        %v1468 = vpack.c.bf16 %v1284, %v1280
        %v1469 = vpack.c.bf16 %v1285, %v1281
        %v1470 = vpack.c.bf16 %v1286, %v1282
        %v1471 = vpack.c.bf16 %v1291, %v1287
        %v1472 = vpack.c.bf16 %v1292, %v1288
        %v1473 = vpack.c.bf16 %v1293, %v1289
        %v1474 = vpack.c.bf16 %v1294, %v1290
        %v1475 = vpack.c.bf16 %v1299, %v1295
        %v1476 = vpack.c.bf16 %v1300, %v1296
        %v1477 = vpack.c.bf16 %v1301, %v1297
        %v1478 = vpack.c.bf16 %v1302, %v1298
        %v1479 = vpack.c.bf16 %v1307, %v1303
        %v1480 = vpack.c.bf16 %v1308, %v1304
        %v1481 = vpack.c.bf16 %v1309, %v1305
        %v1482 = vpack.c.bf16 %v1310, %v1306
        %v1483 = vpack.c.bf16 %v1315, %v1311
        %v1484 = vpack.c.bf16 %v1316, %v1312
        %v1485 = vpack.c.bf16 %v1317, %v1313
        %v1486 = vpack.c.bf16 %v1318, %v1314
        %v1487 = vpack.c.bf16 %v1323, %v1319
        %v1488 = vpack.c.bf16 %v1324, %v1320
        %v1489 = vpack.c.bf16 %v1325, %v1321
        %v1490 = vpack.c.bf16 %v1326, %v1322
        %v1491 = vpack.c.bf16 %v1331, %v1327
        %v1492 = vpack.c.bf16 %v1332, %v1328
        %v1493 = vpack.c.bf16 %v1333, %v1329
        %v1494 = vpack.c.bf16 %v1334, %v1330
        %v1495 = vpack.c.bf16 %v1339, %v1335
        %v1496 = vpack.c.bf16 %v1340, %v1336
        %v1497 = vpack.c.bf16 %v1341, %v1337
        %v1498 = vpack.c.bf16 %v1342, %v1338
        %v1499 = vpack.c.bf16 %v1347, %v1343
        %v1500 = vpack.c.bf16 %v1348, %v1344
        %v1501 = vpack.c.bf16 %v1349, %v1345
        %v1502 = vpack.c.bf16 %v1350, %v1346
        %v1503 = vpack.c.bf16 %v1355, %v1351
        %v1504 = vpack.c.bf16 %v1356, %v1352
        %v1505 = vpack.c.bf16 %v1357, %v1353
        %v1506 = vpack.c.bf16 %v1358, %v1354
        %v1507 = vpack.c.bf16 %v1363, %v1359
        %v1508 = vpack.c.bf16 %v1364, %v1360
        %v1509 = vpack.c.bf16 %v1365, %v1361
        %v1510 = vpack.c.bf16 %v1366, %v1362
        %v1511 = vpack.c.bf16 %v1371, %v1367
        %v1512 = vpack.c.bf16 %v1372, %v1368
        %v1513 = vpack.c.bf16 %v1373, %v1369
        %v1514 = vpack.c.bf16 %v1374, %v1370
        %v1515 = vpack.c.bf16 %v1379, %v1375
        %v1516 = vpack.c.bf16 %v1380, %v1376
        %v1517 = vpack.c.bf16 %v1381, %v1377
        %v1518 = vpack.c.bf16 %v1382, %v1378
        %v1519 = vpack.c.bf16 %v1387, %v1383
        %v1520 = vpack.c.bf16 %v1388, %v1384
        %v1521 = vpack.c.bf16 %v1389, %v1385
        %v1522 = vpack.c.bf16 %v1390, %v1386
        %v1523 = vpack.c.bf16 %v1395, %v1391
        %v1524 = vpack.c.bf16 %v1396, %v1392
        %v1525 = vpack.c.bf16 %v1397, %v1393
        %v1526 = vpack.c.bf16 %v1398, %v1394
        %v1527 = vld [vmem:[%s7] sm:$0xff]
        %v1528 = vld [vmem:[%s7 + $0x8] sm:$0xff]
        %v1529 = vld [vmem:[%s7 + $0x10] sm:$0xff]
        %v1530 = vld [vmem:[%s7 + $0x18] sm:$0xff]
        %v1531 = vld [vmem:[%s7 + $0x20] sm:$0xff]
        %v1532 = vld [vmem:[%s7 + $0x28] sm:$0xff]
        %v1533 = vld [vmem:[%s7 + $0x30] sm:$0xff]
        %v1534 = vld [vmem:[%s7 + $0x38] sm:$0xff]
        %v1535 = vld [vmem:[%s7 + $0x40] sm:$0xff]
        %v1536 = vld [vmem:[%s7 + $0x48] sm:$0xff]
        %v1537 = vld [vmem:[%s7 + $0x50] sm:$0xff]
        %v1538 = vld [vmem:[%s7 + $0x58] sm:$0xff]
        %v1539 = vld [vmem:[%s7 + $0x60] sm:$0xff]
        %v1540 = vld [vmem:[%s7 + $0x68] sm:$0xff]
        %v1541 = vld [vmem:[%s7 + $0x70] sm:$0xff]
        %v1542 = vld [vmem:[%s7 + $0x78] sm:$0xff]
        %v1543 = vld [vmem:[%s7 + $0x80] sm:$0xff]
        %v1544 = vld [vmem:[%s7 + $0x88] sm:$0xff]
        %v1545 = vld [vmem:[%s7 + $0x90] sm:$0xff]
        %v1546 = vld [vmem:[%s7 + $0x98] sm:$0xff]
        %v1547 = vld [vmem:[%s7 + $0xa0] sm:$0xff]
        %v1548 = vld [vmem:[%s7 + $0xa8] sm:$0xff]
        %v1549 = vld [vmem:[%s7 + $0xb0] sm:$0xff]
        %v1550 = vld [vmem:[%s7 + $0xb8] sm:$0xff]
        %v1551 = vld [vmem:[%s7 + $0xc0] sm:$0xff]
        %v1552 = vld [vmem:[%s7 + $0xc8] sm:$0xff]
        %v1553 = vld [vmem:[%s7 + $0xd0] sm:$0xff]
        %v1554 = vld [vmem:[%s7 + $0xd8] sm:$0xff]
        %v1555 = vld [vmem:[%s7 + $0xe0] sm:$0xff]
        %v1556 = vld [vmem:[%s7 + $0xe8] sm:$0xff]
        %v1557 = vld [vmem:[%s7 + $0xf0] sm:$0xff]
        %v1558 = vld [vmem:[%s7 + $0xf8] sm:$0xff]
        %v1559 = vld [vmem:[%s7 + $0x100] sm:$0xff]
        %v1560 = vld [vmem:[%s7 + $0x108] sm:$0xff]
        %v1561 = vld [vmem:[%s7 + $0x110] sm:$0xff]
        %v1562 = vld [vmem:[%s7 + $0x118] sm:$0xff]
        %v1563 = vld [vmem:[%s7 + $0x120] sm:$0xff]
        %v1564 = vld [vmem:[%s7 + $0x128] sm:$0xff]
        %v1565 = vld [vmem:[%s7 + $0x130] sm:$0xff]
        %v1566 = vld [vmem:[%s7 + $0x138] sm:$0xff]
        %v1567 = vld [vmem:[%s7 + $0x140] sm:$0xff]
        %v1568 = vld [vmem:[%s7 + $0x148] sm:$0xff]
        %v1569 = vld [vmem:[%s7 + $0x150] sm:$0xff]
        %v1570 = vld [vmem:[%s7 + $0x158] sm:$0xff]
        %v1571 = vld [vmem:[%s7 + $0x160] sm:$0xff]
        %v1572 = vld [vmem:[%s7 + $0x168] sm:$0xff]
        %v1573 = vld [vmem:[%s7 + $0x170] sm:$0xff]
        %v1574 = vld [vmem:[%s7 + $0x178] sm:$0xff]
        %v1575 = vld [vmem:[%s7 + $0x180] sm:$0xff]
        %v1576 = vld [vmem:[%s7 + $0x188] sm:$0xff]
        %v1577 = vld [vmem:[%s7 + $0x190] sm:$0xff]
        %v1578 = vld [vmem:[%s7 + $0x198] sm:$0xff]
        %v1579 = vld [vmem:[%s7 + $0x1a0] sm:$0xff]
        %v1580 = vld [vmem:[%s7 + $0x1a8] sm:$0xff]
        %v1581 = vld [vmem:[%s7 + $0x1b0] sm:$0xff]
        %v1582 = vld [vmem:[%s7 + $0x1b8] sm:$0xff]
        %v1583 = vld [vmem:[%s7 + $0x1c0] sm:$0xff]
        %v1584 = vld [vmem:[%s7 + $0x1c8] sm:$0xff]
        %v1585 = vld [vmem:[%s7 + $0x1d0] sm:$0xff]
        %v1586 = vld [vmem:[%s7 + $0x1d8] sm:$0xff]
        %v1587 = vld [vmem:[%s7 + $0x1e0] sm:$0xff]
        %v1588 = vld [vmem:[%s7 + $0x1e8] sm:$0xff]
        %v1589 = vld [vmem:[%s7 + $0x1f0] sm:$0xff]
        %v1590 = vld [vmem:[%s7 + $0x1f8] sm:$0xff]
        %1592 = vset.pattern.permute.xlu0 0
        %1593 = vperm.xlu0 %1592, %v1527
        %v1594 = vpop.permute.xlu0 %1593
        %1597 = vset.pattern.permute.xlu0 0
        %1598 = vperm.xlu0 %1597, %v1528
        %v1599 = vpop.permute.xlu0 %1598
        %1602 = vset.pattern.permute.xlu0 0
        %1603 = vperm.xlu0 %1602, %v1529
        %v1604 = vpop.permute.xlu0 %1603
        %1607 = vset.pattern.permute.xlu0 0
        %1608 = vperm.xlu0 %1607, %v1530
        %v1609 = vpop.permute.xlu0 %1608
        %1612 = vset.pattern.permute.xlu0 0
        %1613 = vperm.xlu0 %1612, %v1531
        %v1614 = vpop.permute.xlu0 %1613
        %1617 = vset.pattern.permute.xlu0 0
        %1618 = vperm.xlu0 %1617, %v1532
        %v1619 = vpop.permute.xlu0 %1618
        %1622 = vset.pattern.permute.xlu0 0
        %1623 = vperm.xlu0 %1622, %v1533
        %v1624 = vpop.permute.xlu0 %1623
        %1627 = vset.pattern.permute.xlu0 0
        %1628 = vperm.xlu0 %1627, %v1534
        %v1629 = vpop.permute.xlu0 %1628
        %1632 = vset.pattern.permute.xlu0 0
        %1633 = vperm.xlu0 %1632, %v1535
        %v1634 = vpop.permute.xlu0 %1633
        %1637 = vset.pattern.permute.xlu0 0
        %1638 = vperm.xlu0 %1637, %v1536
        %v1639 = vpop.permute.xlu0 %1638
        %1642 = vset.pattern.permute.xlu0 0
        %1643 = vperm.xlu0 %1642, %v1537
        %v1644 = vpop.permute.xlu0 %1643
        %1647 = vset.pattern.permute.xlu0 0
        %1648 = vperm.xlu0 %1647, %v1538
        %v1649 = vpop.permute.xlu0 %1648
        %1652 = vset.pattern.permute.xlu0 0
        %1653 = vperm.xlu0 %1652, %v1539
        %v1654 = vpop.permute.xlu0 %1653
        %1657 = vset.pattern.permute.xlu0 0
        %1658 = vperm.xlu0 %1657, %v1540
        %v1659 = vpop.permute.xlu0 %1658
        %1662 = vset.pattern.permute.xlu0 0
        %1663 = vperm.xlu0 %1662, %v1541
        %v1664 = vpop.permute.xlu0 %1663
        %1667 = vset.pattern.permute.xlu0 0
        %1668 = vperm.xlu0 %1667, %v1542
        %v1669 = vpop.permute.xlu0 %1668
        %1672 = vset.pattern.permute.xlu0 0
        %1673 = vperm.xlu0 %1672, %v1543
        %v1674 = vpop.permute.xlu0 %1673
        %1677 = vset.pattern.permute.xlu0 0
        %1678 = vperm.xlu0 %1677, %v1544
        %v1679 = vpop.permute.xlu0 %1678
        %1682 = vset.pattern.permute.xlu0 0
        %1683 = vperm.xlu0 %1682, %v1545
        %v1684 = vpop.permute.xlu0 %1683
        %1687 = vset.pattern.permute.xlu0 0
        %1688 = vperm.xlu0 %1687, %v1546
        %v1689 = vpop.permute.xlu0 %1688
        %1692 = vset.pattern.permute.xlu0 0
        %1693 = vperm.xlu0 %1692, %v1547
        %v1694 = vpop.permute.xlu0 %1693
        %1697 = vset.pattern.permute.xlu0 0
        %1698 = vperm.xlu0 %1697, %v1548
        %v1699 = vpop.permute.xlu0 %1698
        %1702 = vset.pattern.permute.xlu0 0
        %1703 = vperm.xlu0 %1702, %v1549
        %v1704 = vpop.permute.xlu0 %1703
        %1707 = vset.pattern.permute.xlu0 0
        %1708 = vperm.xlu0 %1707, %v1550
        %v1709 = vpop.permute.xlu0 %1708
        %1712 = vset.pattern.permute.xlu0 0
        %1713 = vperm.xlu0 %1712, %v1551
        %v1714 = vpop.permute.xlu0 %1713
        %1717 = vset.pattern.permute.xlu0 0
        %1718 = vperm.xlu0 %1717, %v1552
        %v1719 = vpop.permute.xlu0 %1718
        %1722 = vset.pattern.permute.xlu0 0
        %1723 = vperm.xlu0 %1722, %v1553
        %v1724 = vpop.permute.xlu0 %1723
        %1727 = vset.pattern.permute.xlu0 0
        %1728 = vperm.xlu0 %1727, %v1554
        %v1729 = vpop.permute.xlu0 %1728
        %1732 = vset.pattern.permute.xlu0 0
        %1733 = vperm.xlu0 %1732, %v1555
        %v1734 = vpop.permute.xlu0 %1733
        %1737 = vset.pattern.permute.xlu0 0
        %1738 = vperm.xlu0 %1737, %v1556
        %v1739 = vpop.permute.xlu0 %1738
        %1742 = vset.pattern.permute.xlu0 0
        %1743 = vperm.xlu0 %1742, %v1557
        %v1744 = vpop.permute.xlu0 %1743
        %1747 = vset.pattern.permute.xlu0 0
        %1748 = vperm.xlu0 %1747, %v1558
        %v1749 = vpop.permute.xlu0 %1748
        %1752 = vset.pattern.permute.xlu0 0
        %1753 = vperm.xlu0 %1752, %v1559
        %v1754 = vpop.permute.xlu0 %1753
        %1757 = vset.pattern.permute.xlu0 0
        %1758 = vperm.xlu0 %1757, %v1560
        %v1759 = vpop.permute.xlu0 %1758
        %1762 = vset.pattern.permute.xlu0 0
        %1763 = vperm.xlu0 %1762, %v1561
        %v1764 = vpop.permute.xlu0 %1763
        %1767 = vset.pattern.permute.xlu0 0
        %1768 = vperm.xlu0 %1767, %v1562
        %v1769 = vpop.permute.xlu0 %1768
        %1772 = vset.pattern.permute.xlu0 0
        %1773 = vperm.xlu0 %1772, %v1563
        %v1774 = vpop.permute.xlu0 %1773
        %1777 = vset.pattern.permute.xlu0 0
        %1778 = vperm.xlu0 %1777, %v1564
        %v1779 = vpop.permute.xlu0 %1778
        %1782 = vset.pattern.permute.xlu0 0
        %1783 = vperm.xlu0 %1782, %v1565
        %v1784 = vpop.permute.xlu0 %1783
        %1787 = vset.pattern.permute.xlu0 0
        %1788 = vperm.xlu0 %1787, %v1566
        %v1789 = vpop.permute.xlu0 %1788
        %1792 = vset.pattern.permute.xlu0 0
        %1793 = vperm.xlu0 %1792, %v1567
        %v1794 = vpop.permute.xlu0 %1793
        %1797 = vset.pattern.permute.xlu0 0
        %1798 = vperm.xlu0 %1797, %v1568
        %v1799 = vpop.permute.xlu0 %1798
        %1802 = vset.pattern.permute.xlu0 0
        %1803 = vperm.xlu0 %1802, %v1569
        %v1804 = vpop.permute.xlu0 %1803
        %1807 = vset.pattern.permute.xlu0 0
        %1808 = vperm.xlu0 %1807, %v1570
        %v1809 = vpop.permute.xlu0 %1808
        %1812 = vset.pattern.permute.xlu0 0
        %1813 = vperm.xlu0 %1812, %v1571
        %v1814 = vpop.permute.xlu0 %1813
        %1817 = vset.pattern.permute.xlu0 0
        %1818 = vperm.xlu0 %1817, %v1572
        %v1819 = vpop.permute.xlu0 %1818
        %1822 = vset.pattern.permute.xlu0 0
        %1823 = vperm.xlu0 %1822, %v1573
        %v1824 = vpop.permute.xlu0 %1823
        %1827 = vset.pattern.permute.xlu0 0
        %1828 = vperm.xlu0 %1827, %v1574
        %v1829 = vpop.permute.xlu0 %1828
        %1832 = vset.pattern.permute.xlu0 0
        %1833 = vperm.xlu0 %1832, %v1575
        %v1834 = vpop.permute.xlu0 %1833
        %1837 = vset.pattern.permute.xlu0 0
        %1838 = vperm.xlu0 %1837, %v1576
        %v1839 = vpop.permute.xlu0 %1838
        %1842 = vset.pattern.permute.xlu0 0
        %1843 = vperm.xlu0 %1842, %v1577
        %v1844 = vpop.permute.xlu0 %1843
        %1847 = vset.pattern.permute.xlu0 0
        %1848 = vperm.xlu0 %1847, %v1578
        %v1849 = vpop.permute.xlu0 %1848
        %1852 = vset.pattern.permute.xlu0 0
        %1853 = vperm.xlu0 %1852, %v1579
        %v1854 = vpop.permute.xlu0 %1853
        %1857 = vset.pattern.permute.xlu0 0
        %1858 = vperm.xlu0 %1857, %v1580
        %v1859 = vpop.permute.xlu0 %1858
        %1862 = vset.pattern.permute.xlu0 0
        %1863 = vperm.xlu0 %1862, %v1581
        %v1864 = vpop.permute.xlu0 %1863
        %1867 = vset.pattern.permute.xlu0 0
        %1868 = vperm.xlu0 %1867, %v1582
        %v1869 = vpop.permute.xlu0 %1868
        %1872 = vset.pattern.permute.xlu0 0
        %1873 = vperm.xlu0 %1872, %v1583
        %v1874 = vpop.permute.xlu0 %1873
        %1877 = vset.pattern.permute.xlu0 0
        %1878 = vperm.xlu0 %1877, %v1584
        %v1879 = vpop.permute.xlu0 %1878
        %1882 = vset.pattern.permute.xlu0 0
        %1883 = vperm.xlu0 %1882, %v1585
        %v1884 = vpop.permute.xlu0 %1883
        %1887 = vset.pattern.permute.xlu0 0
        %1888 = vperm.xlu0 %1887, %v1586
        %v1889 = vpop.permute.xlu0 %1888
        %1892 = vset.pattern.permute.xlu0 0
        %1893 = vperm.xlu0 %1892, %v1587
        %v1894 = vpop.permute.xlu0 %1893
        %1897 = vset.pattern.permute.xlu0 0
        %1898 = vperm.xlu0 %1897, %v1588
        %v1899 = vpop.permute.xlu0 %1898
        %1902 = vset.pattern.permute.xlu0 0
        %1903 = vperm.xlu0 %1902, %v1589
        %v1904 = vpop.permute.xlu0 %1903
        %1907 = vset.pattern.permute.xlu0 0
        %1908 = vperm.xlu0 %1907, %v1590
        %v1909 = vpop.permute.xlu0 %1908
        %v1975 = vunpack.c.l.b16 %v1399
        %v1976 = vunpack.c.h.b16 %v1399
        %v1977 = vunpack.c.l.b16 %v1400
        %v1978 = vunpack.c.h.b16 %v1400
        %v1979 = vunpack.c.l.b16 %v1401
        %v1980 = vunpack.c.h.b16 %v1401
        %v1981 = vunpack.c.l.b16 %v1402
        %v1982 = vunpack.c.h.b16 %v1402
        %v1983 = vunpack.c.l.b16 %v1403
        %v1984 = vunpack.c.h.b16 %v1403
        %v1985 = vunpack.c.l.b16 %v1404
        %v1986 = vunpack.c.h.b16 %v1404
        %v1987 = vunpack.c.l.b16 %v1405
        %v1988 = vunpack.c.h.b16 %v1405
        %v1989 = vunpack.c.l.b16 %v1406
        %v1990 = vunpack.c.h.b16 %v1406
        %v1991 = vunpack.c.l.b16 %v1407
        %v1992 = vunpack.c.h.b16 %v1407
        %v1993 = vunpack.c.l.b16 %v1408
        %v1994 = vunpack.c.h.b16 %v1408
        %v1995 = vunpack.c.l.b16 %v1409
        %v1996 = vunpack.c.h.b16 %v1409
        %v1997 = vunpack.c.l.b16 %v1410
        %v1998 = vunpack.c.h.b16 %v1410
        %v1999 = vunpack.c.l.b16 %v1411
        %v2000 = vunpack.c.h.b16 %v1411
        %v2001 = vunpack.c.l.b16 %v1412
        %v2002 = vunpack.c.h.b16 %v1412
        %v2003 = vunpack.c.l.b16 %v1413
        %v2004 = vunpack.c.h.b16 %v1413
        %v2005 = vunpack.c.l.b16 %v1414
        %v2006 = vunpack.c.h.b16 %v1414
        %v2007 = vunpack.c.l.b16 %v1415
        %v2008 = vunpack.c.h.b16 %v1415
        %v2009 = vunpack.c.l.b16 %v1416
        %v2010 = vunpack.c.h.b16 %v1416
        %v2011 = vunpack.c.l.b16 %v1417
        %v2012 = vunpack.c.h.b16 %v1417
        %v2013 = vunpack.c.l.b16 %v1418
        %v2014 = vunpack.c.h.b16 %v1418
        %v2015 = vunpack.c.l.b16 %v1419
        %v2016 = vunpack.c.h.b16 %v1419
        %v2017 = vunpack.c.l.b16 %v1420
        %v2018 = vunpack.c.h.b16 %v1420
        %v2019 = vunpack.c.l.b16 %v1421
        %v2020 = vunpack.c.h.b16 %v1421
        %v2021 = vunpack.c.l.b16 %v1422
        %v2022 = vunpack.c.h.b16 %v1422
        %v2023 = vunpack.c.l.b16 %v1423
        %v2024 = vunpack.c.h.b16 %v1423
        %v2025 = vunpack.c.l.b16 %v1424
        %v2026 = vunpack.c.h.b16 %v1424
        %v2027 = vunpack.c.l.b16 %v1425
        %v2028 = vunpack.c.h.b16 %v1425
        %v2029 = vunpack.c.l.b16 %v1426
        %v2030 = vunpack.c.h.b16 %v1426
        %v2031 = vunpack.c.l.b16 %v1427
        %v2032 = vunpack.c.h.b16 %v1427
        %v2033 = vunpack.c.l.b16 %v1428
        %v2034 = vunpack.c.h.b16 %v1428
        %v2035 = vunpack.c.l.b16 %v1429
        %v2036 = vunpack.c.h.b16 %v1429
        %v2037 = vunpack.c.l.b16 %v1430
        %v2038 = vunpack.c.h.b16 %v1430
        %v2039 = vunpack.c.l.b16 %v1431
        %v2040 = vunpack.c.h.b16 %v1431
        %v2041 = vunpack.c.l.b16 %v1432
        %v2042 = vunpack.c.h.b16 %v1432
        %v2043 = vunpack.c.l.b16 %v1433
        %v2044 = vunpack.c.h.b16 %v1433
        %v2045 = vunpack.c.l.b16 %v1434
        %v2046 = vunpack.c.h.b16 %v1434
        %v2047 = vunpack.c.l.b16 %v1435
        %v2048 = vunpack.c.h.b16 %v1435
        %v2049 = vunpack.c.l.b16 %v1436
        %v2050 = vunpack.c.h.b16 %v1436
        %v2051 = vunpack.c.l.b16 %v1437
        %v2052 = vunpack.c.h.b16 %v1437
        %v2053 = vunpack.c.l.b16 %v1438
        %v2054 = vunpack.c.h.b16 %v1438
        %v2055 = vunpack.c.l.b16 %v1439
        %v2056 = vunpack.c.h.b16 %v1439
        %v2057 = vunpack.c.l.b16 %v1440
        %v2058 = vunpack.c.h.b16 %v1440
        %v2059 = vunpack.c.l.b16 %v1441
        %v2060 = vunpack.c.h.b16 %v1441
        %v2061 = vunpack.c.l.b16 %v1442
        %v2062 = vunpack.c.h.b16 %v1442
        %v2063 = vunpack.c.l.b16 %v1443
        %v2064 = vunpack.c.h.b16 %v1443
        %v2065 = vunpack.c.l.b16 %v1444
        %v2066 = vunpack.c.h.b16 %v1444
        %v2067 = vunpack.c.l.b16 %v1445
        %v2068 = vunpack.c.h.b16 %v1445
        %v2069 = vunpack.c.l.b16 %v1446
        %v2070 = vunpack.c.h.b16 %v1446
        %v2071 = vunpack.c.l.b16 %v1447
        %v2072 = vunpack.c.h.b16 %v1447
        %v2073 = vunpack.c.l.b16 %v1448
        %v2074 = vunpack.c.h.b16 %v1448
        %v2075 = vunpack.c.l.b16 %v1449
        %v2076 = vunpack.c.h.b16 %v1449
        %v2077 = vunpack.c.l.b16 %v1450
        %v2078 = vunpack.c.h.b16 %v1450
        %v2079 = vunpack.c.l.b16 %v1451
        %v2080 = vunpack.c.h.b16 %v1451
        %v2081 = vunpack.c.l.b16 %v1452
        %v2082 = vunpack.c.h.b16 %v1452
        %v2083 = vunpack.c.l.b16 %v1453
        %v2084 = vunpack.c.h.b16 %v1453
        %v2085 = vunpack.c.l.b16 %v1454
        %v2086 = vunpack.c.h.b16 %v1454
        %v2087 = vunpack.c.l.b16 %v1455
        %v2088 = vunpack.c.h.b16 %v1455
        %v2089 = vunpack.c.l.b16 %v1456
        %v2090 = vunpack.c.h.b16 %v1456
        %v2091 = vunpack.c.l.b16 %v1457
        %v2092 = vunpack.c.h.b16 %v1457
        %v2093 = vunpack.c.l.b16 %v1458
        %v2094 = vunpack.c.h.b16 %v1458
        %v2095 = vunpack.c.l.b16 %v1459
        %v2096 = vunpack.c.h.b16 %v1459
        %v2097 = vunpack.c.l.b16 %v1460
        %v2098 = vunpack.c.h.b16 %v1460
        %v2099 = vunpack.c.l.b16 %v1461
        %v2100 = vunpack.c.h.b16 %v1461
        %v2101 = vunpack.c.l.b16 %v1462
        %v2102 = vunpack.c.h.b16 %v1462
        %v2103 = vpack.c.b16 %v1977, %v1975
        %v2104 = vpack.c.b16 %v1978, %v1976
        %v2105 = vpack.c.b16 %v1981, %v1979
        %v2106 = vpack.c.b16 %v1982, %v1980
        %v2107 = vpack.c.b16 %v1985, %v1983
        %v2108 = vpack.c.b16 %v1986, %v1984
        %v2109 = vpack.c.b16 %v1989, %v1987
        %v2110 = vpack.c.b16 %v1990, %v1988
        %v2111 = vpack.c.b16 %v1993, %v1991
        %v2112 = vpack.c.b16 %v1994, %v1992
        %v2113 = vpack.c.b16 %v1997, %v1995
        %v2114 = vpack.c.b16 %v1998, %v1996
        %v2115 = vpack.c.b16 %v2001, %v1999
        %v2116 = vpack.c.b16 %v2002, %v2000
        %v2117 = vpack.c.b16 %v2005, %v2003
        %v2118 = vpack.c.b16 %v2006, %v2004
        %v2119 = vpack.c.b16 %v2009, %v2007
        %v2120 = vpack.c.b16 %v2010, %v2008
        %v2121 = vpack.c.b16 %v2013, %v2011
        %v2122 = vpack.c.b16 %v2014, %v2012
        %v2123 = vpack.c.b16 %v2017, %v2015
        %v2124 = vpack.c.b16 %v2018, %v2016
        %v2125 = vpack.c.b16 %v2021, %v2019
        %v2126 = vpack.c.b16 %v2022, %v2020
        %v2127 = vpack.c.b16 %v2025, %v2023
        %v2128 = vpack.c.b16 %v2026, %v2024
        %v2129 = vpack.c.b16 %v2029, %v2027
        %v2130 = vpack.c.b16 %v2030, %v2028
        %v2131 = vpack.c.b16 %v2033, %v2031
        %v2132 = vpack.c.b16 %v2034, %v2032
        %v2133 = vpack.c.b16 %v2037, %v2035
        %v2134 = vpack.c.b16 %v2038, %v2036
        %v2135 = vpack.c.b16 %v2041, %v2039
        %v2136 = vpack.c.b16 %v2042, %v2040
        %v2137 = vpack.c.b16 %v2045, %v2043
        %v2138 = vpack.c.b16 %v2046, %v2044
        %v2139 = vpack.c.b16 %v2049, %v2047
        %v2140 = vpack.c.b16 %v2050, %v2048
        %v2141 = vpack.c.b16 %v2053, %v2051
        %v2142 = vpack.c.b16 %v2054, %v2052
        %v2143 = vpack.c.b16 %v2057, %v2055
        %v2144 = vpack.c.b16 %v2058, %v2056
        %v2145 = vpack.c.b16 %v2061, %v2059
        %v2146 = vpack.c.b16 %v2062, %v2060
        %v2147 = vpack.c.b16 %v2065, %v2063
        %v2148 = vpack.c.b16 %v2066, %v2064
        %v2149 = vpack.c.b16 %v2069, %v2067
        %v2150 = vpack.c.b16 %v2070, %v2068
        %v2151 = vpack.c.b16 %v2073, %v2071
        %v2152 = vpack.c.b16 %v2074, %v2072
        %v2153 = vpack.c.b16 %v2077, %v2075
        %v2154 = vpack.c.b16 %v2078, %v2076
        %v2155 = vpack.c.b16 %v2081, %v2079
        %v2156 = vpack.c.b16 %v2082, %v2080
        %v2157 = vpack.c.b16 %v2085, %v2083
        %v2158 = vpack.c.b16 %v2086, %v2084
        %v2159 = vpack.c.b16 %v2089, %v2087
        %v2160 = vpack.c.b16 %v2090, %v2088
        %v2161 = vpack.c.b16 %v2093, %v2091
        %v2162 = vpack.c.b16 %v2094, %v2092
        %v2163 = vpack.c.b16 %v2097, %v2095
        %v2164 = vpack.c.b16 %v2098, %v2096
        %v2165 = vpack.c.b16 %v2101, %v2099
        %v2166 = vpack.c.b16 %v2102, %v2100
        %2231 = vmatprep.subr.bf16.mxu0 %v1492
        %2232 = vmatpush1.bf16.msra.mxu0 %v1491
        %2233 = vmatprep.subr.bf16.mxu0 %v1488
        %2234 = vmatpush1.bf16.msra.mxu0 %v1487
        %2235 = vmatprep.subr.bf16.mxu0 %v1484
        %2236 = vmatpush1.bf16.msra.mxu0 %v1483
        %2237 = vmatprep.subr.bf16.mxu0 %v1480
        %2238 = vmatpush1.bf16.msra.mxu0 %v1479
        %2239 = vmatprep.subr.bf16.mxu0 %v1476
        %2240 = vmatpush1.bf16.msra.mxu0 %v1475
        %2241 = vmatprep.subr.bf16.mxu0 %v1472
        %2242 = vmatpush1.bf16.msra.mxu0 %v1471
        %2243 = vmatprep.subr.bf16.mxu0 %v1468
        %2244 = vmatpush1.bf16.msra.mxu0 %v1467
        %2245 = vmatprep.subr.bf16.mxu0 %v1464
        %2246 = vmatpush1.bf16.msra.mxu0 %v1463
        %2247 = vmatprep.subr.bf16.mxu0 %v1524
        %2248 = vmatpush2.bf16.msra.mxu0 %v1523
        %2249 = vmatprep.subr.bf16.mxu0 %v1520
        %2250 = vmatpush2.bf16.msra.mxu0 %v1519
        %2251 = vmatprep.subr.bf16.mxu0 %v1516
        %2252 = vmatpush2.bf16.msra.mxu0 %v1515
        %2253 = vmatprep.subr.bf16.mxu0 %v1512
        %2254 = vmatpush2.bf16.msra.mxu0 %v1511
        %2255 = vmatprep.subr.bf16.mxu0 %v1508
        %2256 = vmatpush2.bf16.msra.mxu0 %v1507
        %2257 = vmatprep.subr.bf16.mxu0 %v1504
        %2258 = vmatpush2.bf16.msra.mxu0 %v1503
        %2259 = vmatprep.subr.bf16.mxu0 %v1500
        %2260 = vmatpush2.bf16.msra.mxu0 %v1499
        %2261 = vmatprep.subr.bf16.mxu0 %v1496
        %2262 = vmatpush2.bf16.msra.mxu0 %v1495
        %2263 = vmatprep.mubr.bf16.mxu0 %v2104
        %2264 = vmatmul.mubr.bf16.gmra.mxu0 %v2103
        %v2265 = vpop.f32.mrf.mxu0
        %v2266 = vadd.f32 %v1594, %v2265
        %v2267 = vpop.f32.mrf.mxu0
        %v2268 = vadd.f32 %v1594, %v2267
        %v2269 = vpop.f32.mrf.mxu0
        %v2270 = vadd.f32 %v1599, %v2269
        %v2271 = vpop.f32.mrf.mxu0
        %v2272 = vadd.f32 %v1599, %v2271
        %2273 = vmatprep.mubr.bf16.mxu0 %v2106
        %2274 = vmatmul.mubr.bf16.gmra.mxu0 %v2105
        %v2275 = vpop.f32.mrf.mxu0
        %v2276 = vadd.f32 %v1604, %v2275
        %v2277 = vpop.f32.mrf.mxu0
        %v2278 = vadd.f32 %v1604, %v2277
        %v2279 = vpop.f32.mrf.mxu0
        %v2280 = vadd.f32 %v1609, %v2279
        %v2281 = vpop.f32.mrf.mxu0
        %v2282 = vadd.f32 %v1609, %v2281
        %2283 = vmatprep.mubr.bf16.mxu0 %v2108
        %2284 = vmatmul.mubr.bf16.gmra.mxu0 %v2107
        %v2285 = vpop.f32.mrf.mxu0
        %v2286 = vadd.f32 %v1614, %v2285
        %v2287 = vpop.f32.mrf.mxu0
        %v2288 = vadd.f32 %v1614, %v2287
        %v2289 = vpop.f32.mrf.mxu0
        %v2290 = vadd.f32 %v1619, %v2289
        %v2291 = vpop.f32.mrf.mxu0
        %v2292 = vadd.f32 %v1619, %v2291
        %2293 = vmatprep.mubr.bf16.mxu0 %v2110
        %2294 = vmatmul.mubr.bf16.gmra.mxu0 %v2109
        %v2295 = vpop.f32.mrf.mxu0
        %v2296 = vadd.f32 %v1624, %v2295
        %v2297 = vpop.f32.mrf.mxu0
        %v2298 = vadd.f32 %v1624, %v2297
        %v2299 = vpop.f32.mrf.mxu0
        %v2300 = vadd.f32 %v1629, %v2299
        %v2301 = vpop.f32.mrf.mxu0
        %v2302 = vadd.f32 %v1629, %v2301
        %2303 = vmatprep.mubr.bf16.mxu0 %v2112
        %2304 = vmatmul.mubr.bf16.gmra.mxu0 %v2111
        %v2305 = vpop.f32.mrf.mxu0
        %v2306 = vadd.f32 %v1634, %v2305
        %v2307 = vpop.f32.mrf.mxu0
        %v2308 = vadd.f32 %v1634, %v2307
        %v2309 = vpop.f32.mrf.mxu0
        %v2310 = vadd.f32 %v1639, %v2309
        %v2311 = vpop.f32.mrf.mxu0
        %v2312 = vadd.f32 %v1639, %v2311
        %2313 = vmatprep.mubr.bf16.mxu0 %v2114
        %2314 = vmatmul.mubr.bf16.gmra.mxu0 %v2113
        %v2315 = vpop.f32.mrf.mxu0
        %v2316 = vadd.f32 %v1644, %v2315
        %v2317 = vpop.f32.mrf.mxu0
        %v2318 = vadd.f32 %v1644, %v2317
        %v2319 = vpop.f32.mrf.mxu0
        %v2320 = vadd.f32 %v1649, %v2319
        %v2321 = vpop.f32.mrf.mxu0
        %v2322 = vadd.f32 %v1649, %v2321
        %2323 = vmatprep.mubr.bf16.mxu0 %v2116
        %2324 = vmatmul.mubr.bf16.gmra.mxu0 %v2115
        %v2325 = vpop.f32.mrf.mxu0
        %v2326 = vadd.f32 %v1654, %v2325
        %v2327 = vpop.f32.mrf.mxu0
        %v2328 = vadd.f32 %v1654, %v2327
        %v2329 = vpop.f32.mrf.mxu0
        %v2330 = vadd.f32 %v1659, %v2329
        %v2331 = vpop.f32.mrf.mxu0
        %v2332 = vadd.f32 %v1659, %v2331
        %2333 = vmatprep.mubr.bf16.mxu0 %v2118
        %2334 = vmatmul.mubr.bf16.gmra.mxu0 %v2117
        %v2335 = vpop.f32.mrf.mxu0
        %v2336 = vadd.f32 %v1664, %v2335
        %v2337 = vpop.f32.mrf.mxu0
        %v2338 = vadd.f32 %v1664, %v2337
        %v2339 = vpop.f32.mrf.mxu0
        %v2340 = vadd.f32 %v1669, %v2339
        %v2341 = vpop.f32.mrf.mxu0
        %v2342 = vadd.f32 %v1669, %v2341
        %2343 = vmatprep.mubr.bf16.mxu0 %v2120
        %2344 = vmatmul.mubr.bf16.gmra.mxu0 %v2119
        %v2345 = vpop.f32.mrf.mxu0
        %v2346 = vadd.f32 %v1674, %v2345
        %v2347 = vpop.f32.mrf.mxu0
        %v2348 = vadd.f32 %v1674, %v2347
        %v2349 = vpop.f32.mrf.mxu0
        %v2350 = vadd.f32 %v1679, %v2349
        %v2351 = vpop.f32.mrf.mxu0
        %v2352 = vadd.f32 %v1679, %v2351
        %2353 = vmatprep.mubr.bf16.mxu0 %v2122
        %2354 = vmatmul.mubr.bf16.gmra.mxu0 %v2121
        %v2355 = vpop.f32.mrf.mxu0
        %v2356 = vadd.f32 %v1684, %v2355
        %v2357 = vpop.f32.mrf.mxu0
        %v2358 = vadd.f32 %v1684, %v2357
        %v2359 = vpop.f32.mrf.mxu0
        %v2360 = vadd.f32 %v1689, %v2359
        %v2361 = vpop.f32.mrf.mxu0
        %v2362 = vadd.f32 %v1689, %v2361
        %2363 = vmatprep.mubr.bf16.mxu0 %v2124
        %2364 = vmatmul.mubr.bf16.gmra.mxu0 %v2123
        %v2365 = vpop.f32.mrf.mxu0
        %v2366 = vadd.f32 %v1694, %v2365
        %v2367 = vpop.f32.mrf.mxu0
        %v2368 = vadd.f32 %v1694, %v2367
        %v2369 = vpop.f32.mrf.mxu0
        %v2370 = vadd.f32 %v1699, %v2369
        %v2371 = vpop.f32.mrf.mxu0
        %v2372 = vadd.f32 %v1699, %v2371
        %2373 = vmatprep.mubr.bf16.mxu0 %v2126
        %2374 = vmatmul.mubr.bf16.gmra.mxu0 %v2125
        %v2375 = vpop.f32.mrf.mxu0
        %v2376 = vadd.f32 %v1704, %v2375
        %v2377 = vpop.f32.mrf.mxu0
        %v2378 = vadd.f32 %v1704, %v2377
        %v2379 = vpop.f32.mrf.mxu0
        %v2380 = vadd.f32 %v1709, %v2379
        %v2381 = vpop.f32.mrf.mxu0
        %v2382 = vadd.f32 %v1709, %v2381
        %2383 = vmatprep.mubr.bf16.mxu0 %v2128
        %2384 = vmatmul.mubr.bf16.gmra.mxu0 %v2127
        %v2385 = vpop.f32.mrf.mxu0
        %v2386 = vadd.f32 %v1714, %v2385
        %v2387 = vpop.f32.mrf.mxu0
        %v2388 = vadd.f32 %v1714, %v2387
        %v2389 = vpop.f32.mrf.mxu0
        %v2390 = vadd.f32 %v1719, %v2389
        %v2391 = vpop.f32.mrf.mxu0
        %v2392 = vadd.f32 %v1719, %v2391
        %2393 = vmatprep.mubr.bf16.mxu0 %v2130
        %2394 = vmatmul.mubr.bf16.gmra.mxu0 %v2129
        %v2395 = vpop.f32.mrf.mxu0
        %v2396 = vadd.f32 %v1724, %v2395
        %v2397 = vpop.f32.mrf.mxu0
        %v2398 = vadd.f32 %v1724, %v2397
        %v2399 = vpop.f32.mrf.mxu0
        %v2400 = vadd.f32 %v1729, %v2399
        %v2401 = vpop.f32.mrf.mxu0
        %v2402 = vadd.f32 %v1729, %v2401
        %2403 = vmatprep.mubr.bf16.mxu0 %v2132
        %2404 = vmatmul.mubr.bf16.gmra.mxu0 %v2131
        %v2405 = vpop.f32.mrf.mxu0
        %v2406 = vadd.f32 %v1734, %v2405
        %v2407 = vpop.f32.mrf.mxu0
        %v2408 = vadd.f32 %v1734, %v2407
        %v2409 = vpop.f32.mrf.mxu0
        %v2410 = vadd.f32 %v1739, %v2409
        %v2411 = vpop.f32.mrf.mxu0
        %v2412 = vadd.f32 %v1739, %v2411
        %2413 = vmatprep.mubr.bf16.mxu0 %v2134
        %2414 = vmatmul.mubr.bf16.gmra.mxu0 %v2133
        %v2415 = vpop.f32.mrf.mxu0
        %v2416 = vadd.f32 %v1744, %v2415
        %v2417 = vpop.f32.mrf.mxu0
        %v2418 = vadd.f32 %v1744, %v2417
        %v2419 = vpop.f32.mrf.mxu0
        %v2420 = vadd.f32 %v1749, %v2419
        %v2421 = vpop.f32.mrf.mxu0
        %v2422 = vadd.f32 %v1749, %v2421
        %2423 = vmatprep.mubr.bf16.mxu0 %v2136
        %2424 = vmatmul.mubr.bf16.gmra.mxu0 %v2135
        %v2425 = vpop.f32.mrf.mxu0
        %v2426 = vadd.f32 %v1754, %v2425
        %v2427 = vpop.f32.mrf.mxu0
        %v2428 = vadd.f32 %v1754, %v2427
        %v2429 = vpop.f32.mrf.mxu0
        %v2430 = vadd.f32 %v1759, %v2429
        %v2431 = vpop.f32.mrf.mxu0
        %v2432 = vadd.f32 %v1759, %v2431
        %2433 = vmatprep.mubr.bf16.mxu0 %v2138
        %2434 = vmatmul.mubr.bf16.gmra.mxu0 %v2137
        %v2435 = vpop.f32.mrf.mxu0
        %v2436 = vadd.f32 %v1764, %v2435
        %v2437 = vpop.f32.mrf.mxu0
        %v2438 = vadd.f32 %v1764, %v2437
        %v2439 = vpop.f32.mrf.mxu0
        %v2440 = vadd.f32 %v1769, %v2439
        %v2441 = vpop.f32.mrf.mxu0
        %v2442 = vadd.f32 %v1769, %v2441
        %2443 = vmatprep.mubr.bf16.mxu0 %v2140
        %2444 = vmatmul.mubr.bf16.gmra.mxu0 %v2139
        %v2445 = vpop.f32.mrf.mxu0
        %v2446 = vadd.f32 %v1774, %v2445
        %v2447 = vpop.f32.mrf.mxu0
        %v2448 = vadd.f32 %v1774, %v2447
        %v2449 = vpop.f32.mrf.mxu0
        %v2450 = vadd.f32 %v1779, %v2449
        %v2451 = vpop.f32.mrf.mxu0
        %v2452 = vadd.f32 %v1779, %v2451
        %2453 = vmatprep.mubr.bf16.mxu0 %v2142
        %2454 = vmatmul.mubr.bf16.gmra.mxu0 %v2141
        %v2455 = vpop.f32.mrf.mxu0
        %v2456 = vadd.f32 %v1784, %v2455
        %v2457 = vpop.f32.mrf.mxu0
        %v2458 = vadd.f32 %v1784, %v2457
        %v2459 = vpop.f32.mrf.mxu0
        %v2460 = vadd.f32 %v1789, %v2459
        %v2461 = vpop.f32.mrf.mxu0
        %v2462 = vadd.f32 %v1789, %v2461
        %2463 = vmatprep.mubr.bf16.mxu0 %v2144
        %2464 = vmatmul.mubr.bf16.gmra.mxu0 %v2143
        %v2465 = vpop.f32.mrf.mxu0
        %v2466 = vadd.f32 %v1794, %v2465
        %v2467 = vpop.f32.mrf.mxu0
        %v2468 = vadd.f32 %v1794, %v2467
        %v2469 = vpop.f32.mrf.mxu0
        %v2470 = vadd.f32 %v1799, %v2469
        %v2471 = vpop.f32.mrf.mxu0
        %v2472 = vadd.f32 %v1799, %v2471
        %2473 = vmatprep.mubr.bf16.mxu0 %v2146
        %2474 = vmatmul.mubr.bf16.gmra.mxu0 %v2145
        %v2475 = vpop.f32.mrf.mxu0
        %v2476 = vadd.f32 %v1804, %v2475
        %v2477 = vpop.f32.mrf.mxu0
        %v2478 = vadd.f32 %v1804, %v2477
        %v2479 = vpop.f32.mrf.mxu0
        %v2480 = vadd.f32 %v1809, %v2479
        %v2481 = vpop.f32.mrf.mxu0
        %v2482 = vadd.f32 %v1809, %v2481
        %2483 = vmatprep.mubr.bf16.mxu0 %v2148
        %2484 = vmatmul.mubr.bf16.gmra.mxu0 %v2147
        %v2485 = vpop.f32.mrf.mxu0
        %v2486 = vadd.f32 %v1814, %v2485
        %v2487 = vpop.f32.mrf.mxu0
        %v2488 = vadd.f32 %v1814, %v2487
        %v2489 = vpop.f32.mrf.mxu0
        %v2490 = vadd.f32 %v1819, %v2489
        %v2491 = vpop.f32.mrf.mxu0
        %v2492 = vadd.f32 %v1819, %v2491
        %2493 = vmatprep.mubr.bf16.mxu0 %v2150
        %2494 = vmatmul.mubr.bf16.gmra.mxu0 %v2149
        %v2495 = vpop.f32.mrf.mxu0
        %v2496 = vadd.f32 %v1824, %v2495
        %v2497 = vpop.f32.mrf.mxu0
        %v2498 = vadd.f32 %v1824, %v2497
        %v2499 = vpop.f32.mrf.mxu0
        %v2500 = vadd.f32 %v1829, %v2499
        %v2501 = vpop.f32.mrf.mxu0
        %v2502 = vadd.f32 %v1829, %v2501
        %2503 = vmatprep.mubr.bf16.mxu0 %v2152
        %2504 = vmatmul.mubr.bf16.gmra.mxu0 %v2151
        %v2505 = vpop.f32.mrf.mxu0
        %v2506 = vadd.f32 %v1834, %v2505
        %v2507 = vpop.f32.mrf.mxu0
        %v2508 = vadd.f32 %v1834, %v2507
        %v2509 = vpop.f32.mrf.mxu0
        %v2510 = vadd.f32 %v1839, %v2509
        %v2511 = vpop.f32.mrf.mxu0
        %v2512 = vadd.f32 %v1839, %v2511
        %2513 = vmatprep.mubr.bf16.mxu0 %v2154
        %2514 = vmatmul.mubr.bf16.gmra.mxu0 %v2153
        %v2515 = vpop.f32.mrf.mxu0
        %v2516 = vadd.f32 %v1844, %v2515
        %v2517 = vpop.f32.mrf.mxu0
        %v2518 = vadd.f32 %v1844, %v2517
        %v2519 = vpop.f32.mrf.mxu0
        %v2520 = vadd.f32 %v1849, %v2519
        %v2521 = vpop.f32.mrf.mxu0
        %v2522 = vadd.f32 %v1849, %v2521
        %2523 = vmatprep.mubr.bf16.mxu0 %v2156
        %2524 = vmatmul.mubr.bf16.gmra.mxu0 %v2155
        %v2525 = vpop.f32.mrf.mxu0
        %v2526 = vadd.f32 %v1854, %v2525
        %v2527 = vpop.f32.mrf.mxu0
        %v2528 = vadd.f32 %v1854, %v2527
        %v2529 = vpop.f32.mrf.mxu0
        %v2530 = vadd.f32 %v1859, %v2529
        %v2531 = vpop.f32.mrf.mxu0
        %v2532 = vadd.f32 %v1859, %v2531
        %2533 = vmatprep.mubr.bf16.mxu0 %v2158
        %2534 = vmatmul.mubr.bf16.gmra.mxu0 %v2157
        %v2535 = vpop.f32.mrf.mxu0
        %v2536 = vadd.f32 %v1864, %v2535
        %v2537 = vpop.f32.mrf.mxu0
        %v2538 = vadd.f32 %v1864, %v2537
        %v2539 = vpop.f32.mrf.mxu0
        %v2540 = vadd.f32 %v1869, %v2539
        %v2541 = vpop.f32.mrf.mxu0
        %v2542 = vadd.f32 %v1869, %v2541
        %2543 = vmatprep.mubr.bf16.mxu0 %v2160
        %2544 = vmatmul.mubr.bf16.gmra.mxu0 %v2159
        %v2545 = vpop.f32.mrf.mxu0
        %v2546 = vadd.f32 %v1874, %v2545
        %v2547 = vpop.f32.mrf.mxu0
        %v2548 = vadd.f32 %v1874, %v2547
        %v2549 = vpop.f32.mrf.mxu0
        %v2550 = vadd.f32 %v1879, %v2549
        %v2551 = vpop.f32.mrf.mxu0
        %v2552 = vadd.f32 %v1879, %v2551
        %2553 = vmatprep.mubr.bf16.mxu0 %v2162
        %2554 = vmatmul.mubr.bf16.gmra.mxu0 %v2161
        %v2555 = vpop.f32.mrf.mxu0
        %v2556 = vadd.f32 %v1884, %v2555
        %v2557 = vpop.f32.mrf.mxu0
        %v2558 = vadd.f32 %v1884, %v2557
        %v2559 = vpop.f32.mrf.mxu0
        %v2560 = vadd.f32 %v1889, %v2559
        %v2561 = vpop.f32.mrf.mxu0
        %v2562 = vadd.f32 %v1889, %v2561
        %2563 = vmatprep.mubr.bf16.mxu0 %v2164
        %2564 = vmatmul.mubr.bf16.gmra.mxu0 %v2163
        %v2565 = vpop.f32.mrf.mxu0
        %v2566 = vadd.f32 %v1894, %v2565
        %v2567 = vpop.f32.mrf.mxu0
        %v2568 = vadd.f32 %v1894, %v2567
        %v2569 = vpop.f32.mrf.mxu0
        %v2570 = vadd.f32 %v1899, %v2569
        %v2571 = vpop.f32.mrf.mxu0
        %v2572 = vadd.f32 %v1899, %v2571
        %2573 = vmatprep.mubr.bf16.mxu0 %v2166
        %2574 = vmatmul.mubr.bf16.gmra.mxu0 %v2165
        %v2575 = vpop.f32.mrf.mxu0
        %v2576 = vadd.f32 %v1904, %v2575
        %v2577 = vpop.f32.mrf.mxu0
        %v2578 = vadd.f32 %v1904, %v2577
        %v2579 = vpop.f32.mrf.mxu0
        %v2580 = vadd.f32 %v1909, %v2579
        %v2581 = vpop.f32.mrf.mxu0
        %v2582 = vadd.f32 %v1909, %v2581
        %2583 = vdwg.mxu0
        %2584 = vmatprep.subr.bf16.mxu0 %v1494
        %2585 = vmatpush1.bf16.msra.mxu0 %v1493
        %2586 = vmatprep.subr.bf16.mxu0 %v1490
        %2587 = vmatpush1.bf16.msra.mxu0 %v1489
        %2588 = vmatprep.subr.bf16.mxu0 %v1486
        %2589 = vmatpush1.bf16.msra.mxu0 %v1485
        %2590 = vmatprep.subr.bf16.mxu0 %v1482
        %2591 = vmatpush1.bf16.msra.mxu0 %v1481
        %2592 = vmatprep.subr.bf16.mxu0 %v1478
        %2593 = vmatpush1.bf16.msra.mxu0 %v1477
        %2594 = vmatprep.subr.bf16.mxu0 %v1474
        %2595 = vmatpush1.bf16.msra.mxu0 %v1473
        %2596 = vmatprep.subr.bf16.mxu0 %v1470
        %2597 = vmatpush1.bf16.msra.mxu0 %v1469
        %2598 = vmatprep.subr.bf16.mxu0 %v1466
        %2599 = vmatpush1.bf16.msra.mxu0 %v1465
        %2600 = vmatprep.subr.bf16.mxu0 %v1526
        %2601 = vmatpush2.bf16.msra.mxu0 %v1525
        %2602 = vmatprep.subr.bf16.mxu0 %v1522
        %2603 = vmatpush2.bf16.msra.mxu0 %v1521
        %2604 = vmatprep.subr.bf16.mxu0 %v1518
        %2605 = vmatpush2.bf16.msra.mxu0 %v1517
        %2606 = vmatprep.subr.bf16.mxu0 %v1514
        %2607 = vmatpush2.bf16.msra.mxu0 %v1513
        %2608 = vmatprep.subr.bf16.mxu0 %v1510
        %2609 = vmatpush2.bf16.msra.mxu0 %v1509
        %2610 = vmatprep.subr.bf16.mxu0 %v1506
        %2611 = vmatpush2.bf16.msra.mxu0 %v1505
        %2612 = vmatprep.subr.bf16.mxu0 %v1502
        %2613 = vmatpush2.bf16.msra.mxu0 %v1501
        %2614 = vmatprep.subr.bf16.mxu0 %v1498
        %2615 = vmatpush2.bf16.msra.mxu0 %v1497
        %2616 = vmatprep.mubr.bf16.mxu0 %v2104
        %2617 = vmatmul.mubr.bf16.gmra.mxu0 %v2103
        %v2618 = vpop.f32.mrf.mxu0
        %v2619 = vadd.f32 %v1594, %v2618
        %v2620 = vpop.f32.mrf.mxu0
        %v2621 = vadd.f32 %v1594, %v2620
        %v2622 = vpop.f32.mrf.mxu0
        %v2623 = vadd.f32 %v1599, %v2622
        %v2624 = vpop.f32.mrf.mxu0
        %v2625 = vadd.f32 %v1599, %v2624
        %2626 = vmatprep.mubr.bf16.mxu0 %v2106
        %2627 = vmatmul.mubr.bf16.gmra.mxu0 %v2105
        %v2628 = vpop.f32.mrf.mxu0
        %v2629 = vadd.f32 %v1604, %v2628
        %v2630 = vpop.f32.mrf.mxu0
        %v2631 = vadd.f32 %v1604, %v2630
        %v2632 = vpop.f32.mrf.mxu0
        %v2633 = vadd.f32 %v1609, %v2632
        %v2634 = vpop.f32.mrf.mxu0
        %v2635 = vadd.f32 %v1609, %v2634
        %2636 = vmatprep.mubr.bf16.mxu0 %v2108
        %2637 = vmatmul.mubr.bf16.gmra.mxu0 %v2107
        %v2638 = vpop.f32.mrf.mxu0
        %v2639 = vadd.f32 %v1614, %v2638
        %v2640 = vpop.f32.mrf.mxu0
        %v2641 = vadd.f32 %v1614, %v2640
        %v2642 = vpop.f32.mrf.mxu0
        %v2643 = vadd.f32 %v1619, %v2642
        %v2644 = vpop.f32.mrf.mxu0
        %v2645 = vadd.f32 %v1619, %v2644
        %2646 = vmatprep.mubr.bf16.mxu0 %v2110
        %2647 = vmatmul.mubr.bf16.gmra.mxu0 %v2109
        %v2648 = vpop.f32.mrf.mxu0
        %v2649 = vadd.f32 %v1624, %v2648
        %v2650 = vpop.f32.mrf.mxu0
        %v2651 = vadd.f32 %v1624, %v2650
        %v2652 = vpop.f32.mrf.mxu0
        %v2653 = vadd.f32 %v1629, %v2652
        %v2654 = vpop.f32.mrf.mxu0
        %v2655 = vadd.f32 %v1629, %v2654
        %2656 = vmatprep.mubr.bf16.mxu0 %v2112
        %2657 = vmatmul.mubr.bf16.gmra.mxu0 %v2111
        %v2658 = vpop.f32.mrf.mxu0
        %v2659 = vadd.f32 %v1634, %v2658
        %v2660 = vpop.f32.mrf.mxu0
        %v2661 = vadd.f32 %v1634, %v2660
        %v2662 = vpop.f32.mrf.mxu0
        %v2663 = vadd.f32 %v1639, %v2662
        %v2664 = vpop.f32.mrf.mxu0
        %v2665 = vadd.f32 %v1639, %v2664
        %2666 = vmatprep.mubr.bf16.mxu0 %v2114
        %2667 = vmatmul.mubr.bf16.gmra.mxu0 %v2113
        %v2668 = vpop.f32.mrf.mxu0
        %v2669 = vadd.f32 %v1644, %v2668
        %v2670 = vpop.f32.mrf.mxu0
        %v2671 = vadd.f32 %v1644, %v2670
        %v2672 = vpop.f32.mrf.mxu0
        %v2673 = vadd.f32 %v1649, %v2672
        %v2674 = vpop.f32.mrf.mxu0
        %v2675 = vadd.f32 %v1649, %v2674
        %2676 = vmatprep.mubr.bf16.mxu0 %v2116
        %2677 = vmatmul.mubr.bf16.gmra.mxu0 %v2115
        %v2678 = vpop.f32.mrf.mxu0
        %v2679 = vadd.f32 %v1654, %v2678
        %v2680 = vpop.f32.mrf.mxu0
        %v2681 = vadd.f32 %v1654, %v2680
        %v2682 = vpop.f32.mrf.mxu0
        %v2683 = vadd.f32 %v1659, %v2682
        %v2684 = vpop.f32.mrf.mxu0
        %v2685 = vadd.f32 %v1659, %v2684
        %2686 = vmatprep.mubr.bf16.mxu0 %v2118
        %2687 = vmatmul.mubr.bf16.gmra.mxu0 %v2117
        %v2688 = vpop.f32.mrf.mxu0
        %v2689 = vadd.f32 %v1664, %v2688
        %v2690 = vpop.f32.mrf.mxu0
        %v2691 = vadd.f32 %v1664, %v2690
        %v2692 = vpop.f32.mrf.mxu0
        %v2693 = vadd.f32 %v1669, %v2692
        %v2694 = vpop.f32.mrf.mxu0
        %v2695 = vadd.f32 %v1669, %v2694
        %2696 = vmatprep.mubr.bf16.mxu0 %v2120
        %2697 = vmatmul.mubr.bf16.gmra.mxu0 %v2119
        %v2698 = vpop.f32.mrf.mxu0
        %v2699 = vadd.f32 %v1674, %v2698
        %v2700 = vpop.f32.mrf.mxu0
        %v2701 = vadd.f32 %v1674, %v2700
        %v2702 = vpop.f32.mrf.mxu0
        %v2703 = vadd.f32 %v1679, %v2702
        %v2704 = vpop.f32.mrf.mxu0
        %v2705 = vadd.f32 %v1679, %v2704
        %2706 = vmatprep.mubr.bf16.mxu0 %v2122
        %2707 = vmatmul.mubr.bf16.gmra.mxu0 %v2121
        %v2708 = vpop.f32.mrf.mxu0
        %v2709 = vadd.f32 %v1684, %v2708
        %v2710 = vpop.f32.mrf.mxu0
        %v2711 = vadd.f32 %v1684, %v2710
        %v2712 = vpop.f32.mrf.mxu0
        %v2713 = vadd.f32 %v1689, %v2712
        %v2714 = vpop.f32.mrf.mxu0
        %v2715 = vadd.f32 %v1689, %v2714
        %2716 = vmatprep.mubr.bf16.mxu0 %v2124
        %2717 = vmatmul.mubr.bf16.gmra.mxu0 %v2123
        %v2718 = vpop.f32.mrf.mxu0
        %v2719 = vadd.f32 %v1694, %v2718
        %v2720 = vpop.f32.mrf.mxu0
        %v2721 = vadd.f32 %v1694, %v2720
        %v2722 = vpop.f32.mrf.mxu0
        %v2723 = vadd.f32 %v1699, %v2722
        %v2724 = vpop.f32.mrf.mxu0
        %v2725 = vadd.f32 %v1699, %v2724
        %2726 = vmatprep.mubr.bf16.mxu0 %v2126
        %2727 = vmatmul.mubr.bf16.gmra.mxu0 %v2125
        %v2728 = vpop.f32.mrf.mxu0
        %v2729 = vadd.f32 %v1704, %v2728
        %v2730 = vpop.f32.mrf.mxu0
        %v2731 = vadd.f32 %v1704, %v2730
        %v2732 = vpop.f32.mrf.mxu0
        %v2733 = vadd.f32 %v1709, %v2732
        %v2734 = vpop.f32.mrf.mxu0
        %v2735 = vadd.f32 %v1709, %v2734
        %2736 = vmatprep.mubr.bf16.mxu0 %v2128
        %2737 = vmatmul.mubr.bf16.gmra.mxu0 %v2127
        %v2738 = vpop.f32.mrf.mxu0
        %v2739 = vadd.f32 %v1714, %v2738
        %v2740 = vpop.f32.mrf.mxu0
        %v2741 = vadd.f32 %v1714, %v2740
        %v2742 = vpop.f32.mrf.mxu0
        %v2743 = vadd.f32 %v1719, %v2742
        %v2744 = vpop.f32.mrf.mxu0
        %v2745 = vadd.f32 %v1719, %v2744
        %2746 = vmatprep.mubr.bf16.mxu0 %v2130
        %2747 = vmatmul.mubr.bf16.gmra.mxu0 %v2129
        %v2748 = vpop.f32.mrf.mxu0
        %v2749 = vadd.f32 %v1724, %v2748
        %v2750 = vpop.f32.mrf.mxu0
        %v2751 = vadd.f32 %v1724, %v2750
        %v2752 = vpop.f32.mrf.mxu0
        %v2753 = vadd.f32 %v1729, %v2752
        %v2754 = vpop.f32.mrf.mxu0
        %v2755 = vadd.f32 %v1729, %v2754
        %2756 = vmatprep.mubr.bf16.mxu0 %v2132
        %2757 = vmatmul.mubr.bf16.gmra.mxu0 %v2131
        %v2758 = vpop.f32.mrf.mxu0
        %v2759 = vadd.f32 %v1734, %v2758
        %v2760 = vpop.f32.mrf.mxu0
        %v2761 = vadd.f32 %v1734, %v2760
        %v2762 = vpop.f32.mrf.mxu0
        %v2763 = vadd.f32 %v1739, %v2762
        %v2764 = vpop.f32.mrf.mxu0
        %v2765 = vadd.f32 %v1739, %v2764
        %2766 = vmatprep.mubr.bf16.mxu0 %v2134
        %2767 = vmatmul.mubr.bf16.gmra.mxu0 %v2133
        %v2768 = vpop.f32.mrf.mxu0
        %v2769 = vadd.f32 %v1744, %v2768
        %v2770 = vpop.f32.mrf.mxu0
        %v2771 = vadd.f32 %v1744, %v2770
        %v2772 = vpop.f32.mrf.mxu0
        %v2773 = vadd.f32 %v1749, %v2772
        %v2774 = vpop.f32.mrf.mxu0
        %v2775 = vadd.f32 %v1749, %v2774
        %2776 = vmatprep.mubr.bf16.mxu0 %v2136
        %2777 = vmatmul.mubr.bf16.gmra.mxu0 %v2135
        %v2778 = vpop.f32.mrf.mxu0
        %v2779 = vadd.f32 %v1754, %v2778
        %v2780 = vpop.f32.mrf.mxu0
        %v2781 = vadd.f32 %v1754, %v2780
        %v2782 = vpop.f32.mrf.mxu0
        %v2783 = vadd.f32 %v1759, %v2782
        %v2784 = vpop.f32.mrf.mxu0
        %v2785 = vadd.f32 %v1759, %v2784
        %2786 = vmatprep.mubr.bf16.mxu0 %v2138
        %2787 = vmatmul.mubr.bf16.gmra.mxu0 %v2137
        %v2788 = vpop.f32.mrf.mxu0
        %v2789 = vadd.f32 %v1764, %v2788
        %v2790 = vpop.f32.mrf.mxu0
        %v2791 = vadd.f32 %v1764, %v2790
        %v2792 = vpop.f32.mrf.mxu0
        %v2793 = vadd.f32 %v1769, %v2792
        %v2794 = vpop.f32.mrf.mxu0
        %v2795 = vadd.f32 %v1769, %v2794
        %2796 = vmatprep.mubr.bf16.mxu0 %v2140
        %2797 = vmatmul.mubr.bf16.gmra.mxu0 %v2139
        %v2798 = vpop.f32.mrf.mxu0
        %v2799 = vadd.f32 %v1774, %v2798
        %v2800 = vpop.f32.mrf.mxu0
        %v2801 = vadd.f32 %v1774, %v2800
        %v2802 = vpop.f32.mrf.mxu0
        %v2803 = vadd.f32 %v1779, %v2802
        %v2804 = vpop.f32.mrf.mxu0
        %v2805 = vadd.f32 %v1779, %v2804
        %2806 = vmatprep.mubr.bf16.mxu0 %v2142
        %2807 = vmatmul.mubr.bf16.gmra.mxu0 %v2141
        %v2808 = vpop.f32.mrf.mxu0
        %v2809 = vadd.f32 %v1784, %v2808
        %v2810 = vpop.f32.mrf.mxu0
        %v2811 = vadd.f32 %v1784, %v2810
        %v2812 = vpop.f32.mrf.mxu0
        %v2813 = vadd.f32 %v1789, %v2812
        %v2814 = vpop.f32.mrf.mxu0
        %v2815 = vadd.f32 %v1789, %v2814
        %2816 = vmatprep.mubr.bf16.mxu0 %v2144
        %2817 = vmatmul.mubr.bf16.gmra.mxu0 %v2143
        %v2818 = vpop.f32.mrf.mxu0
        %v2819 = vadd.f32 %v1794, %v2818
        %v2820 = vpop.f32.mrf.mxu0
        %v2821 = vadd.f32 %v1794, %v2820
        %v2822 = vpop.f32.mrf.mxu0
        %v2823 = vadd.f32 %v1799, %v2822
        %v2824 = vpop.f32.mrf.mxu0
        %v2825 = vadd.f32 %v1799, %v2824
        %2826 = vmatprep.mubr.bf16.mxu0 %v2146
        %2827 = vmatmul.mubr.bf16.gmra.mxu0 %v2145
        %v2828 = vpop.f32.mrf.mxu0
        %v2829 = vadd.f32 %v1804, %v2828
        %v2830 = vpop.f32.mrf.mxu0
        %v2831 = vadd.f32 %v1804, %v2830
        %v2832 = vpop.f32.mrf.mxu0
        %v2833 = vadd.f32 %v1809, %v2832
        %v2834 = vpop.f32.mrf.mxu0
        %v2835 = vadd.f32 %v1809, %v2834
        %2836 = vmatprep.mubr.bf16.mxu0 %v2148
        %2837 = vmatmul.mubr.bf16.gmra.mxu0 %v2147
        %v2838 = vpop.f32.mrf.mxu0
        %v2839 = vadd.f32 %v1814, %v2838
        %v2840 = vpop.f32.mrf.mxu0
        %v2841 = vadd.f32 %v1814, %v2840
        %v2842 = vpop.f32.mrf.mxu0
        %v2843 = vadd.f32 %v1819, %v2842
        %v2844 = vpop.f32.mrf.mxu0
        %v2845 = vadd.f32 %v1819, %v2844
        %2846 = vmatprep.mubr.bf16.mxu0 %v2150
        %2847 = vmatmul.mubr.bf16.gmra.mxu0 %v2149
        %v2848 = vpop.f32.mrf.mxu0
        %v2849 = vadd.f32 %v1824, %v2848
        %v2850 = vpop.f32.mrf.mxu0
        %v2851 = vadd.f32 %v1824, %v2850
        %v2852 = vpop.f32.mrf.mxu0
        %v2853 = vadd.f32 %v1829, %v2852
        %v2854 = vpop.f32.mrf.mxu0
        %v2855 = vadd.f32 %v1829, %v2854
        %2856 = vmatprep.mubr.bf16.mxu0 %v2152
        %2857 = vmatmul.mubr.bf16.gmra.mxu0 %v2151
        %v2858 = vpop.f32.mrf.mxu0
        %v2859 = vadd.f32 %v1834, %v2858
        %v2860 = vpop.f32.mrf.mxu0
        %v2861 = vadd.f32 %v1834, %v2860
        %v2862 = vpop.f32.mrf.mxu0
        %v2863 = vadd.f32 %v1839, %v2862
        %v2864 = vpop.f32.mrf.mxu0
        %v2865 = vadd.f32 %v1839, %v2864
        %2866 = vmatprep.mubr.bf16.mxu0 %v2154
        %2867 = vmatmul.mubr.bf16.gmra.mxu0 %v2153
        %v2868 = vpop.f32.mrf.mxu0
        %v2869 = vadd.f32 %v1844, %v2868
        %v2870 = vpop.f32.mrf.mxu0
        %v2871 = vadd.f32 %v1844, %v2870
        %v2872 = vpop.f32.mrf.mxu0
        %v2873 = vadd.f32 %v1849, %v2872
        %v2874 = vpop.f32.mrf.mxu0
        %v2875 = vadd.f32 %v1849, %v2874
        %2876 = vmatprep.mubr.bf16.mxu0 %v2156
        %2877 = vmatmul.mubr.bf16.gmra.mxu0 %v2155
        %v2878 = vpop.f32.mrf.mxu0
        %v2879 = vadd.f32 %v1854, %v2878
        %v2880 = vpop.f32.mrf.mxu0
        %v2881 = vadd.f32 %v1854, %v2880
        %v2882 = vpop.f32.mrf.mxu0
        %v2883 = vadd.f32 %v1859, %v2882
        %v2884 = vpop.f32.mrf.mxu0
        %v2885 = vadd.f32 %v1859, %v2884
        %2886 = vmatprep.mubr.bf16.mxu0 %v2158
        %2887 = vmatmul.mubr.bf16.gmra.mxu0 %v2157
        %v2888 = vpop.f32.mrf.mxu0
        %v2889 = vadd.f32 %v1864, %v2888
        %v2890 = vpop.f32.mrf.mxu0
        %v2891 = vadd.f32 %v1864, %v2890
        %v2892 = vpop.f32.mrf.mxu0
        %v2893 = vadd.f32 %v1869, %v2892
        %v2894 = vpop.f32.mrf.mxu0
        %v2895 = vadd.f32 %v1869, %v2894
        %2896 = vmatprep.mubr.bf16.mxu0 %v2160
        %2897 = vmatmul.mubr.bf16.gmra.mxu0 %v2159
        %v2898 = vpop.f32.mrf.mxu0
        %v2899 = vadd.f32 %v1874, %v2898
        %v2900 = vpop.f32.mrf.mxu0
        %v2901 = vadd.f32 %v1874, %v2900
        %v2902 = vpop.f32.mrf.mxu0
        %v2903 = vadd.f32 %v1879, %v2902
        %v2904 = vpop.f32.mrf.mxu0
        %v2905 = vadd.f32 %v1879, %v2904
        %2906 = vmatprep.mubr.bf16.mxu0 %v2162
        %2907 = vmatmul.mubr.bf16.gmra.mxu0 %v2161
        %v2908 = vpop.f32.mrf.mxu0
        %v2909 = vadd.f32 %v1884, %v2908
        %v2910 = vpop.f32.mrf.mxu0
        %v2911 = vadd.f32 %v1884, %v2910
        %v2912 = vpop.f32.mrf.mxu0
        %v2913 = vadd.f32 %v1889, %v2912
        %v2914 = vpop.f32.mrf.mxu0
        %v2915 = vadd.f32 %v1889, %v2914
        %2916 = vmatprep.mubr.bf16.mxu0 %v2164
        %2917 = vmatmul.mubr.bf16.gmra.mxu0 %v2163
        %v2918 = vpop.f32.mrf.mxu0
        %v2919 = vadd.f32 %v1894, %v2918
        %v2920 = vpop.f32.mrf.mxu0
        %v2921 = vadd.f32 %v1894, %v2920
        %v2922 = vpop.f32.mrf.mxu0
        %v2923 = vadd.f32 %v1899, %v2922
        %v2924 = vpop.f32.mrf.mxu0
        %v2925 = vadd.f32 %v1899, %v2924
        %2926 = vmatprep.mubr.bf16.mxu0 %v2166
        %2927 = vmatmul.mubr.bf16.gmra.mxu0 %v2165
        %v2928 = vpop.f32.mrf.mxu0
        %v2929 = vadd.f32 %v1904, %v2928
        %v2930 = vpop.f32.mrf.mxu0
        %v2931 = vadd.f32 %v1904, %v2930
        %v2932 = vpop.f32.mrf.mxu0
        %v2933 = vadd.f32 %v1909, %v2932
        %v2934 = vpop.f32.mrf.mxu0
        %v2935 = vadd.f32 %v1909, %v2934
        %2936 = vdwg.mxu0
        %v2937 = vmax.f32 %v2266, 0.0
        %v2938 = vmax.f32 %v2268, 0.0
        %v2939 = vmax.f32 %v2619, 0.0
        %v2940 = vmax.f32 %v2621, 0.0
        %v2941 = vmax.f32 %v2270, 0.0
        %v2942 = vmax.f32 %v2272, 0.0
        %v2943 = vmax.f32 %v2623, 0.0
        %v2944 = vmax.f32 %v2625, 0.0
        %v2945 = vmax.f32 %v2276, 0.0
        %v2946 = vmax.f32 %v2278, 0.0
        %v2947 = vmax.f32 %v2629, 0.0
        %v2948 = vmax.f32 %v2631, 0.0
        %v2949 = vmax.f32 %v2280, 0.0
        %v2950 = vmax.f32 %v2282, 0.0
        %v2951 = vmax.f32 %v2633, 0.0
        %v2952 = vmax.f32 %v2635, 0.0
        %v2953 = vmax.f32 %v2286, 0.0
        %v2954 = vmax.f32 %v2288, 0.0
        %v2955 = vmax.f32 %v2639, 0.0
        %v2956 = vmax.f32 %v2641, 0.0
        %v2957 = vmax.f32 %v2290, 0.0
        %v2958 = vmax.f32 %v2292, 0.0
        %v2959 = vmax.f32 %v2643, 0.0
        %v2960 = vmax.f32 %v2645, 0.0
        %v2961 = vmax.f32 %v2296, 0.0
        %v2962 = vmax.f32 %v2298, 0.0
        %v2963 = vmax.f32 %v2649, 0.0
        %v2964 = vmax.f32 %v2651, 0.0
        %v2965 = vmax.f32 %v2300, 0.0
        %v2966 = vmax.f32 %v2302, 0.0
        %v2967 = vmax.f32 %v2653, 0.0
        %v2968 = vmax.f32 %v2655, 0.0
        %v2969 = vmax.f32 %v2306, 0.0
        %v2970 = vmax.f32 %v2308, 0.0
        %v2971 = vmax.f32 %v2659, 0.0
        %v2972 = vmax.f32 %v2661, 0.0
        %v2973 = vmax.f32 %v2310, 0.0
        %v2974 = vmax.f32 %v2312, 0.0
        %v2975 = vmax.f32 %v2663, 0.0
        %v2976 = vmax.f32 %v2665, 0.0
        %v2977 = vmax.f32 %v2316, 0.0
        %v2978 = vmax.f32 %v2318, 0.0
        %v2979 = vmax.f32 %v2669, 0.0
        %v2980 = vmax.f32 %v2671, 0.0
        %v2981 = vmax.f32 %v2320, 0.0
        %v2982 = vmax.f32 %v2322, 0.0
        %v2983 = vmax.f32 %v2673, 0.0
        %v2984 = vmax.f32 %v2675, 0.0
        %v2985 = vmax.f32 %v2326, 0.0
        %v2986 = vmax.f32 %v2328, 0.0
        %v2987 = vmax.f32 %v2679, 0.0
        %v2988 = vmax.f32 %v2681, 0.0
        %v2989 = vmax.f32 %v2330, 0.0
        %v2990 = vmax.f32 %v2332, 0.0
        %v2991 = vmax.f32 %v2683, 0.0
        %v2992 = vmax.f32 %v2685, 0.0
        %v2993 = vmax.f32 %v2336, 0.0
        %v2994 = vmax.f32 %v2338, 0.0
        %v2995 = vmax.f32 %v2689, 0.0
        %v2996 = vmax.f32 %v2691, 0.0
        %v2997 = vmax.f32 %v2340, 0.0
        %v2998 = vmax.f32 %v2342, 0.0
        %v2999 = vmax.f32 %v2693, 0.0
        %v3000 = vmax.f32 %v2695, 0.0
        %v3001 = vmax.f32 %v2346, 0.0
        %v3002 = vmax.f32 %v2348, 0.0
        %v3003 = vmax.f32 %v2699, 0.0
        %v3004 = vmax.f32 %v2701, 0.0
        %v3005 = vmax.f32 %v2350, 0.0
        %v3006 = vmax.f32 %v2352, 0.0
        %v3007 = vmax.f32 %v2703, 0.0
        %v3008 = vmax.f32 %v2705, 0.0
        %v3009 = vmax.f32 %v2356, 0.0
        %v3010 = vmax.f32 %v2358, 0.0
        %v3011 = vmax.f32 %v2709, 0.0
        %v3012 = vmax.f32 %v2711, 0.0
        %v3013 = vmax.f32 %v2360, 0.0
        %v3014 = vmax.f32 %v2362, 0.0
        %v3015 = vmax.f32 %v2713, 0.0
        %v3016 = vmax.f32 %v2715, 0.0
        %v3017 = vmax.f32 %v2366, 0.0
        %v3018 = vmax.f32 %v2368, 0.0
        %v3019 = vmax.f32 %v2719, 0.0
        %v3020 = vmax.f32 %v2721, 0.0
        %v3021 = vmax.f32 %v2370, 0.0
        %v3022 = vmax.f32 %v2372, 0.0
        %v3023 = vmax.f32 %v2723, 0.0
        %v3024 = vmax.f32 %v2725, 0.0
        %v3025 = vmax.f32 %v2376, 0.0
        %v3026 = vmax.f32 %v2378, 0.0
        %v3027 = vmax.f32 %v2729, 0.0
        %v3028 = vmax.f32 %v2731, 0.0
        %v3029 = vmax.f32 %v2380, 0.0
        %v3030 = vmax.f32 %v2382, 0.0
        %v3031 = vmax.f32 %v2733, 0.0
        %v3032 = vmax.f32 %v2735, 0.0
        %v3033 = vmax.f32 %v2386, 0.0
        %v3034 = vmax.f32 %v2388, 0.0
        %v3035 = vmax.f32 %v2739, 0.0
        %v3036 = vmax.f32 %v2741, 0.0
        %v3037 = vmax.f32 %v2390, 0.0
        %v3038 = vmax.f32 %v2392, 0.0
        %v3039 = vmax.f32 %v2743, 0.0
        %v3040 = vmax.f32 %v2745, 0.0
        %v3041 = vmax.f32 %v2396, 0.0
        %v3042 = vmax.f32 %v2398, 0.0
        %v3043 = vmax.f32 %v2749, 0.0
        %v3044 = vmax.f32 %v2751, 0.0
        %v3045 = vmax.f32 %v2400, 0.0
        %v3046 = vmax.f32 %v2402, 0.0
        %v3047 = vmax.f32 %v2753, 0.0
        %v3048 = vmax.f32 %v2755, 0.0
        %v3049 = vmax.f32 %v2406, 0.0
        %v3050 = vmax.f32 %v2408, 0.0
        %v3051 = vmax.f32 %v2759, 0.0
        %v3052 = vmax.f32 %v2761, 0.0
        %v3053 = vmax.f32 %v2410, 0.0
        %v3054 = vmax.f32 %v2412, 0.0
        %v3055 = vmax.f32 %v2763, 0.0
        %v3056 = vmax.f32 %v2765, 0.0
        %v3057 = vmax.f32 %v2416, 0.0
        %v3058 = vmax.f32 %v2418, 0.0
        %v3059 = vmax.f32 %v2769, 0.0
        %v3060 = vmax.f32 %v2771, 0.0
        %v3061 = vmax.f32 %v2420, 0.0
        %v3062 = vmax.f32 %v2422, 0.0
        %v3063 = vmax.f32 %v2773, 0.0
        %v3064 = vmax.f32 %v2775, 0.0
        %v3065 = vmax.f32 %v2426, 0.0
        %v3066 = vmax.f32 %v2428, 0.0
        %v3067 = vmax.f32 %v2779, 0.0
        %v3068 = vmax.f32 %v2781, 0.0
        %v3069 = vmax.f32 %v2430, 0.0
        %v3070 = vmax.f32 %v2432, 0.0
        %v3071 = vmax.f32 %v2783, 0.0
        %v3072 = vmax.f32 %v2785, 0.0
        %v3073 = vmax.f32 %v2436, 0.0
        %v3074 = vmax.f32 %v2438, 0.0
        %v3075 = vmax.f32 %v2789, 0.0
        %v3076 = vmax.f32 %v2791, 0.0
        %v3077 = vmax.f32 %v2440, 0.0
        %v3078 = vmax.f32 %v2442, 0.0
        %v3079 = vmax.f32 %v2793, 0.0
        %v3080 = vmax.f32 %v2795, 0.0
        %v3081 = vmax.f32 %v2446, 0.0
        %v3082 = vmax.f32 %v2448, 0.0
        %v3083 = vmax.f32 %v2799, 0.0
        %v3084 = vmax.f32 %v2801, 0.0
        %v3085 = vmax.f32 %v2450, 0.0
        %v3086 = vmax.f32 %v2452, 0.0
        %v3087 = vmax.f32 %v2803, 0.0
        %v3088 = vmax.f32 %v2805, 0.0
        %v3089 = vmax.f32 %v2456, 0.0
        %v3090 = vmax.f32 %v2458, 0.0
        %v3091 = vmax.f32 %v2809, 0.0
        %v3092 = vmax.f32 %v2811, 0.0
        %v3093 = vmax.f32 %v2460, 0.0
        %v3094 = vmax.f32 %v2462, 0.0
        %v3095 = vmax.f32 %v2813, 0.0
        %v3096 = vmax.f32 %v2815, 0.0
        %v3097 = vmax.f32 %v2466, 0.0
        %v3098 = vmax.f32 %v2468, 0.0
        %v3099 = vmax.f32 %v2819, 0.0
        %v3100 = vmax.f32 %v2821, 0.0
        %v3101 = vmax.f32 %v2470, 0.0
        %v3102 = vmax.f32 %v2472, 0.0
        %v3103 = vmax.f32 %v2823, 0.0
        %v3104 = vmax.f32 %v2825, 0.0
        %v3105 = vmax.f32 %v2476, 0.0
        %v3106 = vmax.f32 %v2478, 0.0
        %v3107 = vmax.f32 %v2829, 0.0
        %v3108 = vmax.f32 %v2831, 0.0
        %v3109 = vmax.f32 %v2480, 0.0
        %v3110 = vmax.f32 %v2482, 0.0
        %v3111 = vmax.f32 %v2833, 0.0
        %v3112 = vmax.f32 %v2835, 0.0
        %v3113 = vmax.f32 %v2486, 0.0
        %v3114 = vmax.f32 %v2488, 0.0
        %v3115 = vmax.f32 %v2839, 0.0
        %v3116 = vmax.f32 %v2841, 0.0
        %v3117 = vmax.f32 %v2490, 0.0
        %v3118 = vmax.f32 %v2492, 0.0
        %v3119 = vmax.f32 %v2843, 0.0
        %v3120 = vmax.f32 %v2845, 0.0
        %v3121 = vmax.f32 %v2496, 0.0
        %v3122 = vmax.f32 %v2498, 0.0
        %v3123 = vmax.f32 %v2849, 0.0
        %v3124 = vmax.f32 %v2851, 0.0
        %v3125 = vmax.f32 %v2500, 0.0
        %v3126 = vmax.f32 %v2502, 0.0
        %v3127 = vmax.f32 %v2853, 0.0
        %v3128 = vmax.f32 %v2855, 0.0
        %v3129 = vmax.f32 %v2506, 0.0
        %v3130 = vmax.f32 %v2508, 0.0
        %v3131 = vmax.f32 %v2859, 0.0
        %v3132 = vmax.f32 %v2861, 0.0
        %v3133 = vmax.f32 %v2510, 0.0
        %v3134 = vmax.f32 %v2512, 0.0
        %v3135 = vmax.f32 %v2863, 0.0
        %v3136 = vmax.f32 %v2865, 0.0
        %v3137 = vmax.f32 %v2516, 0.0
        %v3138 = vmax.f32 %v2518, 0.0
        %v3139 = vmax.f32 %v2869, 0.0
        %v3140 = vmax.f32 %v2871, 0.0
        %v3141 = vmax.f32 %v2520, 0.0
        %v3142 = vmax.f32 %v2522, 0.0
        %v3143 = vmax.f32 %v2873, 0.0
        %v3144 = vmax.f32 %v2875, 0.0
        %v3145 = vmax.f32 %v2526, 0.0
        %v3146 = vmax.f32 %v2528, 0.0
        %v3147 = vmax.f32 %v2879, 0.0
        %v3148 = vmax.f32 %v2881, 0.0
        %v3149 = vmax.f32 %v2530, 0.0
        %v3150 = vmax.f32 %v2532, 0.0
        %v3151 = vmax.f32 %v2883, 0.0
        %v3152 = vmax.f32 %v2885, 0.0
        %v3153 = vmax.f32 %v2536, 0.0
        %v3154 = vmax.f32 %v2538, 0.0
        %v3155 = vmax.f32 %v2889, 0.0
        %v3156 = vmax.f32 %v2891, 0.0
        %v3157 = vmax.f32 %v2540, 0.0
        %v3158 = vmax.f32 %v2542, 0.0
        %v3159 = vmax.f32 %v2893, 0.0
        %v3160 = vmax.f32 %v2895, 0.0
        %v3161 = vmax.f32 %v2546, 0.0
        %v3162 = vmax.f32 %v2548, 0.0
        %v3163 = vmax.f32 %v2899, 0.0
        %v3164 = vmax.f32 %v2901, 0.0
        %v3165 = vmax.f32 %v2550, 0.0
        %v3166 = vmax.f32 %v2552, 0.0
        %v3167 = vmax.f32 %v2903, 0.0
        %v3168 = vmax.f32 %v2905, 0.0
        %v3169 = vmax.f32 %v2556, 0.0
        %v3170 = vmax.f32 %v2558, 0.0
        %v3171 = vmax.f32 %v2909, 0.0
        %v3172 = vmax.f32 %v2911, 0.0
        %v3173 = vmax.f32 %v2560, 0.0
        %v3174 = vmax.f32 %v2562, 0.0
        %v3175 = vmax.f32 %v2913, 0.0
        %v3176 = vmax.f32 %v2915, 0.0
        %v3177 = vmax.f32 %v2566, 0.0
        %v3178 = vmax.f32 %v2568, 0.0
        %v3179 = vmax.f32 %v2919, 0.0
        %v3180 = vmax.f32 %v2921, 0.0
        %v3181 = vmax.f32 %v2570, 0.0
        %v3182 = vmax.f32 %v2572, 0.0
        %v3183 = vmax.f32 %v2923, 0.0
        %v3184 = vmax.f32 %v2925, 0.0
        %v3185 = vmax.f32 %v2576, 0.0
        %v3186 = vmax.f32 %v2578, 0.0
        %v3187 = vmax.f32 %v2929, 0.0
        %v3188 = vmax.f32 %v2931, 0.0
        %v3189 = vmax.f32 %v2580, 0.0
        %v3190 = vmax.f32 %v2582, 0.0
        %v3191 = vmax.f32 %v2933, 0.0
        %v3192 = vmax.f32 %v2935, 0.0
        %v3193 = vld [vmem:[%s8] sm:$0xff]
        %v3194 = vld [vmem:[%s8 + $0x8] sm:$0xff]
        %v3195 = vld [vmem:[%s8 + $0x10] sm:$0xff]
        %v3196 = vld [vmem:[%s8 + $0x18] sm:$0xff]
        %v3197 = vld [vmem:[%s8 + $0x20] sm:$0xff]
        %v3198 = vld [vmem:[%s8 + $0x28] sm:$0xff]
        %v3199 = vld [vmem:[%s8 + $0x30] sm:$0xff]
        %v3200 = vld [vmem:[%s8 + $0x38] sm:$0xff]
        %v3201 = vld [vmem:[%s8 + $0x40] sm:$0xff]
        %v3202 = vld [vmem:[%s8 + $0x48] sm:$0xff]
        %v3203 = vld [vmem:[%s8 + $0x50] sm:$0xff]
        %v3204 = vld [vmem:[%s8 + $0x58] sm:$0xff]
        %v3205 = vld [vmem:[%s8 + $0x60] sm:$0xff]
        %v3206 = vld [vmem:[%s8 + $0x68] sm:$0xff]
        %v3207 = vld [vmem:[%s8 + $0x70] sm:$0xff]
        %v3208 = vld [vmem:[%s8 + $0x78] sm:$0xff]
        %v3209 = vld [vmem:[%s8 + $0x80] sm:$0xff]
        %v3210 = vld [vmem:[%s8 + $0x88] sm:$0xff]
        %v3211 = vld [vmem:[%s8 + $0x90] sm:$0xff]
        %v3212 = vld [vmem:[%s8 + $0x98] sm:$0xff]
        %v3213 = vld [vmem:[%s8 + $0xa0] sm:$0xff]
        %v3214 = vld [vmem:[%s8 + $0xa8] sm:$0xff]
        %v3215 = vld [vmem:[%s8 + $0xb0] sm:$0xff]
        %v3216 = vld [vmem:[%s8 + $0xb8] sm:$0xff]
        %v3217 = vld [vmem:[%s8 + $0xc0] sm:$0xff]
        %v3218 = vld [vmem:[%s8 + $0xc8] sm:$0xff]
        %v3219 = vld [vmem:[%s8 + $0xd0] sm:$0xff]
        %v3220 = vld [vmem:[%s8 + $0xd8] sm:$0xff]
        %v3221 = vld [vmem:[%s8 + $0xe0] sm:$0xff]
        %v3222 = vld [vmem:[%s8 + $0xe8] sm:$0xff]
        %v3223 = vld [vmem:[%s8 + $0xf0] sm:$0xff]
        %v3224 = vld [vmem:[%s8 + $0xf8] sm:$0xff]
        %v3225 = vld [vmem:[%s8 + $0x100] sm:$0xff]
        %v3226 = vld [vmem:[%s8 + $0x108] sm:$0xff]
        %v3227 = vld [vmem:[%s8 + $0x110] sm:$0xff]
        %v3228 = vld [vmem:[%s8 + $0x118] sm:$0xff]
        %v3229 = vld [vmem:[%s8 + $0x120] sm:$0xff]
        %v3230 = vld [vmem:[%s8 + $0x128] sm:$0xff]
        %v3231 = vld [vmem:[%s8 + $0x130] sm:$0xff]
        %v3232 = vld [vmem:[%s8 + $0x138] sm:$0xff]
        %v3233 = vld [vmem:[%s8 + $0x140] sm:$0xff]
        %v3234 = vld [vmem:[%s8 + $0x148] sm:$0xff]
        %v3235 = vld [vmem:[%s8 + $0x150] sm:$0xff]
        %v3236 = vld [vmem:[%s8 + $0x158] sm:$0xff]
        %v3237 = vld [vmem:[%s8 + $0x160] sm:$0xff]
        %v3238 = vld [vmem:[%s8 + $0x168] sm:$0xff]
        %v3239 = vld [vmem:[%s8 + $0x170] sm:$0xff]
        %v3240 = vld [vmem:[%s8 + $0x178] sm:$0xff]
        %v3241 = vld [vmem:[%s8 + $0x180] sm:$0xff]
        %v3242 = vld [vmem:[%s8 + $0x188] sm:$0xff]
        %v3243 = vld [vmem:[%s8 + $0x190] sm:$0xff]
        %v3244 = vld [vmem:[%s8 + $0x198] sm:$0xff]
        %v3245 = vld [vmem:[%s8 + $0x1a0] sm:$0xff]
        %v3246 = vld [vmem:[%s8 + $0x1a8] sm:$0xff]
        %v3247 = vld [vmem:[%s8 + $0x1b0] sm:$0xff]
        %v3248 = vld [vmem:[%s8 + $0x1b8] sm:$0xff]
        %v3249 = vld [vmem:[%s8 + $0x1c0] sm:$0xff]
        %v3250 = vld [vmem:[%s8 + $0x1c8] sm:$0xff]
        %v3251 = vld [vmem:[%s8 + $0x1d0] sm:$0xff]
        %v3252 = vld [vmem:[%s8 + $0x1d8] sm:$0xff]
        %v3253 = vld [vmem:[%s8 + $0x1e0] sm:$0xff]
        %v3254 = vld [vmem:[%s8 + $0x1e8] sm:$0xff]
        %v3255 = vld [vmem:[%s8 + $0x1f0] sm:$0xff]
        %v3256 = vld [vmem:[%s8 + $0x1f8] sm:$0xff]
        %v3257 = vpack.c.bf16 %v2941, %v2937
        %v3258 = vpack.c.bf16 %v2942, %v2938
        %v3259 = vpack.c.bf16 %v2943, %v2939
        %v3260 = vpack.c.bf16 %v2944, %v2940
        %v3261 = vpack.c.bf16 %v2949, %v2945
        %v3262 = vpack.c.bf16 %v2950, %v2946
        %v3263 = vpack.c.bf16 %v2951, %v2947
        %v3264 = vpack.c.bf16 %v2952, %v2948
        %v3265 = vpack.c.bf16 %v2957, %v2953
        %v3266 = vpack.c.bf16 %v2958, %v2954
        %v3267 = vpack.c.bf16 %v2959, %v2955
        %v3268 = vpack.c.bf16 %v2960, %v2956
        %v3269 = vpack.c.bf16 %v2965, %v2961
        %v3270 = vpack.c.bf16 %v2966, %v2962
        %v3271 = vpack.c.bf16 %v2967, %v2963
        %v3272 = vpack.c.bf16 %v2968, %v2964
        %v3273 = vpack.c.bf16 %v2973, %v2969
        %v3274 = vpack.c.bf16 %v2974, %v2970
        %v3275 = vpack.c.bf16 %v2975, %v2971
        %v3276 = vpack.c.bf16 %v2976, %v2972
        %v3277 = vpack.c.bf16 %v2981, %v2977
        %v3278 = vpack.c.bf16 %v2982, %v2978
        %v3279 = vpack.c.bf16 %v2983, %v2979
        %v3280 = vpack.c.bf16 %v2984, %v2980
        %v3281 = vpack.c.bf16 %v2989, %v2985
        %v3282 = vpack.c.bf16 %v2990, %v2986
        %v3283 = vpack.c.bf16 %v2991, %v2987
        %v3284 = vpack.c.bf16 %v2992, %v2988
        %v3285 = vpack.c.bf16 %v2997, %v2993
        %v3286 = vpack.c.bf16 %v2998, %v2994
        %v3287 = vpack.c.bf16 %v2999, %v2995
        %v3288 = vpack.c.bf16 %v3000, %v2996
        %v3289 = vpack.c.bf16 %v3005, %v3001
        %v3290 = vpack.c.bf16 %v3006, %v3002
        %v3291 = vpack.c.bf16 %v3007, %v3003
        %v3292 = vpack.c.bf16 %v3008, %v3004
        %v3293 = vpack.c.bf16 %v3013, %v3009
        %v3294 = vpack.c.bf16 %v3014, %v3010
        %v3295 = vpack.c.bf16 %v3015, %v3011
        %v3296 = vpack.c.bf16 %v3016, %v3012
        %v3297 = vpack.c.bf16 %v3021, %v3017
        %v3298 = vpack.c.bf16 %v3022, %v3018
        %v3299 = vpack.c.bf16 %v3023, %v3019
        %v3300 = vpack.c.bf16 %v3024, %v3020
        %v3301 = vpack.c.bf16 %v3029, %v3025
        %v3302 = vpack.c.bf16 %v3030, %v3026
        %v3303 = vpack.c.bf16 %v3031, %v3027
        %v3304 = vpack.c.bf16 %v3032, %v3028
        %v3305 = vpack.c.bf16 %v3037, %v3033
        %v3306 = vpack.c.bf16 %v3038, %v3034
        %v3307 = vpack.c.bf16 %v3039, %v3035
        %v3308 = vpack.c.bf16 %v3040, %v3036
        %v3309 = vpack.c.bf16 %v3045, %v3041
        %v3310 = vpack.c.bf16 %v3046, %v3042
        %v3311 = vpack.c.bf16 %v3047, %v3043
        %v3312 = vpack.c.bf16 %v3048, %v3044
        %v3313 = vpack.c.bf16 %v3053, %v3049
        %v3314 = vpack.c.bf16 %v3054, %v3050
        %v3315 = vpack.c.bf16 %v3055, %v3051
        %v3316 = vpack.c.bf16 %v3056, %v3052
        %v3317 = vpack.c.bf16 %v3061, %v3057
        %v3318 = vpack.c.bf16 %v3062, %v3058
        %v3319 = vpack.c.bf16 %v3063, %v3059
        %v3320 = vpack.c.bf16 %v3064, %v3060
        %v3321 = vpack.c.bf16 %v3069, %v3065
        %v3322 = vpack.c.bf16 %v3070, %v3066
        %v3323 = vpack.c.bf16 %v3071, %v3067
        %v3324 = vpack.c.bf16 %v3072, %v3068
        %v3325 = vpack.c.bf16 %v3077, %v3073
        %v3326 = vpack.c.bf16 %v3078, %v3074
        %v3327 = vpack.c.bf16 %v3079, %v3075
        %v3328 = vpack.c.bf16 %v3080, %v3076
        %v3329 = vpack.c.bf16 %v3085, %v3081
        %v3330 = vpack.c.bf16 %v3086, %v3082
        %v3331 = vpack.c.bf16 %v3087, %v3083
        %v3332 = vpack.c.bf16 %v3088, %v3084
        %v3333 = vpack.c.bf16 %v3093, %v3089
        %v3334 = vpack.c.bf16 %v3094, %v3090
        %v3335 = vpack.c.bf16 %v3095, %v3091
        %v3336 = vpack.c.bf16 %v3096, %v3092
        %v3337 = vpack.c.bf16 %v3101, %v3097
        %v3338 = vpack.c.bf16 %v3102, %v3098
        %v3339 = vpack.c.bf16 %v3103, %v3099
        %v3340 = vpack.c.bf16 %v3104, %v3100
        %v3341 = vpack.c.bf16 %v3109, %v3105
        %v3342 = vpack.c.bf16 %v3110, %v3106
        %v3343 = vpack.c.bf16 %v3111, %v3107
        %v3344 = vpack.c.bf16 %v3112, %v3108
        %v3345 = vpack.c.bf16 %v3117, %v3113
        %v3346 = vpack.c.bf16 %v3118, %v3114
        %v3347 = vpack.c.bf16 %v3119, %v3115
        %v3348 = vpack.c.bf16 %v3120, %v3116
        %v3349 = vpack.c.bf16 %v3125, %v3121
        %v3350 = vpack.c.bf16 %v3126, %v3122
        %v3351 = vpack.c.bf16 %v3127, %v3123
        %v3352 = vpack.c.bf16 %v3128, %v3124
        %v3353 = vpack.c.bf16 %v3133, %v3129
        %v3354 = vpack.c.bf16 %v3134, %v3130
        %v3355 = vpack.c.bf16 %v3135, %v3131
        %v3356 = vpack.c.bf16 %v3136, %v3132
        %v3357 = vpack.c.bf16 %v3141, %v3137
        %v3358 = vpack.c.bf16 %v3142, %v3138
        %v3359 = vpack.c.bf16 %v3143, %v3139
        %v3360 = vpack.c.bf16 %v3144, %v3140
        %v3361 = vpack.c.bf16 %v3149, %v3145
        %v3362 = vpack.c.bf16 %v3150, %v3146
        %v3363 = vpack.c.bf16 %v3151, %v3147
        %v3364 = vpack.c.bf16 %v3152, %v3148
        %v3365 = vpack.c.bf16 %v3157, %v3153
        %v3366 = vpack.c.bf16 %v3158, %v3154
        %v3367 = vpack.c.bf16 %v3159, %v3155
        %v3368 = vpack.c.bf16 %v3160, %v3156
        %v3369 = vpack.c.bf16 %v3165, %v3161
        %v3370 = vpack.c.bf16 %v3166, %v3162
        %v3371 = vpack.c.bf16 %v3167, %v3163
        %v3372 = vpack.c.bf16 %v3168, %v3164
        %v3373 = vpack.c.bf16 %v3173, %v3169
        %v3374 = vpack.c.bf16 %v3174, %v3170
        %v3375 = vpack.c.bf16 %v3175, %v3171
        %v3376 = vpack.c.bf16 %v3176, %v3172
        %v3377 = vpack.c.bf16 %v3181, %v3177
        %v3378 = vpack.c.bf16 %v3182, %v3178
        %v3379 = vpack.c.bf16 %v3183, %v3179
        %v3380 = vpack.c.bf16 %v3184, %v3180
        %v3381 = vpack.c.bf16 %v3189, %v3185
        %v3382 = vpack.c.bf16 %v3190, %v3186
        %v3383 = vpack.c.bf16 %v3191, %v3187
        %v3384 = vpack.c.bf16 %v3192, %v3188
        %v3385 = vld [vmem:[%s9] sm:$0xff]
        %v3386 = vld [vmem:[%s9 + $0x8] sm:$0xff]
        %v3387 = vld [vmem:[%s9 + $0x10] sm:$0xff]
        %v3388 = vld [vmem:[%s9 + $0x18] sm:$0xff]
        %v3389 = vld [vmem:[%s9 + $0x20] sm:$0xff]
        %v3390 = vld [vmem:[%s9 + $0x28] sm:$0xff]
        %v3391 = vld [vmem:[%s9 + $0x30] sm:$0xff]
        %v3392 = vld [vmem:[%s9 + $0x38] sm:$0xff]
        %v3393 = vld [vmem:[%s9 + $0x40] sm:$0xff]
        %v3394 = vld [vmem:[%s9 + $0x48] sm:$0xff]
        %v3395 = vld [vmem:[%s9 + $0x50] sm:$0xff]
        %v3396 = vld [vmem:[%s9 + $0x58] sm:$0xff]
        %v3397 = vld [vmem:[%s9 + $0x60] sm:$0xff]
        %v3398 = vld [vmem:[%s9 + $0x68] sm:$0xff]
        %v3399 = vld [vmem:[%s9 + $0x70] sm:$0xff]
        %v3400 = vld [vmem:[%s9 + $0x78] sm:$0xff]
        %v3401 = vld [vmem:[%s9 + $0x80] sm:$0xff]
        %v3402 = vld [vmem:[%s9 + $0x88] sm:$0xff]
        %v3403 = vld [vmem:[%s9 + $0x90] sm:$0xff]
        %v3404 = vld [vmem:[%s9 + $0x98] sm:$0xff]
        %v3405 = vld [vmem:[%s9 + $0xa0] sm:$0xff]
        %v3406 = vld [vmem:[%s9 + $0xa8] sm:$0xff]
        %v3407 = vld [vmem:[%s9 + $0xb0] sm:$0xff]
        %v3408 = vld [vmem:[%s9 + $0xb8] sm:$0xff]
        %v3409 = vld [vmem:[%s9 + $0xc0] sm:$0xff]
        %v3410 = vld [vmem:[%s9 + $0xc8] sm:$0xff]
        %v3411 = vld [vmem:[%s9 + $0xd0] sm:$0xff]
        %v3412 = vld [vmem:[%s9 + $0xd8] sm:$0xff]
        %v3413 = vld [vmem:[%s9 + $0xe0] sm:$0xff]
        %v3414 = vld [vmem:[%s9 + $0xe8] sm:$0xff]
        %v3415 = vld [vmem:[%s9 + $0xf0] sm:$0xff]
        %v3416 = vld [vmem:[%s9 + $0xf8] sm:$0xff]
        %3418 = vset.pattern.permute.xlu0 0
        %3419 = vperm.xlu0 %3418, %v3385
        %v3420 = vpop.permute.xlu0 %3419
        %3423 = vset.pattern.permute.xlu0 0
        %3424 = vperm.xlu0 %3423, %v3386
        %v3425 = vpop.permute.xlu0 %3424
        %3428 = vset.pattern.permute.xlu0 0
        %3429 = vperm.xlu0 %3428, %v3387
        %v3430 = vpop.permute.xlu0 %3429
        %3433 = vset.pattern.permute.xlu0 0
        %3434 = vperm.xlu0 %3433, %v3388
        %v3435 = vpop.permute.xlu0 %3434
        %3438 = vset.pattern.permute.xlu0 0
        %3439 = vperm.xlu0 %3438, %v3389
        %v3440 = vpop.permute.xlu0 %3439
        %3443 = vset.pattern.permute.xlu0 0
        %3444 = vperm.xlu0 %3443, %v3390
        %v3445 = vpop.permute.xlu0 %3444
        %3448 = vset.pattern.permute.xlu0 0
        %3449 = vperm.xlu0 %3448, %v3391
        %v3450 = vpop.permute.xlu0 %3449
        %3453 = vset.pattern.permute.xlu0 0
        %3454 = vperm.xlu0 %3453, %v3392
        %v3455 = vpop.permute.xlu0 %3454
        %3458 = vset.pattern.permute.xlu0 0
        %3459 = vperm.xlu0 %3458, %v3393
        %v3460 = vpop.permute.xlu0 %3459
        %3463 = vset.pattern.permute.xlu0 0
        %3464 = vperm.xlu0 %3463, %v3394
        %v3465 = vpop.permute.xlu0 %3464
        %3468 = vset.pattern.permute.xlu0 0
        %3469 = vperm.xlu0 %3468, %v3395
        %v3470 = vpop.permute.xlu0 %3469
        %3473 = vset.pattern.permute.xlu0 0
        %3474 = vperm.xlu0 %3473, %v3396
        %v3475 = vpop.permute.xlu0 %3474
        %3478 = vset.pattern.permute.xlu0 0
        %3479 = vperm.xlu0 %3478, %v3397
        %v3480 = vpop.permute.xlu0 %3479
        %3483 = vset.pattern.permute.xlu0 0
        %3484 = vperm.xlu0 %3483, %v3398
        %v3485 = vpop.permute.xlu0 %3484
        %3488 = vset.pattern.permute.xlu0 0
        %3489 = vperm.xlu0 %3488, %v3399
        %v3490 = vpop.permute.xlu0 %3489
        %3493 = vset.pattern.permute.xlu0 0
        %3494 = vperm.xlu0 %3493, %v3400
        %v3495 = vpop.permute.xlu0 %3494
        %3498 = vset.pattern.permute.xlu0 0
        %3499 = vperm.xlu0 %3498, %v3401
        %v3500 = vpop.permute.xlu0 %3499
        %3503 = vset.pattern.permute.xlu0 0
        %3504 = vperm.xlu0 %3503, %v3402
        %v3505 = vpop.permute.xlu0 %3504
        %3508 = vset.pattern.permute.xlu0 0
        %3509 = vperm.xlu0 %3508, %v3403
        %v3510 = vpop.permute.xlu0 %3509
        %3513 = vset.pattern.permute.xlu0 0
        %3514 = vperm.xlu0 %3513, %v3404
        %v3515 = vpop.permute.xlu0 %3514
        %3518 = vset.pattern.permute.xlu0 0
        %3519 = vperm.xlu0 %3518, %v3405
        %v3520 = vpop.permute.xlu0 %3519
        %3523 = vset.pattern.permute.xlu0 0
        %3524 = vperm.xlu0 %3523, %v3406
        %v3525 = vpop.permute.xlu0 %3524
        %3528 = vset.pattern.permute.xlu0 0
        %3529 = vperm.xlu0 %3528, %v3407
        %v3530 = vpop.permute.xlu0 %3529
        %3533 = vset.pattern.permute.xlu0 0
        %3534 = vperm.xlu0 %3533, %v3408
        %v3535 = vpop.permute.xlu0 %3534
        %3538 = vset.pattern.permute.xlu0 0
        %3539 = vperm.xlu0 %3538, %v3409
        %v3540 = vpop.permute.xlu0 %3539
        %3543 = vset.pattern.permute.xlu0 0
        %3544 = vperm.xlu0 %3543, %v3410
        %v3545 = vpop.permute.xlu0 %3544
        %3548 = vset.pattern.permute.xlu0 0
        %3549 = vperm.xlu0 %3548, %v3411
        %v3550 = vpop.permute.xlu0 %3549
        %3553 = vset.pattern.permute.xlu0 0
        %3554 = vperm.xlu0 %3553, %v3412
        %v3555 = vpop.permute.xlu0 %3554
        %3558 = vset.pattern.permute.xlu0 0
        %3559 = vperm.xlu0 %3558, %v3413
        %v3560 = vpop.permute.xlu0 %3559
        %3563 = vset.pattern.permute.xlu0 0
        %3564 = vperm.xlu0 %3563, %v3414
        %v3565 = vpop.permute.xlu0 %3564
        %3568 = vset.pattern.permute.xlu0 0
        %3569 = vperm.xlu0 %3568, %v3415
        %v3570 = vpop.permute.xlu0 %3569
        %3573 = vset.pattern.permute.xlu0 0
        %3574 = vperm.xlu0 %3573, %v3416
        %v3575 = vpop.permute.xlu0 %3574
        %v3641 = vunpack.c.l.b16 %v3193
        %v3642 = vunpack.c.h.b16 %v3193
        %v3643 = vunpack.c.l.b16 %v3194
        %v3644 = vunpack.c.h.b16 %v3194
        %v3645 = vunpack.c.l.b16 %v3195
        %v3646 = vunpack.c.h.b16 %v3195
        %v3647 = vunpack.c.l.b16 %v3196
        %v3648 = vunpack.c.h.b16 %v3196
        %v3649 = vunpack.c.l.b16 %v3197
        %v3650 = vunpack.c.h.b16 %v3197
        %v3651 = vunpack.c.l.b16 %v3198
        %v3652 = vunpack.c.h.b16 %v3198
        %v3653 = vunpack.c.l.b16 %v3199
        %v3654 = vunpack.c.h.b16 %v3199
        %v3655 = vunpack.c.l.b16 %v3200
        %v3656 = vunpack.c.h.b16 %v3200
        %v3657 = vunpack.c.l.b16 %v3201
        %v3658 = vunpack.c.h.b16 %v3201
        %v3659 = vunpack.c.l.b16 %v3202
        %v3660 = vunpack.c.h.b16 %v3202
        %v3661 = vunpack.c.l.b16 %v3203
        %v3662 = vunpack.c.h.b16 %v3203
        %v3663 = vunpack.c.l.b16 %v3204
        %v3664 = vunpack.c.h.b16 %v3204
        %v3665 = vunpack.c.l.b16 %v3205
        %v3666 = vunpack.c.h.b16 %v3205
        %v3667 = vunpack.c.l.b16 %v3206
        %v3668 = vunpack.c.h.b16 %v3206
        %v3669 = vunpack.c.l.b16 %v3207
        %v3670 = vunpack.c.h.b16 %v3207
        %v3671 = vunpack.c.l.b16 %v3208
        %v3672 = vunpack.c.h.b16 %v3208
        %v3673 = vunpack.c.l.b16 %v3209
        %v3674 = vunpack.c.h.b16 %v3209
        %v3675 = vunpack.c.l.b16 %v3210
        %v3676 = vunpack.c.h.b16 %v3210
        %v3677 = vunpack.c.l.b16 %v3211
        %v3678 = vunpack.c.h.b16 %v3211
        %v3679 = vunpack.c.l.b16 %v3212
        %v3680 = vunpack.c.h.b16 %v3212
        %v3681 = vunpack.c.l.b16 %v3213
        %v3682 = vunpack.c.h.b16 %v3213
        %v3683 = vunpack.c.l.b16 %v3214
        %v3684 = vunpack.c.h.b16 %v3214
        %v3685 = vunpack.c.l.b16 %v3215
        %v3686 = vunpack.c.h.b16 %v3215
        %v3687 = vunpack.c.l.b16 %v3216
        %v3688 = vunpack.c.h.b16 %v3216
        %v3689 = vunpack.c.l.b16 %v3217
        %v3690 = vunpack.c.h.b16 %v3217
        %v3691 = vunpack.c.l.b16 %v3218
        %v3692 = vunpack.c.h.b16 %v3218
        %v3693 = vunpack.c.l.b16 %v3219
        %v3694 = vunpack.c.h.b16 %v3219
        %v3695 = vunpack.c.l.b16 %v3220
        %v3696 = vunpack.c.h.b16 %v3220
        %v3697 = vunpack.c.l.b16 %v3221
        %v3698 = vunpack.c.h.b16 %v3221
        %v3699 = vunpack.c.l.b16 %v3222
        %v3700 = vunpack.c.h.b16 %v3222
        %v3701 = vunpack.c.l.b16 %v3223
        %v3702 = vunpack.c.h.b16 %v3223
        %v3703 = vunpack.c.l.b16 %v3224
        %v3704 = vunpack.c.h.b16 %v3224
        %v3705 = vunpack.c.l.b16 %v3225
        %v3706 = vunpack.c.h.b16 %v3225
        %v3707 = vunpack.c.l.b16 %v3226
        %v3708 = vunpack.c.h.b16 %v3226
        %v3709 = vunpack.c.l.b16 %v3227
        %v3710 = vunpack.c.h.b16 %v3227
        %v3711 = vunpack.c.l.b16 %v3228
        %v3712 = vunpack.c.h.b16 %v3228
        %v3713 = vunpack.c.l.b16 %v3229
        %v3714 = vunpack.c.h.b16 %v3229
        %v3715 = vunpack.c.l.b16 %v3230
        %v3716 = vunpack.c.h.b16 %v3230
        %v3717 = vunpack.c.l.b16 %v3231
        %v3718 = vunpack.c.h.b16 %v3231
        %v3719 = vunpack.c.l.b16 %v3232
        %v3720 = vunpack.c.h.b16 %v3232
        %v3721 = vunpack.c.l.b16 %v3233
        %v3722 = vunpack.c.h.b16 %v3233
        %v3723 = vunpack.c.l.b16 %v3234
        %v3724 = vunpack.c.h.b16 %v3234
        %v3725 = vunpack.c.l.b16 %v3235
        %v3726 = vunpack.c.h.b16 %v3235
        %v3727 = vunpack.c.l.b16 %v3236
        %v3728 = vunpack.c.h.b16 %v3236
        %v3729 = vunpack.c.l.b16 %v3237
        %v3730 = vunpack.c.h.b16 %v3237
        %v3731 = vunpack.c.l.b16 %v3238
        %v3732 = vunpack.c.h.b16 %v3238
        %v3733 = vunpack.c.l.b16 %v3239
        %v3734 = vunpack.c.h.b16 %v3239
        %v3735 = vunpack.c.l.b16 %v3240
        %v3736 = vunpack.c.h.b16 %v3240
        %v3737 = vunpack.c.l.b16 %v3241
        %v3738 = vunpack.c.h.b16 %v3241
        %v3739 = vunpack.c.l.b16 %v3242
        %v3740 = vunpack.c.h.b16 %v3242
        %v3741 = vunpack.c.l.b16 %v3243
        %v3742 = vunpack.c.h.b16 %v3243
        %v3743 = vunpack.c.l.b16 %v3244
        %v3744 = vunpack.c.h.b16 %v3244
        %v3745 = vunpack.c.l.b16 %v3245
        %v3746 = vunpack.c.h.b16 %v3245
        %v3747 = vunpack.c.l.b16 %v3246
        %v3748 = vunpack.c.h.b16 %v3246
        %v3749 = vunpack.c.l.b16 %v3247
        %v3750 = vunpack.c.h.b16 %v3247
        %v3751 = vunpack.c.l.b16 %v3248
        %v3752 = vunpack.c.h.b16 %v3248
        %v3753 = vunpack.c.l.b16 %v3249
        %v3754 = vunpack.c.h.b16 %v3249
        %v3755 = vunpack.c.l.b16 %v3250
        %v3756 = vunpack.c.h.b16 %v3250
        %v3757 = vunpack.c.l.b16 %v3251
        %v3758 = vunpack.c.h.b16 %v3251
        %v3759 = vunpack.c.l.b16 %v3252
        %v3760 = vunpack.c.h.b16 %v3252
        %v3761 = vunpack.c.l.b16 %v3253
        %v3762 = vunpack.c.h.b16 %v3253
        %v3763 = vunpack.c.l.b16 %v3254
        %v3764 = vunpack.c.h.b16 %v3254
        %v3765 = vunpack.c.l.b16 %v3255
        %v3766 = vunpack.c.h.b16 %v3255
        %v3767 = vunpack.c.l.b16 %v3256
        %v3768 = vunpack.c.h.b16 %v3256
        %v3769 = vpack.c.b16 %v3645, %v3641
        %v3770 = vpack.c.b16 %v3646, %v3642
        %v3771 = vpack.c.b16 %v3647, %v3643
        %v3772 = vpack.c.b16 %v3648, %v3644
        %v3773 = vpack.c.b16 %v3653, %v3649
        %v3774 = vpack.c.b16 %v3654, %v3650
        %v3775 = vpack.c.b16 %v3655, %v3651
        %v3776 = vpack.c.b16 %v3656, %v3652
        %v3777 = vpack.c.b16 %v3661, %v3657
        %v3778 = vpack.c.b16 %v3662, %v3658
        %v3779 = vpack.c.b16 %v3663, %v3659
        %v3780 = vpack.c.b16 %v3664, %v3660
        %v3781 = vpack.c.b16 %v3669, %v3665
        %v3782 = vpack.c.b16 %v3670, %v3666
        %v3783 = vpack.c.b16 %v3671, %v3667
        %v3784 = vpack.c.b16 %v3672, %v3668
        %v3785 = vpack.c.b16 %v3677, %v3673
        %v3786 = vpack.c.b16 %v3678, %v3674
        %v3787 = vpack.c.b16 %v3679, %v3675
        %v3788 = vpack.c.b16 %v3680, %v3676
        %v3789 = vpack.c.b16 %v3685, %v3681
        %v3790 = vpack.c.b16 %v3686, %v3682
        %v3791 = vpack.c.b16 %v3687, %v3683
        %v3792 = vpack.c.b16 %v3688, %v3684
        %v3793 = vpack.c.b16 %v3693, %v3689
        %v3794 = vpack.c.b16 %v3694, %v3690
        %v3795 = vpack.c.b16 %v3695, %v3691
        %v3796 = vpack.c.b16 %v3696, %v3692
        %v3797 = vpack.c.b16 %v3701, %v3697
        %v3798 = vpack.c.b16 %v3702, %v3698
        %v3799 = vpack.c.b16 %v3703, %v3699
        %v3800 = vpack.c.b16 %v3704, %v3700
        %v3801 = vpack.c.b16 %v3709, %v3705
        %v3802 = vpack.c.b16 %v3710, %v3706
        %v3803 = vpack.c.b16 %v3711, %v3707
        %v3804 = vpack.c.b16 %v3712, %v3708
        %v3805 = vpack.c.b16 %v3717, %v3713
        %v3806 = vpack.c.b16 %v3718, %v3714
        %v3807 = vpack.c.b16 %v3719, %v3715
        %v3808 = vpack.c.b16 %v3720, %v3716
        %v3809 = vpack.c.b16 %v3725, %v3721
        %v3810 = vpack.c.b16 %v3726, %v3722
        %v3811 = vpack.c.b16 %v3727, %v3723
        %v3812 = vpack.c.b16 %v3728, %v3724
        %v3813 = vpack.c.b16 %v3733, %v3729
        %v3814 = vpack.c.b16 %v3734, %v3730
        %v3815 = vpack.c.b16 %v3735, %v3731
        %v3816 = vpack.c.b16 %v3736, %v3732
        %v3817 = vpack.c.b16 %v3741, %v3737
        %v3818 = vpack.c.b16 %v3742, %v3738
        %v3819 = vpack.c.b16 %v3743, %v3739
        %v3820 = vpack.c.b16 %v3744, %v3740
        %v3821 = vpack.c.b16 %v3749, %v3745
        %v3822 = vpack.c.b16 %v3750, %v3746
        %v3823 = vpack.c.b16 %v3751, %v3747
        %v3824 = vpack.c.b16 %v3752, %v3748
        %v3825 = vpack.c.b16 %v3757, %v3753
        %v3826 = vpack.c.b16 %v3758, %v3754
        %v3827 = vpack.c.b16 %v3759, %v3755
        %v3828 = vpack.c.b16 %v3760, %v3756
        %v3829 = vpack.c.b16 %v3765, %v3761
        %v3830 = vpack.c.b16 %v3766, %v3762
        %v3831 = vpack.c.b16 %v3767, %v3763
        %v3832 = vpack.c.b16 %v3768, %v3764
        %3897 = vmatprep.subr.bf16.mxu0 %v3286
        %3898 = vmatpush1.bf16.msra.mxu0 %v3285
        %3899 = vmatprep.subr.bf16.mxu0 %v3282
        %3900 = vmatpush1.bf16.msra.mxu0 %v3281
        %3901 = vmatprep.subr.bf16.mxu0 %v3278
        %3902 = vmatpush1.bf16.msra.mxu0 %v3277
        %3903 = vmatprep.subr.bf16.mxu0 %v3274
        %3904 = vmatpush1.bf16.msra.mxu0 %v3273
        %3905 = vmatprep.subr.bf16.mxu0 %v3270
        %3906 = vmatpush1.bf16.msra.mxu0 %v3269
        %3907 = vmatprep.subr.bf16.mxu0 %v3266
        %3908 = vmatpush1.bf16.msra.mxu0 %v3265
        %3909 = vmatprep.subr.bf16.mxu0 %v3262
        %3910 = vmatpush1.bf16.msra.mxu0 %v3261
        %3911 = vmatprep.subr.bf16.mxu0 %v3258
        %3912 = vmatpush1.bf16.msra.mxu0 %v3257
        %3913 = vmatprep.subr.bf16.mxu0 %v3318
        %3914 = vmatpush2.bf16.msra.mxu0 %v3317
        %3915 = vmatprep.subr.bf16.mxu0 %v3314
        %3916 = vmatpush2.bf16.msra.mxu0 %v3313
        %3917 = vmatprep.subr.bf16.mxu0 %v3310
        %3918 = vmatpush2.bf16.msra.mxu0 %v3309
        %3919 = vmatprep.subr.bf16.mxu0 %v3306
        %3920 = vmatpush2.bf16.msra.mxu0 %v3305
        %3921 = vmatprep.subr.bf16.mxu0 %v3302
        %3922 = vmatpush2.bf16.msra.mxu0 %v3301
        %3923 = vmatprep.subr.bf16.mxu0 %v3298
        %3924 = vmatpush2.bf16.msra.mxu0 %v3297
        %3925 = vmatprep.subr.bf16.mxu0 %v3294
        %3926 = vmatpush2.bf16.msra.mxu0 %v3293
        %3927 = vmatprep.subr.bf16.mxu0 %v3290
        %3928 = vmatpush2.bf16.msra.mxu0 %v3289
        %3929 = vmatprep.mubr.bf16.mxu0 %v3770
        %3930 = vmatmul.mubr.bf16.gmra.mxu0 %v3769
        %v3931 = vpop.f32.mrf.mxu0
        %v3932 = vadd.f32 %v3420, %v3931
        %v3933 = vpop.f32.mrf.mxu0
        %v3934 = vadd.f32 %v3420, %v3933
        %v3935 = vpop.f32.mrf.mxu0
        %v3936 = vadd.f32 %v3425, %v3935
        %v3937 = vpop.f32.mrf.mxu0
        %v3938 = vadd.f32 %v3425, %v3937
        %3939 = vmatprep.mubr.bf16.mxu0 %v3774
        %3940 = vmatmul.mubr.bf16.gmra.mxu0 %v3773
        %v3941 = vpop.f32.mrf.mxu0
        %v3942 = vadd.f32 %v3430, %v3941
        %v3943 = vpop.f32.mrf.mxu0
        %v3944 = vadd.f32 %v3430, %v3943
        %v3945 = vpop.f32.mrf.mxu0
        %v3946 = vadd.f32 %v3435, %v3945
        %v3947 = vpop.f32.mrf.mxu0
        %v3948 = vadd.f32 %v3435, %v3947
        %3949 = vmatprep.mubr.bf16.mxu0 %v3778
        %3950 = vmatmul.mubr.bf16.gmra.mxu0 %v3777
        %v3951 = vpop.f32.mrf.mxu0
        %v3952 = vadd.f32 %v3440, %v3951
        %v3953 = vpop.f32.mrf.mxu0
        %v3954 = vadd.f32 %v3440, %v3953
        %v3955 = vpop.f32.mrf.mxu0
        %v3956 = vadd.f32 %v3445, %v3955
        %v3957 = vpop.f32.mrf.mxu0
        %v3958 = vadd.f32 %v3445, %v3957
        %3959 = vmatprep.mubr.bf16.mxu0 %v3782
        %3960 = vmatmul.mubr.bf16.gmra.mxu0 %v3781
        %v3961 = vpop.f32.mrf.mxu0
        %v3962 = vadd.f32 %v3450, %v3961
        %v3963 = vpop.f32.mrf.mxu0
        %v3964 = vadd.f32 %v3450, %v3963
        %v3965 = vpop.f32.mrf.mxu0
        %v3966 = vadd.f32 %v3455, %v3965
        %v3967 = vpop.f32.mrf.mxu0
        %v3968 = vadd.f32 %v3455, %v3967
        %3969 = vmatprep.mubr.bf16.mxu0 %v3786
        %3970 = vmatmul.mubr.bf16.gmra.mxu0 %v3785
        %v3971 = vpop.f32.mrf.mxu0
        %v3972 = vadd.f32 %v3460, %v3971
        %v3973 = vpop.f32.mrf.mxu0
        %v3974 = vadd.f32 %v3460, %v3973
        %v3975 = vpop.f32.mrf.mxu0
        %v3976 = vadd.f32 %v3465, %v3975
        %v3977 = vpop.f32.mrf.mxu0
        %v3978 = vadd.f32 %v3465, %v3977
        %3979 = vmatprep.mubr.bf16.mxu0 %v3790
        %3980 = vmatmul.mubr.bf16.gmra.mxu0 %v3789
        %v3981 = vpop.f32.mrf.mxu0
        %v3982 = vadd.f32 %v3470, %v3981
        %v3983 = vpop.f32.mrf.mxu0
        %v3984 = vadd.f32 %v3470, %v3983
        %v3985 = vpop.f32.mrf.mxu0
        %v3986 = vadd.f32 %v3475, %v3985
        %v3987 = vpop.f32.mrf.mxu0
        %v3988 = vadd.f32 %v3475, %v3987
        %3989 = vmatprep.mubr.bf16.mxu0 %v3794
        %3990 = vmatmul.mubr.bf16.gmra.mxu0 %v3793
        %v3991 = vpop.f32.mrf.mxu0
        %v3992 = vadd.f32 %v3480, %v3991
        %v3993 = vpop.f32.mrf.mxu0
        %v3994 = vadd.f32 %v3480, %v3993
        %v3995 = vpop.f32.mrf.mxu0
        %v3996 = vadd.f32 %v3485, %v3995
        %v3997 = vpop.f32.mrf.mxu0
        %v3998 = vadd.f32 %v3485, %v3997
        %3999 = vmatprep.mubr.bf16.mxu0 %v3798
        %4000 = vmatmul.mubr.bf16.gmra.mxu0 %v3797
        %v4001 = vpop.f32.mrf.mxu0
        %v4002 = vadd.f32 %v3490, %v4001
        %v4003 = vpop.f32.mrf.mxu0
        %v4004 = vadd.f32 %v3490, %v4003
        %v4005 = vpop.f32.mrf.mxu0
        %v4006 = vadd.f32 %v3495, %v4005
        %v4007 = vpop.f32.mrf.mxu0
        %v4008 = vadd.f32 %v3495, %v4007
        %4009 = vmatprep.mubr.bf16.mxu0 %v3802
        %4010 = vmatmul.mubr.bf16.gmra.mxu0 %v3801
        %v4011 = vpop.f32.mrf.mxu0
        %v4012 = vadd.f32 %v3500, %v4011
        %v4013 = vpop.f32.mrf.mxu0
        %v4014 = vadd.f32 %v3500, %v4013
        %v4015 = vpop.f32.mrf.mxu0
        %v4016 = vadd.f32 %v3505, %v4015
        %v4017 = vpop.f32.mrf.mxu0
        %v4018 = vadd.f32 %v3505, %v4017
        %4019 = vmatprep.mubr.bf16.mxu0 %v3806
        %4020 = vmatmul.mubr.bf16.gmra.mxu0 %v3805
        %v4021 = vpop.f32.mrf.mxu0
        %v4022 = vadd.f32 %v3510, %v4021
        %v4023 = vpop.f32.mrf.mxu0
        %v4024 = vadd.f32 %v3510, %v4023
        %v4025 = vpop.f32.mrf.mxu0
        %v4026 = vadd.f32 %v3515, %v4025
        %v4027 = vpop.f32.mrf.mxu0
        %v4028 = vadd.f32 %v3515, %v4027
        %4029 = vmatprep.mubr.bf16.mxu0 %v3810
        %4030 = vmatmul.mubr.bf16.gmra.mxu0 %v3809
        %v4031 = vpop.f32.mrf.mxu0
        %v4032 = vadd.f32 %v3520, %v4031
        %v4033 = vpop.f32.mrf.mxu0
        %v4034 = vadd.f32 %v3520, %v4033
        %v4035 = vpop.f32.mrf.mxu0
        %v4036 = vadd.f32 %v3525, %v4035
        %v4037 = vpop.f32.mrf.mxu0
        %v4038 = vadd.f32 %v3525, %v4037
        %4039 = vmatprep.mubr.bf16.mxu0 %v3814
        %4040 = vmatmul.mubr.bf16.gmra.mxu0 %v3813
        %v4041 = vpop.f32.mrf.mxu0
        %v4042 = vadd.f32 %v3530, %v4041
        %v4043 = vpop.f32.mrf.mxu0
        %v4044 = vadd.f32 %v3530, %v4043
        %v4045 = vpop.f32.mrf.mxu0
        %v4046 = vadd.f32 %v3535, %v4045
        %v4047 = vpop.f32.mrf.mxu0
        %v4048 = vadd.f32 %v3535, %v4047
        %4049 = vmatprep.mubr.bf16.mxu0 %v3818
        %4050 = vmatmul.mubr.bf16.gmra.mxu0 %v3817
        %v4051 = vpop.f32.mrf.mxu0
        %v4052 = vadd.f32 %v3540, %v4051
        %v4053 = vpop.f32.mrf.mxu0
        %v4054 = vadd.f32 %v3540, %v4053
        %v4055 = vpop.f32.mrf.mxu0
        %v4056 = vadd.f32 %v3545, %v4055
        %v4057 = vpop.f32.mrf.mxu0
        %v4058 = vadd.f32 %v3545, %v4057
        %4059 = vmatprep.mubr.bf16.mxu0 %v3822
        %4060 = vmatmul.mubr.bf16.gmra.mxu0 %v3821
        %v4061 = vpop.f32.mrf.mxu0
        %v4062 = vadd.f32 %v3550, %v4061
        %v4063 = vpop.f32.mrf.mxu0
        %v4064 = vadd.f32 %v3550, %v4063
        %v4065 = vpop.f32.mrf.mxu0
        %v4066 = vadd.f32 %v3555, %v4065
        %v4067 = vpop.f32.mrf.mxu0
        %v4068 = vadd.f32 %v3555, %v4067
        %4069 = vmatprep.mubr.bf16.mxu0 %v3826
        %4070 = vmatmul.mubr.bf16.gmra.mxu0 %v3825
        %v4071 = vpop.f32.mrf.mxu0
        %v4072 = vadd.f32 %v3560, %v4071
        %v4073 = vpop.f32.mrf.mxu0
        %v4074 = vadd.f32 %v3560, %v4073
        %v4075 = vpop.f32.mrf.mxu0
        %v4076 = vadd.f32 %v3565, %v4075
        %v4077 = vpop.f32.mrf.mxu0
        %v4078 = vadd.f32 %v3565, %v4077
        %4079 = vmatprep.mubr.bf16.mxu0 %v3830
        %4080 = vmatmul.mubr.bf16.gmra.mxu0 %v3829
        %v4081 = vpop.f32.mrf.mxu0
        %v4082 = vadd.f32 %v3570, %v4081
        %v4083 = vpop.f32.mrf.mxu0
        %v4084 = vadd.f32 %v3570, %v4083
        %v4085 = vpop.f32.mrf.mxu0
        %v4086 = vadd.f32 %v3575, %v4085
        %v4087 = vpop.f32.mrf.mxu0
        %v4088 = vadd.f32 %v3575, %v4087
        %4089 = vdwg.mxu0
        %4090 = vmatprep.subr.bf16.mxu0 %v3350
        %4091 = vmatpush1.bf16.msra.mxu0 %v3349
        %4092 = vmatprep.subr.bf16.mxu0 %v3346
        %4093 = vmatpush1.bf16.msra.mxu0 %v3345
        %4094 = vmatprep.subr.bf16.mxu0 %v3342
        %4095 = vmatpush1.bf16.msra.mxu0 %v3341
        %4096 = vmatprep.subr.bf16.mxu0 %v3338
        %4097 = vmatpush1.bf16.msra.mxu0 %v3337
        %4098 = vmatprep.subr.bf16.mxu0 %v3334
        %4099 = vmatpush1.bf16.msra.mxu0 %v3333
        %4100 = vmatprep.subr.bf16.mxu0 %v3330
        %4101 = vmatpush1.bf16.msra.mxu0 %v3329
        %4102 = vmatprep.subr.bf16.mxu0 %v3326
        %4103 = vmatpush1.bf16.msra.mxu0 %v3325
        %4104 = vmatprep.subr.bf16.mxu0 %v3322
        %4105 = vmatpush1.bf16.msra.mxu0 %v3321
        %4106 = vmatprep.subr.bf16.mxu0 %v3382
        %4107 = vmatpush2.bf16.msra.mxu0 %v3381
        %4108 = vmatprep.subr.bf16.mxu0 %v3378
        %4109 = vmatpush2.bf16.msra.mxu0 %v3377
        %4110 = vmatprep.subr.bf16.mxu0 %v3374
        %4111 = vmatpush2.bf16.msra.mxu0 %v3373
        %4112 = vmatprep.subr.bf16.mxu0 %v3370
        %4113 = vmatpush2.bf16.msra.mxu0 %v3369
        %4114 = vmatprep.subr.bf16.mxu0 %v3366
        %4115 = vmatpush2.bf16.msra.mxu0 %v3365
        %4116 = vmatprep.subr.bf16.mxu0 %v3362
        %4117 = vmatpush2.bf16.msra.mxu0 %v3361
        %4118 = vmatprep.subr.bf16.mxu0 %v3358
        %4119 = vmatpush2.bf16.msra.mxu0 %v3357
        %4120 = vmatprep.subr.bf16.mxu0 %v3354
        %4121 = vmatpush2.bf16.msra.mxu0 %v3353
        %4122 = vmatprep.mubr.bf16.mxu0 %v3772
        %4123 = vmatmul.mubr.bf16.gmra.mxu0 %v3771
        %v4124 = vpop.f32.mrf.mxu0
        %v4125 = vadd.f32 %v3932, %v4124
        %v4126 = vpop.f32.mrf.mxu0
        %v4127 = vadd.f32 %v3934, %v4126
        %v4128 = vpop.f32.mrf.mxu0
        %v4129 = vadd.f32 %v3936, %v4128
        %v4130 = vpop.f32.mrf.mxu0
        %v4131 = vadd.f32 %v3938, %v4130
        %4132 = vmatprep.mubr.bf16.mxu0 %v3776
        %4133 = vmatmul.mubr.bf16.gmra.mxu0 %v3775
        %v4134 = vpop.f32.mrf.mxu0
        %v4135 = vadd.f32 %v3942, %v4134
        %v4136 = vpop.f32.mrf.mxu0
        %v4137 = vadd.f32 %v3944, %v4136
        %v4138 = vpop.f32.mrf.mxu0
        %v4139 = vadd.f32 %v3946, %v4138
        %v4140 = vpop.f32.mrf.mxu0
        %v4141 = vadd.f32 %v3948, %v4140
        %4142 = vmatprep.mubr.bf16.mxu0 %v3780
        %4143 = vmatmul.mubr.bf16.gmra.mxu0 %v3779
        %v4144 = vpop.f32.mrf.mxu0
        %v4145 = vadd.f32 %v3952, %v4144
        %v4146 = vpop.f32.mrf.mxu0
        %v4147 = vadd.f32 %v3954, %v4146
        %v4148 = vpop.f32.mrf.mxu0
        %v4149 = vadd.f32 %v3956, %v4148
        %v4150 = vpop.f32.mrf.mxu0
        %v4151 = vadd.f32 %v3958, %v4150
        %4152 = vmatprep.mubr.bf16.mxu0 %v3784
        %4153 = vmatmul.mubr.bf16.gmra.mxu0 %v3783
        %v4154 = vpop.f32.mrf.mxu0
        %v4155 = vadd.f32 %v3962, %v4154
        %v4156 = vpop.f32.mrf.mxu0
        %v4157 = vadd.f32 %v3964, %v4156
        %v4158 = vpop.f32.mrf.mxu0
        %v4159 = vadd.f32 %v3966, %v4158
        %v4160 = vpop.f32.mrf.mxu0
        %v4161 = vadd.f32 %v3968, %v4160
        %4162 = vmatprep.mubr.bf16.mxu0 %v3788
        %4163 = vmatmul.mubr.bf16.gmra.mxu0 %v3787
        %v4164 = vpop.f32.mrf.mxu0
        %v4165 = vadd.f32 %v3972, %v4164
        %v4166 = vpop.f32.mrf.mxu0
        %v4167 = vadd.f32 %v3974, %v4166
        %v4168 = vpop.f32.mrf.mxu0
        %v4169 = vadd.f32 %v3976, %v4168
        %v4170 = vpop.f32.mrf.mxu0
        %v4171 = vadd.f32 %v3978, %v4170
        %4172 = vmatprep.mubr.bf16.mxu0 %v3792
        %4173 = vmatmul.mubr.bf16.gmra.mxu0 %v3791
        %v4174 = vpop.f32.mrf.mxu0
        %v4175 = vadd.f32 %v3982, %v4174
        %v4176 = vpop.f32.mrf.mxu0
        %v4177 = vadd.f32 %v3984, %v4176
        %v4178 = vpop.f32.mrf.mxu0
        %v4179 = vadd.f32 %v3986, %v4178
        %v4180 = vpop.f32.mrf.mxu0
        %v4181 = vadd.f32 %v3988, %v4180
        %4182 = vmatprep.mubr.bf16.mxu0 %v3796
        %4183 = vmatmul.mubr.bf16.gmra.mxu0 %v3795
        %v4184 = vpop.f32.mrf.mxu0
        %v4185 = vadd.f32 %v3992, %v4184
        %v4186 = vpop.f32.mrf.mxu0
        %v4187 = vadd.f32 %v3994, %v4186
        %v4188 = vpop.f32.mrf.mxu0
        %v4189 = vadd.f32 %v3996, %v4188
        %v4190 = vpop.f32.mrf.mxu0
        %v4191 = vadd.f32 %v3998, %v4190
        %4192 = vmatprep.mubr.bf16.mxu0 %v3800
        %4193 = vmatmul.mubr.bf16.gmra.mxu0 %v3799
        %v4194 = vpop.f32.mrf.mxu0
        %v4195 = vadd.f32 %v4002, %v4194
        %v4196 = vpop.f32.mrf.mxu0
        %v4197 = vadd.f32 %v4004, %v4196
        %v4198 = vpop.f32.mrf.mxu0
        %v4199 = vadd.f32 %v4006, %v4198
        %v4200 = vpop.f32.mrf.mxu0
        %v4201 = vadd.f32 %v4008, %v4200
        %4202 = vmatprep.mubr.bf16.mxu0 %v3804
        %4203 = vmatmul.mubr.bf16.gmra.mxu0 %v3803
        %v4204 = vpop.f32.mrf.mxu0
        %v4205 = vadd.f32 %v4012, %v4204
        %v4206 = vpop.f32.mrf.mxu0
        %v4207 = vadd.f32 %v4014, %v4206
        %v4208 = vpop.f32.mrf.mxu0
        %v4209 = vadd.f32 %v4016, %v4208
        %v4210 = vpop.f32.mrf.mxu0
        %v4211 = vadd.f32 %v4018, %v4210
        %4212 = vmatprep.mubr.bf16.mxu0 %v3808
        %4213 = vmatmul.mubr.bf16.gmra.mxu0 %v3807
        %v4214 = vpop.f32.mrf.mxu0
        %v4215 = vadd.f32 %v4022, %v4214
        %v4216 = vpop.f32.mrf.mxu0
        %v4217 = vadd.f32 %v4024, %v4216
        %v4218 = vpop.f32.mrf.mxu0
        %v4219 = vadd.f32 %v4026, %v4218
        %v4220 = vpop.f32.mrf.mxu0
        %v4221 = vadd.f32 %v4028, %v4220
        %4222 = vmatprep.mubr.bf16.mxu0 %v3812
        %4223 = vmatmul.mubr.bf16.gmra.mxu0 %v3811
        %v4224 = vpop.f32.mrf.mxu0
        %v4225 = vadd.f32 %v4032, %v4224
        %v4226 = vpop.f32.mrf.mxu0
        %v4227 = vadd.f32 %v4034, %v4226
        %v4228 = vpop.f32.mrf.mxu0
        %v4229 = vadd.f32 %v4036, %v4228
        %v4230 = vpop.f32.mrf.mxu0
        %v4231 = vadd.f32 %v4038, %v4230
        %4232 = vmatprep.mubr.bf16.mxu0 %v3816
        %4233 = vmatmul.mubr.bf16.gmra.mxu0 %v3815
        %v4234 = vpop.f32.mrf.mxu0
        %v4235 = vadd.f32 %v4042, %v4234
        %v4236 = vpop.f32.mrf.mxu0
        %v4237 = vadd.f32 %v4044, %v4236
        %v4238 = vpop.f32.mrf.mxu0
        %v4239 = vadd.f32 %v4046, %v4238
        %v4240 = vpop.f32.mrf.mxu0
        %v4241 = vadd.f32 %v4048, %v4240
        %4242 = vmatprep.mubr.bf16.mxu0 %v3820
        %4243 = vmatmul.mubr.bf16.gmra.mxu0 %v3819
        %v4244 = vpop.f32.mrf.mxu0
        %v4245 = vadd.f32 %v4052, %v4244
        %v4246 = vpop.f32.mrf.mxu0
        %v4247 = vadd.f32 %v4054, %v4246
        %v4248 = vpop.f32.mrf.mxu0
        %v4249 = vadd.f32 %v4056, %v4248
        %v4250 = vpop.f32.mrf.mxu0
        %v4251 = vadd.f32 %v4058, %v4250
        %4252 = vmatprep.mubr.bf16.mxu0 %v3824
        %4253 = vmatmul.mubr.bf16.gmra.mxu0 %v3823
        %v4254 = vpop.f32.mrf.mxu0
        %v4255 = vadd.f32 %v4062, %v4254
        %v4256 = vpop.f32.mrf.mxu0
        %v4257 = vadd.f32 %v4064, %v4256
        %v4258 = vpop.f32.mrf.mxu0
        %v4259 = vadd.f32 %v4066, %v4258
        %v4260 = vpop.f32.mrf.mxu0
        %v4261 = vadd.f32 %v4068, %v4260
        %4262 = vmatprep.mubr.bf16.mxu0 %v3828
        %4263 = vmatmul.mubr.bf16.gmra.mxu0 %v3827
        %v4264 = vpop.f32.mrf.mxu0
        %v4265 = vadd.f32 %v4072, %v4264
        %v4266 = vpop.f32.mrf.mxu0
        %v4267 = vadd.f32 %v4074, %v4266
        %v4268 = vpop.f32.mrf.mxu0
        %v4269 = vadd.f32 %v4076, %v4268
        %v4270 = vpop.f32.mrf.mxu0
        %v4271 = vadd.f32 %v4078, %v4270
        %4272 = vmatprep.mubr.bf16.mxu0 %v3832
        %4273 = vmatmul.mubr.bf16.gmra.mxu0 %v3831
        %v4274 = vpop.f32.mrf.mxu0
        %v4275 = vadd.f32 %v4082, %v4274
        %v4276 = vpop.f32.mrf.mxu0
        %v4277 = vadd.f32 %v4084, %v4276
        %v4278 = vpop.f32.mrf.mxu0
        %v4279 = vadd.f32 %v4086, %v4278
        %v4280 = vpop.f32.mrf.mxu0
        %v4281 = vadd.f32 %v4088, %v4280
        %4282 = vdwg.mxu0
        %4283 = vmatprep.subr.bf16.mxu0 %v3288
        %4284 = vmatpush1.bf16.msra.mxu0 %v3287
        %4285 = vmatprep.subr.bf16.mxu0 %v3284
        %4286 = vmatpush1.bf16.msra.mxu0 %v3283
        %4287 = vmatprep.subr.bf16.mxu0 %v3280
        %4288 = vmatpush1.bf16.msra.mxu0 %v3279
        %4289 = vmatprep.subr.bf16.mxu0 %v3276
        %4290 = vmatpush1.bf16.msra.mxu0 %v3275
        %4291 = vmatprep.subr.bf16.mxu0 %v3272
        %4292 = vmatpush1.bf16.msra.mxu0 %v3271
        %4293 = vmatprep.subr.bf16.mxu0 %v3268
        %4294 = vmatpush1.bf16.msra.mxu0 %v3267
        %4295 = vmatprep.subr.bf16.mxu0 %v3264
        %4296 = vmatpush1.bf16.msra.mxu0 %v3263
        %4297 = vmatprep.subr.bf16.mxu0 %v3260
        %4298 = vmatpush1.bf16.msra.mxu0 %v3259
        %4299 = vmatprep.subr.bf16.mxu0 %v3320
        %4300 = vmatpush2.bf16.msra.mxu0 %v3319
        %4301 = vmatprep.subr.bf16.mxu0 %v3316
        %4302 = vmatpush2.bf16.msra.mxu0 %v3315
        %4303 = vmatprep.subr.bf16.mxu0 %v3312
        %4304 = vmatpush2.bf16.msra.mxu0 %v3311
        %4305 = vmatprep.subr.bf16.mxu0 %v3308
        %4306 = vmatpush2.bf16.msra.mxu0 %v3307
        %4307 = vmatprep.subr.bf16.mxu0 %v3304
        %4308 = vmatpush2.bf16.msra.mxu0 %v3303
        %4309 = vmatprep.subr.bf16.mxu0 %v3300
        %4310 = vmatpush2.bf16.msra.mxu0 %v3299
        %4311 = vmatprep.subr.bf16.mxu0 %v3296
        %4312 = vmatpush2.bf16.msra.mxu0 %v3295
        %4313 = vmatprep.subr.bf16.mxu0 %v3292
        %4314 = vmatpush2.bf16.msra.mxu0 %v3291
        %4315 = vmatprep.mubr.bf16.mxu0 %v3770
        %4316 = vmatmul.mubr.bf16.gmra.mxu0 %v3769
        %v4317 = vpop.f32.mrf.mxu0
        %v4318 = vadd.f32 %v3420, %v4317
        %v4319 = vpop.f32.mrf.mxu0
        %v4320 = vadd.f32 %v3420, %v4319
        %v4321 = vpop.f32.mrf.mxu0
        %v4322 = vadd.f32 %v3425, %v4321
        %v4323 = vpop.f32.mrf.mxu0
        %v4324 = vadd.f32 %v3425, %v4323
        %4325 = vmatprep.mubr.bf16.mxu0 %v3774
        %4326 = vmatmul.mubr.bf16.gmra.mxu0 %v3773
        %v4327 = vpop.f32.mrf.mxu0
        %v4328 = vadd.f32 %v3430, %v4327
        %v4329 = vpop.f32.mrf.mxu0
        %v4330 = vadd.f32 %v3430, %v4329
        %v4331 = vpop.f32.mrf.mxu0
        %v4332 = vadd.f32 %v3435, %v4331
        %v4333 = vpop.f32.mrf.mxu0
        %v4334 = vadd.f32 %v3435, %v4333
        %4335 = vmatprep.mubr.bf16.mxu0 %v3778
        %4336 = vmatmul.mubr.bf16.gmra.mxu0 %v3777
        %v4337 = vpop.f32.mrf.mxu0
        %v4338 = vadd.f32 %v3440, %v4337
        %v4339 = vpop.f32.mrf.mxu0
        %v4340 = vadd.f32 %v3440, %v4339
        %v4341 = vpop.f32.mrf.mxu0
        %v4342 = vadd.f32 %v3445, %v4341
        %v4343 = vpop.f32.mrf.mxu0
        %v4344 = vadd.f32 %v3445, %v4343
        %4345 = vmatprep.mubr.bf16.mxu0 %v3782
        %4346 = vmatmul.mubr.bf16.gmra.mxu0 %v3781
        %v4347 = vpop.f32.mrf.mxu0
        %v4348 = vadd.f32 %v3450, %v4347
        %v4349 = vpop.f32.mrf.mxu0
        %v4350 = vadd.f32 %v3450, %v4349
        %v4351 = vpop.f32.mrf.mxu0
        %v4352 = vadd.f32 %v3455, %v4351
        %v4353 = vpop.f32.mrf.mxu0
        %v4354 = vadd.f32 %v3455, %v4353
        %4355 = vmatprep.mubr.bf16.mxu0 %v3786
        %4356 = vmatmul.mubr.bf16.gmra.mxu0 %v3785
        %v4357 = vpop.f32.mrf.mxu0
        %v4358 = vadd.f32 %v3460, %v4357
        %v4359 = vpop.f32.mrf.mxu0
        %v4360 = vadd.f32 %v3460, %v4359
        %v4361 = vpop.f32.mrf.mxu0
        %v4362 = vadd.f32 %v3465, %v4361
        %v4363 = vpop.f32.mrf.mxu0
        %v4364 = vadd.f32 %v3465, %v4363
        %4365 = vmatprep.mubr.bf16.mxu0 %v3790
        %4366 = vmatmul.mubr.bf16.gmra.mxu0 %v3789
        %v4367 = vpop.f32.mrf.mxu0
        %v4368 = vadd.f32 %v3470, %v4367
        %v4369 = vpop.f32.mrf.mxu0
        %v4370 = vadd.f32 %v3470, %v4369
        %v4371 = vpop.f32.mrf.mxu0
        %v4372 = vadd.f32 %v3475, %v4371
        %v4373 = vpop.f32.mrf.mxu0
        %v4374 = vadd.f32 %v3475, %v4373
        %4375 = vmatprep.mubr.bf16.mxu0 %v3794
        %4376 = vmatmul.mubr.bf16.gmra.mxu0 %v3793
        %v4377 = vpop.f32.mrf.mxu0
        %v4378 = vadd.f32 %v3480, %v4377
        %v4379 = vpop.f32.mrf.mxu0
        %v4380 = vadd.f32 %v3480, %v4379
        %v4381 = vpop.f32.mrf.mxu0
        %v4382 = vadd.f32 %v3485, %v4381
        %v4383 = vpop.f32.mrf.mxu0
        %v4384 = vadd.f32 %v3485, %v4383
        %4385 = vmatprep.mubr.bf16.mxu0 %v3798
        %4386 = vmatmul.mubr.bf16.gmra.mxu0 %v3797
        %v4387 = vpop.f32.mrf.mxu0
        %v4388 = vadd.f32 %v3490, %v4387
        %v4389 = vpop.f32.mrf.mxu0
        %v4390 = vadd.f32 %v3490, %v4389
        %v4391 = vpop.f32.mrf.mxu0
        %v4392 = vadd.f32 %v3495, %v4391
        %v4393 = vpop.f32.mrf.mxu0
        %v4394 = vadd.f32 %v3495, %v4393
        %4395 = vmatprep.mubr.bf16.mxu0 %v3802
        %4396 = vmatmul.mubr.bf16.gmra.mxu0 %v3801
        %v4397 = vpop.f32.mrf.mxu0
        %v4398 = vadd.f32 %v3500, %v4397
        %v4399 = vpop.f32.mrf.mxu0
        %v4400 = vadd.f32 %v3500, %v4399
        %v4401 = vpop.f32.mrf.mxu0
        %v4402 = vadd.f32 %v3505, %v4401
        %v4403 = vpop.f32.mrf.mxu0
        %v4404 = vadd.f32 %v3505, %v4403
        %4405 = vmatprep.mubr.bf16.mxu0 %v3806
        %4406 = vmatmul.mubr.bf16.gmra.mxu0 %v3805
        %v4407 = vpop.f32.mrf.mxu0
        %v4408 = vadd.f32 %v3510, %v4407
        %v4409 = vpop.f32.mrf.mxu0
        %v4410 = vadd.f32 %v3510, %v4409
        %v4411 = vpop.f32.mrf.mxu0
        %v4412 = vadd.f32 %v3515, %v4411
        %v4413 = vpop.f32.mrf.mxu0
        %v4414 = vadd.f32 %v3515, %v4413
        %4415 = vmatprep.mubr.bf16.mxu0 %v3810
        %4416 = vmatmul.mubr.bf16.gmra.mxu0 %v3809
        %v4417 = vpop.f32.mrf.mxu0
        %v4418 = vadd.f32 %v3520, %v4417
        %v4419 = vpop.f32.mrf.mxu0
        %v4420 = vadd.f32 %v3520, %v4419
        %v4421 = vpop.f32.mrf.mxu0
        %v4422 = vadd.f32 %v3525, %v4421
        %v4423 = vpop.f32.mrf.mxu0
        %v4424 = vadd.f32 %v3525, %v4423
        %4425 = vmatprep.mubr.bf16.mxu0 %v3814
        %4426 = vmatmul.mubr.bf16.gmra.mxu0 %v3813
        %v4427 = vpop.f32.mrf.mxu0
        %v4428 = vadd.f32 %v3530, %v4427
        %v4429 = vpop.f32.mrf.mxu0
        %v4430 = vadd.f32 %v3530, %v4429
        %v4431 = vpop.f32.mrf.mxu0
        %v4432 = vadd.f32 %v3535, %v4431
        %v4433 = vpop.f32.mrf.mxu0
        %v4434 = vadd.f32 %v3535, %v4433
        %4435 = vmatprep.mubr.bf16.mxu0 %v3818
        %4436 = vmatmul.mubr.bf16.gmra.mxu0 %v3817
        %v4437 = vpop.f32.mrf.mxu0
        %v4438 = vadd.f32 %v3540, %v4437
        %v4439 = vpop.f32.mrf.mxu0
        %v4440 = vadd.f32 %v3540, %v4439
        %v4441 = vpop.f32.mrf.mxu0
        %v4442 = vadd.f32 %v3545, %v4441
        %v4443 = vpop.f32.mrf.mxu0
        %v4444 = vadd.f32 %v3545, %v4443
        %4445 = vmatprep.mubr.bf16.mxu0 %v3822
        %4446 = vmatmul.mubr.bf16.gmra.mxu0 %v3821
        %v4447 = vpop.f32.mrf.mxu0
        %v4448 = vadd.f32 %v3550, %v4447
        %v4449 = vpop.f32.mrf.mxu0
        %v4450 = vadd.f32 %v3550, %v4449
        %v4451 = vpop.f32.mrf.mxu0
        %v4452 = vadd.f32 %v3555, %v4451
        %v4453 = vpop.f32.mrf.mxu0
        %v4454 = vadd.f32 %v3555, %v4453
        %4455 = vmatprep.mubr.bf16.mxu0 %v3826
        %4456 = vmatmul.mubr.bf16.gmra.mxu0 %v3825
        %v4457 = vpop.f32.mrf.mxu0
        %v4458 = vadd.f32 %v3560, %v4457
        %v4459 = vpop.f32.mrf.mxu0
        %v4460 = vadd.f32 %v3560, %v4459
        %v4461 = vpop.f32.mrf.mxu0
        %v4462 = vadd.f32 %v3565, %v4461
        %v4463 = vpop.f32.mrf.mxu0
        %v4464 = vadd.f32 %v3565, %v4463
        %4465 = vmatprep.mubr.bf16.mxu0 %v3830
        %4466 = vmatmul.mubr.bf16.gmra.mxu0 %v3829
        %v4467 = vpop.f32.mrf.mxu0
        %v4468 = vadd.f32 %v3570, %v4467
        %v4469 = vpop.f32.mrf.mxu0
        %v4470 = vadd.f32 %v3570, %v4469
        %v4471 = vpop.f32.mrf.mxu0
        %v4472 = vadd.f32 %v3575, %v4471
        %v4473 = vpop.f32.mrf.mxu0
        %v4474 = vadd.f32 %v3575, %v4473
        %4475 = vdwg.mxu0
        %4476 = vmatprep.subr.bf16.mxu0 %v3352
        %4477 = vmatpush1.bf16.msra.mxu0 %v3351
        %4478 = vmatprep.subr.bf16.mxu0 %v3348
        %4479 = vmatpush1.bf16.msra.mxu0 %v3347
        %4480 = vmatprep.subr.bf16.mxu0 %v3344
        %4481 = vmatpush1.bf16.msra.mxu0 %v3343
        %4482 = vmatprep.subr.bf16.mxu0 %v3340
        %4483 = vmatpush1.bf16.msra.mxu0 %v3339
        %4484 = vmatprep.subr.bf16.mxu0 %v3336
        %4485 = vmatpush1.bf16.msra.mxu0 %v3335
        %4486 = vmatprep.subr.bf16.mxu0 %v3332
        %4487 = vmatpush1.bf16.msra.mxu0 %v3331
        %4488 = vmatprep.subr.bf16.mxu0 %v3328
        %4489 = vmatpush1.bf16.msra.mxu0 %v3327
        %4490 = vmatprep.subr.bf16.mxu0 %v3324
        %4491 = vmatpush1.bf16.msra.mxu0 %v3323
        %4492 = vmatprep.subr.bf16.mxu0 %v3384
        %4493 = vmatpush2.bf16.msra.mxu0 %v3383
        %4494 = vmatprep.subr.bf16.mxu0 %v3380
        %4495 = vmatpush2.bf16.msra.mxu0 %v3379
        %4496 = vmatprep.subr.bf16.mxu0 %v3376
        %4497 = vmatpush2.bf16.msra.mxu0 %v3375
        %4498 = vmatprep.subr.bf16.mxu0 %v3372
        %4499 = vmatpush2.bf16.msra.mxu0 %v3371
        %4500 = vmatprep.subr.bf16.mxu0 %v3368
        %4501 = vmatpush2.bf16.msra.mxu0 %v3367
        %4502 = vmatprep.subr.bf16.mxu0 %v3364
        %4503 = vmatpush2.bf16.msra.mxu0 %v3363
        %4504 = vmatprep.subr.bf16.mxu0 %v3360
        %4505 = vmatpush2.bf16.msra.mxu0 %v3359
        %4506 = vmatprep.subr.bf16.mxu0 %v3356
        %4507 = vmatpush2.bf16.msra.mxu0 %v3355
        %4508 = vmatprep.mubr.bf16.mxu0 %v3772
        %4509 = vmatmul.mubr.bf16.gmra.mxu0 %v3771
        %v4510 = vpop.f32.mrf.mxu0
        %v4511 = vadd.f32 %v4318, %v4510
        %v4512 = vpop.f32.mrf.mxu0
        %v4513 = vadd.f32 %v4320, %v4512
        %v4514 = vpop.f32.mrf.mxu0
        %v4515 = vadd.f32 %v4322, %v4514
        %v4516 = vpop.f32.mrf.mxu0
        %v4517 = vadd.f32 %v4324, %v4516
        %4518 = vmatprep.mubr.bf16.mxu0 %v3776
        %4519 = vmatmul.mubr.bf16.gmra.mxu0 %v3775
        %v4520 = vpop.f32.mrf.mxu0
        %v4521 = vadd.f32 %v4328, %v4520
        %v4522 = vpop.f32.mrf.mxu0
        %v4523 = vadd.f32 %v4330, %v4522
        %v4524 = vpop.f32.mrf.mxu0
        %v4525 = vadd.f32 %v4332, %v4524
        %v4526 = vpop.f32.mrf.mxu0
        %v4527 = vadd.f32 %v4334, %v4526
        %4528 = vmatprep.mubr.bf16.mxu0 %v3780
        %4529 = vmatmul.mubr.bf16.gmra.mxu0 %v3779
        %v4530 = vpop.f32.mrf.mxu0
        %v4531 = vadd.f32 %v4338, %v4530
        %v4532 = vpop.f32.mrf.mxu0
        %v4533 = vadd.f32 %v4340, %v4532
        %v4534 = vpop.f32.mrf.mxu0
        %v4535 = vadd.f32 %v4342, %v4534
        %v4536 = vpop.f32.mrf.mxu0
        %v4537 = vadd.f32 %v4344, %v4536
        %4538 = vmatprep.mubr.bf16.mxu0 %v3784
        %4539 = vmatmul.mubr.bf16.gmra.mxu0 %v3783
        %v4540 = vpop.f32.mrf.mxu0
        %v4541 = vadd.f32 %v4348, %v4540
        %v4542 = vpop.f32.mrf.mxu0
        %v4543 = vadd.f32 %v4350, %v4542
        %v4544 = vpop.f32.mrf.mxu0
        %v4545 = vadd.f32 %v4352, %v4544
        %v4546 = vpop.f32.mrf.mxu0
        %v4547 = vadd.f32 %v4354, %v4546
        %4548 = vmatprep.mubr.bf16.mxu0 %v3788
        %4549 = vmatmul.mubr.bf16.gmra.mxu0 %v3787
        %v4550 = vpop.f32.mrf.mxu0
        %v4551 = vadd.f32 %v4358, %v4550
        %v4552 = vpop.f32.mrf.mxu0
        %v4553 = vadd.f32 %v4360, %v4552
        %v4554 = vpop.f32.mrf.mxu0
        %v4555 = vadd.f32 %v4362, %v4554
        %v4556 = vpop.f32.mrf.mxu0
        %v4557 = vadd.f32 %v4364, %v4556
        %4558 = vmatprep.mubr.bf16.mxu0 %v3792
        %4559 = vmatmul.mubr.bf16.gmra.mxu0 %v3791
        %v4560 = vpop.f32.mrf.mxu0
        %v4561 = vadd.f32 %v4368, %v4560
        %v4562 = vpop.f32.mrf.mxu0
        %v4563 = vadd.f32 %v4370, %v4562
        %v4564 = vpop.f32.mrf.mxu0
        %v4565 = vadd.f32 %v4372, %v4564
        %v4566 = vpop.f32.mrf.mxu0
        %v4567 = vadd.f32 %v4374, %v4566
        %4568 = vmatprep.mubr.bf16.mxu0 %v3796
        %4569 = vmatmul.mubr.bf16.gmra.mxu0 %v3795
        %v4570 = vpop.f32.mrf.mxu0
        %v4571 = vadd.f32 %v4378, %v4570
        %v4572 = vpop.f32.mrf.mxu0
        %v4573 = vadd.f32 %v4380, %v4572
        %v4574 = vpop.f32.mrf.mxu0
        %v4575 = vadd.f32 %v4382, %v4574
        %v4576 = vpop.f32.mrf.mxu0
        %v4577 = vadd.f32 %v4384, %v4576
        %4578 = vmatprep.mubr.bf16.mxu0 %v3800
        %4579 = vmatmul.mubr.bf16.gmra.mxu0 %v3799
        %v4580 = vpop.f32.mrf.mxu0
        %v4581 = vadd.f32 %v4388, %v4580
        %v4582 = vpop.f32.mrf.mxu0
        %v4583 = vadd.f32 %v4390, %v4582
        %v4584 = vpop.f32.mrf.mxu0
        %v4585 = vadd.f32 %v4392, %v4584
        %v4586 = vpop.f32.mrf.mxu0
        %v4587 = vadd.f32 %v4394, %v4586
        %4588 = vmatprep.mubr.bf16.mxu0 %v3804
        %4589 = vmatmul.mubr.bf16.gmra.mxu0 %v3803
        %v4590 = vpop.f32.mrf.mxu0
        %v4591 = vadd.f32 %v4398, %v4590
        %v4592 = vpop.f32.mrf.mxu0
        %v4593 = vadd.f32 %v4400, %v4592
        %v4594 = vpop.f32.mrf.mxu0
        %v4595 = vadd.f32 %v4402, %v4594
        %v4596 = vpop.f32.mrf.mxu0
        %v4597 = vadd.f32 %v4404, %v4596
        %4598 = vmatprep.mubr.bf16.mxu0 %v3808
        %4599 = vmatmul.mubr.bf16.gmra.mxu0 %v3807
        %v4600 = vpop.f32.mrf.mxu0
        %v4601 = vadd.f32 %v4408, %v4600
        %v4602 = vpop.f32.mrf.mxu0
        %v4603 = vadd.f32 %v4410, %v4602
        %v4604 = vpop.f32.mrf.mxu0
        %v4605 = vadd.f32 %v4412, %v4604
        %v4606 = vpop.f32.mrf.mxu0
        %v4607 = vadd.f32 %v4414, %v4606
        %4608 = vmatprep.mubr.bf16.mxu0 %v3812
        %4609 = vmatmul.mubr.bf16.gmra.mxu0 %v3811
        %v4610 = vpop.f32.mrf.mxu0
        %v4611 = vadd.f32 %v4418, %v4610
        %v4612 = vpop.f32.mrf.mxu0
        %v4613 = vadd.f32 %v4420, %v4612
        %v4614 = vpop.f32.mrf.mxu0
        %v4615 = vadd.f32 %v4422, %v4614
        %v4616 = vpop.f32.mrf.mxu0
        %v4617 = vadd.f32 %v4424, %v4616
        %4618 = vmatprep.mubr.bf16.mxu0 %v3816
        %4619 = vmatmul.mubr.bf16.gmra.mxu0 %v3815
        %v4620 = vpop.f32.mrf.mxu0
        %v4621 = vadd.f32 %v4428, %v4620
        %v4622 = vpop.f32.mrf.mxu0
        %v4623 = vadd.f32 %v4430, %v4622
        %v4624 = vpop.f32.mrf.mxu0
        %v4625 = vadd.f32 %v4432, %v4624
        %v4626 = vpop.f32.mrf.mxu0
        %v4627 = vadd.f32 %v4434, %v4626
        %4628 = vmatprep.mubr.bf16.mxu0 %v3820
        %4629 = vmatmul.mubr.bf16.gmra.mxu0 %v3819
        %v4630 = vpop.f32.mrf.mxu0
        %v4631 = vadd.f32 %v4438, %v4630
        %v4632 = vpop.f32.mrf.mxu0
        %v4633 = vadd.f32 %v4440, %v4632
        %v4634 = vpop.f32.mrf.mxu0
        %v4635 = vadd.f32 %v4442, %v4634
        %v4636 = vpop.f32.mrf.mxu0
        %v4637 = vadd.f32 %v4444, %v4636
        %4638 = vmatprep.mubr.bf16.mxu0 %v3824
        %4639 = vmatmul.mubr.bf16.gmra.mxu0 %v3823
        %v4640 = vpop.f32.mrf.mxu0
        %v4641 = vadd.f32 %v4448, %v4640
        %v4642 = vpop.f32.mrf.mxu0
        %v4643 = vadd.f32 %v4450, %v4642
        %v4644 = vpop.f32.mrf.mxu0
        %v4645 = vadd.f32 %v4452, %v4644
        %v4646 = vpop.f32.mrf.mxu0
        %v4647 = vadd.f32 %v4454, %v4646
        %4648 = vmatprep.mubr.bf16.mxu0 %v3828
        %4649 = vmatmul.mubr.bf16.gmra.mxu0 %v3827
        %v4650 = vpop.f32.mrf.mxu0
        %v4651 = vadd.f32 %v4458, %v4650
        %v4652 = vpop.f32.mrf.mxu0
        %v4653 = vadd.f32 %v4460, %v4652
        %v4654 = vpop.f32.mrf.mxu0
        %v4655 = vadd.f32 %v4462, %v4654
        %v4656 = vpop.f32.mrf.mxu0
        %v4657 = vadd.f32 %v4464, %v4656
        %4658 = vmatprep.mubr.bf16.mxu0 %v3832
        %4659 = vmatmul.mubr.bf16.gmra.mxu0 %v3831
        %v4660 = vpop.f32.mrf.mxu0
        %v4661 = vadd.f32 %v4468, %v4660
        %v4662 = vpop.f32.mrf.mxu0
        %v4663 = vadd.f32 %v4470, %v4662
        %v4664 = vpop.f32.mrf.mxu0
        %v4665 = vadd.f32 %v4472, %v4664
        %v4666 = vpop.f32.mrf.mxu0
        %v4667 = vadd.f32 %v4474, %v4666
        %4668 = vdwg.mxu0
        %v4669 = vmax.f32 %v4125, 0.0
        %v4670 = vmax.f32 %v4127, 0.0
        %v4671 = vmax.f32 %v4511, 0.0
        %v4672 = vmax.f32 %v4513, 0.0
        %v4673 = vmax.f32 %v4129, 0.0
        %v4674 = vmax.f32 %v4131, 0.0
        %v4675 = vmax.f32 %v4515, 0.0
        %v4676 = vmax.f32 %v4517, 0.0
        %v4677 = vmax.f32 %v4135, 0.0
        %v4678 = vmax.f32 %v4137, 0.0
        %v4679 = vmax.f32 %v4521, 0.0
        %v4680 = vmax.f32 %v4523, 0.0
        %v4681 = vmax.f32 %v4139, 0.0
        %v4682 = vmax.f32 %v4141, 0.0
        %v4683 = vmax.f32 %v4525, 0.0
        %v4684 = vmax.f32 %v4527, 0.0
        %v4685 = vmax.f32 %v4145, 0.0
        %v4686 = vmax.f32 %v4147, 0.0
        %v4687 = vmax.f32 %v4531, 0.0
        %v4688 = vmax.f32 %v4533, 0.0
        %v4689 = vmax.f32 %v4149, 0.0
        %v4690 = vmax.f32 %v4151, 0.0
        %v4691 = vmax.f32 %v4535, 0.0
        %v4692 = vmax.f32 %v4537, 0.0
        %v4693 = vmax.f32 %v4155, 0.0
        %v4694 = vmax.f32 %v4157, 0.0
        %v4695 = vmax.f32 %v4541, 0.0
        %v4696 = vmax.f32 %v4543, 0.0
        %v4697 = vmax.f32 %v4159, 0.0
        %v4698 = vmax.f32 %v4161, 0.0
        %v4699 = vmax.f32 %v4545, 0.0
        %v4700 = vmax.f32 %v4547, 0.0
        %v4701 = vmax.f32 %v4165, 0.0
        %v4702 = vmax.f32 %v4167, 0.0
        %v4703 = vmax.f32 %v4551, 0.0
        %v4704 = vmax.f32 %v4553, 0.0
        %v4705 = vmax.f32 %v4169, 0.0
        %v4706 = vmax.f32 %v4171, 0.0
        %v4707 = vmax.f32 %v4555, 0.0
        %v4708 = vmax.f32 %v4557, 0.0
        %v4709 = vmax.f32 %v4175, 0.0
        %v4710 = vmax.f32 %v4177, 0.0
        %v4711 = vmax.f32 %v4561, 0.0
        %v4712 = vmax.f32 %v4563, 0.0
        %v4713 = vmax.f32 %v4179, 0.0
        %v4714 = vmax.f32 %v4181, 0.0
        %v4715 = vmax.f32 %v4565, 0.0
        %v4716 = vmax.f32 %v4567, 0.0
        %v4717 = vmax.f32 %v4185, 0.0
        %v4718 = vmax.f32 %v4187, 0.0
        %v4719 = vmax.f32 %v4571, 0.0
        %v4720 = vmax.f32 %v4573, 0.0
        %v4721 = vmax.f32 %v4189, 0.0
        %v4722 = vmax.f32 %v4191, 0.0
        %v4723 = vmax.f32 %v4575, 0.0
        %v4724 = vmax.f32 %v4577, 0.0
        %v4725 = vmax.f32 %v4195, 0.0
        %v4726 = vmax.f32 %v4197, 0.0
        %v4727 = vmax.f32 %v4581, 0.0
        %v4728 = vmax.f32 %v4583, 0.0
        %v4729 = vmax.f32 %v4199, 0.0
        %v4730 = vmax.f32 %v4201, 0.0
        %v4731 = vmax.f32 %v4585, 0.0
        %v4732 = vmax.f32 %v4587, 0.0
        %v4733 = vmax.f32 %v4205, 0.0
        %v4734 = vmax.f32 %v4207, 0.0
        %v4735 = vmax.f32 %v4591, 0.0
        %v4736 = vmax.f32 %v4593, 0.0
        %v4737 = vmax.f32 %v4209, 0.0
        %v4738 = vmax.f32 %v4211, 0.0
        %v4739 = vmax.f32 %v4595, 0.0
        %v4740 = vmax.f32 %v4597, 0.0
        %v4741 = vmax.f32 %v4215, 0.0
        %v4742 = vmax.f32 %v4217, 0.0
        %v4743 = vmax.f32 %v4601, 0.0
        %v4744 = vmax.f32 %v4603, 0.0
        %v4745 = vmax.f32 %v4219, 0.0
        %v4746 = vmax.f32 %v4221, 0.0
        %v4747 = vmax.f32 %v4605, 0.0
        %v4748 = vmax.f32 %v4607, 0.0
        %v4749 = vmax.f32 %v4225, 0.0
        %v4750 = vmax.f32 %v4227, 0.0
        %v4751 = vmax.f32 %v4611, 0.0
        %v4752 = vmax.f32 %v4613, 0.0
        %v4753 = vmax.f32 %v4229, 0.0
        %v4754 = vmax.f32 %v4231, 0.0
        %v4755 = vmax.f32 %v4615, 0.0
        %v4756 = vmax.f32 %v4617, 0.0
        %v4757 = vmax.f32 %v4235, 0.0
        %v4758 = vmax.f32 %v4237, 0.0
        %v4759 = vmax.f32 %v4621, 0.0
        %v4760 = vmax.f32 %v4623, 0.0
        %v4761 = vmax.f32 %v4239, 0.0
        %v4762 = vmax.f32 %v4241, 0.0
        %v4763 = vmax.f32 %v4625, 0.0
        %v4764 = vmax.f32 %v4627, 0.0
        %v4765 = vmax.f32 %v4245, 0.0
        %v4766 = vmax.f32 %v4247, 0.0
        %v4767 = vmax.f32 %v4631, 0.0
        %v4768 = vmax.f32 %v4633, 0.0
        %v4769 = vmax.f32 %v4249, 0.0
        %v4770 = vmax.f32 %v4251, 0.0
        %v4771 = vmax.f32 %v4635, 0.0
        %v4772 = vmax.f32 %v4637, 0.0
        %v4773 = vmax.f32 %v4255, 0.0
        %v4774 = vmax.f32 %v4257, 0.0
        %v4775 = vmax.f32 %v4641, 0.0
        %v4776 = vmax.f32 %v4643, 0.0
        %v4777 = vmax.f32 %v4259, 0.0
        %v4778 = vmax.f32 %v4261, 0.0
        %v4779 = vmax.f32 %v4645, 0.0
        %v4780 = vmax.f32 %v4647, 0.0
        %v4781 = vmax.f32 %v4265, 0.0
        %v4782 = vmax.f32 %v4267, 0.0
        %v4783 = vmax.f32 %v4651, 0.0
        %v4784 = vmax.f32 %v4653, 0.0
        %v4785 = vmax.f32 %v4269, 0.0
        %v4786 = vmax.f32 %v4271, 0.0
        %v4787 = vmax.f32 %v4655, 0.0
        %v4788 = vmax.f32 %v4657, 0.0
        %v4789 = vmax.f32 %v4275, 0.0
        %v4790 = vmax.f32 %v4277, 0.0
        %v4791 = vmax.f32 %v4661, 0.0
        %v4792 = vmax.f32 %v4663, 0.0
        %v4793 = vmax.f32 %v4279, 0.0
        %v4794 = vmax.f32 %v4281, 0.0
        %v4795 = vmax.f32 %v4665, 0.0
        %v4796 = vmax.f32 %v4667, 0.0
        %v4797 = vld [vmem:[%s469] sm:$0x1f]
        %v4798 = vld [vmem:[%s469 + $0x8] sm:$0x1f]
        %v4799 = vld [vmem:[%s469 + $0x10] sm:$0x1f]
        %v4800 = vld [vmem:[%s469 + $0x18] sm:$0x1f]
        %v4801 = vld [vmem:[%s10] sm:$0x77]
        %v4802 = vpack.c.bf16 %v4673, %v4669
        %v4803 = vpack.c.bf16 %v4674, %v4670
        %v4804 = vpack.c.bf16 %v4675, %v4671
        %v4805 = vpack.c.bf16 %v4676, %v4672
        %v4806 = vpack.c.bf16 %v4681, %v4677
        %v4807 = vpack.c.bf16 %v4682, %v4678
        %v4808 = vpack.c.bf16 %v4683, %v4679
        %v4809 = vpack.c.bf16 %v4684, %v4680
        %v4810 = vpack.c.bf16 %v4689, %v4685
        %v4811 = vpack.c.bf16 %v4690, %v4686
        %v4812 = vpack.c.bf16 %v4691, %v4687
        %v4813 = vpack.c.bf16 %v4692, %v4688
        %v4814 = vpack.c.bf16 %v4697, %v4693
        %v4815 = vpack.c.bf16 %v4698, %v4694
        %v4816 = vpack.c.bf16 %v4699, %v4695
        %v4817 = vpack.c.bf16 %v4700, %v4696
        %v4818 = vpack.c.bf16 %v4705, %v4701
        %v4819 = vpack.c.bf16 %v4706, %v4702
        %v4820 = vpack.c.bf16 %v4707, %v4703
        %v4821 = vpack.c.bf16 %v4708, %v4704
        %v4822 = vpack.c.bf16 %v4713, %v4709
        %v4823 = vpack.c.bf16 %v4714, %v4710
        %v4824 = vpack.c.bf16 %v4715, %v4711
        %v4825 = vpack.c.bf16 %v4716, %v4712
        %v4826 = vpack.c.bf16 %v4721, %v4717
        %v4827 = vpack.c.bf16 %v4722, %v4718
        %v4828 = vpack.c.bf16 %v4723, %v4719
        %v4829 = vpack.c.bf16 %v4724, %v4720
        %v4830 = vpack.c.bf16 %v4729, %v4725
        %v4831 = vpack.c.bf16 %v4730, %v4726
        %v4832 = vpack.c.bf16 %v4731, %v4727
        %v4833 = vpack.c.bf16 %v4732, %v4728
        %v4834 = vpack.c.bf16 %v4737, %v4733
        %v4835 = vpack.c.bf16 %v4738, %v4734
        %v4836 = vpack.c.bf16 %v4739, %v4735
        %v4837 = vpack.c.bf16 %v4740, %v4736
        %v4838 = vpack.c.bf16 %v4745, %v4741
        %v4839 = vpack.c.bf16 %v4746, %v4742
        %v4840 = vpack.c.bf16 %v4747, %v4743
        %v4841 = vpack.c.bf16 %v4748, %v4744
        %v4842 = vpack.c.bf16 %v4753, %v4749
        %v4843 = vpack.c.bf16 %v4754, %v4750
        %v4844 = vpack.c.bf16 %v4755, %v4751
        %v4845 = vpack.c.bf16 %v4756, %v4752
        %v4846 = vpack.c.bf16 %v4761, %v4757
        %v4847 = vpack.c.bf16 %v4762, %v4758
        %v4848 = vpack.c.bf16 %v4763, %v4759
        %v4849 = vpack.c.bf16 %v4764, %v4760
        %v4850 = vpack.c.bf16 %v4769, %v4765
        %v4851 = vpack.c.bf16 %v4770, %v4766
        %v4852 = vpack.c.bf16 %v4771, %v4767
        %v4853 = vpack.c.bf16 %v4772, %v4768
        %v4854 = vpack.c.bf16 %v4777, %v4773
        %v4855 = vpack.c.bf16 %v4778, %v4774
        %v4856 = vpack.c.bf16 %v4779, %v4775
        %v4857 = vpack.c.bf16 %v4780, %v4776
        %v4858 = vpack.c.bf16 %v4785, %v4781
        %v4859 = vpack.c.bf16 %v4786, %v4782
        %v4860 = vpack.c.bf16 %v4787, %v4783
        %v4861 = vpack.c.bf16 %v4788, %v4784
        %v4862 = vpack.c.bf16 %v4793, %v4789
        %v4863 = vpack.c.bf16 %v4794, %v4790
        %v4864 = vpack.c.bf16 %v4795, %v4791
        %v4865 = vpack.c.bf16 %v4796, %v4792
        %v4867 = vunpack.c.l.b16 %v4801
        %v4868 = vunpack.c.h.b16 %v4801
        %v4869 = vpack.c.b16 %v4867, %v4867
        %v4870 = vpack.c.b16 %v4868, %v4868
        %4873 = vmatprep.subr.bf16.mxu0 %v4831
        %4874 = vmatpush1.bf16.msra.mxu0 %v4830
        %4875 = vmatprep.subr.bf16.mxu0 %v4827
        %4876 = vmatpush1.bf16.msra.mxu0 %v4826
        %4877 = vmatprep.subr.bf16.mxu0 %v4823
        %4878 = vmatpush1.bf16.msra.mxu0 %v4822
        %4879 = vmatprep.subr.bf16.mxu0 %v4819
        %4880 = vmatpush1.bf16.msra.mxu0 %v4818
        %4881 = vmatprep.subr.bf16.mxu0 %v4815
        %4882 = vmatpush1.bf16.msra.mxu0 %v4814
        %4883 = vmatprep.subr.bf16.mxu0 %v4811
        %4884 = vmatpush1.bf16.msra.mxu0 %v4810
        %4885 = vmatprep.subr.bf16.mxu0 %v4807
        %4886 = vmatpush1.bf16.msra.mxu0 %v4806
        %4887 = vmatprep.subr.bf16.mxu0 %v4803
        %4888 = vmatpush1.bf16.msra.mxu0 %v4802
        %4889 = vmatprep.subr.bf16.mxu0 %v4863
        %4890 = vmatpush2.bf16.msra.mxu0 %v4862
        %4891 = vmatprep.subr.bf16.mxu0 %v4859
        %4892 = vmatpush2.bf16.msra.mxu0 %v4858
        %4893 = vmatprep.subr.bf16.mxu0 %v4855
        %4894 = vmatpush2.bf16.msra.mxu0 %v4854
        %4895 = vmatprep.subr.bf16.mxu0 %v4851
        %4896 = vmatpush2.bf16.msra.mxu0 %v4850
        %4897 = vmatprep.subr.bf16.mxu0 %v4847
        %4898 = vmatpush2.bf16.msra.mxu0 %v4846
        %4899 = vmatprep.subr.bf16.mxu0 %v4843
        %4900 = vmatpush2.bf16.msra.mxu0 %v4842
        %4901 = vmatprep.subr.bf16.mxu0 %v4839
        %4902 = vmatpush2.bf16.msra.mxu0 %v4838
        %4903 = vmatprep.subr.bf16.mxu0 %v4835
        %4904 = vmatpush2.bf16.msra.mxu0 %v4834
        %4905 = vmatprep.mubr.bf16.mxu0 %v4870
        %4906 = vmatmul.mubr.bf16.gmra.mxu0 %v4869
        %v4907 = vpop.f32.mrf.mxu0
        %v4908 = vadd.f32 0.0, %v4907
        %v4909 = vpop.f32.mrf.mxu0
        %v4910 = vadd.f32 0.0, %v4909
        %v4911 = vpop.f32.mrf.mxu0
        %v4912 = vpop.f32.mrf.mxu0
        %4913 = vdwg.mxu0
        %4914 = vmatprep.subr.bf16.mxu0 %v4833
        %4915 = vmatpush1.bf16.msra.mxu0 %v4832
        %4916 = vmatprep.subr.bf16.mxu0 %v4829
        %4917 = vmatpush1.bf16.msra.mxu0 %v4828
        %4918 = vmatprep.subr.bf16.mxu0 %v4825
        %4919 = vmatpush1.bf16.msra.mxu0 %v4824
        %4920 = vmatprep.subr.bf16.mxu0 %v4821
        %4921 = vmatpush1.bf16.msra.mxu0 %v4820
        %4922 = vmatprep.subr.bf16.mxu0 %v4817
        %4923 = vmatpush1.bf16.msra.mxu0 %v4816
        %4924 = vmatprep.subr.bf16.mxu0 %v4813
        %4925 = vmatpush1.bf16.msra.mxu0 %v4812
        %4926 = vmatprep.subr.bf16.mxu0 %v4809
        %4927 = vmatpush1.bf16.msra.mxu0 %v4808
        %4928 = vmatprep.subr.bf16.mxu0 %v4805
        %4929 = vmatpush1.bf16.msra.mxu0 %v4804
        %4930 = vmatprep.subr.bf16.mxu0 %v4865
        %4931 = vmatpush2.bf16.msra.mxu0 %v4864
        %4932 = vmatprep.subr.bf16.mxu0 %v4861
        %4933 = vmatpush2.bf16.msra.mxu0 %v4860
        %4934 = vmatprep.subr.bf16.mxu0 %v4857
        %4935 = vmatpush2.bf16.msra.mxu0 %v4856
        %4936 = vmatprep.subr.bf16.mxu0 %v4853
        %4937 = vmatpush2.bf16.msra.mxu0 %v4852
        %4938 = vmatprep.subr.bf16.mxu0 %v4849
        %4939 = vmatpush2.bf16.msra.mxu0 %v4848
        %4940 = vmatprep.subr.bf16.mxu0 %v4845
        %4941 = vmatpush2.bf16.msra.mxu0 %v4844
        %4942 = vmatprep.subr.bf16.mxu0 %v4841
        %4943 = vmatpush2.bf16.msra.mxu0 %v4840
        %4944 = vmatprep.subr.bf16.mxu0 %v4837
        %4945 = vmatpush2.bf16.msra.mxu0 %v4836
        %4946 = vmatprep.mubr.bf16.mxu0 %v4870
        %4947 = vmatmul.mubr.bf16.gmra.mxu0 %v4869
        %v4948 = vpop.f32.mrf.mxu0
        %v4949 = vadd.f32 0.0, %v4948
        %v4950 = vpop.f32.mrf.mxu0
        %v4951 = vadd.f32 0.0, %v4950
        %v4952 = vpop.f32.mrf.mxu0
        %v4953 = vpop.f32.mrf.mxu0
        %4954 = vdwg.mxu0
        %v4955 = vadd.f32 %v4797, %v4908
        %v4956 = vadd.f32 %v4798, %v4910
        %v4957 = vadd.f32 %v4799, %v4949
        %v4958 = vadd.f32 %v4800, %v4951
        %s4959 = sld [smem:[#allocation3]]
        %v4960 = vstv %s4959
        %v4961 = vmul.f32 %v4960, %v4955
        %v4962 = vmul.f32 %v4960, %v4956
        %v4963 = vmul.f32 %v4960, %v4957
        %v4964 = vmul.f32 %v4960, %v4958
        %v4969 = vrot.slane %v4955, 2
        %v4970 = vrot.slane %v4956, 2
        %v4971 = vrot.slane %v4957, 2
        %v4972 = vrot.slane %v4958, 2
        %v4977 = vmul.f32 %v4961, %v4969
        %v4978 = vmul.f32 %v4962, %v4970
        %v4979 = vmul.f32 %v4963, %v4971
        %v4980 = vmul.f32 %v4964, %v4972
        %s4981 = sld [smem:[#allocation3 + $0x1]]
        %v4982 = vstv %s4981
        %v4983 = vmul.f32 %v4982, %v4955
        %v4984 = vmul.f32 %v4982, %v4956
        %v4985 = vmul.f32 %v4982, %v4957
        %v4986 = vmul.f32 %v4982, %v4958
        %v4987 = vrot.slane %v4955, 3
        %v4988 = vrot.slane %v4956, 3
        %v4989 = vrot.slane %v4957, 3
        %v4990 = vrot.slane %v4958, 3
        %v4995 = vmul.f32 %v4983, %v4987
        %v4996 = vmul.f32 %v4984, %v4988
        %v4997 = vmul.f32 %v4985, %v4989
        %v4998 = vmul.f32 %v4986, %v4990
        %s4999 = sld [smem:[#allocation3 + $0x2]]
        %v5000 = vstv %s4999
        %v5001 = vmul.f32 %v5000, %v4955
        %v5002 = vmul.f32 %v5000, %v4956
        %v5003 = vmul.f32 %v5000, %v4957
        %v5004 = vmul.f32 %v5000, %v4958
        %v5005 = vrot.slane %v4955, 4
        %v5006 = vrot.slane %v4956, 4
        %v5007 = vrot.slane %v4957, 4
        %v5008 = vrot.slane %v4958, 4
        %v5013 = vmul.f32 %v5001, %v5005
        %v5014 = vmul.f32 %v5002, %v5006
        %v5015 = vmul.f32 %v5003, %v5007
        %v5016 = vmul.f32 %v5004, %v5008
        %s5017 = sld [smem:[#allocation3 + $0x3]]
        %v5018 = vstv %s5017
        %v5019 = vmul.f32 %v5018, %v4955
        %v5020 = vmul.f32 %v5018, %v4956
        %v5021 = vmul.f32 %v5018, %v4957
        %v5022 = vmul.f32 %v5018, %v4958
        %v5023 = vrot.slane %v4955, 1
        %v5024 = vrot.slane %v4956, 1
        %v5025 = vrot.slane %v4957, 1
        %v5026 = vrot.slane %v4958, 1
        %v5031 = vmul.f32 %v5019, %v5023
        %v5032 = vmul.f32 %v5020, %v5024
        %v5033 = vmul.f32 %v5021, %v5025
        %v5034 = vmul.f32 %v5022, %v5026
        %v5039 = vrot.slane %v5031, 1
        %v5040 = vrot.slane %v5032, 1
        %v5041 = vrot.slane %v5033, 1
        %v5042 = vrot.slane %v5034, 1
        %v5047 = vadd.f32 %v4977, %v5039
        %v5048 = vadd.f32 %v4978, %v5040
        %v5049 = vadd.f32 %v4979, %v5041
        %v5050 = vadd.f32 %v4980, %v5042
        %s5051 = sld [smem:[#allocation3 + $0x4]]
        %v5052 = vstv %s5051
        %v5053 = vmul.f32 %v5052, %v4955
        %v5054 = vmul.f32 %v5052, %v4956
        %v5055 = vmul.f32 %v5052, %v4957
        %v5056 = vmul.f32 %v5052, %v4958
        %v5057 = vmul.f32 %v5053, %v4969
        %v5058 = vmul.f32 %v5054, %v4970
        %v5059 = vmul.f32 %v5055, %v4971
        %v5060 = vmul.f32 %v5056, %v4972
        %v5065 = vrot.slane %v5057, 1
        %v5066 = vrot.slane %v5058, 1
        %v5067 = vrot.slane %v5059, 1
        %v5068 = vrot.slane %v5060, 1
        %v5073 = vadd.f32 %v4995, %v5065
        %v5074 = vadd.f32 %v4996, %v5066
        %v5075 = vadd.f32 %v4997, %v5067
        %v5076 = vadd.f32 %v4998, %v5068
        %s5077 = sld [smem:[#allocation3 + $0x5]]
        %v5078 = vstv %s5077
        %v5079 = vmul.f32 %v5078, %v4955
        %v5080 = vmul.f32 %v5078, %v4956
        %v5081 = vmul.f32 %v5078, %v4957
        %v5082 = vmul.f32 %v5078, %v4958
        %v5083 = vmul.f32 %v5079, %v4987
        %v5084 = vmul.f32 %v5080, %v4988
        %v5085 = vmul.f32 %v5081, %v4989
        %v5086 = vmul.f32 %v5082, %v4990
        %v5091 = vrot.slane %v5083, 1
        %v5092 = vrot.slane %v5084, 1
        %v5093 = vrot.slane %v5085, 1
        %v5094 = vrot.slane %v5086, 1
        %v5099 = vadd.f32 %v5013, %v5091
        %v5100 = vadd.f32 %v5014, %v5092
        %v5101 = vadd.f32 %v5015, %v5093
        %v5102 = vadd.f32 %v5016, %v5094
        %s5103 = sld [smem:[#allocation3 + $0x6]]
        %v5104 = vstv %s5103
        %v5105 = vmul.f32 %v5104, %v4955
        %v5106 = vmul.f32 %v5104, %v4956
        %v5107 = vmul.f32 %v5104, %v4957
        %v5108 = vmul.f32 %v5104, %v4958
        %v5109 = vrot.slane %v4955, 6
        %v5110 = vrot.slane %v4956, 6
        %v5111 = vrot.slane %v4957, 6
        %v5112 = vrot.slane %v4958, 6
        %v5117 = vmul.f32 %v5105, %v5109
        %v5118 = vmul.f32 %v5106, %v5110
        %v5119 = vmul.f32 %v5107, %v5111
        %v5120 = vmul.f32 %v5108, %v5112
        %v5125 = vrot.slane %v5117, 2
        %v5126 = vrot.slane %v5118, 2
        %v5127 = vrot.slane %v5119, 2
        %v5128 = vrot.slane %v5120, 2
        %v5133 = vadd.f32 %v5047, %v5125
        %v5134 = vadd.f32 %v5048, %v5126
        %v5135 = vadd.f32 %v5049, %v5127
        %v5136 = vadd.f32 %v5050, %v5128
        %s5137 = sld [smem:[#allocation3 + $0x7]]
        %v5138 = vstv %s5137
        %v5139 = vmul.f32 %v5138, %v4955
        %v5140 = vmul.f32 %v5138, %v4956
        %v5141 = vmul.f32 %v5138, %v4957
        %v5142 = vmul.f32 %v5138, %v4958
        %v5143 = vrot.slane %v4955, 7
        %v5144 = vrot.slane %v4956, 7
        %v5145 = vrot.slane %v4957, 7
        %v5146 = vrot.slane %v4958, 7
        %v5151 = vmul.f32 %v5139, %v5143
        %v5152 = vmul.f32 %v5140, %v5144
        %v5153 = vmul.f32 %v5141, %v5145
        %v5154 = vmul.f32 %v5142, %v5146
        %v5159 = vrot.slane %v5151, 2
        %v5160 = vrot.slane %v5152, 2
        %v5161 = vrot.slane %v5153, 2
        %v5162 = vrot.slane %v5154, 2
        %v5167 = vadd.f32 %v5133, %v5159
        %v5168 = vadd.f32 %v5134, %v5160
        %v5169 = vadd.f32 %v5135, %v5161
        %v5170 = vadd.f32 %v5136, %v5162
        %s5171 = sld [smem:[#allocation3 + $0x8]]
        %v5172 = vstv %s5171
        %v5173 = vmul.f32 %v5172, %v4955
        %v5174 = vmul.f32 %v5172, %v4956
        %v5175 = vmul.f32 %v5172, %v4957
        %v5176 = vmul.f32 %v5172, %v4958
        %v5177 = vmul.f32 %v5173, %v5023
        %v5178 = vmul.f32 %v5174, %v5024
        %v5179 = vmul.f32 %v5175, %v5025
        %v5180 = vmul.f32 %v5176, %v5026
        %v5185 = vrot.slane %v5177, 2
        %v5186 = vrot.slane %v5178, 2
        %v5187 = vrot.slane %v5179, 2
        %v5188 = vrot.slane %v5180, 2
        %v5193 = vadd.f32 %v5099, %v5185
        %v5194 = vadd.f32 %v5100, %v5186
        %v5195 = vadd.f32 %v5101, %v5187
        %v5196 = vadd.f32 %v5102, %v5188
        %s5197 = sld [smem:[#allocation3 + $0x9]]
        %v5198 = vstv %s5197
        %v5199 = vmul.f32 %v5198, %v4955
        %v5200 = vmul.f32 %v5198, %v4956
        %v5201 = vmul.f32 %v5198, %v4957
        %v5202 = vmul.f32 %v5198, %v4958
        %v5203 = vmul.f32 %v5199, %v4969
        %v5204 = vmul.f32 %v5200, %v4970
        %v5205 = vmul.f32 %v5201, %v4971
        %v5206 = vmul.f32 %v5202, %v4972
        %v5211 = vrot.slane %v5203, 2
        %v5212 = vrot.slane %v5204, 2
        %v5213 = vrot.slane %v5205, 2
        %v5214 = vrot.slane %v5206, 2
        %v5219 = vadd.f32 %v5073, %v5211
        %v5220 = vadd.f32 %v5074, %v5212
        %v5221 = vadd.f32 %v5075, %v5213
        %v5222 = vadd.f32 %v5076, %v5214
        %s5223 = sld [smem:[#allocation3 + $0xa]]
        %v5224 = vstv %s5223
        %v5225 = vmul.f32 %v5224, %v4955
        %v5226 = vmul.f32 %v5224, %v4956
        %v5227 = vmul.f32 %v5224, %v4957
        %v5228 = vmul.f32 %v5224, %v4958
        %v5229 = vrot.slane %v4955, 5
        %v5230 = vrot.slane %v4956, 5
        %v5231 = vrot.slane %v4957, 5
        %v5232 = vrot.slane %v4958, 5
        %v5237 = vmul.f32 %v5225, %v5229
        %v5238 = vmul.f32 %v5226, %v5230
        %v5239 = vmul.f32 %v5227, %v5231
        %v5240 = vmul.f32 %v5228, %v5232
        %v5245 = vrot.slane %v5237, 3
        %v5246 = vrot.slane %v5238, 3
        %v5247 = vrot.slane %v5239, 3
        %v5248 = vrot.slane %v5240, 3
        %v5253 = vadd.f32 %v5219, %v5245
        %v5254 = vadd.f32 %v5220, %v5246
        %v5255 = vadd.f32 %v5221, %v5247
        %v5256 = vadd.f32 %v5222, %v5248
        %s5257 = sld [smem:[#allocation3 + $0xb]]
        %v5258 = vstv %s5257
        %v5259 = vmul.f32 %v5258, %v4955
        %v5260 = vmul.f32 %v5258, %v4956
        %v5261 = vmul.f32 %v5258, %v4957
        %v5262 = vmul.f32 %v5258, %v4958
        %v5263 = vmul.f32 %v5259, %v5109
        %v5264 = vmul.f32 %v5260, %v5110
        %v5265 = vmul.f32 %v5261, %v5111
        %v5266 = vmul.f32 %v5262, %v5112
        %v5271 = vrot.slane %v5263, 3
        %v5272 = vrot.slane %v5264, 3
        %v5273 = vrot.slane %v5265, 3
        %v5274 = vrot.slane %v5266, 3
        %v5279 = vadd.f32 %v5253, %v5271
        %v5280 = vadd.f32 %v5254, %v5272
        %v5281 = vadd.f32 %v5255, %v5273
        %v5282 = vadd.f32 %v5256, %v5274
        %s5283 = sld [smem:[#allocation3 + $0xc]]
        %v5284 = vstv %s5283
        %v5285 = vmul.f32 %v5284, %v4955
        %v5286 = vmul.f32 %v5284, %v4956
        %v5287 = vmul.f32 %v5284, %v4957
        %v5288 = vmul.f32 %v5284, %v4958
        %v5289 = vmul.f32 %v5285, %v5143
        %v5290 = vmul.f32 %v5286, %v5144
        %v5291 = vmul.f32 %v5287, %v5145
        %v5292 = vmul.f32 %v5288, %v5146
        %v5297 = vrot.slane %v5289, 3
        %v5298 = vrot.slane %v5290, 3
        %v5299 = vrot.slane %v5291, 3
        %v5300 = vrot.slane %v5292, 3
        %v5305 = vadd.f32 %v5193, %v5297
        %v5306 = vadd.f32 %v5194, %v5298
        %v5307 = vadd.f32 %v5195, %v5299
        %v5308 = vadd.f32 %v5196, %v5300
        %s5309 = sld [smem:[#allocation3 + $0xd]]
        %v5310 = vstv %s5309
        %v5311 = vmul.f32 %v5310, %v4955
        %v5312 = vmul.f32 %v5310, %v4956
        %v5313 = vmul.f32 %v5310, %v4957
        %v5314 = vmul.f32 %v5310, %v4958
        %v5315 = vmul.f32 %v5311, %v5023
        %v5316 = vmul.f32 %v5312, %v5024
        %v5317 = vmul.f32 %v5313, %v5025
        %v5318 = vmul.f32 %v5314, %v5026
        %v5323 = vrot.slane %v5315, 3
        %v5324 = vrot.slane %v5316, 3
        %v5325 = vrot.slane %v5317, 3
        %v5326 = vrot.slane %v5318, 3
        %v5331 = vadd.f32 %v5167, %v5323
        %v5332 = vadd.f32 %v5168, %v5324
        %v5333 = vadd.f32 %v5169, %v5325
        %v5334 = vadd.f32 %v5170, %v5326
        %s5335 = sld [smem:[#allocation3 + $0xe]]
        %v5336 = vstv %s5335
        %v5337 = vmul.f32 %v5336, %v4955
        %v5338 = vmul.f32 %v5336, %v4956
        %v5339 = vmul.f32 %v5336, %v4957
        %v5340 = vmul.f32 %v5336, %v4958
        %v5341 = vmul.f32 %v5337, %v5005
        %v5342 = vmul.f32 %v5338, %v5006
        %v5343 = vmul.f32 %v5339, %v5007
        %v5344 = vmul.f32 %v5340, %v5008
        %v5349 = vrot.slane %v5341, 4
        %v5350 = vrot.slane %v5342, 4
        %v5351 = vrot.slane %v5343, 4
        %v5352 = vrot.slane %v5344, 4
        %v5357 = vadd.f32 %v5305, %v5349
        %v5358 = vadd.f32 %v5306, %v5350
        %v5359 = vadd.f32 %v5307, %v5351
        %v5360 = vadd.f32 %v5308, %v5352
        %s5361 = sld [smem:[#allocation3 + $0xf]]
        %v5362 = vstv %s5361
        %v5363 = vmul.f32 %v5362, %v4955
        %v5364 = vmul.f32 %v5362, %v4956
        %v5365 = vmul.f32 %v5362, %v4957
        %v5366 = vmul.f32 %v5362, %v4958
        %v5367 = vmul.f32 %v5363, %v5229
        %v5368 = vmul.f32 %v5364, %v5230
        %v5369 = vmul.f32 %v5365, %v5231
        %v5370 = vmul.f32 %v5366, %v5232
        %v5375 = vrot.slane %v5367, 4
        %v5376 = vrot.slane %v5368, 4
        %v5377 = vrot.slane %v5369, 4
        %v5378 = vrot.slane %v5370, 4
        %v5383 = vadd.f32 %v5357, %v5375
        %v5384 = vadd.f32 %v5358, %v5376
        %v5385 = vadd.f32 %v5359, %v5377
        %v5386 = vadd.f32 %v5360, %v5378
        %s5387 = sld [smem:[#allocation3 + $0x10]]
        %v5388 = vstv %s5387
        %v5389 = vmul.f32 %v5388, %v4955
        %v5390 = vmul.f32 %v5388, %v4956
        %v5391 = vmul.f32 %v5388, %v4957
        %v5392 = vmul.f32 %v5388, %v4958
        %v5393 = vmul.f32 %v5389, %v5109
        %v5394 = vmul.f32 %v5390, %v5110
        %v5395 = vmul.f32 %v5391, %v5111
        %v5396 = vmul.f32 %v5392, %v5112
        %v5401 = vrot.slane %v5393, 4
        %v5402 = vrot.slane %v5394, 4
        %v5403 = vrot.slane %v5395, 4
        %v5404 = vrot.slane %v5396, 4
        %v5409 = vadd.f32 %v5279, %v5401
        %v5410 = vadd.f32 %v5280, %v5402
        %v5411 = vadd.f32 %v5281, %v5403
        %v5412 = vadd.f32 %v5282, %v5404
        %s5413 = sld [smem:[#allocation3 + $0x11]]
        %v5414 = vstv %s5413
        %v5415 = vmul.f32 %v5414, %v4955
        %v5416 = vmul.f32 %v5414, %v4956
        %v5417 = vmul.f32 %v5414, %v4957
        %v5418 = vmul.f32 %v5414, %v4958
        %v5419 = vmul.f32 %v5415, %v5143
        %v5420 = vmul.f32 %v5416, %v5144
        %v5421 = vmul.f32 %v5417, %v5145
        %v5422 = vmul.f32 %v5418, %v5146
        %v5427 = vrot.slane %v5419, 4
        %v5428 = vrot.slane %v5420, 4
        %v5429 = vrot.slane %v5421, 4
        %v5430 = vrot.slane %v5422, 4
        %v5435 = vadd.f32 %v5331, %v5427
        %v5436 = vadd.f32 %v5332, %v5428
        %v5437 = vadd.f32 %v5333, %v5429
        %v5438 = vadd.f32 %v5334, %v5430
        %s5439 = sld [smem:[#allocation3 + $0x12]]
        %v5440 = vstv %s5439
        %v5441 = vmul.f32 %v5440, %v5435
        %v5442 = vmul.f32 %v5440, %v5436
        %v5443 = vmul.f32 %v5440, %v5437
        %v5444 = vmul.f32 %v5440, %v5438
        %v5445 = vmul.f32 %v5441, %v4955
        %v5446 = vmul.f32 %v5442, %v4956
        %v5447 = vmul.f32 %v5443, %v4957
        %v5448 = vmul.f32 %v5444, %v4958
        %s5449 = sld [smem:[#allocation3 + $0x13]]
        %v5450 = vstv %s5449
        %v5451 = vmul.f32 %v5450, %v5435
        %v5452 = vmul.f32 %v5450, %v5436
        %v5453 = vmul.f32 %v5450, %v5437
        %v5454 = vmul.f32 %v5450, %v5438
        %v5455 = vmul.f32 %v5451, %v5023
        %v5456 = vmul.f32 %v5452, %v5024
        %v5457 = vmul.f32 %v5453, %v5025
        %v5458 = vmul.f32 %v5454, %v5026
        %v5459 = vadd.f32 %v5445, %v5455
        %v5460 = vadd.f32 %v5446, %v5456
        %v5461 = vadd.f32 %v5447, %v5457
        %v5462 = vadd.f32 %v5448, %v5458
        %s5463 = sld [smem:[#allocation3 + $0x14]]
        %v5464 = vstv %s5463
        %v5465 = vmul.f32 %v5464, %v5435
        %v5466 = vmul.f32 %v5464, %v5436
        %v5467 = vmul.f32 %v5464, %v5437
        %v5468 = vmul.f32 %v5464, %v5438
        %v5469 = vmul.f32 %v5465, %v4987
        %v5470 = vmul.f32 %v5466, %v4988
        %v5471 = vmul.f32 %v5467, %v4989
        %v5472 = vmul.f32 %v5468, %v4990
        %s5473 = sld [smem:[#allocation3 + $0x15]]
        %v5474 = vstv %s5473
        %v5475 = vmul.f32 %v5474, %v5435
        %v5476 = vmul.f32 %v5474, %v5436
        %v5477 = vmul.f32 %v5474, %v5437
        %v5478 = vmul.f32 %v5474, %v5438
        %v5479 = vmul.f32 %v5475, %v5005
        %v5480 = vmul.f32 %v5476, %v5006
        %v5481 = vmul.f32 %v5477, %v5007
        %v5482 = vmul.f32 %v5478, %v5008
        %s5483 = sld [smem:[#allocation3 + $0x16]]
        %v5484 = vstv %s5483
        %v5485 = vmul.f32 %v5484, %v5409
        %v5486 = vmul.f32 %v5484, %v5410
        %v5487 = vmul.f32 %v5484, %v5411
        %v5488 = vmul.f32 %v5484, %v5412
        %v5489 = vmul.f32 %v5485, %v4955
        %v5490 = vmul.f32 %v5486, %v4956
        %v5491 = vmul.f32 %v5487, %v4957
        %v5492 = vmul.f32 %v5488, %v4958
        %v5493 = vadd.f32 %v5479, %v5489
        %v5494 = vadd.f32 %v5480, %v5490
        %v5495 = vadd.f32 %v5481, %v5491
        %v5496 = vadd.f32 %v5482, %v5492
        %s5497 = sld [smem:[#allocation3 + $0x17]]
        %v5498 = vstv %s5497
        %v5499 = vmul.f32 %v5498, %v5409
        %v5500 = vmul.f32 %v5498, %v5410
        %v5501 = vmul.f32 %v5498, %v5411
        %v5502 = vmul.f32 %v5498, %v5412
        %v5503 = vmul.f32 %v5499, %v5023
        %v5504 = vmul.f32 %v5500, %v5024
        %v5505 = vmul.f32 %v5501, %v5025
        %v5506 = vmul.f32 %v5502, %v5026
        %v5507 = vadd.f32 %v5493, %v5503
        %v5508 = vadd.f32 %v5494, %v5504
        %v5509 = vadd.f32 %v5495, %v5505
        %v5510 = vadd.f32 %v5496, %v5506
        %s5511 = sld [smem:[#allocation3 + $0x18]]
        %v5512 = vstv %s5511
        %v5513 = vmul.f32 %v5512, %v5409
        %v5514 = vmul.f32 %v5512, %v5410
        %v5515 = vmul.f32 %v5512, %v5411
        %v5516 = vmul.f32 %v5512, %v5412
        %v5517 = vmul.f32 %v5513, %v4969
        %v5518 = vmul.f32 %v5514, %v4970
        %v5519 = vmul.f32 %v5515, %v4971
        %v5520 = vmul.f32 %v5516, %v4972
        %v5521 = vadd.f32 %v5469, %v5517
        %v5522 = vadd.f32 %v5470, %v5518
        %v5523 = vadd.f32 %v5471, %v5519
        %v5524 = vadd.f32 %v5472, %v5520
        %s5525 = sld [smem:[#allocation3 + $0x19]]
        %v5526 = vstv %s5525
        %v5527 = vmul.f32 %v5526, %v5409
        %v5528 = vmul.f32 %v5526, %v5410
        %v5529 = vmul.f32 %v5526, %v5411
        %v5530 = vmul.f32 %v5526, %v5412
        %v5531 = vmul.f32 %v5527, %v5005
        %v5532 = vmul.f32 %v5528, %v5006
        %v5533 = vmul.f32 %v5529, %v5007
        %v5534 = vmul.f32 %v5530, %v5008
        %v5535 = vadd.f32 %v5459, %v5531
        %v5536 = vadd.f32 %v5460, %v5532
        %v5537 = vadd.f32 %v5461, %v5533
        %v5538 = vadd.f32 %v5462, %v5534
        %s5539 = sld [smem:[#allocation3 + $0x1a]]
        %v5540 = vstv %s5539
        %v5541 = vmul.f32 %v5540, %v5383
        %v5542 = vmul.f32 %v5540, %v5384
        %v5543 = vmul.f32 %v5540, %v5385
        %v5544 = vmul.f32 %v5540, %v5386
        %v5545 = vmul.f32 %v5541, %v4955
        %v5546 = vmul.f32 %v5542, %v4956
        %v5547 = vmul.f32 %v5543, %v4957
        %v5548 = vmul.f32 %v5544, %v4958
        %v5549 = vadd.f32 %v5521, %v5545
        %v5550 = vadd.f32 %v5522, %v5546
        %v5551 = vadd.f32 %v5523, %v5547
        %v5552 = vadd.f32 %v5524, %v5548
        %s5553 = sld [smem:[#allocation3 + $0x1b]]
        %v5554 = vstv %s5553
        %v5555 = vmul.f32 %v5554, %v5383
        %v5556 = vmul.f32 %v5554, %v5384
        %v5557 = vmul.f32 %v5554, %v5385
        %v5558 = vmul.f32 %v5554, %v5386
        %v5559 = vmul.f32 %v5555, %v5023
        %v5560 = vmul.f32 %v5556, %v5024
        %v5561 = vmul.f32 %v5557, %v5025
        %v5562 = vmul.f32 %v5558, %v5026
        %v5563 = vadd.f32 %v5549, %v5559
        %v5564 = vadd.f32 %v5550, %v5560
        %v5565 = vadd.f32 %v5551, %v5561
        %v5566 = vadd.f32 %v5552, %v5562
        %s5567 = sld [smem:[#allocation3 + $0x1c]]
        %v5568 = vstv %s5567
        %v5569 = vmul.f32 %v5568, %v5383
        %v5570 = vmul.f32 %v5568, %v5384
        %v5571 = vmul.f32 %v5568, %v5385
        %v5572 = vmul.f32 %v5568, %v5386
        %v5573 = vmul.f32 %v5569, %v4969
        %v5574 = vmul.f32 %v5570, %v4970
        %v5575 = vmul.f32 %v5571, %v4971
        %v5576 = vmul.f32 %v5572, %v4972
        %v5577 = vadd.f32 %v5507, %v5573
        %v5578 = vadd.f32 %v5508, %v5574
        %v5579 = vadd.f32 %v5509, %v5575
        %v5580 = vadd.f32 %v5510, %v5576
        %s5581 = sld [smem:[#allocation3 + $0x1d]]
        %v5582 = vstv %s5581
        %v5583 = vmul.f32 %v5582, %v5383
        %v5584 = vmul.f32 %v5582, %v5384
        %v5585 = vmul.f32 %v5582, %v5385
        %v5586 = vmul.f32 %v5582, %v5386
        %v5587 = vmul.f32 %v5583, %v4987
        %v5588 = vmul.f32 %v5584, %v4988
        %v5589 = vmul.f32 %v5585, %v4989
        %v5590 = vmul.f32 %v5586, %v4990
        %v5591 = vadd.f32 %v5535, %v5587
        %v5592 = vadd.f32 %v5536, %v5588
        %v5593 = vadd.f32 %v5537, %v5589
        %v5594 = vadd.f32 %v5538, %v5590
        %s5595 = sld [smem:[#allocation3 + $0x2a]]
        %v5596 = vstv %s5595
        %v5597 = vmul.f32 %v5596, %v5591
        %v5598 = vmul.f32 %v5596, %v5592
        %v5599 = vmul.f32 %v5596, %v5593
        %v5600 = vmul.f32 %v5596, %v5594
        %v5601 = vmul.f32 %v5597, %v4955
        %v5602 = vmul.f32 %v5598, %v4956
        %v5603 = vmul.f32 %v5599, %v4957
        %v5604 = vmul.f32 %v5600, %v4958
        %s5605 = sld [smem:[#allocation3 + $0x2b]]
        %v5606 = vstv %s5605
        %v5607 = vmul.f32 %v5606, %v5591
        %v5608 = vmul.f32 %v5606, %v5592
        %v5609 = vmul.f32 %v5606, %v5593
        %v5610 = vmul.f32 %v5606, %v5594
        %v5611 = vmul.f32 %v5607, %v5023
        %v5612 = vmul.f32 %v5608, %v5024
        %v5613 = vmul.f32 %v5609, %v5025
        %v5614 = vmul.f32 %v5610, %v5026
        %v5615 = vadd.f32 %v5601, %v5611
        %v5616 = vadd.f32 %v5602, %v5612
        %v5617 = vadd.f32 %v5603, %v5613
        %v5618 = vadd.f32 %v5604, %v5614
        %s5619 = sld [smem:[#allocation3 + $0x2c]]
        %v5620 = vstv %s5619
        %v5621 = vmul.f32 %v5620, %v5591
        %v5622 = vmul.f32 %v5620, %v5592
        %v5623 = vmul.f32 %v5620, %v5593
        %v5624 = vmul.f32 %v5620, %v5594
        %v5625 = vmul.f32 %v5621, %v4987
        %v5626 = vmul.f32 %v5622, %v4988
        %v5627 = vmul.f32 %v5623, %v4989
        %v5628 = vmul.f32 %v5624, %v4990
        %s5629 = sld [smem:[#allocation3 + $0x2d]]
        %v5630 = vstv %s5629
        %v5631 = vmul.f32 %v5630, %v5591
        %v5632 = vmul.f32 %v5630, %v5592
        %v5633 = vmul.f32 %v5630, %v5593
        %v5634 = vmul.f32 %v5630, %v5594
        %v5635 = vmul.f32 %v5631, %v5005
        %v5636 = vmul.f32 %v5632, %v5006
        %v5637 = vmul.f32 %v5633, %v5007
        %v5638 = vmul.f32 %v5634, %v5008
        %s5639 = sld [smem:[#allocation3 + $0x2e]]
        %v5640 = vstv %s5639
        %v5641 = vmul.f32 %v5640, %v5577
        %v5642 = vmul.f32 %v5640, %v5578
        %v5643 = vmul.f32 %v5640, %v5579
        %v5644 = vmul.f32 %v5640, %v5580
        %v5645 = vmul.f32 %v5641, %v4955
        %v5646 = vmul.f32 %v5642, %v4956
        %v5647 = vmul.f32 %v5643, %v4957
        %v5648 = vmul.f32 %v5644, %v4958
        %v5649 = vadd.f32 %v5635, %v5645
        %v5650 = vadd.f32 %v5636, %v5646
        %v5651 = vadd.f32 %v5637, %v5647
        %v5652 = vadd.f32 %v5638, %v5648
        %s5653 = sld [smem:[#allocation3 + $0x2f]]
        %v5654 = vstv %s5653
        %v5655 = vmul.f32 %v5654, %v5577
        %v5656 = vmul.f32 %v5654, %v5578
        %v5657 = vmul.f32 %v5654, %v5579
        %v5658 = vmul.f32 %v5654, %v5580
        %v5659 = vmul.f32 %v5655, %v5023
        %v5660 = vmul.f32 %v5656, %v5024
        %v5661 = vmul.f32 %v5657, %v5025
        %v5662 = vmul.f32 %v5658, %v5026
        %v5663 = vadd.f32 %v5649, %v5659
        %v5664 = vadd.f32 %v5650, %v5660
        %v5665 = vadd.f32 %v5651, %v5661
        %v5666 = vadd.f32 %v5652, %v5662
        %s5667 = sld [smem:[#allocation3 + $0x30]]
        %v5668 = vstv %s5667
        %v5669 = vmul.f32 %v5668, %v5577
        %v5670 = vmul.f32 %v5668, %v5578
        %v5671 = vmul.f32 %v5668, %v5579
        %v5672 = vmul.f32 %v5668, %v5580
        %v5673 = vmul.f32 %v5669, %v4969
        %v5674 = vmul.f32 %v5670, %v4970
        %v5675 = vmul.f32 %v5671, %v4971
        %v5676 = vmul.f32 %v5672, %v4972
        %v5677 = vadd.f32 %v5625, %v5673
        %v5678 = vadd.f32 %v5626, %v5674
        %v5679 = vadd.f32 %v5627, %v5675
        %v5680 = vadd.f32 %v5628, %v5676
        %s5681 = sld [smem:[#allocation3 + $0x31]]
        %v5682 = vstv %s5681
        %v5683 = vmul.f32 %v5682, %v5577
        %v5684 = vmul.f32 %v5682, %v5578
        %v5685 = vmul.f32 %v5682, %v5579
        %v5686 = vmul.f32 %v5682, %v5580
        %v5687 = vmul.f32 %v5683, %v5005
        %v5688 = vmul.f32 %v5684, %v5006
        %v5689 = vmul.f32 %v5685, %v5007
        %v5690 = vmul.f32 %v5686, %v5008
        %v5691 = vadd.f32 %v5615, %v5687
        %v5692 = vadd.f32 %v5616, %v5688
        %v5693 = vadd.f32 %v5617, %v5689
        %v5694 = vadd.f32 %v5618, %v5690
        %s5695 = sld [smem:[#allocation3 + $0x32]]
        %v5696 = vstv %s5695
        %v5697 = vmul.f32 %v5696, %v5563
        %v5698 = vmul.f32 %v5696, %v5564
        %v5699 = vmul.f32 %v5696, %v5565
        %v5700 = vmul.f32 %v5696, %v5566
        %v5701 = vmul.f32 %v5697, %v4955
        %v5702 = vmul.f32 %v5698, %v4956
        %v5703 = vmul.f32 %v5699, %v4957
        %v5704 = vmul.f32 %v5700, %v4958
        %v5705 = vadd.f32 %v5677, %v5701
        %v5706 = vadd.f32 %v5678, %v5702
        %v5707 = vadd.f32 %v5679, %v5703
        %v5708 = vadd.f32 %v5680, %v5704
        %s5709 = sld [smem:[#allocation3 + $0x33]]
        %v5710 = vstv %s5709
        %v5711 = vmul.f32 %v5710, %v5563
        %v5712 = vmul.f32 %v5710, %v5564
        %v5713 = vmul.f32 %v5710, %v5565
        %v5714 = vmul.f32 %v5710, %v5566
        %v5715 = vmul.f32 %v5711, %v5023
        %v5716 = vmul.f32 %v5712, %v5024
        %v5717 = vmul.f32 %v5713, %v5025
        %v5718 = vmul.f32 %v5714, %v5026
        %v5719 = vadd.f32 %v5705, %v5715
        %v5720 = vadd.f32 %v5706, %v5716
        %v5721 = vadd.f32 %v5707, %v5717
        %v5722 = vadd.f32 %v5708, %v5718
        %s5723 = sld [smem:[#allocation3 + $0x34]]
        %v5724 = vstv %s5723
        %v5725 = vmul.f32 %v5724, %v5563
        %v5726 = vmul.f32 %v5724, %v5564
        %v5727 = vmul.f32 %v5724, %v5565
        %v5728 = vmul.f32 %v5724, %v5566
        %v5729 = vmul.f32 %v5725, %v4969
        %v5730 = vmul.f32 %v5726, %v4970
        %v5731 = vmul.f32 %v5727, %v4971
        %v5732 = vmul.f32 %v5728, %v4972
        %v5733 = vadd.f32 %v5663, %v5729
        %v5734 = vadd.f32 %v5664, %v5730
        %v5735 = vadd.f32 %v5665, %v5731
        %v5736 = vadd.f32 %v5666, %v5732
        %s5737 = sld [smem:[#allocation3 + $0x35]]
        %v5738 = vstv %s5737
        %v5739 = vmul.f32 %v5738, %v5563
        %v5740 = vmul.f32 %v5738, %v5564
        %v5741 = vmul.f32 %v5738, %v5565
        %v5742 = vmul.f32 %v5738, %v5566
        %v5743 = vmul.f32 %v5739, %v4987
        %v5744 = vmul.f32 %v5740, %v4988
        %v5745 = vmul.f32 %v5741, %v4989
        %v5746 = vmul.f32 %v5742, %v4990
        %v5747 = vadd.f32 %v5691, %v5743
        %v5748 = vadd.f32 %v5692, %v5744
        %v5749 = vadd.f32 %v5693, %v5745
        %v5750 = vadd.f32 %v5694, %v5746
        %s5751 = sld [smem:[#allocation3 + $0x42]]
        %v5752 = vstv %s5751
        %v5753 = vmul.f32 %v5752, %v5747
        %v5754 = vmul.f32 %v5752, %v5748
        %v5755 = vmul.f32 %v5752, %v5749
        %v5756 = vmul.f32 %v5752, %v5750
        %v5757 = vmul.f32 %v5753, %v4955
        %v5758 = vmul.f32 %v5754, %v4956
        %v5759 = vmul.f32 %v5755, %v4957
        %v5760 = vmul.f32 %v5756, %v4958
        %s5761 = sld [smem:[#allocation3 + $0x43]]
        %v5762 = vstv %s5761
        %v5763 = vmul.f32 %v5762, %v5747
        %v5764 = vmul.f32 %v5762, %v5748
        %v5765 = vmul.f32 %v5762, %v5749
        %v5766 = vmul.f32 %v5762, %v5750
        %v5767 = vmul.f32 %v5763, %v5023
        %v5768 = vmul.f32 %v5764, %v5024
        %v5769 = vmul.f32 %v5765, %v5025
        %v5770 = vmul.f32 %v5766, %v5026
        %v5771 = vadd.f32 %v5757, %v5767
        %v5772 = vadd.f32 %v5758, %v5768
        %v5773 = vadd.f32 %v5759, %v5769
        %v5774 = vadd.f32 %v5760, %v5770
        %s5775 = sld [smem:[#allocation3 + $0x44]]
        %v5776 = vstv %s5775
        %v5777 = vmul.f32 %v5776, %v5747
        %v5778 = vmul.f32 %v5776, %v5748
        %v5779 = vmul.f32 %v5776, %v5749
        %v5780 = vmul.f32 %v5776, %v5750
        %v5781 = vmul.f32 %v5777, %v4987
        %v5782 = vmul.f32 %v5778, %v4988
        %v5783 = vmul.f32 %v5779, %v4989
        %v5784 = vmul.f32 %v5780, %v4990
        %s5785 = sld [smem:[#allocation3 + $0x45]]
        %v5786 = vstv %s5785
        %v5787 = vmul.f32 %v5786, %v5747
        %v5788 = vmul.f32 %v5786, %v5748
        %v5789 = vmul.f32 %v5786, %v5749
        %v5790 = vmul.f32 %v5786, %v5750
        %v5791 = vmul.f32 %v5787, %v5005
        %v5792 = vmul.f32 %v5788, %v5006
        %v5793 = vmul.f32 %v5789, %v5007
        %v5794 = vmul.f32 %v5790, %v5008
        %s5795 = sld [smem:[#allocation3 + $0x46]]
        %v5796 = vstv %s5795
        %v5797 = vmul.f32 %v5796, %v5733
        %v5798 = vmul.f32 %v5796, %v5734
        %v5799 = vmul.f32 %v5796, %v5735
        %v5800 = vmul.f32 %v5796, %v5736
        %v5801 = vmul.f32 %v5797, %v4955
        %v5802 = vmul.f32 %v5798, %v4956
        %v5803 = vmul.f32 %v5799, %v4957
        %v5804 = vmul.f32 %v5800, %v4958
        %v5805 = vadd.f32 %v5791, %v5801
        %v5806 = vadd.f32 %v5792, %v5802
        %v5807 = vadd.f32 %v5793, %v5803
        %v5808 = vadd.f32 %v5794, %v5804
        %s5809 = sld [smem:[#allocation3 + $0x47]]
        %v5810 = vstv %s5809
        %v5811 = vmul.f32 %v5810, %v5733
        %v5812 = vmul.f32 %v5810, %v5734
        %v5813 = vmul.f32 %v5810, %v5735
        %v5814 = vmul.f32 %v5810, %v5736
        %v5815 = vmul.f32 %v5811, %v5023
        %v5816 = vmul.f32 %v5812, %v5024
        %v5817 = vmul.f32 %v5813, %v5025
        %v5818 = vmul.f32 %v5814, %v5026
        %v5819 = vadd.f32 %v5805, %v5815
        %v5820 = vadd.f32 %v5806, %v5816
        %v5821 = vadd.f32 %v5807, %v5817
        %v5822 = vadd.f32 %v5808, %v5818
        %s5823 = sld [smem:[#allocation3 + $0x48]]
        %v5824 = vstv %s5823
        %v5825 = vmul.f32 %v5824, %v5733
        %v5826 = vmul.f32 %v5824, %v5734
        %v5827 = vmul.f32 %v5824, %v5735
        %v5828 = vmul.f32 %v5824, %v5736
        %v5829 = vmul.f32 %v5825, %v4969
        %v5830 = vmul.f32 %v5826, %v4970
        %v5831 = vmul.f32 %v5827, %v4971
        %v5832 = vmul.f32 %v5828, %v4972
        %v5833 = vadd.f32 %v5781, %v5829
        %v5834 = vadd.f32 %v5782, %v5830
        %v5835 = vadd.f32 %v5783, %v5831
        %v5836 = vadd.f32 %v5784, %v5832
        %s5837 = sld [smem:[#allocation3 + $0x49]]
        %v5838 = vstv %s5837
        %v5839 = vmul.f32 %v5838, %v5733
        %v5840 = vmul.f32 %v5838, %v5734
        %v5841 = vmul.f32 %v5838, %v5735
        %v5842 = vmul.f32 %v5838, %v5736
        %v5843 = vmul.f32 %v5839, %v5005
        %v5844 = vmul.f32 %v5840, %v5006
        %v5845 = vmul.f32 %v5841, %v5007
        %v5846 = vmul.f32 %v5842, %v5008
        %v5847 = vadd.f32 %v5771, %v5843
        %v5848 = vadd.f32 %v5772, %v5844
        %v5849 = vadd.f32 %v5773, %v5845
        %v5850 = vadd.f32 %v5774, %v5846
        %s5851 = sld [smem:[#allocation3 + $0x4a]]
        %v5852 = vstv %s5851
        %v5853 = vmul.f32 %v5852, %v5719
        %v5854 = vmul.f32 %v5852, %v5720
        %v5855 = vmul.f32 %v5852, %v5721
        %v5856 = vmul.f32 %v5852, %v5722
        %v5857 = vmul.f32 %v5853, %v4955
        %v5858 = vmul.f32 %v5854, %v4956
        %v5859 = vmul.f32 %v5855, %v4957
        %v5860 = vmul.f32 %v5856, %v4958
        %v5861 = vadd.f32 %v5833, %v5857
        %v5862 = vadd.f32 %v5834, %v5858
        %v5863 = vadd.f32 %v5835, %v5859
        %v5864 = vadd.f32 %v5836, %v5860
        %s5865 = sld [smem:[#allocation3 + $0x4b]]
        %v5866 = vstv %s5865
        %v5867 = vmul.f32 %v5866, %v5719
        %v5868 = vmul.f32 %v5866, %v5720
        %v5869 = vmul.f32 %v5866, %v5721
        %v5870 = vmul.f32 %v5866, %v5722
        %v5871 = vmul.f32 %v5867, %v5023
        %v5872 = vmul.f32 %v5868, %v5024
        %v5873 = vmul.f32 %v5869, %v5025
        %v5874 = vmul.f32 %v5870, %v5026
        %v5875 = vadd.f32 %v5861, %v5871
        %v5876 = vadd.f32 %v5862, %v5872
        %v5877 = vadd.f32 %v5863, %v5873
        %v5878 = vadd.f32 %v5864, %v5874
        %s5879 = sld [smem:[#allocation3 + $0x4c]]
        %v5880 = vstv %s5879
        %v5881 = vmul.f32 %v5880, %v5719
        %v5882 = vmul.f32 %v5880, %v5720
        %v5883 = vmul.f32 %v5880, %v5721
        %v5884 = vmul.f32 %v5880, %v5722
        %v5885 = vmul.f32 %v5881, %v4969
        %v5886 = vmul.f32 %v5882, %v4970
        %v5887 = vmul.f32 %v5883, %v4971
        %v5888 = vmul.f32 %v5884, %v4972
        %v5889 = vadd.f32 %v5819, %v5885
        %v5890 = vadd.f32 %v5820, %v5886
        %v5891 = vadd.f32 %v5821, %v5887
        %v5892 = vadd.f32 %v5822, %v5888
        %s5893 = sld [smem:[#allocation3 + $0x4d]]
        %v5894 = vstv %s5893
        %v5895 = vmul.f32 %v5894, %v5719
        %v5896 = vmul.f32 %v5894, %v5720
        %v5897 = vmul.f32 %v5894, %v5721
        %v5898 = vmul.f32 %v5894, %v5722
        %v5899 = vmul.f32 %v5895, %v4987
        %v5900 = vmul.f32 %v5896, %v4988
        %v5901 = vmul.f32 %v5897, %v4989
        %v5902 = vmul.f32 %v5898, %v4990
        %v5903 = vadd.f32 %v5847, %v5899
        %v5904 = vadd.f32 %v5848, %v5900
        %v5905 = vadd.f32 %v5849, %v5901
        %v5906 = vadd.f32 %v5850, %v5902
        %s5907 = sld [smem:[#allocation3 + $0x5a]]
        %v5908 = vstv %s5907
        %v5909 = vmul.f32 %v5908, %v5903
        %v5910 = vmul.f32 %v5908, %v5904
        %v5911 = vmul.f32 %v5908, %v5905
        %v5912 = vmul.f32 %v5908, %v5906
        %v5913 = vmul.f32 %v5909, %v4955
        %v5914 = vmul.f32 %v5910, %v4956
        %v5915 = vmul.f32 %v5911, %v4957
        %v5916 = vmul.f32 %v5912, %v4958
        %s5917 = sld [smem:[#allocation3 + $0x5b]]
        %v5918 = vstv %s5917
        %v5919 = vmul.f32 %v5918, %v5903
        %v5920 = vmul.f32 %v5918, %v5904
        %v5921 = vmul.f32 %v5918, %v5905
        %v5922 = vmul.f32 %v5918, %v5906
        %v5923 = vmul.f32 %v5919, %v5023
        %v5924 = vmul.f32 %v5920, %v5024
        %v5925 = vmul.f32 %v5921, %v5025
        %v5926 = vmul.f32 %v5922, %v5026
        %v5927 = vadd.f32 %v5913, %v5923
        %v5928 = vadd.f32 %v5914, %v5924
        %v5929 = vadd.f32 %v5915, %v5925
        %v5930 = vadd.f32 %v5916, %v5926
        %s5931 = sld [smem:[#allocation3 + $0x5c]]
        %v5932 = vstv %s5931
        %v5933 = vmul.f32 %v5932, %v5903
        %v5934 = vmul.f32 %v5932, %v5904
        %v5935 = vmul.f32 %v5932, %v5905
        %v5936 = vmul.f32 %v5932, %v5906
        %v5937 = vmul.f32 %v5933, %v4987
        %v5938 = vmul.f32 %v5934, %v4988
        %v5939 = vmul.f32 %v5935, %v4989
        %v5940 = vmul.f32 %v5936, %v4990
        %s5941 = sld [smem:[#allocation3 + $0x5d]]
        %v5942 = vstv %s5941
        %v5943 = vmul.f32 %v5942, %v5903
        %v5944 = vmul.f32 %v5942, %v5904
        %v5945 = vmul.f32 %v5942, %v5905
        %v5946 = vmul.f32 %v5942, %v5906
        %v5947 = vmul.f32 %v5943, %v5005
        %v5948 = vmul.f32 %v5944, %v5006
        %v5949 = vmul.f32 %v5945, %v5007
        %v5950 = vmul.f32 %v5946, %v5008
        %s5951 = sld [smem:[#allocation3 + $0x5e]]
        %v5952 = vstv %s5951
        %v5953 = vmul.f32 %v5952, %v5889
        %v5954 = vmul.f32 %v5952, %v5890
        %v5955 = vmul.f32 %v5952, %v5891
        %v5956 = vmul.f32 %v5952, %v5892
        %v5957 = vmul.f32 %v5953, %v4955
        %v5958 = vmul.f32 %v5954, %v4956
        %v5959 = vmul.f32 %v5955, %v4957
        %v5960 = vmul.f32 %v5956, %v4958
        %v5961 = vadd.f32 %v5947, %v5957
        %v5962 = vadd.f32 %v5948, %v5958
        %v5963 = vadd.f32 %v5949, %v5959
        %v5964 = vadd.f32 %v5950, %v5960
        %s5965 = sld [smem:[#allocation3 + $0x5f]]
        %v5966 = vstv %s5965
        %v5967 = vmul.f32 %v5966, %v5889
        %v5968 = vmul.f32 %v5966, %v5890
        %v5969 = vmul.f32 %v5966, %v5891
        %v5970 = vmul.f32 %v5966, %v5892
        %v5971 = vmul.f32 %v5967, %v5023
        %v5972 = vmul.f32 %v5968, %v5024
        %v5973 = vmul.f32 %v5969, %v5025
        %v5974 = vmul.f32 %v5970, %v5026
        %v5975 = vadd.f32 %v5961, %v5971
        %v5976 = vadd.f32 %v5962, %v5972
        %v5977 = vadd.f32 %v5963, %v5973
        %v5978 = vadd.f32 %v5964, %v5974
        %s5979 = sld [smem:[#allocation3 + $0x60]]
        %v5980 = vstv %s5979
        %v5981 = vmul.f32 %v5980, %v5889
        %v5982 = vmul.f32 %v5980, %v5890
        %v5983 = vmul.f32 %v5980, %v5891
        %v5984 = vmul.f32 %v5980, %v5892
        %v5985 = vmul.f32 %v5981, %v4969
        %v5986 = vmul.f32 %v5982, %v4970
        %v5987 = vmul.f32 %v5983, %v4971
        %v5988 = vmul.f32 %v5984, %v4972
        %v5989 = vadd.f32 %v5937, %v5985
        %v5990 = vadd.f32 %v5938, %v5986
        %v5991 = vadd.f32 %v5939, %v5987
        %v5992 = vadd.f32 %v5940, %v5988
        %s5993 = sld [smem:[#allocation3 + $0x61]]
        %v5994 = vstv %s5993
        %v5995 = vmul.f32 %v5994, %v5889
        %v5996 = vmul.f32 %v5994, %v5890
        %v5997 = vmul.f32 %v5994, %v5891
        %v5998 = vmul.f32 %v5994, %v5892
        %v5999 = vmul.f32 %v5995, %v5005
        %v6000 = vmul.f32 %v5996, %v5006
        %v6001 = vmul.f32 %v5997, %v5007
        %v6002 = vmul.f32 %v5998, %v5008
        %v6003 = vadd.f32 %v5927, %v5999
        %v6004 = vadd.f32 %v5928, %v6000
        %v6005 = vadd.f32 %v5929, %v6001
        %v6006 = vadd.f32 %v5930, %v6002
        %s6007 = sld [smem:[#allocation3 + $0x62]]
        %v6008 = vstv %s6007
        %v6009 = vmul.f32 %v6008, %v5875
        %v6010 = vmul.f32 %v6008, %v5876
        %v6011 = vmul.f32 %v6008, %v5877
        %v6012 = vmul.f32 %v6008, %v5878
        %v6013 = vmul.f32 %v6009, %v4955
        %v6014 = vmul.f32 %v6010, %v4956
        %v6015 = vmul.f32 %v6011, %v4957
        %v6016 = vmul.f32 %v6012, %v4958
        %v6017 = vadd.f32 %v5989, %v6013
        %v6018 = vadd.f32 %v5990, %v6014
        %v6019 = vadd.f32 %v5991, %v6015
        %v6020 = vadd.f32 %v5992, %v6016
        %s6021 = sld [smem:[#allocation3 + $0x63]]
        %v6022 = vstv %s6021
        %v6023 = vmul.f32 %v6022, %v5875
        %v6024 = vmul.f32 %v6022, %v5876
        %v6025 = vmul.f32 %v6022, %v5877
        %v6026 = vmul.f32 %v6022, %v5878
        %v6027 = vmul.f32 %v6023, %v5023
        %v6028 = vmul.f32 %v6024, %v5024
        %v6029 = vmul.f32 %v6025, %v5025
        %v6030 = vmul.f32 %v6026, %v5026
        %v6031 = vadd.f32 %v6017, %v6027
        %v6032 = vadd.f32 %v6018, %v6028
        %v6033 = vadd.f32 %v6019, %v6029
        %v6034 = vadd.f32 %v6020, %v6030
        %s6035 = sld [smem:[#allocation3 + $0x64]]
        %v6036 = vstv %s6035
        %v6037 = vmul.f32 %v6036, %v5875
        %v6038 = vmul.f32 %v6036, %v5876
        %v6039 = vmul.f32 %v6036, %v5877
        %v6040 = vmul.f32 %v6036, %v5878
        %v6041 = vmul.f32 %v6037, %v4969
        %v6042 = vmul.f32 %v6038, %v4970
        %v6043 = vmul.f32 %v6039, %v4971
        %v6044 = vmul.f32 %v6040, %v4972
        %v6045 = vadd.f32 %v5975, %v6041
        %v6046 = vadd.f32 %v5976, %v6042
        %v6047 = vadd.f32 %v5977, %v6043
        %v6048 = vadd.f32 %v5978, %v6044
        %s6049 = sld [smem:[#allocation3 + $0x65]]
        %v6050 = vstv %s6049
        %v6051 = vmul.f32 %v6050, %v5875
        %v6052 = vmul.f32 %v6050, %v5876
        %v6053 = vmul.f32 %v6050, %v5877
        %v6054 = vmul.f32 %v6050, %v5878
        %v6055 = vmul.f32 %v6051, %v4987
        %v6056 = vmul.f32 %v6052, %v4988
        %v6057 = vmul.f32 %v6053, %v4989
        %v6058 = vmul.f32 %v6054, %v4990
        %v6059 = vadd.f32 %v6003, %v6055
        %v6060 = vadd.f32 %v6004, %v6056
        %v6061 = vadd.f32 %v6005, %v6057
        %v6062 = vadd.f32 %v6006, %v6058
        %s6063 = sld [smem:[#allocation3 + $0x72]]
        %v6064 = vstv %s6063
        %v6065 = vmul.f32 %v6064, %v6059
        %v6066 = vmul.f32 %v6064, %v6060
        %v6067 = vmul.f32 %v6064, %v6061
        %v6068 = vmul.f32 %v6064, %v6062
        %v6069 = vmul.f32 %v6065, %v4955
        %v6070 = vmul.f32 %v6066, %v4956
        %v6071 = vmul.f32 %v6067, %v4957
        %v6072 = vmul.f32 %v6068, %v4958
        %s6073 = sld [smem:[#allocation3 + $0x73]]
        %v6074 = vstv %s6073
        %v6075 = vmul.f32 %v6074, %v6059
        %v6076 = vmul.f32 %v6074, %v6060
        %v6077 = vmul.f32 %v6074, %v6061
        %v6078 = vmul.f32 %v6074, %v6062
        %v6079 = vmul.f32 %v6075, %v5023
        %v6080 = vmul.f32 %v6076, %v5024
        %v6081 = vmul.f32 %v6077, %v5025
        %v6082 = vmul.f32 %v6078, %v5026
        %v6083 = vadd.f32 %v6069, %v6079
        %v6084 = vadd.f32 %v6070, %v6080
        %v6085 = vadd.f32 %v6071, %v6081
        %v6086 = vadd.f32 %v6072, %v6082
        %s6087 = sld [smem:[#allocation3 + $0x74]]
        %v6088 = vstv %s6087
        %v6089 = vmul.f32 %v6088, %v6059
        %v6090 = vmul.f32 %v6088, %v6060
        %v6091 = vmul.f32 %v6088, %v6061
        %v6092 = vmul.f32 %v6088, %v6062
        %v6093 = vmul.f32 %v6089, %v4987
        %v6094 = vmul.f32 %v6090, %v4988
        %v6095 = vmul.f32 %v6091, %v4989
        %v6096 = vmul.f32 %v6092, %v4990
        %s6097 = sld [smem:[#allocation3 + $0x75]]
        %v6098 = vstv %s6097
        %v6099 = vmul.f32 %v6098, %v6059
        %v6100 = vmul.f32 %v6098, %v6060
        %v6101 = vmul.f32 %v6098, %v6061
        %v6102 = vmul.f32 %v6098, %v6062
        %v6103 = vmul.f32 %v6099, %v5005
        %v6104 = vmul.f32 %v6100, %v5006
        %v6105 = vmul.f32 %v6101, %v5007
        %v6106 = vmul.f32 %v6102, %v5008
        %s6107 = sld [smem:[#allocation3 + $0x76]]
        %v6108 = vstv %s6107
        %v6109 = vmul.f32 %v6108, %v6045
        %v6110 = vmul.f32 %v6108, %v6046
        %v6111 = vmul.f32 %v6108, %v6047
        %v6112 = vmul.f32 %v6108, %v6048
        %v6113 = vmul.f32 %v6109, %v4955
        %v6114 = vmul.f32 %v6110, %v4956
        %v6115 = vmul.f32 %v6111, %v4957
        %v6116 = vmul.f32 %v6112, %v4958
        %v6117 = vadd.f32 %v6103, %v6113
        %v6118 = vadd.f32 %v6104, %v6114
        %v6119 = vadd.f32 %v6105, %v6115
        %v6120 = vadd.f32 %v6106, %v6116
        %s6121 = sld [smem:[#allocation3 + $0x77]]
        %v6122 = vstv %s6121
        %v6123 = vmul.f32 %v6122, %v6045
        %v6124 = vmul.f32 %v6122, %v6046
        %v6125 = vmul.f32 %v6122, %v6047
        %v6126 = vmul.f32 %v6122, %v6048
        %v6127 = vmul.f32 %v6123, %v5023
        %v6128 = vmul.f32 %v6124, %v5024
        %v6129 = vmul.f32 %v6125, %v5025
        %v6130 = vmul.f32 %v6126, %v5026
        %v6131 = vadd.f32 %v6117, %v6127
        %v6132 = vadd.f32 %v6118, %v6128
        %v6133 = vadd.f32 %v6119, %v6129
        %v6134 = vadd.f32 %v6120, %v6130
        %s6135 = sld [smem:[#allocation3 + $0x78]]
        %v6136 = vstv %s6135
        %v6137 = vmul.f32 %v6136, %v6045
        %v6138 = vmul.f32 %v6136, %v6046
        %v6139 = vmul.f32 %v6136, %v6047
        %v6140 = vmul.f32 %v6136, %v6048
        %v6141 = vmul.f32 %v6137, %v4969
        %v6142 = vmul.f32 %v6138, %v4970
        %v6143 = vmul.f32 %v6139, %v4971
        %v6144 = vmul.f32 %v6140, %v4972
        %v6145 = vadd.f32 %v6093, %v6141
        %v6146 = vadd.f32 %v6094, %v6142
        %v6147 = vadd.f32 %v6095, %v6143
        %v6148 = vadd.f32 %v6096, %v6144
        %s6149 = sld [smem:[#allocation3 + $0x79]]
        %v6150 = vstv %s6149
        %v6151 = vmul.f32 %v6150, %v6045
        %v6152 = vmul.f32 %v6150, %v6046
        %v6153 = vmul.f32 %v6150, %v6047
        %v6154 = vmul.f32 %v6150, %v6048
        %v6155 = vmul.f32 %v6151, %v5005
        %v6156 = vmul.f32 %v6152, %v5006
        %v6157 = vmul.f32 %v6153, %v5007
        %v6158 = vmul.f32 %v6154, %v5008
        %v6159 = vadd.f32 %v6083, %v6155
        %v6160 = vadd.f32 %v6084, %v6156
        %v6161 = vadd.f32 %v6085, %v6157
        %v6162 = vadd.f32 %v6086, %v6158
        %s6163 = sld [smem:[#allocation3 + $0x7a]]
        %v6164 = vstv %s6163
        %v6165 = vmul.f32 %v6164, %v6031
        %v6166 = vmul.f32 %v6164, %v6032
        %v6167 = vmul.f32 %v6164, %v6033
        %v6168 = vmul.f32 %v6164, %v6034
        %v6169 = vmul.f32 %v6165, %v4955
        %v6170 = vmul.f32 %v6166, %v4956
        %v6171 = vmul.f32 %v6167, %v4957
        %v6172 = vmul.f32 %v6168, %v4958
        %v6173 = vadd.f32 %v6145, %v6169
        %v6174 = vadd.f32 %v6146, %v6170
        %v6175 = vadd.f32 %v6147, %v6171
        %v6176 = vadd.f32 %v6148, %v6172
        %s6177 = sld [smem:[#allocation3 + $0x7b]]
        %v6178 = vstv %s6177
        %v6179 = vmul.f32 %v6178, %v6031
        %v6180 = vmul.f32 %v6178, %v6032
        %v6181 = vmul.f32 %v6178, %v6033
        %v6182 = vmul.f32 %v6178, %v6034
        %v6183 = vmul.f32 %v6179, %v5023
        %v6184 = vmul.f32 %v6180, %v5024
        %v6185 = vmul.f32 %v6181, %v5025
        %v6186 = vmul.f32 %v6182, %v5026
        %v6187 = vadd.f32 %v6173, %v6183
        %v6188 = vadd.f32 %v6174, %v6184
        %v6189 = vadd.f32 %v6175, %v6185
        %v6190 = vadd.f32 %v6176, %v6186
        %s6191 = sld [smem:[#allocation3 + $0x7c]]
        %v6192 = vstv %s6191
        %v6193 = vmul.f32 %v6192, %v6031
        %v6194 = vmul.f32 %v6192, %v6032
        %v6195 = vmul.f32 %v6192, %v6033
        %v6196 = vmul.f32 %v6192, %v6034
        %v6197 = vmul.f32 %v6193, %v4969
        %v6198 = vmul.f32 %v6194, %v4970
        %v6199 = vmul.f32 %v6195, %v4971
        %v6200 = vmul.f32 %v6196, %v4972
        %v6201 = vadd.f32 %v6131, %v6197
        %v6202 = vadd.f32 %v6132, %v6198
        %v6203 = vadd.f32 %v6133, %v6199
        %v6204 = vadd.f32 %v6134, %v6200
        %s6205 = sld [smem:[#allocation3 + $0x7d]]
        %v6206 = vstv %s6205
        %v6207 = vmul.f32 %v6206, %v6031
        %v6208 = vmul.f32 %v6206, %v6032
        %v6209 = vmul.f32 %v6206, %v6033
        %v6210 = vmul.f32 %v6206, %v6034
        %v6211 = vmul.f32 %v6207, %v4987
        %v6212 = vmul.f32 %v6208, %v4988
        %v6213 = vmul.f32 %v6209, %v4989
        %v6214 = vmul.f32 %v6210, %v4990
        %v6215 = vadd.f32 %v6159, %v6211
        %v6216 = vadd.f32 %v6160, %v6212
        %v6217 = vadd.f32 %v6161, %v6213
        %v6218 = vadd.f32 %v6162, %v6214
        %v6223 = vrot.slane %v6201, 7
        %v6224 = vrot.slane %v6202, 7
        %v6225 = vrot.slane %v6203, 7
        %v6226 = vrot.slane %v6204, 7
        %v6235 = vrot.slane %v6187, 6
        %v6236 = vrot.slane %v6188, 6
        %v6237 = vrot.slane %v6189, 6
        %v6238 = vrot.slane %v6190, 6
        %v6243 = vsel %vm869, %v6215, %v6223
        %v6244 = vsel %vm869, %v6216, %v6224
        %v6245 = vsel %vm869, %v6217, %v6225
        %v6246 = vsel %vm869, %v6218, %v6226
        %v6247 = vsel %vm870, %v6243, %v6235
        %v6248 = vsel %vm870, %v6244, %v6236
        %v6249 = vsel %vm870, %v6245, %v6237
        %v6250 = vsel %vm870, %v6246, %v6238
        %v6251 = vld [vmem:[#allocation2] sm:$0xf]
        %v6252 = vld [vmem:[%s489] sm:$0xff]
        %v6253 = vld [vmem:[%s489 + $0x8] sm:$0xff]
        %v6256 = vcombine.high %v6252, %v6252
        %v6257 = vcombine.high %v6253, %v6253
        %6260 = vmatprep.subr.mxu0 0.0
        %6261 = vmatpush1.xpose.msra.mxu0 0.0
        %6262 = vmatprep.subr.mxu0 0.0
        %6263 = vmatpush1.xpose.msra.mxu0 0.0
        %6264 = vmatprep.subr.mxu0 0.0
        %6265 = vmatpush1.xpose.msra.mxu0 0.0
        %6266 = vmatprep.subr.mxu0 0.0
        %6267 = vmatpush1.xpose.msra.mxu0 0.0
        %6268 = vmatprep.subr.mxu0 0.0
        %6269 = vmatpush1.xpose.msra.mxu0 0.0
        %6270 = vmatprep.subr.mxu0 0.0
        %6271 = vmatpush1.xpose.msra.mxu0 0.0
        %6272 = vmatprep.subr.mxu0 0.0
        %6273 = vmatpush1.xpose.msra.mxu0 0.0
        %6274 = vmatprep.subr.mxu0 0.0
        %6275 = vmatpush1.xpose.msra.mxu0 0.0
        %6276 = vmatprep.subr.mxu0 0.0
        %6277 = vmatpush1.xpose.msra.mxu0 0.0
        %6278 = vmatprep.subr.mxu0 0.0
        %6279 = vmatpush1.xpose.msra.mxu0 0.0
        %6280 = vmatprep.subr.mxu0 0.0
        %6281 = vmatpush1.xpose.msra.mxu0 0.0
        %6282 = vmatprep.subr.mxu0 0.0
        %6283 = vmatpush1.xpose.msra.mxu0 0.0
        %6284 = vmatprep.subr.mxu0 0.0
        %6285 = vmatpush1.xpose.msra.mxu0 0.0
        %6286 = vmatprep.subr.mxu0 0.0
        %6287 = vmatpush1.xpose.msra.mxu0 0.0
        %6288 = vmatprep.subr.mxu0 0.0
        %6289 = vmatpush1.xpose.msra.mxu0 0.0
        %6290 = vmatprep.subr.mxu0 %v6248
        %6291 = vmatpush1.xpose.msra.mxu0 %v6247
        %6292 = vmatprep.subr.mxu0 0.0
        %6293 = vmatpush2.xpose.msra.mxu0 0.0
        %6294 = vmatprep.subr.mxu0 0.0
        %6295 = vmatpush2.xpose.msra.mxu0 0.0
        %6296 = vmatprep.subr.mxu0 0.0
        %6297 = vmatpush2.xpose.msra.mxu0 0.0
        %6298 = vmatprep.subr.mxu0 0.0
        %6299 = vmatpush2.xpose.msra.mxu0 0.0
        %6300 = vmatprep.subr.mxu0 0.0
        %6301 = vmatpush2.xpose.msra.mxu0 0.0
        %6302 = vmatprep.subr.mxu0 0.0
        %6303 = vmatpush2.xpose.msra.mxu0 0.0
        %6304 = vmatprep.subr.mxu0 0.0
        %6305 = vmatpush2.xpose.msra.mxu0 0.0
        %6306 = vmatprep.subr.mxu0 0.0
        %6307 = vmatpush2.xpose.msra.mxu0 0.0
        %6308 = vmatprep.subr.mxu0 0.0
        %6309 = vmatpush2.xpose.msra.mxu0 0.0
        %6310 = vmatprep.subr.mxu0 0.0
        %6311 = vmatpush2.xpose.msra.mxu0 0.0
        %6312 = vmatprep.subr.mxu0 0.0
        %6313 = vmatpush2.xpose.msra.mxu0 0.0
        %6314 = vmatprep.subr.mxu0 0.0
        %6315 = vmatpush2.xpose.msra.mxu0 0.0
        %6316 = vmatprep.subr.mxu0 0.0
        %6317 = vmatpush2.xpose.msra.mxu0 0.0
        %6318 = vmatprep.subr.mxu0 0.0
        %6319 = vmatpush2.xpose.msra.mxu0 0.0
        %6320 = vmatprep.subr.mxu0 0.0
        %6321 = vmatpush2.xpose.msra.mxu0 0.0
        %6322 = vmatprep.subr.mxu0 0.0
        %6323 = vmatpush2.xpose.msra.mxu0 0.0
        %6324 = vmatprep.mubr.f32.mxu0 %v6256
        %6325 = vmatmul.mubr.f32.gmra.mxu0 %v6252
        %v6326 = vpop.f32.mrf.mxu0
        %v6327 = vadd.f32 0.0, %v6326
        %v6328 = vpop.f32.mrf.mxu0
        %6329 = vdwg.mxu0
        %6330 = vmatprep.subr.mxu0 0.0
        %6331 = vmatpush1.xpose.msra.mxu0 0.0
        %6332 = vmatprep.subr.mxu0 0.0
        %6333 = vmatpush1.xpose.msra.mxu0 0.0
        %6334 = vmatprep.subr.mxu0 0.0
        %6335 = vmatpush1.xpose.msra.mxu0 0.0
        %6336 = vmatprep.subr.mxu0 0.0
        %6337 = vmatpush1.xpose.msra.mxu0 0.0
        %6338 = vmatprep.subr.mxu0 0.0
        %6339 = vmatpush1.xpose.msra.mxu0 0.0
        %6340 = vmatprep.subr.mxu0 0.0
        %6341 = vmatpush1.xpose.msra.mxu0 0.0
        %6342 = vmatprep.subr.mxu0 0.0
        %6343 = vmatpush1.xpose.msra.mxu0 0.0
        %6344 = vmatprep.subr.mxu0 0.0
        %6345 = vmatpush1.xpose.msra.mxu0 0.0
        %6346 = vmatprep.subr.mxu0 0.0
        %6347 = vmatpush1.xpose.msra.mxu0 0.0
        %6348 = vmatprep.subr.mxu0 0.0
        %6349 = vmatpush1.xpose.msra.mxu0 0.0
        %6350 = vmatprep.subr.mxu0 0.0
        %6351 = vmatpush1.xpose.msra.mxu0 0.0
        %6352 = vmatprep.subr.mxu0 0.0
        %6353 = vmatpush1.xpose.msra.mxu0 0.0
        %6354 = vmatprep.subr.mxu0 0.0
        %6355 = vmatpush1.xpose.msra.mxu0 0.0
        %6356 = vmatprep.subr.mxu0 0.0
        %6357 = vmatpush1.xpose.msra.mxu0 0.0
        %6358 = vmatprep.subr.mxu0 0.0
        %6359 = vmatpush1.xpose.msra.mxu0 0.0
        %6360 = vmatprep.subr.mxu0 %v6250
        %6361 = vmatpush1.xpose.msra.mxu0 %v6249
        %6362 = vmatprep.subr.mxu0 0.0
        %6363 = vmatpush2.xpose.msra.mxu0 0.0
        %6364 = vmatprep.subr.mxu0 0.0
        %6365 = vmatpush2.xpose.msra.mxu0 0.0
        %6366 = vmatprep.subr.mxu0 0.0
        %6367 = vmatpush2.xpose.msra.mxu0 0.0
        %6368 = vmatprep.subr.mxu0 0.0
        %6369 = vmatpush2.xpose.msra.mxu0 0.0
        %6370 = vmatprep.subr.mxu0 0.0
        %6371 = vmatpush2.xpose.msra.mxu0 0.0
        %6372 = vmatprep.subr.mxu0 0.0
        %6373 = vmatpush2.xpose.msra.mxu0 0.0
        %6374 = vmatprep.subr.mxu0 0.0
        %6375 = vmatpush2.xpose.msra.mxu0 0.0
        %6376 = vmatprep.subr.mxu0 0.0
        %6377 = vmatpush2.xpose.msra.mxu0 0.0
        %6378 = vmatprep.subr.mxu0 0.0
        %6379 = vmatpush2.xpose.msra.mxu0 0.0
        %6380 = vmatprep.subr.mxu0 0.0
        %6381 = vmatpush2.xpose.msra.mxu0 0.0
        %6382 = vmatprep.subr.mxu0 0.0
        %6383 = vmatpush2.xpose.msra.mxu0 0.0
        %6384 = vmatprep.subr.mxu0 0.0
        %6385 = vmatpush2.xpose.msra.mxu0 0.0
        %6386 = vmatprep.subr.mxu0 0.0
        %6387 = vmatpush2.xpose.msra.mxu0 0.0
        %6388 = vmatprep.subr.mxu0 0.0
        %6389 = vmatpush2.xpose.msra.mxu0 0.0
        %6390 = vmatprep.subr.mxu0 0.0
        %6391 = vmatpush2.xpose.msra.mxu0 0.0
        %6392 = vmatprep.subr.mxu0 0.0
        %6393 = vmatpush2.xpose.msra.mxu0 0.0
        %6394 = vmatprep.mubr.f32.mxu0 %v6257
        %6395 = vmatmul.mubr.f32.gmra.mxu0 %v6253
        %v6396 = vpop.f32.mrf.mxu0
        %v6397 = vadd.f32 %v6327, %v6396
        %v6398 = vpop.f32.mrf.mxu0
        %6399 = vdwg.mxu0
        %v6400 = vadd.f32 %v6251, %v6397
        %vm6401 = vcmask 19456
        %6402 = vst.msk [vmem:[#allocation2] sm:$0xf] %vm6401, %v6400
        %p6403 = scmp.eq.s32.totalorder %s28, 1
        // Predicated region
        $region73: #{tpu_custom_call.1} parent=63 // pred_check
          %p6404 = pneg %p6403
        $region74: #{tpu_custom_call.1} parent=63 // pred_check_branch
          %6406 = sbr.rel (%p6404) target = $region76
        $region75: #{tpu_custom_call.1} parent=63 // pred_region
          %v6407 = vld [vmem:[#allocation2] sm:$0xf]
          %6408 = vst.msk [vmem:[%s496] sm:$0xf] %vm6401, %v6407
        $region76: #{tpu_custom_call.1} parent=63 // pred_fallthru
          _
        %p6409 = scmp.lt.s32.totalorder %s27, 0
        %s6410 = scalar_select %p6409, %s27, 0
        %s6411 = smul.addr %s6410, 4
        %s6412 = scalar_lea.vmem %s11, %s6411
        // Predicated region
        $region77: #{tpu_custom_call.1} parent=63 // pred_check
          %p6413 = pneg %p311
        $region78: #{tpu_custom_call.1} parent=63 // pred_check_branch
          %6415 = sbr.rel (%p6413) target = $region80
        $region79: #{tpu_custom_call.1} parent=63 // pred_region
          _
        $region80: #{tpu_custom_call.1} parent=63 // pred_fallthru
          _
        // Predicated region
        $region81: #{tpu_custom_call.1} parent=63 // pred_check
          %p6416 = pneg %p311
        $region82: #{tpu_custom_call.1} parent=63 // pred_check_branch
          %6418 = sbr.rel (%p6416) target = $region84
        $region83: #{tpu_custom_call.1} parent=63 // pred_region
          %p6419 = scmp.lt.s32.totalorder %s27, 0
          %s6420 = scalar_select %p6419, %s27, 0
          %s6421 = smul.addr %s6420, 4
          %s6422 = scalar_lea.vmem %s11, %s6421
        $region84: #{tpu_custom_call.1} parent=63 // pred_fallthru
          _
      $region64: #{tpu_custom_call.1} parent=5 // pred_fallthru
        _
      %p6423 = scmp.le.s32.totalorder 2, %s18
      // Predicated region
      $region85: #{tpu_custom_call.1} parent=5 // pred_check
        %p6424 = pneg %p6423
      $region86: #{tpu_custom_call.1} parent=5 // pred_check_branch
        %6426 = sbr.rel (%p6424) target = $region88
      $region87: #{tpu_custom_call.1} parent=5 // pred_region
        %s6427 = ssub.s32 %s18, 2
      $region88: #{tpu_custom_call.1} parent=5 // pred_fallthru
        _
    $region6: #{tpu_custom_call.1} parent=1 // loop_footer
      %s22 = sadd.s32 1, %s18
    $region7: #{tpu_custom_call.1} parent=1 // loop_footer_branch
      %17 = sbr.rel target = $region3
    $region8: #{tpu_custom_call.1} parent=1 // loop_exit
      _
    %6428 = vsyncpa [#allocation4], 1
    %s6429 = scalar_lea.sflag [#allocation4], 1
    %6430 = vsyncpa %s6429, 1

</llo_original>
